<compile_context>
chip_gen: v6e
topology: v6e:2x2x1
jax: 0.10.0
libtpu: 0.0.40
codegen_flags: <defaults>
</compile_context>

<pallas_src>
import functools

import jax
import jax.numpy as jnp
from jax.experimental import pallas as pl
from jax.experimental.pallas import tpu as pltpu

VMEM_SPEC = pl.BlockSpec(memory_space=pltpu.MemorySpace.VMEM)


def _elu(v):
    return jnp.where(v > 0, v, jnp.exp(jnp.minimum(v, 0.0)) - 1.0)


# ---------------------------------------------------------------- fused forward kernel
def _net_kernel(x_ref, adj_ref, ops_ref, wg_ref, am_ref, bg_ref,
                wm_ref, bm_ref, wf_ref, bf_ref, o_ref,
                *, n, fin, head, layer, J):
    x = x_ref[...]                                   # [N, Fin]
    adj = adj_ref[...]                               # [N, N]
    ops = ops_ref[...]                               # [(J+1)*N, N] = [U; psi_0; ...]

    # Hoisted once for all branches/heads: additive bias masking non-edges.
    mask_bias = jnp.where(adj > 0, 0.0, -1e30)       # [N, N]

    def gat_branch(coef, idx):
        # GATConv(coef, edge_index) with `head` heads (Fout = Fin), then ELU + Linear.
        xp = jnp.dot(coef, wg_ref[idx], preferred_element_type=jnp.float32)   # [N, H*Fout]
        # All-head attention logits in one MXU matmul against a block-diagonal
        # [H*Fout, 2H] matrix: cols 0..H-1 -> a_src per head, H..2H-1 -> a_dst.
        sc = jnp.dot(xp, am_ref[idx], preferred_element_type=jnp.float32)     # [N, 2H]
        a_src_t = jnp.transpose(sc[:, :head])        # [H, N] (one transpose per branch)
        a_dst = sc[:, head:]                         # [N, H]
        outs = []
        for h in range(head):                        # unrolled; H is tiny
            e = a_dst[:, h:h + 1] + a_src_t[h:h + 1, :]   # e[i, j]: target i, source j
            e = jnp.where(e > 0, e, 0.2 * e)              # LeakyReLU(0.2)
            e = e + mask_bias                             # mask non-edges
            m = jnp.max(e, axis=1, keepdims=True)
            p = jnp.exp(e - m)
            alpha = p / jnp.sum(p, axis=1, keepdims=True)  # softmax over sources j
            outs.append(jnp.dot(alpha, xp[:, h * fin:(h + 1) * fin],
                                preferred_element_type=jnp.float32))          # [N, Fout]
        g = jnp.concatenate(outs, axis=1) + bg_ref[idx:idx + 1, :]            # [N, H*Fout]
        # TODO(synk): Dropout (attention dropout + MLP dropout) is eval-mode identity.
        g = _elu(g)                                                            # Seq(ELU, Dropout, Linear)
        return (jnp.dot(g, wm_ref[idx], preferred_element_type=jnp.float32)
                + bm_ref[idx:idx + 1, :])                                      # [N, nhid]

    # ---------------- Scatter.forward (diffusion matmuls batched per parent) --------
    r0 = jnp.dot(ops, jnp.abs(x), preferred_element_type=jnp.float32)   # [(J+1)N, Fin]
    y_out = [gat_branch(r0[:n], 0)]                  # low = U @ |x|
    index = 1
    y_next = [r0]                                    # carry ops @ |node| for each node
    for _i in range(layer - 1):
        for _k in range(len(y_next)):
            y_next_new = []                          # reset inside k-loop: fidelity to original code
            rf = y_next.pop(0)                       # ops @ |ftemp|
            y = [rf[(j + 1) * n:(j + 2) * n] for j in range(J)]               # psi_j @ |ftemp|
            yabs = jnp.concatenate([jnp.abs(v) for v in y], axis=1)           # [N, J*Fin]
            ry = jnp.dot(ops, yabs, preferred_element_type=jnp.float32)       # [(J+1)N, J*Fin]
            for j in range(J):
                coef = ry[:n, j * fin:(j + 1) * fin]                          # U @ |y_j|
                y_out.append(gat_branch(coef, index))
                index += 1
                y_next_new.append(ry[:, j * fin:(j + 1) * fin])               # ops @ |y_j|
        y_next = y_next_new

    scat = jnp.concatenate(y_out, axis=1)            # [N, num_gat * nhid]

    # ---------------- Net.mlp (ELU -> Dropout(id) -> Linear) + log_softmax ----------
    scat = _elu(scat)
    logits = jnp.dot(scat, wf_ref[...], preferred_element_type=jnp.float32) + bf_ref[...]
    z = logits - jnp.max(logits, axis=1, keepdims=True)
    o_ref[...] = z - jnp.log(jnp.sum(jnp.exp(z), axis=1, keepdims=True))


# ---------------------------------------------------------------- parameters
def init_params(key, num_features, nhid, num_classes, head, layer):
    num_gat = (3 ** layer - 1) // 2
    fin = num_features
    fout = num_features            # GATConv(in_channels, in_channels)
    gat_params, mlp_params = [], []
    for _ in range(num_gat):
        key, k1, k2, k3, k4, k5, k6 = jax.random.split(key, 7)
        w = 0.1 * jax.random.normal(k1, (fin, head * fout), jnp.float32)
        a_s = 0.1 * jax.random.normal(k2, (head, fout), jnp.float32)
        a_d = 0.1 * jax.random.normal(k3, (head, fout), jnp.float32)
        b = 0.1 * jax.random.normal(k4, (1, head * fout), jnp.float32)
        wm = 0.1 * jax.random.normal(k5, (head * fin, nhid), jnp.float32)
        bm = 0.1 * jax.random.normal(k6, (1, nhid), jnp.float32)
        gat_params.append((w, a_s, a_d, b))
        mlp_params.append((wm, bm))
    key, kf1, kf2 = jax.random.split(key, 3)
    wf = 0.1 * jax.random.normal(kf1, (num_gat * nhid, num_classes), jnp.float32)
    bf = 0.1 * jax.random.normal(kf2, (1, num_classes), jnp.float32)
    return gat_params, mlp_params, (wf, bf)


# ---------------------------------------------------------------- forward (Net.forward)
def net_forward(x, adj, U, psi_list, params, *, head, layer):
    gat_params, mlp_params, (wf, bf) = params
    n, fin = x.shape
    fout = fin
    J = len(psi_list)
    num_gat = len(gat_params)

    # Stacked diffusion operators: [U; psi_0; ...; psi_{J-1}]  -> [(J+1)*N, N].
    ops = jnp.concatenate([U] + list(psi_list), axis=0)

    # Stack per-branch parameters so the kernel indexes a single VMEM-resident array.
    wg = jnp.stack([p[0] for p in gat_params])                     # [G, Fin, H*Fout]
    bg = jnp.stack([p[3][0] for p in gat_params])                  # [G, H*Fout]
    wm = jnp.stack([p[0] for p in mlp_params])                     # [G, H*Fin, nhid]
    bm = jnp.stack([p[1][0] for p in mlp_params])                  # [G, nhid]

    # Block-diagonal attention matrices (built host-side, once):
    # col h <- att_src[h] in rows h*Fout:(h+1)*Fout, col H+h <- att_dst[h].
    def att_mat(a_s, a_d):
        m = jnp.zeros((head * fout, 2 * head), jnp.float32)
        for h in range(head):
            m = m.at[h * fout:(h + 1) * fout, h].set(a_s[h])
            m = m.at[h * fout:(h + 1) * fout, head + h].set(a_d[h])
        return m
    am = jnp.stack([att_mat(p[1], p[2]) for p in gat_params])      # [G, H*Fout, 2H]

    kern = functools.partial(_net_kernel, n=n, fin=fin, head=head, layer=layer, J=J)
    return pl.pallas_call(
        kern,
        out_shape=jax.ShapeDtypeStruct((n, wf.shape[1]), jnp.float32),
        in_specs=[VMEM_SPEC] * 10,
        out_specs=VMEM_SPEC,
    )(x, adj, ops, wg, am, bg, wm, bm, wf, bf)


if __name__ == "__main__":
    N, num_features, nhid, num_classes = 16, 4, 8, 4
    head, layer, J = 2, 3, 3

    key = jax.random.PRNGKey(0)
    kx, ku, kp, kparam = jax.random.split(key, 4)

    x = jax.random.normal(kx, (N, num_features), jnp.float32)

    # deterministic bidirectional ring graph; edge_index = [sources; targets]
    src = jnp.arange(N, dtype=jnp.int32)
    dst = (src + 1) % N
    edge_index = jnp.stack([jnp.concatenate([src, dst]),
                            jnp.concatenate([dst, src])])
    adj = jnp.zeros((N, N), jnp.float32).at[edge_index[1], edge_index[0]].set(1.0)
    adj = jnp.maximum(adj, jnp.eye(N, dtype=jnp.float32))    # add_self_loops

    U = 0.3 * jax.random.normal(ku, (N, N), jnp.float32)
    psi = [0.3 * jax.random.normal(k, (N, N), jnp.float32)
           for k in jax.random.split(kp, J)]

    params = init_params(kparam, num_features, nhid, num_classes, head, layer)

    out = net_forward(x, adj, U, psi, params, head=head, layer=layer)
    out = jax.block_until_ready(out)
    assert out.shape == (N, num_classes)
    assert bool(jnp.all(jnp.isfinite(out)))
    print("KERNEL_OK")
</pallas_src>

<mosaic_0001>
module attributes {stable_mosaic.version = 11 : i64} {
  func.func @_net_kernel(%arg0: memref<16x4xf32, #tpu.memory_space<vmem>>, %arg1: memref<16x16xf32, #tpu.memory_space<vmem>>, %arg2: memref<64x16xf32, #tpu.memory_space<vmem>>, %arg3: memref<13x4x8xf32, #tpu.memory_space<vmem>>, %arg4: memref<13x8x4xf32, #tpu.memory_space<vmem>>, %arg5: memref<13x8xf32, #tpu.memory_space<vmem>>, %arg6: memref<13x8x8xf32, #tpu.memory_space<vmem>>, %arg7: memref<13x8xf32, #tpu.memory_space<vmem>>, %arg8: memref<104x4xf32, #tpu.memory_space<vmem>>, %arg9: memref<1x4xf32, #tpu.memory_space<vmem>>, %arg10: memref<16x4xf32, #tpu.memory_space<vmem>>) attributes {dimension_semantics = [], scalar_prefetch = 0 : i64, scratch_operands = 0 : i64, tpu.core_type = #tpu.core_type<tc>} {
    %c0 = arith.constant 0 : index
    %c0_0 = arith.constant 0 : index
    %0 = vector.load %arg0[%c0, %c0_0] : memref<16x4xf32, #tpu.memory_space<vmem>>, vector<16x4xf32>
    %c0_1 = arith.constant 0 : index
    %c0_2 = arith.constant 0 : index
    %1 = vector.load %arg1[%c0_1, %c0_2] : memref<16x16xf32, #tpu.memory_space<vmem>>, vector<16x16xf32>
    %c0_3 = arith.constant 0 : index
    %c0_4 = arith.constant 0 : index
    %2 = vector.load %arg2[%c0_3, %c0_4] : memref<64x16xf32, #tpu.memory_space<vmem>>, vector<64x16xf32>
    %cst = arith.constant 0.000000e+00 : f32
    %3 = vector.broadcast %cst : f32 to vector<16x16xf32>
    %4 = arith.cmpf ogt, %1, %3 : vector<16x16xf32>
    %cst_5 = arith.constant 0.000000e+00 : f32
    %cst_6 = arith.constant -1.000000e+30 : f32
    %5 = vector.broadcast %cst_5 : f32 to vector<16x16xf32>
    %6 = vector.broadcast %cst_6 : f32 to vector<16x16xf32>
    %7 = arith.select %4, %5, %6 : vector<16x16xi1>, vector<16x16xf32>
    %8 = math.absf %0 : vector<16x4xf32>
    %cst_7 = arith.constant dense<0.000000e+00> : vector<64x4xf32>
    %9 = tpu.matmul %2, %8, %cst_7 {dimension_numbers = #tpu.dot_dimension_numbers<[1], [0], [0], [1], [0, 0, 1, 1], [], []>} : vector<64x16xf32>, vector<16x4xf32>, vector<64x4xf32> -> vector<64x4xf32>
    %10 = vector.extract_strided_slice %9 {offsets = [0, 0], sizes = [16, 4], strides = [1, 1]} : vector<64x4xf32> to vector<16x4xf32>
    %c0_8 = arith.constant 0 : index
    %c0_9 = arith.constant 0 : index
    %c0_10 = arith.constant 0 : index
    %11 = vector.load %arg3[%c0_8, %c0_9, %c0_10] : memref<13x4x8xf32, #tpu.memory_space<vmem>>, vector<1x4x8xf32>
    %12 = vector.shape_cast %11 : vector<1x4x8xf32> to vector<4x8xf32>
    %cst_11 = arith.constant dense<0.000000e+00> : vector<16x8xf32>
    %13 = tpu.matmul %10, %12, %cst_11 {dimension_numbers = #tpu.dot_dimension_numbers<[1], [0], [0], [1], [0, 0, 1, 1], [], []>} : vector<16x4xf32>, vector<4x8xf32>, vector<16x8xf32> -> vector<16x8xf32>
    %c0_12 = arith.constant 0 : index
    %c0_13 = arith.constant 0 : index
    %c0_14 = arith.constant 0 : index
    %14 = vector.load %arg4[%c0_12, %c0_13, %c0_14] : memref<13x8x4xf32, #tpu.memory_space<vmem>>, vector<1x8x4xf32>
    %15 = vector.shape_cast %14 : vector<1x8x4xf32> to vector<8x4xf32>
    %cst_15 = arith.constant dense<0.000000e+00> : vector<16x4xf32>
    %16 = tpu.matmul %13, %15, %cst_15 {dimension_numbers = #tpu.dot_dimension_numbers<[1], [0], [0], [1], [0, 0, 1, 1], [], []>} : vector<16x8xf32>, vector<8x4xf32>, vector<16x4xf32> -> vector<16x4xf32>
    %17 = vector.extract_strided_slice %16 {offsets = [0, 0], sizes = [16, 2], strides = [1, 1]} : vector<16x4xf32> to vector<16x2xf32>
    %18 = tpu.transpose %17, [1, 0] : vector<16x2xf32> -> vector<2x16xf32>
    %19 = vector.extract_strided_slice %16 {offsets = [0, 2], sizes = [16, 2], strides = [1, 1]} : vector<16x4xf32> to vector<16x2xf32>
    %20 = vector.extract_strided_slice %19 {offsets = [0, 0], sizes = [16, 1], strides = [1, 1]} : vector<16x2xf32> to vector<16x1xf32>
    %21 = vector.extract_strided_slice %18 {offsets = [0, 0], sizes = [1, 16], strides = [1, 1]} : vector<2x16xf32> to vector<1x16xf32>
    %22 = vector.broadcast %20 : vector<16x1xf32> to vector<16x16xf32>
    %23 = vector.broadcast %21 : vector<1x16xf32> to vector<16x16xf32>
    %24 = arith.addf %22, %23 : vector<16x16xf32>
    %cst_16 = arith.constant 0.000000e+00 : f32
    %25 = vector.broadcast %cst_16 : f32 to vector<16x16xf32>
    %26 = arith.cmpf ogt, %24, %25 : vector<16x16xf32>
    %cst_17 = arith.constant 2.000000e-01 : f32
    %27 = vector.broadcast %cst_17 : f32 to vector<16x16xf32>
    %28 = arith.mulf %27, %24 : vector<16x16xf32>
    %29 = arith.select %26, %24, %28 : vector<16x16xi1>, vector<16x16xf32>
    %30 = arith.addf %29, %7 : vector<16x16xf32>
    %cst_18 = arith.constant dense<0xFF800000> : vector<16xf32>
    %31 = vector.multi_reduction <maximumf>, %30, %cst_18 [1] : vector<16x16xf32> to vector<16xf32>
    %32 = vector.shape_cast %31 : vector<16xf32> to vector<16x1xf32>
    %33 = vector.broadcast %32 : vector<16x1xf32> to vector<16x16xf32>
    %34 = arith.subf %30, %33 : vector<16x16xf32>
    %35 = math.exp %34 : vector<16x16xf32>
    %cst_19 = arith.constant dense<0.000000e+00> : vector<16xf32>
    %36 = vector.multi_reduction <add>, %35, %cst_19 [1] : vector<16x16xf32> to vector<16xf32>
    %37 = vector.shape_cast %36 : vector<16xf32> to vector<16x1xf32>
    %38 = vector.broadcast %37 : vector<16x1xf32> to vector<16x16xf32>
    %39 = arith.divf %35, %38 : vector<16x16xf32>
    %40 = vector.extract_strided_slice %13 {offsets = [0, 0], sizes = [16, 4], strides = [1, 1]} : vector<16x8xf32> to vector<16x4xf32>
    %cst_20 = arith.constant dense<0.000000e+00> : vector<16x4xf32>
    %41 = tpu.matmul %39, %40, %cst_20 {dimension_numbers = #tpu.dot_dimension_numbers<[1], [0], [0], [1], [0, 0, 1, 1], [], []>} : vector<16x16xf32>, vector<16x4xf32>, vector<16x4xf32> -> vector<16x4xf32>
    %42 = vector.extract_strided_slice %19 {offsets = [0, 1], sizes = [16, 1], strides = [1, 1]} : vector<16x2xf32> to vector<16x1xf32>
    %43 = vector.extract_strided_slice %18 {offsets = [1, 0], sizes = [1, 16], strides = [1, 1]} : vector<2x16xf32> to vector<1x16xf32>
    %44 = vector.broadcast %42 : vector<16x1xf32> to vector<16x16xf32>
    %45 = vector.broadcast %43 : vector<1x16xf32> to vector<16x16xf32>
    %46 = arith.addf %44, %45 : vector<16x16xf32>
    %cst_21 = arith.constant 0.000000e+00 : f32
    %47 = vector.broadcast %cst_21 : f32 to vector<16x16xf32>
    %48 = arith.cmpf ogt, %46, %47 : vector<16x16xf32>
    %cst_22 = arith.constant 2.000000e-01 : f32
    %49 = vector.broadcast %cst_22 : f32 to vector<16x16xf32>
    %50 = arith.mulf %49, %46 : vector<16x16xf32>
    %51 = arith.select %48, %46, %50 : vector<16x16xi1>, vector<16x16xf32>
    %52 = arith.addf %51, %7 : vector<16x16xf32>
    %cst_23 = arith.constant dense<0xFF800000> : vector<16xf32>
    %53 = vector.multi_reduction <maximumf>, %52, %cst_23 [1] : vector<16x16xf32> to vector<16xf32>
    %54 = vector.shape_cast %53 : vector<16xf32> to vector<16x1xf32>
    %55 = vector.broadcast %54 : vector<16x1xf32> to vector<16x16xf32>
    %56 = arith.subf %52, %55 : vector<16x16xf32>
    %57 = math.exp %56 : vector<16x16xf32>
    %cst_24 = arith.constant dense<0.000000e+00> : vector<16xf32>
    %58 = vector.multi_reduction <add>, %57, %cst_24 [1] : vector<16x16xf32> to vector<16xf32>
    %59 = vector.shape_cast %58 : vector<16xf32> to vector<16x1xf32>
    %60 = vector.broadcast %59 : vector<16x1xf32> to vector<16x16xf32>
    %61 = arith.divf %57, %60 : vector<16x16xf32>
    %62 = vector.extract_strided_slice %13 {offsets = [0, 4], sizes = [16, 4], strides = [1, 1]} : vector<16x8xf32> to vector<16x4xf32>
    %cst_25 = arith.constant dense<0.000000e+00> : vector<16x4xf32>
    %63 = tpu.matmul %61, %62, %cst_25 {dimension_numbers = #tpu.dot_dimension_numbers<[1], [0], [0], [1], [0, 0, 1, 1], [], []>} : vector<16x16xf32>, vector<16x4xf32>, vector<16x4xf32> -> vector<16x4xf32>
    %64 = tpu.concatenate %41, %63 in 1 : vector<16x4xf32>, vector<16x4xf32> -> vector<16x8xf32>
    %c0_26 = arith.constant 0 : index
    %c0_27 = arith.constant 0 : index
    %65 = vector.load %arg5[%c0_26, %c0_27] : memref<13x8xf32, #tpu.memory_space<vmem>>, vector<1x8xf32>
    %66 = vector.broadcast %65 : vector<1x8xf32> to vector<16x8xf32>
    %67 = arith.addf %64, %66 : vector<16x8xf32>
    %cst_28 = arith.constant 0.000000e+00 : f32
    %68 = vector.broadcast %cst_28 : f32 to vector<16x8xf32>
    %69 = arith.cmpf ogt, %67, %68 : vector<16x8xf32>
    %cst_29 = arith.constant 0.000000e+00 : f32
    %70 = vector.broadcast %cst_29 : f32 to vector<16x8xf32>
    %71 = arith.minimumf %67, %70 : vector<16x8xf32>
    %72 = math.exp %71 : vector<16x8xf32>
    %cst_30 = arith.constant 1.000000e+00 : f32
    %73 = vector.broadcast %cst_30 : f32 to vector<16x8xf32>
    %74 = arith.subf %72, %73 : vector<16x8xf32>
    %75 = arith.select %69, %67, %74 : vector<16x8xi1>, vector<16x8xf32>
    %c0_31 = arith.constant 0 : index
    %c0_32 = arith.constant 0 : index
    %c0_33 = arith.constant 0 : index
    %76 = vector.load %arg6[%c0_31, %c0_32, %c0_33] : memref<13x8x8xf32, #tpu.memory_space<vmem>>, vector<1x8x8xf32>
    %77 = vector.shape_cast %76 : vector<1x8x8xf32> to vector<8x8xf32>
    %cst_34 = arith.constant dense<0.000000e+00> : vector<16x8xf32>
    %78 = tpu.matmul %75, %77, %cst_34 {dimension_numbers = #tpu.dot_dimension_numbers<[1], [0], [0], [1], [0, 0, 1, 1], [], []>} : vector<16x8xf32>, vector<8x8xf32>, vector<16x8xf32> -> vector<16x8xf32>
    %c0_35 = arith.constant 0 : index
    %c0_36 = arith.constant 0 : index
    %79 = vector.load %arg7[%c0_35, %c0_36] : memref<13x8xf32, #tpu.memory_space<vmem>>, vector<1x8xf32>
    %80 = vector.broadcast %79 : vector<1x8xf32> to vector<16x8xf32>
    %81 = arith.addf %78, %80 : vector<16x8xf32>
    %82 = vector.extract_strided_slice %9 {offsets = [16, 0], sizes = [16, 4], strides = [1, 1]} : vector<64x4xf32> to vector<16x4xf32>
    %83 = vector.extract_strided_slice %9 {offsets = [32, 0], sizes = [16, 4], strides = [1, 1]} : vector<64x4xf32> to vector<16x4xf32>
    %84 = vector.extract_strided_slice %9 {offsets = [48, 0], sizes = [16, 4], strides = [1, 1]} : vector<64x4xf32> to vector<16x4xf32>
    %85 = math.absf %82 : vector<16x4xf32>
    %86 = math.absf %83 : vector<16x4xf32>
    %87 = math.absf %84 : vector<16x4xf32>
    %88 = tpu.concatenate %85, %86, %87 in 1 : vector<16x4xf32>, vector<16x4xf32>, vector<16x4xf32> -> vector<16x12xf32>
    %cst_37 = arith.constant dense<0.000000e+00> : vector<64x12xf32>
    %89 = tpu.matmul %2, %88, %cst_37 {dimension_numbers = #tpu.dot_dimension_numbers<[1], [0], [0], [1], [0, 0, 1, 1], [], []>} : vector<64x16xf32>, vector<16x12xf32>, vector<64x12xf32> -> vector<64x12xf32>
    %90 = vector.extract_strided_slice %89 {offsets = [0, 0], sizes = [16, 4], strides = [1, 1]} : vector<64x12xf32> to vector<16x4xf32>
    %c1 = arith.constant 1 : index
    %c0_38 = arith.constant 0 : index
    %c0_39 = arith.constant 0 : index
    %91 = vector.load %arg3[%c1, %c0_38, %c0_39] : memref<13x4x8xf32, #tpu.memory_space<vmem>>, vector<1x4x8xf32>
    %92 = vector.shape_cast %91 : vector<1x4x8xf32> to vector<4x8xf32>
    %cst_40 = arith.constant dense<0.000000e+00> : vector<16x8xf32>
    %93 = tpu.matmul %90, %92, %cst_40 {dimension_numbers = #tpu.dot_dimension_numbers<[1], [0], [0], [1], [0, 0, 1, 1], [], []>} : vector<16x4xf32>, vector<4x8xf32>, vector<16x8xf32> -> vector<16x8xf32>
    %c1_41 = arith.constant 1 : index
    %c0_42 = arith.constant 0 : index
    %c0_43 = arith.constant 0 : index
    %94 = vector.load %arg4[%c1_41, %c0_42, %c0_43] : memref<13x8x4xf32, #tpu.memory_space<vmem>>, vector<1x8x4xf32>
    %95 = vector.shape_cast %94 : vector<1x8x4xf32> to vector<8x4xf32>
    %cst_44 = arith.constant dense<0.000000e+00> : vector<16x4xf32>
    %96 = tpu.matmul %93, %95, %cst_44 {dimension_numbers = #tpu.dot_dimension_numbers<[1], [0], [0], [1], [0, 0, 1, 1], [], []>} : vector<16x8xf32>, vector<8x4xf32>, vector<16x4xf32> -> vector<16x4xf32>
    %97 = vector.extract_strided_slice %96 {offsets = [0, 0], sizes = [16, 2], strides = [1, 1]} : vector<16x4xf32> to vector<16x2xf32>
    %98 = tpu.transpose %97, [1, 0] : vector<16x2xf32> -> vector<2x16xf32>
    %99 = vector.extract_strided_slice %96 {offsets = [0, 2], sizes = [16, 2], strides = [1, 1]} : vector<16x4xf32> to vector<16x2xf32>
    %100 = vector.extract_strided_slice %99 {offsets = [0, 0], sizes = [16, 1], strides = [1, 1]} : vector<16x2xf32> to vector<16x1xf32>
    %101 = vector.extract_strided_slice %98 {offsets = [0, 0], sizes = [1, 16], strides = [1, 1]} : vector<2x16xf32> to vector<1x16xf32>
    %102 = vector.broadcast %100 : vector<16x1xf32> to vector<16x16xf32>
    %103 = vector.broadcast %101 : vector<1x16xf32> to vector<16x16xf32>
    %104 = arith.addf %102, %103 : vector<16x16xf32>
    %cst_45 = arith.constant 0.000000e+00 : f32
    %105 = vector.broadcast %cst_45 : f32 to vector<16x16xf32>
    %106 = arith.cmpf ogt, %104, %105 : vector<16x16xf32>
    %cst_46 = arith.constant 2.000000e-01 : f32
    %107 = vector.broadcast %cst_46 : f32 to vector<16x16xf32>
    %108 = arith.mulf %107, %104 : vector<16x16xf32>
    %109 = arith.select %106, %104, %108 : vector<16x16xi1>, vector<16x16xf32>
    %110 = arith.addf %109, %7 : vector<16x16xf32>
    %cst_47 = arith.constant dense<0xFF800000> : vector<16xf32>
    %111 = vector.multi_reduction <maximumf>, %110, %cst_47 [1] : vector<16x16xf32> to vector<16xf32>
    %112 = vector.shape_cast %111 : vector<16xf32> to vector<16x1xf32>
    %113 = vector.broadcast %112 : vector<16x1xf32> to vector<16x16xf32>
    %114 = arith.subf %110, %113 : vector<16x16xf32>
    %115 = math.exp %114 : vector<16x16xf32>
    %cst_48 = arith.constant dense<0.000000e+00> : vector<16xf32>
    %116 = vector.multi_reduction <add>, %115, %cst_48 [1] : vector<16x16xf32> to vector<16xf32>
    %117 = vector.shape_cast %116 : vector<16xf32> to vector<16x1xf32>
    %118 = vector.broadcast %117 : vector<16x1xf32> to vector<16x16xf32>
    %119 = arith.divf %115, %118 : vector<16x16xf32>
    %120 = vector.extract_strided_slice %93 {offsets = [0, 0], sizes = [16, 4], strides = [1, 1]} : vector<16x8xf32> to vector<16x4xf32>
    %cst_49 = arith.constant dense<0.000000e+00> : vector<16x4xf32>
    %121 = tpu.matmul %119, %120, %cst_49 {dimension_numbers = #tpu.dot_dimension_numbers<[1], [0], [0], [1], [0, 0, 1, 1], [], []>} : vector<16x16xf32>, vector<16x4xf32>, vector<16x4xf32> -> vector<16x4xf32>
    %122 = vector.extract_strided_slice %99 {offsets = [0, 1], sizes = [16, 1], strides = [1, 1]} : vector<16x2xf32> to vector<16x1xf32>
    %123 = vector.extract_strided_slice %98 {offsets = [1, 0], sizes = [1, 16], strides = [1, 1]} : vector<2x16xf32> to vector<1x16xf32>
    %124 = vector.broadcast %122 : vector<16x1xf32> to vector<16x16xf32>
    %125 = vector.broadcast %123 : vector<1x16xf32> to vector<16x16xf32>
    %126 = arith.addf %124, %125 : vector<16x16xf32>
    %cst_50 = arith.constant 0.000000e+00 : f32
    %127 = vector.broadcast %cst_50 : f32 to vector<16x16xf32>
    %128 = arith.cmpf ogt, %126, %127 : vector<16x16xf32>
    %cst_51 = arith.constant 2.000000e-01 : f32
    %129 = vector.broadcast %cst_51 : f32 to vector<16x16xf32>
    %130 = arith.mulf %129, %126 : vector<16x16xf32>
    %131 = arith.select %128, %126, %130 : vector<16x16xi1>, vector<16x16xf32>
    %132 = arith.addf %131, %7 : vector<16x16xf32>
    %cst_52 = arith.constant dense<0xFF800000> : vector<16xf32>
    %133 = vector.multi_reduction <maximumf>, %132, %cst_52 [1] : vector<16x16xf32> to vector<16xf32>
    %134 = vector.shape_cast %133 : vector<16xf32> to vector<16x1xf32>
    %135 = vector.broadcast %134 : vector<16x1xf32> to vector<16x16xf32>
    %136 = arith.subf %132, %135 : vector<16x16xf32>
    %137 = math.exp %136 : vector<16x16xf32>
    %cst_53 = arith.constant dense<0.000000e+00> : vector<16xf32>
    %138 = vector.multi_reduction <add>, %137, %cst_53 [1] : vector<16x16xf32> to vector<16xf32>
    %139 = vector.shape_cast %138 : vector<16xf32> to vector<16x1xf32>
    %140 = vector.broadcast %139 : vector<16x1xf32> to vector<16x16xf32>
    %141 = arith.divf %137, %140 : vector<16x16xf32>
    %142 = vector.extract_strided_slice %93 {offsets = [0, 4], sizes = [16, 4], strides = [1, 1]} : vector<16x8xf32> to vector<16x4xf32>
    %cst_54 = arith.constant dense<0.000000e+00> : vector<16x4xf32>
    %143 = tpu.matmul %141, %142, %cst_54 {dimension_numbers = #tpu.dot_dimension_numbers<[1], [0], [0], [1], [0, 0, 1, 1], [], []>} : vector<16x16xf32>, vector<16x4xf32>, vector<16x4xf32> -> vector<16x4xf32>
    %144 = tpu.concatenate %121, %143 in 1 : vector<16x4xf32>, vector<16x4xf32> -> vector<16x8xf32>
    %c1_55 = arith.constant 1 : index
    %c0_56 = arith.constant 0 : index
    %145 = vector.load %arg5[%c1_55, %c0_56] : memref<13x8xf32, #tpu.memory_space<vmem>>, vector<1x8xf32>
    %146 = vector.broadcast %145 : vector<1x8xf32> to vector<16x8xf32>
    %147 = arith.addf %144, %146 : vector<16x8xf32>
    %cst_57 = arith.constant 0.000000e+00 : f32
    %148 = vector.broadcast %cst_57 : f32 to vector<16x8xf32>
    %149 = arith.cmpf ogt, %147, %148 : vector<16x8xf32>
    %cst_58 = arith.constant 0.000000e+00 : f32
    %150 = vector.broadcast %cst_58 : f32 to vector<16x8xf32>
    %151 = arith.minimumf %147, %150 : vector<16x8xf32>
    %152 = math.exp %151 : vector<16x8xf32>
    %cst_59 = arith.constant 1.000000e+00 : f32
    %153 = vector.broadcast %cst_59 : f32 to vector<16x8xf32>
    %154 = arith.subf %152, %153 : vector<16x8xf32>
    %155 = arith.select %149, %147, %154 : vector<16x8xi1>, vector<16x8xf32>
    %c1_60 = arith.constant 1 : index
    %c0_61 = arith.constant 0 : index
    %c0_62 = arith.constant 0 : index
    %156 = vector.load %arg6[%c1_60, %c0_61, %c0_62] : memref<13x8x8xf32, #tpu.memory_space<vmem>>, vector<1x8x8xf32>
    %157 = vector.shape_cast %156 : vector<1x8x8xf32> to vector<8x8xf32>
    %cst_63 = arith.constant dense<0.000000e+00> : vector<16x8xf32>
    %158 = tpu.matmul %155, %157, %cst_63 {dimension_numbers = #tpu.dot_dimension_numbers<[1], [0], [0], [1], [0, 0, 1, 1], [], []>} : vector<16x8xf32>, vector<8x8xf32>, vector<16x8xf32> -> vector<16x8xf32>
    %c1_64 = arith.constant 1 : index
    %c0_65 = arith.constant 0 : index
    %159 = vector.load %arg7[%c1_64, %c0_65] : memref<13x8xf32, #tpu.memory_space<vmem>>, vector<1x8xf32>
    %160 = vector.broadcast %159 : vector<1x8xf32> to vector<16x8xf32>
    %161 = arith.addf %158, %160 : vector<16x8xf32>
    %162 = vector.extract_strided_slice %89 {offsets = [0, 0], sizes = [64, 4], strides = [1, 1]} : vector<64x12xf32> to vector<64x4xf32>
    %163 = vector.extract_strided_slice %89 {offsets = [0, 4], sizes = [16, 4], strides = [1, 1]} : vector<64x12xf32> to vector<16x4xf32>
    %c2 = arith.constant 2 : index
    %c0_66 = arith.constant 0 : index
    %c0_67 = arith.constant 0 : index
    %164 = vector.load %arg3[%c2, %c0_66, %c0_67] : memref<13x4x8xf32, #tpu.memory_space<vmem>>, vector<1x4x8xf32>
    %165 = vector.shape_cast %164 : vector<1x4x8xf32> to vector<4x8xf32>
    %cst_68 = arith.constant dense<0.000000e+00> : vector<16x8xf32>
    %166 = tpu.matmul %163, %165, %cst_68 {dimension_numbers = #tpu.dot_dimension_numbers<[1], [0], [0], [1], [0, 0, 1, 1], [], []>} : vector<16x4xf32>, vector<4x8xf32>, vector<16x8xf32> -> vector<16x8xf32>
    %c2_69 = arith.constant 2 : index
    %c0_70 = arith.constant 0 : index
    %c0_71 = arith.constant 0 : index
    %167 = vector.load %arg4[%c2_69, %c0_70, %c0_71] : memref<13x8x4xf32, #tpu.memory_space<vmem>>, vector<1x8x4xf32>
    %168 = vector.shape_cast %167 : vector<1x8x4xf32> to vector<8x4xf32>
    %cst_72 = arith.constant dense<0.000000e+00> : vector<16x4xf32>
    %169 = tpu.matmul %166, %168, %cst_72 {dimension_numbers = #tpu.dot_dimension_numbers<[1], [0], [0], [1], [0, 0, 1, 1], [], []>} : vector<16x8xf32>, vector<8x4xf32>, vector<16x4xf32> -> vector<16x4xf32>
    %170 = vector.extract_strided_slice %169 {offsets = [0, 0], sizes = [16, 2], strides = [1, 1]} : vector<16x4xf32> to vector<16x2xf32>
    %171 = tpu.transpose %170, [1, 0] : vector<16x2xf32> -> vector<2x16xf32>
    %172 = vector.extract_strided_slice %169 {offsets = [0, 2], sizes = [16, 2], strides = [1, 1]} : vector<16x4xf32> to vector<16x2xf32>
    %173 = vector.extract_strided_slice %172 {offsets = [0, 0], sizes = [16, 1], strides = [1, 1]} : vector<16x2xf32> to vector<16x1xf32>
    %174 = vector.extract_strided_slice %171 {offsets = [0, 0], sizes = [1, 16], strides = [1, 1]} : vector<2x16xf32> to vector<1x16xf32>
    %175 = vector.broadcast %173 : vector<16x1xf32> to vector<16x16xf32>
    %176 = vector.broadcast %174 : vector<1x16xf32> to vector<16x16xf32>
    %177 = arith.addf %175, %176 : vector<16x16xf32>
    %cst_73 = arith.constant 0.000000e+00 : f32
    %178 = vector.broadcast %cst_73 : f32 to vector<16x16xf32>
    %179 = arith.cmpf ogt, %177, %178 : vector<16x16xf32>
    %cst_74 = arith.constant 2.000000e-01 : f32
    %180 = vector.broadcast %cst_74 : f32 to vector<16x16xf32>
    %181 = arith.mulf %180, %177 : vector<16x16xf32>
    %182 = arith.select %179, %177, %181 : vector<16x16xi1>, vector<16x16xf32>
    %183 = arith.addf %182, %7 : vector<16x16xf32>
    %cst_75 = arith.constant dense<0xFF800000> : vector<16xf32>
    %184 = vector.multi_reduction <maximumf>, %183, %cst_75 [1] : vector<16x16xf32> to vector<16xf32>
    %185 = vector.shape_cast %184 : vector<16xf32> to vector<16x1xf32>
    %186 = vector.broadcast %185 : vector<16x1xf32> to vector<16x16xf32>
    %187 = arith.subf %183, %186 : vector<16x16xf32>
    %188 = math.exp %187 : vector<16x16xf32>
    %cst_76 = arith.constant dense<0.000000e+00> : vector<16xf32>
    %189 = vector.multi_reduction <add>, %188, %cst_76 [1] : vector<16x16xf32> to vector<16xf32>
    %190 = vector.shape_cast %189 : vector<16xf32> to vector<16x1xf32>
    %191 = vector.broadcast %190 : vector<16x1xf32> to vector<16x16xf32>
    %192 = arith.divf %188, %191 : vector<16x16xf32>
    %193 = vector.extract_strided_slice %166 {offsets = [0, 0], sizes = [16, 4], strides = [1, 1]} : vector<16x8xf32> to vector<16x4xf32>
    %cst_77 = arith.constant dense<0.000000e+00> : vector<16x4xf32>
    %194 = tpu.matmul %192, %193, %cst_77 {dimension_numbers = #tpu.dot_dimension_numbers<[1], [0], [0], [1], [0, 0, 1, 1], [], []>} : vector<16x16xf32>, vector<16x4xf32>, vector<16x4xf32> -> vector<16x4xf32>
    %195 = vector.extract_strided_slice %172 {offsets = [0, 1], sizes = [16, 1], strides = [1, 1]} : vector<16x2xf32> to vector<16x1xf32>
    %196 = vector.extract_strided_slice %171 {offsets = [1, 0], sizes = [1, 16], strides = [1, 1]} : vector<2x16xf32> to vector<1x16xf32>
    %197 = vector.broadcast %195 : vector<16x1xf32> to vector<16x16xf32>
    %198 = vector.broadcast %196 : vector<1x16xf32> to vector<16x16xf32>
    %199 = arith.addf %197, %198 : vector<16x16xf32>
    %cst_78 = arith.constant 0.000000e+00 : f32
    %200 = vector.broadcast %cst_78 : f32 to vector<16x16xf32>
    %201 = arith.cmpf ogt, %199, %200 : vector<16x16xf32>
    %cst_79 = arith.constant 2.000000e-01 : f32
    %202 = vector.broadcast %cst_79 : f32 to vector<16x16xf32>
    %203 = arith.mulf %202, %199 : vector<16x16xf32>
    %204 = arith.select %201, %199, %203 : vector<16x16xi1>, vector<16x16xf32>
    %205 = arith.addf %204, %7 : vector<16x16xf32>
    %cst_80 = arith.constant dense<0xFF800000> : vector<16xf32>
    %206 = vector.multi_reduction <maximumf>, %205, %cst_80 [1] : vector<16x16xf32> to vector<16xf32>
    %207 = vector.shape_cast %206 : vector<16xf32> to vector<16x1xf32>
    %208 = vector.broadcast %207 : vector<16x1xf32> to vector<16x16xf32>
    %209 = arith.subf %205, %208 : vector<16x16xf32>
    %210 = math.exp %209 : vector<16x16xf32>
    %cst_81 = arith.constant dense<0.000000e+00> : vector<16xf32>
    %211 = vector.multi_reduction <add>, %210, %cst_81 [1] : vector<16x16xf32> to vector<16xf32>
    %212 = vector.shape_cast %211 : vector<16xf32> to vector<16x1xf32>
    %213 = vector.broadcast %212 : vector<16x1xf32> to vector<16x16xf32>
    %214 = arith.divf %210, %213 : vector<16x16xf32>
    %215 = vector.extract_strided_slice %166 {offsets = [0, 4], sizes = [16, 4], strides = [1, 1]} : vector<16x8xf32> to vector<16x4xf32>
    %cst_82 = arith.constant dense<0.000000e+00> : vector<16x4xf32>
    %216 = tpu.matmul %214, %215, %cst_82 {dimension_numbers = #tpu.dot_dimension_numbers<[1], [0], [0], [1], [0, 0, 1, 1], [], []>} : vector<16x16xf32>, vector<16x4xf32>, vector<16x4xf32> -> vector<16x4xf32>
    %217 = tpu.concatenate %194, %216 in 1 : vector<16x4xf32>, vector<16x4xf32> -> vector<16x8xf32>
    %c2_83 = arith.constant 2 : index
    %c0_84 = arith.constant 0 : index
    %218 = vector.load %arg5[%c2_83, %c0_84] : memref<13x8xf32, #tpu.memory_space<vmem>>, vector<1x8xf32>
    %219 = vector.broadcast %218 : vector<1x8xf32> to vector<16x8xf32>
    %220 = arith.addf %217, %219 : vector<16x8xf32>
    %cst_85 = arith.constant 0.000000e+00 : f32
    %221 = vector.broadcast %cst_85 : f32 to vector<16x8xf32>
    %222 = arith.cmpf ogt, %220, %221 : vector<16x8xf32>
    %cst_86 = arith.constant 0.000000e+00 : f32
    %223 = vector.broadcast %cst_86 : f32 to vector<16x8xf32>
    %224 = arith.minimumf %220, %223 : vector<16x8xf32>
    %225 = math.exp %224 : vector<16x8xf32>
    %cst_87 = arith.constant 1.000000e+00 : f32
    %226 = vector.broadcast %cst_87 : f32 to vector<16x8xf32>
    %227 = arith.subf %225, %226 : vector<16x8xf32>
    %228 = arith.select %222, %220, %227 : vector<16x8xi1>, vector<16x8xf32>
    %c2_88 = arith.constant 2 : index
    %c0_89 = arith.constant 0 : index
    %c0_90 = arith.constant 0 : index
    %229 = vector.load %arg6[%c2_88, %c0_89, %c0_90] : memref<13x8x8xf32, #tpu.memory_space<vmem>>, vector<1x8x8xf32>
    %230 = vector.shape_cast %229 : vector<1x8x8xf32> to vector<8x8xf32>
    %cst_91 = arith.constant dense<0.000000e+00> : vector<16x8xf32>
    %231 = tpu.matmul %228, %230, %cst_91 {dimension_numbers = #tpu.dot_dimension_numbers<[1], [0], [0], [1], [0, 0, 1, 1], [], []>} : vector<16x8xf32>, vector<8x8xf32>, vector<16x8xf32> -> vector<16x8xf32>
    %c2_92 = arith.constant 2 : index
    %c0_93 = arith.constant 0 : index
    %232 = vector.load %arg7[%c2_92, %c0_93] : memref<13x8xf32, #tpu.memory_space<vmem>>, vector<1x8xf32>
    %233 = vector.broadcast %232 : vector<1x8xf32> to vector<16x8xf32>
    %234 = arith.addf %231, %233 : vector<16x8xf32>
    %235 = vector.extract_strided_slice %89 {offsets = [0, 4], sizes = [64, 4], strides = [1, 1]} : vector<64x12xf32> to vector<64x4xf32>
    %236 = vector.extract_strided_slice %89 {offsets = [0, 8], sizes = [16, 4], strides = [1, 1]} : vector<64x12xf32> to vector<16x4xf32>
    %c3 = arith.constant 3 : index
    %c0_94 = arith.constant 0 : index
    %c0_95 = arith.constant 0 : index
    %237 = vector.load %arg3[%c3, %c0_94, %c0_95] : memref<13x4x8xf32, #tpu.memory_space<vmem>>, vector<1x4x8xf32>
    %238 = vector.shape_cast %237 : vector<1x4x8xf32> to vector<4x8xf32>
    %cst_96 = arith.constant dense<0.000000e+00> : vector<16x8xf32>
    %239 = tpu.matmul %236, %238, %cst_96 {dimension_numbers = #tpu.dot_dimension_numbers<[1], [0], [0], [1], [0, 0, 1, 1], [], []>} : vector<16x4xf32>, vector<4x8xf32>, vector<16x8xf32> -> vector<16x8xf32>
    %c3_97 = arith.constant 3 : index
    %c0_98 = arith.constant 0 : index
    %c0_99 = arith.constant 0 : index
    %240 = vector.load %arg4[%c3_97, %c0_98, %c0_99] : memref<13x8x4xf32, #tpu.memory_space<vmem>>, vector<1x8x4xf32>
    %241 = vector.shape_cast %240 : vector<1x8x4xf32> to vector<8x4xf32>
    %cst_100 = arith.constant dense<0.000000e+00> : vector<16x4xf32>
    %242 = tpu.matmul %239, %241, %cst_100 {dimension_numbers = #tpu.dot_dimension_numbers<[1], [0], [0], [1], [0, 0, 1, 1], [], []>} : vector<16x8xf32>, vector<8x4xf32>, vector<16x4xf32> -> vector<16x4xf32>
    %243 = vector.extract_strided_slice %242 {offsets = [0, 0], sizes = [16, 2], strides = [1, 1]} : vector<16x4xf32> to vector<16x2xf32>
    %244 = tpu.transpose %243, [1, 0] : vector<16x2xf32> -> vector<2x16xf32>
    %245 = vector.extract_strided_slice %242 {offsets = [0, 2], sizes = [16, 2], strides = [1, 1]} : vector<16x4xf32> to vector<16x2xf32>
    %246 = vector.extract_strided_slice %245 {offsets = [0, 0], sizes = [16, 1], strides = [1, 1]} : vector<16x2xf32> to vector<16x1xf32>
    %247 = vector.extract_strided_slice %244 {offsets = [0, 0], sizes = [1, 16], strides = [1, 1]} : vector<2x16xf32> to vector<1x16xf32>
    %248 = vector.broadcast %246 : vector<16x1xf32> to vector<16x16xf32>
    %249 = vector.broadcast %247 : vector<1x16xf32> to vector<16x16xf32>
    %250 = arith.addf %248, %249 : vector<16x16xf32>
    %cst_101 = arith.constant 0.000000e+00 : f32
    %251 = vector.broadcast %cst_101 : f32 to vector<16x16xf32>
    %252 = arith.cmpf ogt, %250, %251 : vector<16x16xf32>
    %cst_102 = arith.constant 2.000000e-01 : f32
    %253 = vector.broadcast %cst_102 : f32 to vector<16x16xf32>
    %254 = arith.mulf %253, %250 : vector<16x16xf32>
    %255 = arith.select %252, %250, %254 : vector<16x16xi1>, vector<16x16xf32>
    %256 = arith.addf %255, %7 : vector<16x16xf32>
    %cst_103 = arith.constant dense<0xFF800000> : vector<16xf32>
    %257 = vector.multi_reduction <maximumf>, %256, %cst_103 [1] : vector<16x16xf32> to vector<16xf32>
    %258 = vector.shape_cast %257 : vector<16xf32> to vector<16x1xf32>
    %259 = vector.broadcast %258 : vector<16x1xf32> to vector<16x16xf32>
    %260 = arith.subf %256, %259 : vector<16x16xf32>
    %261 = math.exp %260 : vector<16x16xf32>
    %cst_104 = arith.constant dense<0.000000e+00> : vector<16xf32>
    %262 = vector.multi_reduction <add>, %261, %cst_104 [1] : vector<16x16xf32> to vector<16xf32>
    %263 = vector.shape_cast %262 : vector<16xf32> to vector<16x1xf32>
    %264 = vector.broadcast %263 : vector<16x1xf32> to vector<16x16xf32>
    %265 = arith.divf %261, %264 : vector<16x16xf32>
    %266 = vector.extract_strided_slice %239 {offsets = [0, 0], sizes = [16, 4], strides = [1, 1]} : vector<16x8xf32> to vector<16x4xf32>
    %cst_105 = arith.constant dense<0.000000e+00> : vector<16x4xf32>
    %267 = tpu.matmul %265, %266, %cst_105 {dimension_numbers = #tpu.dot_dimension_numbers<[1], [0], [0], [1], [0, 0, 1, 1], [], []>} : vector<16x16xf32>, vector<16x4xf32>, vector<16x4xf32> -> vector<16x4xf32>
    %268 = vector.extract_strided_slice %245 {offsets = [0, 1], sizes = [16, 1], strides = [1, 1]} : vector<16x2xf32> to vector<16x1xf32>
    %269 = vector.extract_strided_slice %244 {offsets = [1, 0], sizes = [1, 16], strides = [1, 1]} : vector<2x16xf32> to vector<1x16xf32>
    %270 = vector.broadcast %268 : vector<16x1xf32> to vector<16x16xf32>
    %271 = vector.broadcast %269 : vector<1x16xf32> to vector<16x16xf32>
    %272 = arith.addf %270, %271 : vector<16x16xf32>
    %cst_106 = arith.constant 0.000000e+00 : f32
    %273 = vector.broadcast %cst_106 : f32 to vector<16x16xf32>
    %274 = arith.cmpf ogt, %272, %273 : vector<16x16xf32>
    %cst_107 = arith.constant 2.000000e-01 : f32
    %275 = vector.broadcast %cst_107 : f32 to vector<16x16xf32>
    %276 = arith.mulf %275, %272 : vector<16x16xf32>
    %277 = arith.select %274, %272, %276 : vector<16x16xi1>, vector<16x16xf32>
    %278 = arith.addf %277, %7 : vector<16x16xf32>
    %cst_108 = arith.constant dense<0xFF800000> : vector<16xf32>
    %279 = vector.multi_reduction <maximumf>, %278, %cst_108 [1] : vector<16x16xf32> to vector<16xf32>
    %280 = vector.shape_cast %279 : vector<16xf32> to vector<16x1xf32>
    %281 = vector.broadcast %280 : vector<16x1xf32> to vector<16x16xf32>
    %282 = arith.subf %278, %281 : vector<16x16xf32>
    %283 = math.exp %282 : vector<16x16xf32>
    %cst_109 = arith.constant dense<0.000000e+00> : vector<16xf32>
    %284 = vector.multi_reduction <add>, %283, %cst_109 [1] : vector<16x16xf32> to vector<16xf32>
    %285 = vector.shape_cast %284 : vector<16xf32> to vector<16x1xf32>
    %286 = vector.broadcast %285 : vector<16x1xf32> to vector<16x16xf32>
    %287 = arith.divf %283, %286 : vector<16x16xf32>
    %288 = vector.extract_strided_slice %239 {offsets = [0, 4], sizes = [16, 4], strides = [1, 1]} : vector<16x8xf32> to vector<16x4xf32>
    %cst_110 = arith.constant dense<0.000000e+00> : vector<16x4xf32>
    %289 = tpu.matmul %287, %288, %cst_110 {dimension_numbers = #tpu.dot_dimension_numbers<[1], [0], [0], [1], [0, 0, 1, 1], [], []>} : vector<16x16xf32>, vector<16x4xf32>, vector<16x4xf32> -> vector<16x4xf32>
    %290 = tpu.concatenate %267, %289 in 1 : vector<16x4xf32>, vector<16x4xf32> -> vector<16x8xf32>
    %c3_111 = arith.constant 3 : index
    %c0_112 = arith.constant 0 : index
    %291 = vector.load %arg5[%c3_111, %c0_112] : memref<13x8xf32, #tpu.memory_space<vmem>>, vector<1x8xf32>
    %292 = vector.broadcast %291 : vector<1x8xf32> to vector<16x8xf32>
    %293 = arith.addf %290, %292 : vector<16x8xf32>
    %cst_113 = arith.constant 0.000000e+00 : f32
    %294 = vector.broadcast %cst_113 : f32 to vector<16x8xf32>
    %295 = arith.cmpf ogt, %293, %294 : vector<16x8xf32>
    %cst_114 = arith.constant 0.000000e+00 : f32
    %296 = vector.broadcast %cst_114 : f32 to vector<16x8xf32>
    %297 = arith.minimumf %293, %296 : vector<16x8xf32>
    %298 = math.exp %297 : vector<16x8xf32>
    %cst_115 = arith.constant 1.000000e+00 : f32
    %299 = vector.broadcast %cst_115 : f32 to vector<16x8xf32>
    %300 = arith.subf %298, %299 : vector<16x8xf32>
    %301 = arith.select %295, %293, %300 : vector<16x8xi1>, vector<16x8xf32>
    %c3_116 = arith.constant 3 : index
    %c0_117 = arith.constant 0 : index
    %c0_118 = arith.constant 0 : index
    %302 = vector.load %arg6[%c3_116, %c0_117, %c0_118] : memref<13x8x8xf32, #tpu.memory_space<vmem>>, vector<1x8x8xf32>
    %303 = vector.shape_cast %302 : vector<1x8x8xf32> to vector<8x8xf32>
    %cst_119 = arith.constant dense<0.000000e+00> : vector<16x8xf32>
    %304 = tpu.matmul %301, %303, %cst_119 {dimension_numbers = #tpu.dot_dimension_numbers<[1], [0], [0], [1], [0, 0, 1, 1], [], []>} : vector<16x8xf32>, vector<8x8xf32>, vector<16x8xf32> -> vector<16x8xf32>
    %c3_120 = arith.constant 3 : index
    %c0_121 = arith.constant 0 : index
    %305 = vector.load %arg7[%c3_120, %c0_121] : memref<13x8xf32, #tpu.memory_space<vmem>>, vector<1x8xf32>
    %306 = vector.broadcast %305 : vector<1x8xf32> to vector<16x8xf32>
    %307 = arith.addf %304, %306 : vector<16x8xf32>
    %308 = vector.extract_strided_slice %89 {offsets = [0, 8], sizes = [64, 4], strides = [1, 1]} : vector<64x12xf32> to vector<64x4xf32>
    %309 = vector.extract_strided_slice %162 {offsets = [16, 0], sizes = [16, 4], strides = [1, 1]} : vector<64x4xf32> to vector<16x4xf32>
    %310 = vector.extract_strided_slice %162 {offsets = [32, 0], sizes = [16, 4], strides = [1, 1]} : vector<64x4xf32> to vector<16x4xf32>
    %311 = vector.extract_strided_slice %162 {offsets = [48, 0], sizes = [16, 4], strides = [1, 1]} : vector<64x4xf32> to vector<16x4xf32>
    %312 = math.absf %309 : vector<16x4xf32>
    %313 = math.absf %310 : vector<16x4xf32>
    %314 = math.absf %311 : vector<16x4xf32>
    %315 = tpu.concatenate %312, %313, %314 in 1 : vector<16x4xf32>, vector<16x4xf32>, vector<16x4xf32> -> vector<16x12xf32>
    %cst_122 = arith.constant dense<0.000000e+00> : vector<64x12xf32>
    %316 = tpu.matmul %2, %315, %cst_122 {dimension_numbers = #tpu.dot_dimension_numbers<[1], [0], [0], [1], [0, 0, 1, 1], [], []>} : vector<64x16xf32>, vector<16x12xf32>, vector<64x12xf32> -> vector<64x12xf32>
    %317 = vector.extract_strided_slice %316 {offsets = [0, 0], sizes = [16, 4], strides = [1, 1]} : vector<64x12xf32> to vector<16x4xf32>
    %c4 = arith.constant 4 : index
    %c0_123 = arith.constant 0 : index
    %c0_124 = arith.constant 0 : index
    %318 = vector.load %arg3[%c4, %c0_123, %c0_124] : memref<13x4x8xf32, #tpu.memory_space<vmem>>, vector<1x4x8xf32>
    %319 = vector.shape_cast %318 : vector<1x4x8xf32> to vector<4x8xf32>
    %cst_125 = arith.constant dense<0.000000e+00> : vector<16x8xf32>
    %320 = tpu.matmul %317, %319, %cst_125 {dimension_numbers = #tpu.dot_dimension_numbers<[1], [0], [0], [1], [0, 0, 1, 1], [], []>} : vector<16x4xf32>, vector<4x8xf32>, vector<16x8xf32> -> vector<16x8xf32>
    %c4_126 = arith.constant 4 : index
    %c0_127 = arith.constant 0 : index
    %c0_128 = arith.constant 0 : index
    %321 = vector.load %arg4[%c4_126, %c0_127, %c0_128] : memref<13x8x4xf32, #tpu.memory_space<vmem>>, vector<1x8x4xf32>
    %322 = vector.shape_cast %321 : vector<1x8x4xf32> to vector<8x4xf32>
    %cst_129 = arith.constant dense<0.000000e+00> : vector<16x4xf32>
    %323 = tpu.matmul %320, %322, %cst_129 {dimension_numbers = #tpu.dot_dimension_numbers<[1], [0], [0], [1], [0, 0, 1, 1], [], []>} : vector<16x8xf32>, vector<8x4xf32>, vector<16x4xf32> -> vector<16x4xf32>
    %324 = vector.extract_strided_slice %323 {offsets = [0, 0], sizes = [16, 2], strides = [1, 1]} : vector<16x4xf32> to vector<16x2xf32>
    %325 = tpu.transpose %324, [1, 0] : vector<16x2xf32> -> vector<2x16xf32>
    %326 = vector.extract_strided_slice %323 {offsets = [0, 2], sizes = [16, 2], strides = [1, 1]} : vector<16x4xf32> to vector<16x2xf32>
    %327 = vector.extract_strided_slice %326 {offsets = [0, 0], sizes = [16, 1], strides = [1, 1]} : vector<16x2xf32> to vector<16x1xf32>
    %328 = vector.extract_strided_slice %325 {offsets = [0, 0], sizes = [1, 16], strides = [1, 1]} : vector<2x16xf32> to vector<1x16xf32>
    %329 = vector.broadcast %327 : vector<16x1xf32> to vector<16x16xf32>
    %330 = vector.broadcast %328 : vector<1x16xf32> to vector<16x16xf32>
    %331 = arith.addf %329, %330 : vector<16x16xf32>
    %cst_130 = arith.constant 0.000000e+00 : f32
    %332 = vector.broadcast %cst_130 : f32 to vector<16x16xf32>
    %333 = arith.cmpf ogt, %331, %332 : vector<16x16xf32>
    %cst_131 = arith.constant 2.000000e-01 : f32
    %334 = vector.broadcast %cst_131 : f32 to vector<16x16xf32>
    %335 = arith.mulf %334, %331 : vector<16x16xf32>
    %336 = arith.select %333, %331, %335 : vector<16x16xi1>, vector<16x16xf32>
    %337 = arith.addf %336, %7 : vector<16x16xf32>
    %cst_132 = arith.constant dense<0xFF800000> : vector<16xf32>
    %338 = vector.multi_reduction <maximumf>, %337, %cst_132 [1] : vector<16x16xf32> to vector<16xf32>
    %339 = vector.shape_cast %338 : vector<16xf32> to vector<16x1xf32>
    %340 = vector.broadcast %339 : vector<16x1xf32> to vector<16x16xf32>
    %341 = arith.subf %337, %340 : vector<16x16xf32>
    %342 = math.exp %341 : vector<16x16xf32>
    %cst_133 = arith.constant dense<0.000000e+00> : vector<16xf32>
    %343 = vector.multi_reduction <add>, %342, %cst_133 [1] : vector<16x16xf32> to vector<16xf32>
    %344 = vector.shape_cast %343 : vector<16xf32> to vector<16x1xf32>
    %345 = vector.broadcast %344 : vector<16x1xf32> to vector<16x16xf32>
    %346 = arith.divf %342, %345 : vector<16x16xf32>
    %347 = vector.extract_strided_slice %320 {offsets = [0, 0], sizes = [16, 4], strides = [1, 1]} : vector<16x8xf32> to vector<16x4xf32>
    %cst_134 = arith.constant dense<0.000000e+00> : vector<16x4xf32>
    %348 = tpu.matmul %346, %347, %cst_134 {dimension_numbers = #tpu.dot_dimension_numbers<[1], [0], [0], [1], [0, 0, 1, 1], [], []>} : vector<16x16xf32>, vector<16x4xf32>, vector<16x4xf32> -> vector<16x4xf32>
    %349 = vector.extract_strided_slice %326 {offsets = [0, 1], sizes = [16, 1], strides = [1, 1]} : vector<16x2xf32> to vector<16x1xf32>
    %350 = vector.extract_strided_slice %325 {offsets = [1, 0], sizes = [1, 16], strides = [1, 1]} : vector<2x16xf32> to vector<1x16xf32>
    %351 = vector.broadcast %349 : vector<16x1xf32> to vector<16x16xf32>
    %352 = vector.broadcast %350 : vector<1x16xf32> to vector<16x16xf32>
    %353 = arith.addf %351, %352 : vector<16x16xf32>
    %cst_135 = arith.constant 0.000000e+00 : f32
    %354 = vector.broadcast %cst_135 : f32 to vector<16x16xf32>
    %355 = arith.cmpf ogt, %353, %354 : vector<16x16xf32>
    %cst_136 = arith.constant 2.000000e-01 : f32
    %356 = vector.broadcast %cst_136 : f32 to vector<16x16xf32>
    %357 = arith.mulf %356, %353 : vector<16x16xf32>
    %358 = arith.select %355, %353, %357 : vector<16x16xi1>, vector<16x16xf32>
    %359 = arith.addf %358, %7 : vector<16x16xf32>
    %cst_137 = arith.constant dense<0xFF800000> : vector<16xf32>
    %360 = vector.multi_reduction <maximumf>, %359, %cst_137 [1] : vector<16x16xf32> to vector<16xf32>
    %361 = vector.shape_cast %360 : vector<16xf32> to vector<16x1xf32>
    %362 = vector.broadcast %361 : vector<16x1xf32> to vector<16x16xf32>
    %363 = arith.subf %359, %362 : vector<16x16xf32>
    %364 = math.exp %363 : vector<16x16xf32>
    %cst_138 = arith.constant dense<0.000000e+00> : vector<16xf32>
    %365 = vector.multi_reduction <add>, %364, %cst_138 [1] : vector<16x16xf32> to vector<16xf32>
    %366 = vector.shape_cast %365 : vector<16xf32> to vector<16x1xf32>
    %367 = vector.broadcast %366 : vector<16x1xf32> to vector<16x16xf32>
    %368 = arith.divf %364, %367 : vector<16x16xf32>
    %369 = vector.extract_strided_slice %320 {offsets = [0, 4], sizes = [16, 4], strides = [1, 1]} : vector<16x8xf32> to vector<16x4xf32>
    %cst_139 = arith.constant dense<0.000000e+00> : vector<16x4xf32>
    %370 = tpu.matmul %368, %369, %cst_139 {dimension_numbers = #tpu.dot_dimension_numbers<[1], [0], [0], [1], [0, 0, 1, 1], [], []>} : vector<16x16xf32>, vector<16x4xf32>, vector<16x4xf32> -> vector<16x4xf32>
    %371 = tpu.concatenate %348, %370 in 1 : vector<16x4xf32>, vector<16x4xf32> -> vector<16x8xf32>
    %c4_140 = arith.constant 4 : index
    %c0_141 = arith.constant 0 : index
    %372 = vector.load %arg5[%c4_140, %c0_141] : memref<13x8xf32, #tpu.memory_space<vmem>>, vector<1x8xf32>
    %373 = vector.broadcast %372 : vector<1x8xf32> to vector<16x8xf32>
    %374 = arith.addf %371, %373 : vector<16x8xf32>
    %cst_142 = arith.constant 0.000000e+00 : f32
    %375 = vector.broadcast %cst_142 : f32 to vector<16x8xf32>
    %376 = arith.cmpf ogt, %374, %375 : vector<16x8xf32>
    %cst_143 = arith.constant 0.000000e+00 : f32
    %377 = vector.broadcast %cst_143 : f32 to vector<16x8xf32>
    %378 = arith.minimumf %374, %377 : vector<16x8xf32>
    %379 = math.exp %378 : vector<16x8xf32>
    %cst_144 = arith.constant 1.000000e+00 : f32
    %380 = vector.broadcast %cst_144 : f32 to vector<16x8xf32>
    %381 = arith.subf %379, %380 : vector<16x8xf32>
    %382 = arith.select %376, %374, %381 : vector<16x8xi1>, vector<16x8xf32>
    %c4_145 = arith.constant 4 : index
    %c0_146 = arith.constant 0 : index
    %c0_147 = arith.constant 0 : index
    %383 = vector.load %arg6[%c4_145, %c0_146, %c0_147] : memref<13x8x8xf32, #tpu.memory_space<vmem>>, vector<1x8x8xf32>
    %384 = vector.shape_cast %383 : vector<1x8x8xf32> to vector<8x8xf32>
    %cst_148 = arith.constant dense<0.000000e+00> : vector<16x8xf32>
    %385 = tpu.matmul %382, %384, %cst_148 {dimension_numbers = #tpu.dot_dimension_numbers<[1], [0], [0], [1], [0, 0, 1, 1], [], []>} : vector<16x8xf32>, vector<8x8xf32>, vector<16x8xf32> -> vector<16x8xf32>
    %c4_149 = arith.constant 4 : index
    %c0_150 = arith.constant 0 : index
    %386 = vector.load %arg7[%c4_149, %c0_150] : memref<13x8xf32, #tpu.memory_space<vmem>>, vector<1x8xf32>
    %387 = vector.broadcast %386 : vector<1x8xf32> to vector<16x8xf32>
    %388 = arith.addf %385, %387 : vector<16x8xf32>
    %389 = vector.extract_strided_slice %316 {offsets = [0, 4], sizes = [16, 4], strides = [1, 1]} : vector<64x12xf32> to vector<16x4xf32>
    %c5 = arith.constant 5 : index
    %c0_151 = arith.constant 0 : index
    %c0_152 = arith.constant 0 : index
    %390 = vector.load %arg3[%c5, %c0_151, %c0_152] : memref<13x4x8xf32, #tpu.memory_space<vmem>>, vector<1x4x8xf32>
    %391 = vector.shape_cast %390 : vector<1x4x8xf32> to vector<4x8xf32>
    %cst_153 = arith.constant dense<0.000000e+00> : vector<16x8xf32>
    %392 = tpu.matmul %389, %391, %cst_153 {dimension_numbers = #tpu.dot_dimension_numbers<[1], [0], [0], [1], [0, 0, 1, 1], [], []>} : vector<16x4xf32>, vector<4x8xf32>, vector<16x8xf32> -> vector<16x8xf32>
    %c5_154 = arith.constant 5 : index
    %c0_155 = arith.constant 0 : index
    %c0_156 = arith.constant 0 : index
    %393 = vector.load %arg4[%c5_154, %c0_155, %c0_156] : memref<13x8x4xf32, #tpu.memory_space<vmem>>, vector<1x8x4xf32>
    %394 = vector.shape_cast %393 : vector<1x8x4xf32> to vector<8x4xf32>
    %cst_157 = arith.constant dense<0.000000e+00> : vector<16x4xf32>
    %395 = tpu.matmul %392, %394, %cst_157 {dimension_numbers = #tpu.dot_dimension_numbers<[1], [0], [0], [1], [0, 0, 1, 1], [], []>} : vector<16x8xf32>, vector<8x4xf32>, vector<16x4xf32> -> vector<16x4xf32>
    %396 = vector.extract_strided_slice %395 {offsets = [0, 0], sizes = [16, 2], strides = [1, 1]} : vector<16x4xf32> to vector<16x2xf32>
    %397 = tpu.transpose %396, [1, 0] : vector<16x2xf32> -> vector<2x16xf32>
    %398 = vector.extract_strided_slice %395 {offsets = [0, 2], sizes = [16, 2], strides = [1, 1]} : vector<16x4xf32> to vector<16x2xf32>
    %399 = vector.extract_strided_slice %398 {offsets = [0, 0], sizes = [16, 1], strides = [1, 1]} : vector<16x2xf32> to vector<16x1xf32>
    %400 = vector.extract_strided_slice %397 {offsets = [0, 0], sizes = [1, 16], strides = [1, 1]} : vector<2x16xf32> to vector<1x16xf32>
    %401 = vector.broadcast %399 : vector<16x1xf32> to vector<16x16xf32>
    %402 = vector.broadcast %400 : vector<1x16xf32> to vector<16x16xf32>
    %403 = arith.addf %401, %402 : vector<16x16xf32>
    %cst_158 = arith.constant 0.000000e+00 : f32
    %404 = vector.broadcast %cst_158 : f32 to vector<16x16xf32>
    %405 = arith.cmpf ogt, %403, %404 : vector<16x16xf32>
    %cst_159 = arith.constant 2.000000e-01 : f32
    %406 = vector.broadcast %cst_159 : f32 to vector<16x16xf32>
    %407 = arith.mulf %406, %403 : vector<16x16xf32>
    %408 = arith.select %405, %403, %407 : vector<16x16xi1>, vector<16x16xf32>
    %409 = arith.addf %408, %7 : vector<16x16xf32>
    %cst_160 = arith.constant dense<0xFF800000> : vector<16xf32>
    %410 = vector.multi_reduction <maximumf>, %409, %cst_160 [1] : vector<16x16xf32> to vector<16xf32>
    %411 = vector.shape_cast %410 : vector<16xf32> to vector<16x1xf32>
    %412 = vector.broadcast %411 : vector<16x1xf32> to vector<16x16xf32>
    %413 = arith.subf %409, %412 : vector<16x16xf32>
    %414 = math.exp %413 : vector<16x16xf32>
    %cst_161 = arith.constant dense<0.000000e+00> : vector<16xf32>
    %415 = vector.multi_reduction <add>, %414, %cst_161 [1] : vector<16x16xf32> to vector<16xf32>
    %416 = vector.shape_cast %415 : vector<16xf32> to vector<16x1xf32>
    %417 = vector.broadcast %416 : vector<16x1xf32> to vector<16x16xf32>
    %418 = arith.divf %414, %417 : vector<16x16xf32>
    %419 = vector.extract_strided_slice %392 {offsets = [0, 0], sizes = [16, 4], strides = [1, 1]} : vector<16x8xf32> to vector<16x4xf32>
    %cst_162 = arith.constant dense<0.000000e+00> : vector<16x4xf32>
    %420 = tpu.matmul %418, %419, %cst_162 {dimension_numbers = #tpu.dot_dimension_numbers<[1], [0], [0], [1], [0, 0, 1, 1], [], []>} : vector<16x16xf32>, vector<16x4xf32>, vector<16x4xf32> -> vector<16x4xf32>
    %421 = vector.extract_strided_slice %398 {offsets = [0, 1], sizes = [16, 1], strides = [1, 1]} : vector<16x2xf32> to vector<16x1xf32>
    %422 = vector.extract_strided_slice %397 {offsets = [1, 0], sizes = [1, 16], strides = [1, 1]} : vector<2x16xf32> to vector<1x16xf32>
    %423 = vector.broadcast %421 : vector<16x1xf32> to vector<16x16xf32>
    %424 = vector.broadcast %422 : vector<1x16xf32> to vector<16x16xf32>
    %425 = arith.addf %423, %424 : vector<16x16xf32>
    %cst_163 = arith.constant 0.000000e+00 : f32
    %426 = vector.broadcast %cst_163 : f32 to vector<16x16xf32>
    %427 = arith.cmpf ogt, %425, %426 : vector<16x16xf32>
    %cst_164 = arith.constant 2.000000e-01 : f32
    %428 = vector.broadcast %cst_164 : f32 to vector<16x16xf32>
    %429 = arith.mulf %428, %425 : vector<16x16xf32>
    %430 = arith.select %427, %425, %429 : vector<16x16xi1>, vector<16x16xf32>
    %431 = arith.addf %430, %7 : vector<16x16xf32>
    %cst_165 = arith.constant dense<0xFF800000> : vector<16xf32>
    %432 = vector.multi_reduction <maximumf>, %431, %cst_165 [1] : vector<16x16xf32> to vector<16xf32>
    %433 = vector.shape_cast %432 : vector<16xf32> to vector<16x1xf32>
    %434 = vector.broadcast %433 : vector<16x1xf32> to vector<16x16xf32>
    %435 = arith.subf %431, %434 : vector<16x16xf32>
    %436 = math.exp %435 : vector<16x16xf32>
    %cst_166 = arith.constant dense<0.000000e+00> : vector<16xf32>
    %437 = vector.multi_reduction <add>, %436, %cst_166 [1] : vector<16x16xf32> to vector<16xf32>
    %438 = vector.shape_cast %437 : vector<16xf32> to vector<16x1xf32>
    %439 = vector.broadcast %438 : vector<16x1xf32> to vector<16x16xf32>
    %440 = arith.divf %436, %439 : vector<16x16xf32>
    %441 = vector.extract_strided_slice %392 {offsets = [0, 4], sizes = [16, 4], strides = [1, 1]} : vector<16x8xf32> to vector<16x4xf32>
    %cst_167 = arith.constant dense<0.000000e+00> : vector<16x4xf32>
    %442 = tpu.matmul %440, %441, %cst_167 {dimension_numbers = #tpu.dot_dimension_numbers<[1], [0], [0], [1], [0, 0, 1, 1], [], []>} : vector<16x16xf32>, vector<16x4xf32>, vector<16x4xf32> -> vector<16x4xf32>
    %443 = tpu.concatenate %420, %442 in 1 : vector<16x4xf32>, vector<16x4xf32> -> vector<16x8xf32>
    %c5_168 = arith.constant 5 : index
    %c0_169 = arith.constant 0 : index
    %444 = vector.load %arg5[%c5_168, %c0_169] : memref<13x8xf32, #tpu.memory_space<vmem>>, vector<1x8xf32>
    %445 = vector.broadcast %444 : vector<1x8xf32> to vector<16x8xf32>
    %446 = arith.addf %443, %445 : vector<16x8xf32>
    %cst_170 = arith.constant 0.000000e+00 : f32
    %447 = vector.broadcast %cst_170 : f32 to vector<16x8xf32>
    %448 = arith.cmpf ogt, %446, %447 : vector<16x8xf32>
    %cst_171 = arith.constant 0.000000e+00 : f32
    %449 = vector.broadcast %cst_171 : f32 to vector<16x8xf32>
    %450 = arith.minimumf %446, %449 : vector<16x8xf32>
    %451 = math.exp %450 : vector<16x8xf32>
    %cst_172 = arith.constant 1.000000e+00 : f32
    %452 = vector.broadcast %cst_172 : f32 to vector<16x8xf32>
    %453 = arith.subf %451, %452 : vector<16x8xf32>
    %454 = arith.select %448, %446, %453 : vector<16x8xi1>, vector<16x8xf32>
    %c5_173 = arith.constant 5 : index
    %c0_174 = arith.constant 0 : index
    %c0_175 = arith.constant 0 : index
    %455 = vector.load %arg6[%c5_173, %c0_174, %c0_175] : memref<13x8x8xf32, #tpu.memory_space<vmem>>, vector<1x8x8xf32>
    %456 = vector.shape_cast %455 : vector<1x8x8xf32> to vector<8x8xf32>
    %cst_176 = arith.constant dense<0.000000e+00> : vector<16x8xf32>
    %457 = tpu.matmul %454, %456, %cst_176 {dimension_numbers = #tpu.dot_dimension_numbers<[1], [0], [0], [1], [0, 0, 1, 1], [], []>} : vector<16x8xf32>, vector<8x8xf32>, vector<16x8xf32> -> vector<16x8xf32>
    %c5_177 = arith.constant 5 : index
    %c0_178 = arith.constant 0 : index
    %458 = vector.load %arg7[%c5_177, %c0_178] : memref<13x8xf32, #tpu.memory_space<vmem>>, vector<1x8xf32>
    %459 = vector.broadcast %458 : vector<1x8xf32> to vector<16x8xf32>
    %460 = arith.addf %457, %459 : vector<16x8xf32>
    %461 = vector.extract_strided_slice %316 {offsets = [0, 8], sizes = [16, 4], strides = [1, 1]} : vector<64x12xf32> to vector<16x4xf32>
    %c6 = arith.constant 6 : index
    %c0_179 = arith.constant 0 : index
    %c0_180 = arith.constant 0 : index
    %462 = vector.load %arg3[%c6, %c0_179, %c0_180] : memref<13x4x8xf32, #tpu.memory_space<vmem>>, vector<1x4x8xf32>
    %463 = vector.shape_cast %462 : vector<1x4x8xf32> to vector<4x8xf32>
    %cst_181 = arith.constant dense<0.000000e+00> : vector<16x8xf32>
    %464 = tpu.matmul %461, %463, %cst_181 {dimension_numbers = #tpu.dot_dimension_numbers<[1], [0], [0], [1], [0, 0, 1, 1], [], []>} : vector<16x4xf32>, vector<4x8xf32>, vector<16x8xf32> -> vector<16x8xf32>
    %c6_182 = arith.constant 6 : index
    %c0_183 = arith.constant 0 : index
    %c0_184 = arith.constant 0 : index
    %465 = vector.load %arg4[%c6_182, %c0_183, %c0_184] : memref<13x8x4xf32, #tpu.memory_space<vmem>>, vector<1x8x4xf32>
    %466 = vector.shape_cast %465 : vector<1x8x4xf32> to vector<8x4xf32>
    %cst_185 = arith.constant dense<0.000000e+00> : vector<16x4xf32>
    %467 = tpu.matmul %464, %466, %cst_185 {dimension_numbers = #tpu.dot_dimension_numbers<[1], [0], [0], [1], [0, 0, 1, 1], [], []>} : vector<16x8xf32>, vector<8x4xf32>, vector<16x4xf32> -> vector<16x4xf32>
    %468 = vector.extract_strided_slice %467 {offsets = [0, 0], sizes = [16, 2], strides = [1, 1]} : vector<16x4xf32> to vector<16x2xf32>
    %469 = tpu.transpose %468, [1, 0] : vector<16x2xf32> -> vector<2x16xf32>
    %470 = vector.extract_strided_slice %467 {offsets = [0, 2], sizes = [16, 2], strides = [1, 1]} : vector<16x4xf32> to vector<16x2xf32>
    %471 = vector.extract_strided_slice %470 {offsets = [0, 0], sizes = [16, 1], strides = [1, 1]} : vector<16x2xf32> to vector<16x1xf32>
    %472 = vector.extract_strided_slice %469 {offsets = [0, 0], sizes = [1, 16], strides = [1, 1]} : vector<2x16xf32> to vector<1x16xf32>
    %473 = vector.broadcast %471 : vector<16x1xf32> to vector<16x16xf32>
    %474 = vector.broadcast %472 : vector<1x16xf32> to vector<16x16xf32>
    %475 = arith.addf %473, %474 : vector<16x16xf32>
    %cst_186 = arith.constant 0.000000e+00 : f32
    %476 = vector.broadcast %cst_186 : f32 to vector<16x16xf32>
    %477 = arith.cmpf ogt, %475, %476 : vector<16x16xf32>
    %cst_187 = arith.constant 2.000000e-01 : f32
    %478 = vector.broadcast %cst_187 : f32 to vector<16x16xf32>
    %479 = arith.mulf %478, %475 : vector<16x16xf32>
    %480 = arith.select %477, %475, %479 : vector<16x16xi1>, vector<16x16xf32>
    %481 = arith.addf %480, %7 : vector<16x16xf32>
    %cst_188 = arith.constant dense<0xFF800000> : vector<16xf32>
    %482 = vector.multi_reduction <maximumf>, %481, %cst_188 [1] : vector<16x16xf32> to vector<16xf32>
    %483 = vector.shape_cast %482 : vector<16xf32> to vector<16x1xf32>
    %484 = vector.broadcast %483 : vector<16x1xf32> to vector<16x16xf32>
    %485 = arith.subf %481, %484 : vector<16x16xf32>
    %486 = math.exp %485 : vector<16x16xf32>
    %cst_189 = arith.constant dense<0.000000e+00> : vector<16xf32>
    %487 = vector.multi_reduction <add>, %486, %cst_189 [1] : vector<16x16xf32> to vector<16xf32>
    %488 = vector.shape_cast %487 : vector<16xf32> to vector<16x1xf32>
    %489 = vector.broadcast %488 : vector<16x1xf32> to vector<16x16xf32>
    %490 = arith.divf %486, %489 : vector<16x16xf32>
    %491 = vector.extract_strided_slice %464 {offsets = [0, 0], sizes = [16, 4], strides = [1, 1]} : vector<16x8xf32> to vector<16x4xf32>
    %cst_190 = arith.constant dense<0.000000e+00> : vector<16x4xf32>
    %492 = tpu.matmul %490, %491, %cst_190 {dimension_numbers = #tpu.dot_dimension_numbers<[1], [0], [0], [1], [0, 0, 1, 1], [], []>} : vector<16x16xf32>, vector<16x4xf32>, vector<16x4xf32> -> vector<16x4xf32>
    %493 = vector.extract_strided_slice %470 {offsets = [0, 1], sizes = [16, 1], strides = [1, 1]} : vector<16x2xf32> to vector<16x1xf32>
    %494 = vector.extract_strided_slice %469 {offsets = [1, 0], sizes = [1, 16], strides = [1, 1]} : vector<2x16xf32> to vector<1x16xf32>
    %495 = vector.broadcast %493 : vector<16x1xf32> to vector<16x16xf32>
    %496 = vector.broadcast %494 : vector<1x16xf32> to vector<16x16xf32>
    %497 = arith.addf %495, %496 : vector<16x16xf32>
    %cst_191 = arith.constant 0.000000e+00 : f32
    %498 = vector.broadcast %cst_191 : f32 to vector<16x16xf32>
    %499 = arith.cmpf ogt, %497, %498 : vector<16x16xf32>
    %cst_192 = arith.constant 2.000000e-01 : f32
    %500 = vector.broadcast %cst_192 : f32 to vector<16x16xf32>
    %501 = arith.mulf %500, %497 : vector<16x16xf32>
    %502 = arith.select %499, %497, %501 : vector<16x16xi1>, vector<16x16xf32>
    %503 = arith.addf %502, %7 : vector<16x16xf32>
    %cst_193 = arith.constant dense<0xFF800000> : vector<16xf32>
    %504 = vector.multi_reduction <maximumf>, %503, %cst_193 [1] : vector<16x16xf32> to vector<16xf32>
    %505 = vector.shape_cast %504 : vector<16xf32> to vector<16x1xf32>
    %506 = vector.broadcast %505 : vector<16x1xf32> to vector<16x16xf32>
    %507 = arith.subf %503, %506 : vector<16x16xf32>
    %508 = math.exp %507 : vector<16x16xf32>
    %cst_194 = arith.constant dense<0.000000e+00> : vector<16xf32>
    %509 = vector.multi_reduction <add>, %508, %cst_194 [1] : vector<16x16xf32> to vector<16xf32>
    %510 = vector.shape_cast %509 : vector<16xf32> to vector<16x1xf32>
    %511 = vector.broadcast %510 : vector<16x1xf32> to vector<16x16xf32>
    %512 = arith.divf %508, %511 : vector<16x16xf32>
    %513 = vector.extract_strided_slice %464 {offsets = [0, 4], sizes = [16, 4], strides = [1, 1]} : vector<16x8xf32> to vector<16x4xf32>
    %cst_195 = arith.constant dense<0.000000e+00> : vector<16x4xf32>
    %514 = tpu.matmul %512, %513, %cst_195 {dimension_numbers = #tpu.dot_dimension_numbers<[1], [0], [0], [1], [0, 0, 1, 1], [], []>} : vector<16x16xf32>, vector<16x4xf32>, vector<16x4xf32> -> vector<16x4xf32>
    %515 = tpu.concatenate %492, %514 in 1 : vector<16x4xf32>, vector<16x4xf32> -> vector<16x8xf32>
    %c6_196 = arith.constant 6 : index
    %c0_197 = arith.constant 0 : index
    %516 = vector.load %arg5[%c6_196, %c0_197] : memref<13x8xf32, #tpu.memory_space<vmem>>, vector<1x8xf32>
    %517 = vector.broadcast %516 : vector<1x8xf32> to vector<16x8xf32>
    %518 = arith.addf %515, %517 : vector<16x8xf32>
    %cst_198 = arith.constant 0.000000e+00 : f32
    %519 = vector.broadcast %cst_198 : f32 to vector<16x8xf32>
    %520 = arith.cmpf ogt, %518, %519 : vector<16x8xf32>
    %cst_199 = arith.constant 0.000000e+00 : f32
    %521 = vector.broadcast %cst_199 : f32 to vector<16x8xf32>
    %522 = arith.minimumf %518, %521 : vector<16x8xf32>
    %523 = math.exp %522 : vector<16x8xf32>
    %cst_200 = arith.constant 1.000000e+00 : f32
    %524 = vector.broadcast %cst_200 : f32 to vector<16x8xf32>
    %525 = arith.subf %523, %524 : vector<16x8xf32>
    %526 = arith.select %520, %518, %525 : vector<16x8xi1>, vector<16x8xf32>
    %c6_201 = arith.constant 6 : index
    %c0_202 = arith.constant 0 : index
    %c0_203 = arith.constant 0 : index
    %527 = vector.load %arg6[%c6_201, %c0_202, %c0_203] : memref<13x8x8xf32, #tpu.memory_space<vmem>>, vector<1x8x8xf32>
    %528 = vector.shape_cast %527 : vector<1x8x8xf32> to vector<8x8xf32>
    %cst_204 = arith.constant dense<0.000000e+00> : vector<16x8xf32>
    %529 = tpu.matmul %526, %528, %cst_204 {dimension_numbers = #tpu.dot_dimension_numbers<[1], [0], [0], [1], [0, 0, 1, 1], [], []>} : vector<16x8xf32>, vector<8x8xf32>, vector<16x8xf32> -> vector<16x8xf32>
    %c6_205 = arith.constant 6 : index
    %c0_206 = arith.constant 0 : index
    %530 = vector.load %arg7[%c6_205, %c0_206] : memref<13x8xf32, #tpu.memory_space<vmem>>, vector<1x8xf32>
    %531 = vector.broadcast %530 : vector<1x8xf32> to vector<16x8xf32>
    %532 = arith.addf %529, %531 : vector<16x8xf32>
    %533 = vector.extract_strided_slice %235 {offsets = [16, 0], sizes = [16, 4], strides = [1, 1]} : vector<64x4xf32> to vector<16x4xf32>
    %534 = vector.extract_strided_slice %235 {offsets = [32, 0], sizes = [16, 4], strides = [1, 1]} : vector<64x4xf32> to vector<16x4xf32>
    %535 = vector.extract_strided_slice %235 {offsets = [48, 0], sizes = [16, 4], strides = [1, 1]} : vector<64x4xf32> to vector<16x4xf32>
    %536 = math.absf %533 : vector<16x4xf32>
    %537 = math.absf %534 : vector<16x4xf32>
    %538 = math.absf %535 : vector<16x4xf32>
    %539 = tpu.concatenate %536, %537, %538 in 1 : vector<16x4xf32>, vector<16x4xf32>, vector<16x4xf32> -> vector<16x12xf32>
    %cst_207 = arith.constant dense<0.000000e+00> : vector<64x12xf32>
    %540 = tpu.matmul %2, %539, %cst_207 {dimension_numbers = #tpu.dot_dimension_numbers<[1], [0], [0], [1], [0, 0, 1, 1], [], []>} : vector<64x16xf32>, vector<16x12xf32>, vector<64x12xf32> -> vector<64x12xf32>
    %541 = vector.extract_strided_slice %540 {offsets = [0, 0], sizes = [16, 4], strides = [1, 1]} : vector<64x12xf32> to vector<16x4xf32>
    %c7 = arith.constant 7 : index
    %c0_208 = arith.constant 0 : index
    %c0_209 = arith.constant 0 : index
    %542 = vector.load %arg3[%c7, %c0_208, %c0_209] : memref<13x4x8xf32, #tpu.memory_space<vmem>>, vector<1x4x8xf32>
    %543 = vector.shape_cast %542 : vector<1x4x8xf32> to vector<4x8xf32>
    %cst_210 = arith.constant dense<0.000000e+00> : vector<16x8xf32>
    %544 = tpu.matmul %541, %543, %cst_210 {dimension_numbers = #tpu.dot_dimension_numbers<[1], [0], [0], [1], [0, 0, 1, 1], [], []>} : vector<16x4xf32>, vector<4x8xf32>, vector<16x8xf32> -> vector<16x8xf32>
    %c7_211 = arith.constant 7 : index
    %c0_212 = arith.constant 0 : index
    %c0_213 = arith.constant 0 : index
    %545 = vector.load %arg4[%c7_211, %c0_212, %c0_213] : memref<13x8x4xf32, #tpu.memory_space<vmem>>, vector<1x8x4xf32>
    %546 = vector.shape_cast %545 : vector<1x8x4xf32> to vector<8x4xf32>
    %cst_214 = arith.constant dense<0.000000e+00> : vector<16x4xf32>
    %547 = tpu.matmul %544, %546, %cst_214 {dimension_numbers = #tpu.dot_dimension_numbers<[1], [0], [0], [1], [0, 0, 1, 1], [], []>} : vector<16x8xf32>, vector<8x4xf32>, vector<16x4xf32> -> vector<16x4xf32>
    %548 = vector.extract_strided_slice %547 {offsets = [0, 0], sizes = [16, 2], strides = [1, 1]} : vector<16x4xf32> to vector<16x2xf32>
    %549 = tpu.transpose %548, [1, 0] : vector<16x2xf32> -> vector<2x16xf32>
    %550 = vector.extract_strided_slice %547 {offsets = [0, 2], sizes = [16, 2], strides = [1, 1]} : vector<16x4xf32> to vector<16x2xf32>
    %551 = vector.extract_strided_slice %550 {offsets = [0, 0], sizes = [16, 1], strides = [1, 1]} : vector<16x2xf32> to vector<16x1xf32>
    %552 = vector.extract_strided_slice %549 {offsets = [0, 0], sizes = [1, 16], strides = [1, 1]} : vector<2x16xf32> to vector<1x16xf32>
    %553 = vector.broadcast %551 : vector<16x1xf32> to vector<16x16xf32>
    %554 = vector.broadcast %552 : vector<1x16xf32> to vector<16x16xf32>
    %555 = arith.addf %553, %554 : vector<16x16xf32>
    %cst_215 = arith.constant 0.000000e+00 : f32
    %556 = vector.broadcast %cst_215 : f32 to vector<16x16xf32>
    %557 = arith.cmpf ogt, %555, %556 : vector<16x16xf32>
    %cst_216 = arith.constant 2.000000e-01 : f32
    %558 = vector.broadcast %cst_216 : f32 to vector<16x16xf32>
    %559 = arith.mulf %558, %555 : vector<16x16xf32>
    %560 = arith.select %557, %555, %559 : vector<16x16xi1>, vector<16x16xf32>
    %561 = arith.addf %560, %7 : vector<16x16xf32>
    %cst_217 = arith.constant dense<0xFF800000> : vector<16xf32>
    %562 = vector.multi_reduction <maximumf>, %561, %cst_217 [1] : vector<16x16xf32> to vector<16xf32>
    %563 = vector.shape_cast %562 : vector<16xf32> to vector<16x1xf32>
    %564 = vector.broadcast %563 : vector<16x1xf32> to vector<16x16xf32>
    %565 = arith.subf %561, %564 : vector<16x16xf32>
    %566 = math.exp %565 : vector<16x16xf32>
    %cst_218 = arith.constant dense<0.000000e+00> : vector<16xf32>
    %567 = vector.multi_reduction <add>, %566, %cst_218 [1] : vector<16x16xf32> to vector<16xf32>
    %568 = vector.shape_cast %567 : vector<16xf32> to vector<16x1xf32>
    %569 = vector.broadcast %568 : vector<16x1xf32> to vector<16x16xf32>
    %570 = arith.divf %566, %569 : vector<16x16xf32>
    %571 = vector.extract_strided_slice %544 {offsets = [0, 0], sizes = [16, 4], strides = [1, 1]} : vector<16x8xf32> to vector<16x4xf32>
    %cst_219 = arith.constant dense<0.000000e+00> : vector<16x4xf32>
    %572 = tpu.matmul %570, %571, %cst_219 {dimension_numbers = #tpu.dot_dimension_numbers<[1], [0], [0], [1], [0, 0, 1, 1], [], []>} : vector<16x16xf32>, vector<16x4xf32>, vector<16x4xf32> -> vector<16x4xf32>
    %573 = vector.extract_strided_slice %550 {offsets = [0, 1], sizes = [16, 1], strides = [1, 1]} : vector<16x2xf32> to vector<16x1xf32>
    %574 = vector.extract_strided_slice %549 {offsets = [1, 0], sizes = [1, 16], strides = [1, 1]} : vector<2x16xf32> to vector<1x16xf32>
    %575 = vector.broadcast %573 : vector<16x1xf32> to vector<16x16xf32>
    %576 = vector.broadcast %574 : vector<1x16xf32> to vector<16x16xf32>
    %577 = arith.addf %575, %576 : vector<16x16xf32>
    %cst_220 = arith.constant 0.000000e+00 : f32
    %578 = vector.broadcast %cst_220 : f32 to vector<16x16xf32>
    %579 = arith.cmpf ogt, %577, %578 : vector<16x16xf32>
    %cst_221 = arith.constant 2.000000e-01 : f32
    %580 = vector.broadcast %cst_221 : f32 to vector<16x16xf32>
    %581 = arith.mulf %580, %577 : vector<16x16xf32>
    %582 = arith.select %579, %577, %581 : vector<16x16xi1>, vector<16x16xf32>
    %583 = arith.addf %582, %7 : vector<16x16xf32>
    %cst_222 = arith.constant dense<0xFF800000> : vector<16xf32>
    %584 = vector.multi_reduction <maximumf>, %583, %cst_222 [1] : vector<16x16xf32> to vector<16xf32>
    %585 = vector.shape_cast %584 : vector<16xf32> to vector<16x1xf32>
    %586 = vector.broadcast %585 : vector<16x1xf32> to vector<16x16xf32>
    %587 = arith.subf %583, %586 : vector<16x16xf32>
    %588 = math.exp %587 : vector<16x16xf32>
    %cst_223 = arith.constant dense<0.000000e+00> : vector<16xf32>
    %589 = vector.multi_reduction <add>, %588, %cst_223 [1] : vector<16x16xf32> to vector<16xf32>
    %590 = vector.shape_cast %589 : vector<16xf32> to vector<16x1xf32>
    %591 = vector.broadcast %590 : vector<16x1xf32> to vector<16x16xf32>
    %592 = arith.divf %588, %591 : vector<16x16xf32>
    %593 = vector.extract_strided_slice %544 {offsets = [0, 4], sizes = [16, 4], strides = [1, 1]} : vector<16x8xf32> to vector<16x4xf32>
    %cst_224 = arith.constant dense<0.000000e+00> : vector<16x4xf32>
    %594 = tpu.matmul %592, %593, %cst_224 {dimension_numbers = #tpu.dot_dimension_numbers<[1], [0], [0], [1], [0, 0, 1, 1], [], []>} : vector<16x16xf32>, vector<16x4xf32>, vector<16x4xf32> -> vector<16x4xf32>
    %595 = tpu.concatenate %572, %594 in 1 : vector<16x4xf32>, vector<16x4xf32> -> vector<16x8xf32>
    %c7_225 = arith.constant 7 : index
    %c0_226 = arith.constant 0 : index
    %596 = vector.load %arg5[%c7_225, %c0_226] : memref<13x8xf32, #tpu.memory_space<vmem>>, vector<1x8xf32>
    %597 = vector.broadcast %596 : vector<1x8xf32> to vector<16x8xf32>
    %598 = arith.addf %595, %597 : vector<16x8xf32>
    %cst_227 = arith.constant 0.000000e+00 : f32
    %599 = vector.broadcast %cst_227 : f32 to vector<16x8xf32>
    %600 = arith.cmpf ogt, %598, %599 : vector<16x8xf32>
    %cst_228 = arith.constant 0.000000e+00 : f32
    %601 = vector.broadcast %cst_228 : f32 to vector<16x8xf32>
    %602 = arith.minimumf %598, %601 : vector<16x8xf32>
    %603 = math.exp %602 : vector<16x8xf32>
    %cst_229 = arith.constant 1.000000e+00 : f32
    %604 = vector.broadcast %cst_229 : f32 to vector<16x8xf32>
    %605 = arith.subf %603, %604 : vector<16x8xf32>
    %606 = arith.select %600, %598, %605 : vector<16x8xi1>, vector<16x8xf32>
    %c7_230 = arith.constant 7 : index
    %c0_231 = arith.constant 0 : index
    %c0_232 = arith.constant 0 : index
    %607 = vector.load %arg6[%c7_230, %c0_231, %c0_232] : memref<13x8x8xf32, #tpu.memory_space<vmem>>, vector<1x8x8xf32>
    %608 = vector.shape_cast %607 : vector<1x8x8xf32> to vector<8x8xf32>
    %cst_233 = arith.constant dense<0.000000e+00> : vector<16x8xf32>
    %609 = tpu.matmul %606, %608, %cst_233 {dimension_numbers = #tpu.dot_dimension_numbers<[1], [0], [0], [1], [0, 0, 1, 1], [], []>} : vector<16x8xf32>, vector<8x8xf32>, vector<16x8xf32> -> vector<16x8xf32>
    %c7_234 = arith.constant 7 : index
    %c0_235 = arith.constant 0 : index
    %610 = vector.load %arg7[%c7_234, %c0_235] : memref<13x8xf32, #tpu.memory_space<vmem>>, vector<1x8xf32>
    %611 = vector.broadcast %610 : vector<1x8xf32> to vector<16x8xf32>
    %612 = arith.addf %609, %611 : vector<16x8xf32>
    %613 = vector.extract_strided_slice %540 {offsets = [0, 4], sizes = [16, 4], strides = [1, 1]} : vector<64x12xf32> to vector<16x4xf32>
    %c8 = arith.constant 8 : index
    %c0_236 = arith.constant 0 : index
    %c0_237 = arith.constant 0 : index
    %614 = vector.load %arg3[%c8, %c0_236, %c0_237] : memref<13x4x8xf32, #tpu.memory_space<vmem>>, vector<1x4x8xf32>
    %615 = vector.shape_cast %614 : vector<1x4x8xf32> to vector<4x8xf32>
    %cst_238 = arith.constant dense<0.000000e+00> : vector<16x8xf32>
    %616 = tpu.matmul %613, %615, %cst_238 {dimension_numbers = #tpu.dot_dimension_numbers<[1], [0], [0], [1], [0, 0, 1, 1], [], []>} : vector<16x4xf32>, vector<4x8xf32>, vector<16x8xf32> -> vector<16x8xf32>
    %c8_239 = arith.constant 8 : index
    %c0_240 = arith.constant 0 : index
    %c0_241 = arith.constant 0 : index
    %617 = vector.load %arg4[%c8_239, %c0_240, %c0_241] : memref<13x8x4xf32, #tpu.memory_space<vmem>>, vector<1x8x4xf32>
    %618 = vector.shape_cast %617 : vector<1x8x4xf32> to vector<8x4xf32>
    %cst_242 = arith.constant dense<0.000000e+00> : vector<16x4xf32>
    %619 = tpu.matmul %616, %618, %cst_242 {dimension_numbers = #tpu.dot_dimension_numbers<[1], [0], [0], [1], [0, 0, 1, 1], [], []>} : vector<16x8xf32>, vector<8x4xf32>, vector<16x4xf32> -> vector<16x4xf32>
    %620 = vector.extract_strided_slice %619 {offsets = [0, 0], sizes = [16, 2], strides = [1, 1]} : vector<16x4xf32> to vector<16x2xf32>
    %621 = tpu.transpose %620, [1, 0] : vector<16x2xf32> -> vector<2x16xf32>
    %622 = vector.extract_strided_slice %619 {offsets = [0, 2], sizes = [16, 2], strides = [1, 1]} : vector<16x4xf32> to vector<16x2xf32>
    %623 = vector.extract_strided_slice %622 {offsets = [0, 0], sizes = [16, 1], strides = [1, 1]} : vector<16x2xf32> to vector<16x1xf32>
    %624 = vector.extract_strided_slice %621 {offsets = [0, 0], sizes = [1, 16], strides = [1, 1]} : vector<2x16xf32> to vector<1x16xf32>
    %625 = vector.broadcast %623 : vector<16x1xf32> to vector<16x16xf32>
    %626 = vector.broadcast %624 : vector<1x16xf32> to vector<16x16xf32>
    %627 = arith.addf %625, %626 : vector<16x16xf32>
    %cst_243 = arith.constant 0.000000e+00 : f32
    %628 = vector.broadcast %cst_243 : f32 to vector<16x16xf32>
    %629 = arith.cmpf ogt, %627, %628 : vector<16x16xf32>
    %cst_244 = arith.constant 2.000000e-01 : f32
    %630 = vector.broadcast %cst_244 : f32 to vector<16x16xf32>
    %631 = arith.mulf %630, %627 : vector<16x16xf32>
    %632 = arith.select %629, %627, %631 : vector<16x16xi1>, vector<16x16xf32>
    %633 = arith.addf %632, %7 : vector<16x16xf32>
    %cst_245 = arith.constant dense<0xFF800000> : vector<16xf32>
    %634 = vector.multi_reduction <maximumf>, %633, %cst_245 [1] : vector<16x16xf32> to vector<16xf32>
    %635 = vector.shape_cast %634 : vector<16xf32> to vector<16x1xf32>
    %636 = vector.broadcast %635 : vector<16x1xf32> to vector<16x16xf32>
    %637 = arith.subf %633, %636 : vector<16x16xf32>
    %638 = math.exp %637 : vector<16x16xf32>
    %cst_246 = arith.constant dense<0.000000e+00> : vector<16xf32>
    %639 = vector.multi_reduction <add>, %638, %cst_246 [1] : vector<16x16xf32> to vector<16xf32>
    %640 = vector.shape_cast %639 : vector<16xf32> to vector<16x1xf32>
    %641 = vector.broadcast %640 : vector<16x1xf32> to vector<16x16xf32>
    %642 = arith.divf %638, %641 : vector<16x16xf32>
    %643 = vector.extract_strided_slice %616 {offsets = [0, 0], sizes = [16, 4], strides = [1, 1]} : vector<16x8xf32> to vector<16x4xf32>
    %cst_247 = arith.constant dense<0.000000e+00> : vector<16x4xf32>
    %644 = tpu.matmul %642, %643, %cst_247 {dimension_numbers = #tpu.dot_dimension_numbers<[1], [0], [0], [1], [0, 0, 1, 1], [], []>} : vector<16x16xf32>, vector<16x4xf32>, vector<16x4xf32> -> vector<16x4xf32>
    %645 = vector.extract_strided_slice %622 {offsets = [0, 1], sizes = [16, 1], strides = [1, 1]} : vector<16x2xf32> to vector<16x1xf32>
    %646 = vector.extract_strided_slice %621 {offsets = [1, 0], sizes = [1, 16], strides = [1, 1]} : vector<2x16xf32> to vector<1x16xf32>
    %647 = vector.broadcast %645 : vector<16x1xf32> to vector<16x16xf32>
    %648 = vector.broadcast %646 : vector<1x16xf32> to vector<16x16xf32>
    %649 = arith.addf %647, %648 : vector<16x16xf32>
    %cst_248 = arith.constant 0.000000e+00 : f32
    %650 = vector.broadcast %cst_248 : f32 to vector<16x16xf32>
    %651 = arith.cmpf ogt, %649, %650 : vector<16x16xf32>
    %cst_249 = arith.constant 2.000000e-01 : f32
    %652 = vector.broadcast %cst_249 : f32 to vector<16x16xf32>
    %653 = arith.mulf %652, %649 : vector<16x16xf32>
    %654 = arith.select %651, %649, %653 : vector<16x16xi1>, vector<16x16xf32>
    %655 = arith.addf %654, %7 : vector<16x16xf32>
    %cst_250 = arith.constant dense<0xFF800000> : vector<16xf32>
    %656 = vector.multi_reduction <maximumf>, %655, %cst_250 [1] : vector<16x16xf32> to vector<16xf32>
    %657 = vector.shape_cast %656 : vector<16xf32> to vector<16x1xf32>
    %658 = vector.broadcast %657 : vector<16x1xf32> to vector<16x16xf32>
    %659 = arith.subf %655, %658 : vector<16x16xf32>
    %660 = math.exp %659 : vector<16x16xf32>
    %cst_251 = arith.constant dense<0.000000e+00> : vector<16xf32>
    %661 = vector.multi_reduction <add>, %660, %cst_251 [1] : vector<16x16xf32> to vector<16xf32>
    %662 = vector.shape_cast %661 : vector<16xf32> to vector<16x1xf32>
    %663 = vector.broadcast %662 : vector<16x1xf32> to vector<16x16xf32>
    %664 = arith.divf %660, %663 : vector<16x16xf32>
    %665 = vector.extract_strided_slice %616 {offsets = [0, 4], sizes = [16, 4], strides = [1, 1]} : vector<16x8xf32> to vector<16x4xf32>
    %cst_252 = arith.constant dense<0.000000e+00> : vector<16x4xf32>
    %666 = tpu.matmul %664, %665, %cst_252 {dimension_numbers = #tpu.dot_dimension_numbers<[1], [0], [0], [1], [0, 0, 1, 1], [], []>} : vector<16x16xf32>, vector<16x4xf32>, vector<16x4xf32> -> vector<16x4xf32>
    %667 = tpu.concatenate %644, %666 in 1 : vector<16x4xf32>, vector<16x4xf32> -> vector<16x8xf32>
    %c8_253 = arith.constant 8 : index
    %c0_254 = arith.constant 0 : index
    %668 = vector.load %arg5[%c8_253, %c0_254] : memref<13x8xf32, #tpu.memory_space<vmem>>, vector<1x8xf32>
    %669 = vector.broadcast %668 : vector<1x8xf32> to vector<16x8xf32>
    %670 = arith.addf %667, %669 : vector<16x8xf32>
    %cst_255 = arith.constant 0.000000e+00 : f32
    %671 = vector.broadcast %cst_255 : f32 to vector<16x8xf32>
    %672 = arith.cmpf ogt, %670, %671 : vector<16x8xf32>
    %cst_256 = arith.constant 0.000000e+00 : f32
    %673 = vector.broadcast %cst_256 : f32 to vector<16x8xf32>
    %674 = arith.minimumf %670, %673 : vector<16x8xf32>
    %675 = math.exp %674 : vector<16x8xf32>
    %cst_257 = arith.constant 1.000000e+00 : f32
    %676 = vector.broadcast %cst_257 : f32 to vector<16x8xf32>
    %677 = arith.subf %675, %676 : vector<16x8xf32>
    %678 = arith.select %672, %670, %677 : vector<16x8xi1>, vector<16x8xf32>
    %c8_258 = arith.constant 8 : index
    %c0_259 = arith.constant 0 : index
    %c0_260 = arith.constant 0 : index
    %679 = vector.load %arg6[%c8_258, %c0_259, %c0_260] : memref<13x8x8xf32, #tpu.memory_space<vmem>>, vector<1x8x8xf32>
    %680 = vector.shape_cast %679 : vector<1x8x8xf32> to vector<8x8xf32>
    %cst_261 = arith.constant dense<0.000000e+00> : vector<16x8xf32>
    %681 = tpu.matmul %678, %680, %cst_261 {dimension_numbers = #tpu.dot_dimension_numbers<[1], [0], [0], [1], [0, 0, 1, 1], [], []>} : vector<16x8xf32>, vector<8x8xf32>, vector<16x8xf32> -> vector<16x8xf32>
    %c8_262 = arith.constant 8 : index
    %c0_263 = arith.constant 0 : index
    %682 = vector.load %arg7[%c8_262, %c0_263] : memref<13x8xf32, #tpu.memory_space<vmem>>, vector<1x8xf32>
    %683 = vector.broadcast %682 : vector<1x8xf32> to vector<16x8xf32>
    %684 = arith.addf %681, %683 : vector<16x8xf32>
    %685 = vector.extract_strided_slice %540 {offsets = [0, 8], sizes = [16, 4], strides = [1, 1]} : vector<64x12xf32> to vector<16x4xf32>
    %c9 = arith.constant 9 : index
    %c0_264 = arith.constant 0 : index
    %c0_265 = arith.constant 0 : index
    %686 = vector.load %arg3[%c9, %c0_264, %c0_265] : memref<13x4x8xf32, #tpu.memory_space<vmem>>, vector<1x4x8xf32>
    %687 = vector.shape_cast %686 : vector<1x4x8xf32> to vector<4x8xf32>
    %cst_266 = arith.constant dense<0.000000e+00> : vector<16x8xf32>
    %688 = tpu.matmul %685, %687, %cst_266 {dimension_numbers = #tpu.dot_dimension_numbers<[1], [0], [0], [1], [0, 0, 1, 1], [], []>} : vector<16x4xf32>, vector<4x8xf32>, vector<16x8xf32> -> vector<16x8xf32>
    %c9_267 = arith.constant 9 : index
    %c0_268 = arith.constant 0 : index
    %c0_269 = arith.constant 0 : index
    %689 = vector.load %arg4[%c9_267, %c0_268, %c0_269] : memref<13x8x4xf32, #tpu.memory_space<vmem>>, vector<1x8x4xf32>
    %690 = vector.shape_cast %689 : vector<1x8x4xf32> to vector<8x4xf32>
    %cst_270 = arith.constant dense<0.000000e+00> : vector<16x4xf32>
    %691 = tpu.matmul %688, %690, %cst_270 {dimension_numbers = #tpu.dot_dimension_numbers<[1], [0], [0], [1], [0, 0, 1, 1], [], []>} : vector<16x8xf32>, vector<8x4xf32>, vector<16x4xf32> -> vector<16x4xf32>
    %692 = vector.extract_strided_slice %691 {offsets = [0, 0], sizes = [16, 2], strides = [1, 1]} : vector<16x4xf32> to vector<16x2xf32>
    %693 = tpu.transpose %692, [1, 0] : vector<16x2xf32> -> vector<2x16xf32>
    %694 = vector.extract_strided_slice %691 {offsets = [0, 2], sizes = [16, 2], strides = [1, 1]} : vector<16x4xf32> to vector<16x2xf32>
    %695 = vector.extract_strided_slice %694 {offsets = [0, 0], sizes = [16, 1], strides = [1, 1]} : vector<16x2xf32> to vector<16x1xf32>
    %696 = vector.extract_strided_slice %693 {offsets = [0, 0], sizes = [1, 16], strides = [1, 1]} : vector<2x16xf32> to vector<1x16xf32>
    %697 = vector.broadcast %695 : vector<16x1xf32> to vector<16x16xf32>
    %698 = vector.broadcast %696 : vector<1x16xf32> to vector<16x16xf32>
    %699 = arith.addf %697, %698 : vector<16x16xf32>
    %cst_271 = arith.constant 0.000000e+00 : f32
    %700 = vector.broadcast %cst_271 : f32 to vector<16x16xf32>
    %701 = arith.cmpf ogt, %699, %700 : vector<16x16xf32>
    %cst_272 = arith.constant 2.000000e-01 : f32
    %702 = vector.broadcast %cst_272 : f32 to vector<16x16xf32>
    %703 = arith.mulf %702, %699 : vector<16x16xf32>
    %704 = arith.select %701, %699, %703 : vector<16x16xi1>, vector<16x16xf32>
    %705 = arith.addf %704, %7 : vector<16x16xf32>
    %cst_273 = arith.constant dense<0xFF800000> : vector<16xf32>
    %706 = vector.multi_reduction <maximumf>, %705, %cst_273 [1] : vector<16x16xf32> to vector<16xf32>
    %707 = vector.shape_cast %706 : vector<16xf32> to vector<16x1xf32>
    %708 = vector.broadcast %707 : vector<16x1xf32> to vector<16x16xf32>
    %709 = arith.subf %705, %708 : vector<16x16xf32>
    %710 = math.exp %709 : vector<16x16xf32>
    %cst_274 = arith.constant dense<0.000000e+00> : vector<16xf32>
    %711 = vector.multi_reduction <add>, %710, %cst_274 [1] : vector<16x16xf32> to vector<16xf32>
    %712 = vector.shape_cast %711 : vector<16xf32> to vector<16x1xf32>
    %713 = vector.broadcast %712 : vector<16x1xf32> to vector<16x16xf32>
    %714 = arith.divf %710, %713 : vector<16x16xf32>
    %715 = vector.extract_strided_slice %688 {offsets = [0, 0], sizes = [16, 4], strides = [1, 1]} : vector<16x8xf32> to vector<16x4xf32>
    %cst_275 = arith.constant dense<0.000000e+00> : vector<16x4xf32>
    %716 = tpu.matmul %714, %715, %cst_275 {dimension_numbers = #tpu.dot_dimension_numbers<[1], [0], [0], [1], [0, 0, 1, 1], [], []>} : vector<16x16xf32>, vector<16x4xf32>, vector<16x4xf32> -> vector<16x4xf32>
    %717 = vector.extract_strided_slice %694 {offsets = [0, 1], sizes = [16, 1], strides = [1, 1]} : vector<16x2xf32> to vector<16x1xf32>
    %718 = vector.extract_strided_slice %693 {offsets = [1, 0], sizes = [1, 16], strides = [1, 1]} : vector<2x16xf32> to vector<1x16xf32>
    %719 = vector.broadcast %717 : vector<16x1xf32> to vector<16x16xf32>
    %720 = vector.broadcast %718 : vector<1x16xf32> to vector<16x16xf32>
    %721 = arith.addf %719, %720 : vector<16x16xf32>
    %cst_276 = arith.constant 0.000000e+00 : f32
    %722 = vector.broadcast %cst_276 : f32 to vector<16x16xf32>
    %723 = arith.cmpf ogt, %721, %722 : vector<16x16xf32>
    %cst_277 = arith.constant 2.000000e-01 : f32
    %724 = vector.broadcast %cst_277 : f32 to vector<16x16xf32>
    %725 = arith.mulf %724, %721 : vector<16x16xf32>
    %726 = arith.select %723, %721, %725 : vector<16x16xi1>, vector<16x16xf32>
    %727 = arith.addf %726, %7 : vector<16x16xf32>
    %cst_278 = arith.constant dense<0xFF800000> : vector<16xf32>
    %728 = vector.multi_reduction <maximumf>, %727, %cst_278 [1] : vector<16x16xf32> to vector<16xf32>
    %729 = vector.shape_cast %728 : vector<16xf32> to vector<16x1xf32>
    %730 = vector.broadcast %729 : vector<16x1xf32> to vector<16x16xf32>
    %731 = arith.subf %727, %730 : vector<16x16xf32>
    %732 = math.exp %731 : vector<16x16xf32>
    %cst_279 = arith.constant dense<0.000000e+00> : vector<16xf32>
    %733 = vector.multi_reduction <add>, %732, %cst_279 [1] : vector<16x16xf32> to vector<16xf32>
    %734 = vector.shape_cast %733 : vector<16xf32> to vector<16x1xf32>
    %735 = vector.broadcast %734 : vector<16x1xf32> to vector<16x16xf32>
    %736 = arith.divf %732, %735 : vector<16x16xf32>
    %737 = vector.extract_strided_slice %688 {offsets = [0, 4], sizes = [16, 4], strides = [1, 1]} : vector<16x8xf32> to vector<16x4xf32>
    %cst_280 = arith.constant dense<0.000000e+00> : vector<16x4xf32>
    %738 = tpu.matmul %736, %737, %cst_280 {dimension_numbers = #tpu.dot_dimension_numbers<[1], [0], [0], [1], [0, 0, 1, 1], [], []>} : vector<16x16xf32>, vector<16x4xf32>, vector<16x4xf32> -> vector<16x4xf32>
    %739 = tpu.concatenate %716, %738 in 1 : vector<16x4xf32>, vector<16x4xf32> -> vector<16x8xf32>
    %c9_281 = arith.constant 9 : index
    %c0_282 = arith.constant 0 : index
    %740 = vector.load %arg5[%c9_281, %c0_282] : memref<13x8xf32, #tpu.memory_space<vmem>>, vector<1x8xf32>
    %741 = vector.broadcast %740 : vector<1x8xf32> to vector<16x8xf32>
    %742 = arith.addf %739, %741 : vector<16x8xf32>
    %cst_283 = arith.constant 0.000000e+00 : f32
    %743 = vector.broadcast %cst_283 : f32 to vector<16x8xf32>
    %744 = arith.cmpf ogt, %742, %743 : vector<16x8xf32>
    %cst_284 = arith.constant 0.000000e+00 : f32
    %745 = vector.broadcast %cst_284 : f32 to vector<16x8xf32>
    %746 = arith.minimumf %742, %745 : vector<16x8xf32>
    %747 = math.exp %746 : vector<16x8xf32>
    %cst_285 = arith.constant 1.000000e+00 : f32
    %748 = vector.broadcast %cst_285 : f32 to vector<16x8xf32>
    %749 = arith.subf %747, %748 : vector<16x8xf32>
    %750 = arith.select %744, %742, %749 : vector<16x8xi1>, vector<16x8xf32>
    %c9_286 = arith.constant 9 : index
    %c0_287 = arith.constant 0 : index
    %c0_288 = arith.constant 0 : index
    %751 = vector.load %arg6[%c9_286, %c0_287, %c0_288] : memref<13x8x8xf32, #tpu.memory_space<vmem>>, vector<1x8x8xf32>
    %752 = vector.shape_cast %751 : vector<1x8x8xf32> to vector<8x8xf32>
    %cst_289 = arith.constant dense<0.000000e+00> : vector<16x8xf32>
    %753 = tpu.matmul %750, %752, %cst_289 {dimension_numbers = #tpu.dot_dimension_numbers<[1], [0], [0], [1], [0, 0, 1, 1], [], []>} : vector<16x8xf32>, vector<8x8xf32>, vector<16x8xf32> -> vector<16x8xf32>
    %c9_290 = arith.constant 9 : index
    %c0_291 = arith.constant 0 : index
    %754 = vector.load %arg7[%c9_290, %c0_291] : memref<13x8xf32, #tpu.memory_space<vmem>>, vector<1x8xf32>
    %755 = vector.broadcast %754 : vector<1x8xf32> to vector<16x8xf32>
    %756 = arith.addf %753, %755 : vector<16x8xf32>
    %757 = vector.extract_strided_slice %308 {offsets = [16, 0], sizes = [16, 4], strides = [1, 1]} : vector<64x4xf32> to vector<16x4xf32>
    %758 = vector.extract_strided_slice %308 {offsets = [32, 0], sizes = [16, 4], strides = [1, 1]} : vector<64x4xf32> to vector<16x4xf32>
    %759 = vector.extract_strided_slice %308 {offsets = [48, 0], sizes = [16, 4], strides = [1, 1]} : vector<64x4xf32> to vector<16x4xf32>
    %760 = math.absf %757 : vector<16x4xf32>
    %761 = math.absf %758 : vector<16x4xf32>
    %762 = math.absf %759 : vector<16x4xf32>
    %763 = tpu.concatenate %760, %761, %762 in 1 : vector<16x4xf32>, vector<16x4xf32>, vector<16x4xf32> -> vector<16x12xf32>
    %cst_292 = arith.constant dense<0.000000e+00> : vector<64x12xf32>
    %764 = tpu.matmul %2, %763, %cst_292 {dimension_numbers = #tpu.dot_dimension_numbers<[1], [0], [0], [1], [0, 0, 1, 1], [], []>} : vector<64x16xf32>, vector<16x12xf32>, vector<64x12xf32> -> vector<64x12xf32>
    %765 = vector.extract_strided_slice %764 {offsets = [0, 0], sizes = [16, 4], strides = [1, 1]} : vector<64x12xf32> to vector<16x4xf32>
    %c10 = arith.constant 10 : index
    %c0_293 = arith.constant 0 : index
    %c0_294 = arith.constant 0 : index
    %766 = vector.load %arg3[%c10, %c0_293, %c0_294] : memref<13x4x8xf32, #tpu.memory_space<vmem>>, vector<1x4x8xf32>
    %767 = vector.shape_cast %766 : vector<1x4x8xf32> to vector<4x8xf32>
    %cst_295 = arith.constant dense<0.000000e+00> : vector<16x8xf32>
    %768 = tpu.matmul %765, %767, %cst_295 {dimension_numbers = #tpu.dot_dimension_numbers<[1], [0], [0], [1], [0, 0, 1, 1], [], []>} : vector<16x4xf32>, vector<4x8xf32>, vector<16x8xf32> -> vector<16x8xf32>
    %c10_296 = arith.constant 10 : index
    %c0_297 = arith.constant 0 : index
    %c0_298 = arith.constant 0 : index
    %769 = vector.load %arg4[%c10_296, %c0_297, %c0_298] : memref<13x8x4xf32, #tpu.memory_space<vmem>>, vector<1x8x4xf32>
    %770 = vector.shape_cast %769 : vector<1x8x4xf32> to vector<8x4xf32>
    %cst_299 = arith.constant dense<0.000000e+00> : vector<16x4xf32>
    %771 = tpu.matmul %768, %770, %cst_299 {dimension_numbers = #tpu.dot_dimension_numbers<[1], [0], [0], [1], [0, 0, 1, 1], [], []>} : vector<16x8xf32>, vector<8x4xf32>, vector<16x4xf32> -> vector<16x4xf32>
    %772 = vector.extract_strided_slice %771 {offsets = [0, 0], sizes = [16, 2], strides = [1, 1]} : vector<16x4xf32> to vector<16x2xf32>
    %773 = tpu.transpose %772, [1, 0] : vector<16x2xf32> -> vector<2x16xf32>
    %774 = vector.extract_strided_slice %771 {offsets = [0, 2], sizes = [16, 2], strides = [1, 1]} : vector<16x4xf32> to vector<16x2xf32>
    %775 = vector.extract_strided_slice %774 {offsets = [0, 0], sizes = [16, 1], strides = [1, 1]} : vector<16x2xf32> to vector<16x1xf32>
    %776 = vector.extract_strided_slice %773 {offsets = [0, 0], sizes = [1, 16], strides = [1, 1]} : vector<2x16xf32> to vector<1x16xf32>
    %777 = vector.broadcast %775 : vector<16x1xf32> to vector<16x16xf32>
    %778 = vector.broadcast %776 : vector<1x16xf32> to vector<16x16xf32>
    %779 = arith.addf %777, %778 : vector<16x16xf32>
    %cst_300 = arith.constant 0.000000e+00 : f32
    %780 = vector.broadcast %cst_300 : f32 to vector<16x16xf32>
    %781 = arith.cmpf ogt, %779, %780 : vector<16x16xf32>
    %cst_301 = arith.constant 2.000000e-01 : f32
    %782 = vector.broadcast %cst_301 : f32 to vector<16x16xf32>
    %783 = arith.mulf %782, %779 : vector<16x16xf32>
    %784 = arith.select %781, %779, %783 : vector<16x16xi1>, vector<16x16xf32>
    %785 = arith.addf %784, %7 : vector<16x16xf32>
    %cst_302 = arith.constant dense<0xFF800000> : vector<16xf32>
    %786 = vector.multi_reduction <maximumf>, %785, %cst_302 [1] : vector<16x16xf32> to vector<16xf32>
    %787 = vector.shape_cast %786 : vector<16xf32> to vector<16x1xf32>
    %788 = vector.broadcast %787 : vector<16x1xf32> to vector<16x16xf32>
    %789 = arith.subf %785, %788 : vector<16x16xf32>
    %790 = math.exp %789 : vector<16x16xf32>
    %cst_303 = arith.constant dense<0.000000e+00> : vector<16xf32>
    %791 = vector.multi_reduction <add>, %790, %cst_303 [1] : vector<16x16xf32> to vector<16xf32>
    %792 = vector.shape_cast %791 : vector<16xf32> to vector<16x1xf32>
    %793 = vector.broadcast %792 : vector<16x1xf32> to vector<16x16xf32>
    %794 = arith.divf %790, %793 : vector<16x16xf32>
    %795 = vector.extract_strided_slice %768 {offsets = [0, 0], sizes = [16, 4], strides = [1, 1]} : vector<16x8xf32> to vector<16x4xf32>
    %cst_304 = arith.constant dense<0.000000e+00> : vector<16x4xf32>
    %796 = tpu.matmul %794, %795, %cst_304 {dimension_numbers = #tpu.dot_dimension_numbers<[1], [0], [0], [1], [0, 0, 1, 1], [], []>} : vector<16x16xf32>, vector<16x4xf32>, vector<16x4xf32> -> vector<16x4xf32>
    %797 = vector.extract_strided_slice %774 {offsets = [0, 1], sizes = [16, 1], strides = [1, 1]} : vector<16x2xf32> to vector<16x1xf32>
    %798 = vector.extract_strided_slice %773 {offsets = [1, 0], sizes = [1, 16], strides = [1, 1]} : vector<2x16xf32> to vector<1x16xf32>
    %799 = vector.broadcast %797 : vector<16x1xf32> to vector<16x16xf32>
    %800 = vector.broadcast %798 : vector<1x16xf32> to vector<16x16xf32>
    %801 = arith.addf %799, %800 : vector<16x16xf32>
    %cst_305 = arith.constant 0.000000e+00 : f32
    %802 = vector.broadcast %cst_305 : f32 to vector<16x16xf32>
    %803 = arith.cmpf ogt, %801, %802 : vector<16x16xf32>
    %cst_306 = arith.constant 2.000000e-01 : f32
    %804 = vector.broadcast %cst_306 : f32 to vector<16x16xf32>
    %805 = arith.mulf %804, %801 : vector<16x16xf32>
    %806 = arith.select %803, %801, %805 : vector<16x16xi1>, vector<16x16xf32>
    %807 = arith.addf %806, %7 : vector<16x16xf32>
    %cst_307 = arith.constant dense<0xFF800000> : vector<16xf32>
    %808 = vector.multi_reduction <maximumf>, %807, %cst_307 [1] : vector<16x16xf32> to vector<16xf32>
    %809 = vector.shape_cast %808 : vector<16xf32> to vector<16x1xf32>
    %810 = vector.broadcast %809 : vector<16x1xf32> to vector<16x16xf32>
    %811 = arith.subf %807, %810 : vector<16x16xf32>
    %812 = math.exp %811 : vector<16x16xf32>
    %cst_308 = arith.constant dense<0.000000e+00> : vector<16xf32>
    %813 = vector.multi_reduction <add>, %812, %cst_308 [1] : vector<16x16xf32> to vector<16xf32>
    %814 = vector.shape_cast %813 : vector<16xf32> to vector<16x1xf32>
    %815 = vector.broadcast %814 : vector<16x1xf32> to vector<16x16xf32>
    %816 = arith.divf %812, %815 : vector<16x16xf32>
    %817 = vector.extract_strided_slice %768 {offsets = [0, 4], sizes = [16, 4], strides = [1, 1]} : vector<16x8xf32> to vector<16x4xf32>
    %cst_309 = arith.constant dense<0.000000e+00> : vector<16x4xf32>
    %818 = tpu.matmul %816, %817, %cst_309 {dimension_numbers = #tpu.dot_dimension_numbers<[1], [0], [0], [1], [0, 0, 1, 1], [], []>} : vector<16x16xf32>, vector<16x4xf32>, vector<16x4xf32> -> vector<16x4xf32>
    %819 = tpu.concatenate %796, %818 in 1 : vector<16x4xf32>, vector<16x4xf32> -> vector<16x8xf32>
    %c10_310 = arith.constant 10 : index
    %c0_311 = arith.constant 0 : index
    %820 = vector.load %arg5[%c10_310, %c0_311] : memref<13x8xf32, #tpu.memory_space<vmem>>, vector<1x8xf32>
    %821 = vector.broadcast %820 : vector<1x8xf32> to vector<16x8xf32>
    %822 = arith.addf %819, %821 : vector<16x8xf32>
    %cst_312 = arith.constant 0.000000e+00 : f32
    %823 = vector.broadcast %cst_312 : f32 to vector<16x8xf32>
    %824 = arith.cmpf ogt, %822, %823 : vector<16x8xf32>
    %cst_313 = arith.constant 0.000000e+00 : f32
    %825 = vector.broadcast %cst_313 : f32 to vector<16x8xf32>
    %826 = arith.minimumf %822, %825 : vector<16x8xf32>
    %827 = math.exp %826 : vector<16x8xf32>
    %cst_314 = arith.constant 1.000000e+00 : f32
    %828 = vector.broadcast %cst_314 : f32 to vector<16x8xf32>
    %829 = arith.subf %827, %828 : vector<16x8xf32>
    %830 = arith.select %824, %822, %829 : vector<16x8xi1>, vector<16x8xf32>
    %c10_315 = arith.constant 10 : index
    %c0_316 = arith.constant 0 : index
    %c0_317 = arith.constant 0 : index
    %831 = vector.load %arg6[%c10_315, %c0_316, %c0_317] : memref<13x8x8xf32, #tpu.memory_space<vmem>>, vector<1x8x8xf32>
    %832 = vector.shape_cast %831 : vector<1x8x8xf32> to vector<8x8xf32>
    %cst_318 = arith.constant dense<0.000000e+00> : vector<16x8xf32>
    %833 = tpu.matmul %830, %832, %cst_318 {dimension_numbers = #tpu.dot_dimension_numbers<[1], [0], [0], [1], [0, 0, 1, 1], [], []>} : vector<16x8xf32>, vector<8x8xf32>, vector<16x8xf32> -> vector<16x8xf32>
    %c10_319 = arith.constant 10 : index
    %c0_320 = arith.constant 0 : index
    %834 = vector.load %arg7[%c10_319, %c0_320] : memref<13x8xf32, #tpu.memory_space<vmem>>, vector<1x8xf32>
    %835 = vector.broadcast %834 : vector<1x8xf32> to vector<16x8xf32>
    %836 = arith.addf %833, %835 : vector<16x8xf32>
    %837 = vector.extract_strided_slice %764 {offsets = [0, 4], sizes = [16, 4], strides = [1, 1]} : vector<64x12xf32> to vector<16x4xf32>
    %c11 = arith.constant 11 : index
    %c0_321 = arith.constant 0 : index
    %c0_322 = arith.constant 0 : index
    %838 = vector.load %arg3[%c11, %c0_321, %c0_322] : memref<13x4x8xf32, #tpu.memory_space<vmem>>, vector<1x4x8xf32>
    %839 = vector.shape_cast %838 : vector<1x4x8xf32> to vector<4x8xf32>
    %cst_323 = arith.constant dense<0.000000e+00> : vector<16x8xf32>
    %840 = tpu.matmul %837, %839, %cst_323 {dimension_numbers = #tpu.dot_dimension_numbers<[1], [0], [0], [1], [0, 0, 1, 1], [], []>} : vector<16x4xf32>, vector<4x8xf32>, vector<16x8xf32> -> vector<16x8xf32>
    %c11_324 = arith.constant 11 : index
    %c0_325 = arith.constant 0 : index
    %c0_326 = arith.constant 0 : index
    %841 = vector.load %arg4[%c11_324, %c0_325, %c0_326] : memref<13x8x4xf32, #tpu.memory_space<vmem>>, vector<1x8x4xf32>
    %842 = vector.shape_cast %841 : vector<1x8x4xf32> to vector<8x4xf32>
    %cst_327 = arith.constant dense<0.000000e+00> : vector<16x4xf32>
    %843 = tpu.matmul %840, %842, %cst_327 {dimension_numbers = #tpu.dot_dimension_numbers<[1], [0], [0], [1], [0, 0, 1, 1], [], []>} : vector<16x8xf32>, vector<8x4xf32>, vector<16x4xf32> -> vector<16x4xf32>
    %844 = vector.extract_strided_slice %843 {offsets = [0, 0], sizes = [16, 2], strides = [1, 1]} : vector<16x4xf32> to vector<16x2xf32>
    %845 = tpu.transpose %844, [1, 0] : vector<16x2xf32> -> vector<2x16xf32>
    %846 = vector.extract_strided_slice %843 {offsets = [0, 2], sizes = [16, 2], strides = [1, 1]} : vector<16x4xf32> to vector<16x2xf32>
    %847 = vector.extract_strided_slice %846 {offsets = [0, 0], sizes = [16, 1], strides = [1, 1]} : vector<16x2xf32> to vector<16x1xf32>
    %848 = vector.extract_strided_slice %845 {offsets = [0, 0], sizes = [1, 16], strides = [1, 1]} : vector<2x16xf32> to vector<1x16xf32>
    %849 = vector.broadcast %847 : vector<16x1xf32> to vector<16x16xf32>
    %850 = vector.broadcast %848 : vector<1x16xf32> to vector<16x16xf32>
    %851 = arith.addf %849, %850 : vector<16x16xf32>
    %cst_328 = arith.constant 0.000000e+00 : f32
    %852 = vector.broadcast %cst_328 : f32 to vector<16x16xf32>
    %853 = arith.cmpf ogt, %851, %852 : vector<16x16xf32>
    %cst_329 = arith.constant 2.000000e-01 : f32
    %854 = vector.broadcast %cst_329 : f32 to vector<16x16xf32>
    %855 = arith.mulf %854, %851 : vector<16x16xf32>
    %856 = arith.select %853, %851, %855 : vector<16x16xi1>, vector<16x16xf32>
    %857 = arith.addf %856, %7 : vector<16x16xf32>
    %cst_330 = arith.constant dense<0xFF800000> : vector<16xf32>
    %858 = vector.multi_reduction <maximumf>, %857, %cst_330 [1] : vector<16x16xf32> to vector<16xf32>
    %859 = vector.shape_cast %858 : vector<16xf32> to vector<16x1xf32>
    %860 = vector.broadcast %859 : vector<16x1xf32> to vector<16x16xf32>
    %861 = arith.subf %857, %860 : vector<16x16xf32>
    %862 = math.exp %861 : vector<16x16xf32>
    %cst_331 = arith.constant dense<0.000000e+00> : vector<16xf32>
    %863 = vector.multi_reduction <add>, %862, %cst_331 [1] : vector<16x16xf32> to vector<16xf32>
    %864 = vector.shape_cast %863 : vector<16xf32> to vector<16x1xf32>
    %865 = vector.broadcast %864 : vector<16x1xf32> to vector<16x16xf32>
    %866 = arith.divf %862, %865 : vector<16x16xf32>
    %867 = vector.extract_strided_slice %840 {offsets = [0, 0], sizes = [16, 4], strides = [1, 1]} : vector<16x8xf32> to vector<16x4xf32>
    %cst_332 = arith.constant dense<0.000000e+00> : vector<16x4xf32>
    %868 = tpu.matmul %866, %867, %cst_332 {dimension_numbers = #tpu.dot_dimension_numbers<[1], [0], [0], [1], [0, 0, 1, 1], [], []>} : vector<16x16xf32>, vector<16x4xf32>, vector<16x4xf32> -> vector<16x4xf32>
    %869 = vector.extract_strided_slice %846 {offsets = [0, 1], sizes = [16, 1], strides = [1, 1]} : vector<16x2xf32> to vector<16x1xf32>
    %870 = vector.extract_strided_slice %845 {offsets = [1, 0], sizes = [1, 16], strides = [1, 1]} : vector<2x16xf32> to vector<1x16xf32>
    %871 = vector.broadcast %869 : vector<16x1xf32> to vector<16x16xf32>
    %872 = vector.broadcast %870 : vector<1x16xf32> to vector<16x16xf32>
    %873 = arith.addf %871, %872 : vector<16x16xf32>
    %cst_333 = arith.constant 0.000000e+00 : f32
    %874 = vector.broadcast %cst_333 : f32 to vector<16x16xf32>
    %875 = arith.cmpf ogt, %873, %874 : vector<16x16xf32>
    %cst_334 = arith.constant 2.000000e-01 : f32
    %876 = vector.broadcast %cst_334 : f32 to vector<16x16xf32>
    %877 = arith.mulf %876, %873 : vector<16x16xf32>
    %878 = arith.select %875, %873, %877 : vector<16x16xi1>, vector<16x16xf32>
    %879 = arith.addf %878, %7 : vector<16x16xf32>
    %cst_335 = arith.constant dense<0xFF800000> : vector<16xf32>
    %880 = vector.multi_reduction <maximumf>, %879, %cst_335 [1] : vector<16x16xf32> to vector<16xf32>
    %881 = vector.shape_cast %880 : vector<16xf32> to vector<16x1xf32>
    %882 = vector.broadcast %881 : vector<16x1xf32> to vector<16x16xf32>
    %883 = arith.subf %879, %882 : vector<16x16xf32>
    %884 = math.exp %883 : vector<16x16xf32>
    %cst_336 = arith.constant dense<0.000000e+00> : vector<16xf32>
    %885 = vector.multi_reduction <add>, %884, %cst_336 [1] : vector<16x16xf32> to vector<16xf32>
    %886 = vector.shape_cast %885 : vector<16xf32> to vector<16x1xf32>
    %887 = vector.broadcast %886 : vector<16x1xf32> to vector<16x16xf32>
    %888 = arith.divf %884, %887 : vector<16x16xf32>
    %889 = vector.extract_strided_slice %840 {offsets = [0, 4], sizes = [16, 4], strides = [1, 1]} : vector<16x8xf32> to vector<16x4xf32>
    %cst_337 = arith.constant dense<0.000000e+00> : vector<16x4xf32>
    %890 = tpu.matmul %888, %889, %cst_337 {dimension_numbers = #tpu.dot_dimension_numbers<[1], [0], [0], [1], [0, 0, 1, 1], [], []>} : vector<16x16xf32>, vector<16x4xf32>, vector<16x4xf32> -> vector<16x4xf32>
    %891 = tpu.concatenate %868, %890 in 1 : vector<16x4xf32>, vector<16x4xf32> -> vector<16x8xf32>
    %c11_338 = arith.constant 11 : index
    %c0_339 = arith.constant 0 : index
    %892 = vector.load %arg5[%c11_338, %c0_339] : memref<13x8xf32, #tpu.memory_space<vmem>>, vector<1x8xf32>
    %893 = vector.broadcast %892 : vector<1x8xf32> to vector<16x8xf32>
    %894 = arith.addf %891, %893 : vector<16x8xf32>
    %cst_340 = arith.constant 0.000000e+00 : f32
    %895 = vector.broadcast %cst_340 : f32 to vector<16x8xf32>
    %896 = arith.cmpf ogt, %894, %895 : vector<16x8xf32>
    %cst_341 = arith.constant 0.000000e+00 : f32
    %897 = vector.broadcast %cst_341 : f32 to vector<16x8xf32>
    %898 = arith.minimumf %894, %897 : vector<16x8xf32>
    %899 = math.exp %898 : vector<16x8xf32>
    %cst_342 = arith.constant 1.000000e+00 : f32
    %900 = vector.broadcast %cst_342 : f32 to vector<16x8xf32>
    %901 = arith.subf %899, %900 : vector<16x8xf32>
    %902 = arith.select %896, %894, %901 : vector<16x8xi1>, vector<16x8xf32>
    %c11_343 = arith.constant 11 : index
    %c0_344 = arith.constant 0 : index
    %c0_345 = arith.constant 0 : index
    %903 = vector.load %arg6[%c11_343, %c0_344, %c0_345] : memref<13x8x8xf32, #tpu.memory_space<vmem>>, vector<1x8x8xf32>
    %904 = vector.shape_cast %903 : vector<1x8x8xf32> to vector<8x8xf32>
    %cst_346 = arith.constant dense<0.000000e+00> : vector<16x8xf32>
    %905 = tpu.matmul %902, %904, %cst_346 {dimension_numbers = #tpu.dot_dimension_numbers<[1], [0], [0], [1], [0, 0, 1, 1], [], []>} : vector<16x8xf32>, vector<8x8xf32>, vector<16x8xf32> -> vector<16x8xf32>
    %c11_347 = arith.constant 11 : index
    %c0_348 = arith.constant 0 : index
    %906 = vector.load %arg7[%c11_347, %c0_348] : memref<13x8xf32, #tpu.memory_space<vmem>>, vector<1x8xf32>
    %907 = vector.broadcast %906 : vector<1x8xf32> to vector<16x8xf32>
    %908 = arith.addf %905, %907 : vector<16x8xf32>
    %909 = vector.extract_strided_slice %764 {offsets = [0, 8], sizes = [16, 4], strides = [1, 1]} : vector<64x12xf32> to vector<16x4xf32>
    %c12 = arith.constant 12 : index
    %c0_349 = arith.constant 0 : index
    %c0_350 = arith.constant 0 : index
    %910 = vector.load %arg3[%c12, %c0_349, %c0_350] : memref<13x4x8xf32, #tpu.memory_space<vmem>>, vector<1x4x8xf32>
    %911 = vector.shape_cast %910 : vector<1x4x8xf32> to vector<4x8xf32>
    %cst_351 = arith.constant dense<0.000000e+00> : vector<16x8xf32>
    %912 = tpu.matmul %909, %911, %cst_351 {dimension_numbers = #tpu.dot_dimension_numbers<[1], [0], [0], [1], [0, 0, 1, 1], [], []>} : vector<16x4xf32>, vector<4x8xf32>, vector<16x8xf32> -> vector<16x8xf32>
    %c12_352 = arith.constant 12 : index
    %c0_353 = arith.constant 0 : index
    %c0_354 = arith.constant 0 : index
    %913 = vector.load %arg4[%c12_352, %c0_353, %c0_354] : memref<13x8x4xf32, #tpu.memory_space<vmem>>, vector<1x8x4xf32>
    %914 = vector.shape_cast %913 : vector<1x8x4xf32> to vector<8x4xf32>
    %cst_355 = arith.constant dense<0.000000e+00> : vector<16x4xf32>
    %915 = tpu.matmul %912, %914, %cst_355 {dimension_numbers = #tpu.dot_dimension_numbers<[1], [0], [0], [1], [0, 0, 1, 1], [], []>} : vector<16x8xf32>, vector<8x4xf32>, vector<16x4xf32> -> vector<16x4xf32>
    %916 = vector.extract_strided_slice %915 {offsets = [0, 0], sizes = [16, 2], strides = [1, 1]} : vector<16x4xf32> to vector<16x2xf32>
    %917 = tpu.transpose %916, [1, 0] : vector<16x2xf32> -> vector<2x16xf32>
    %918 = vector.extract_strided_slice %915 {offsets = [0, 2], sizes = [16, 2], strides = [1, 1]} : vector<16x4xf32> to vector<16x2xf32>
    %919 = vector.extract_strided_slice %918 {offsets = [0, 0], sizes = [16, 1], strides = [1, 1]} : vector<16x2xf32> to vector<16x1xf32>
    %920 = vector.extract_strided_slice %917 {offsets = [0, 0], sizes = [1, 16], strides = [1, 1]} : vector<2x16xf32> to vector<1x16xf32>
    %921 = vector.broadcast %919 : vector<16x1xf32> to vector<16x16xf32>
    %922 = vector.broadcast %920 : vector<1x16xf32> to vector<16x16xf32>
    %923 = arith.addf %921, %922 : vector<16x16xf32>
    %cst_356 = arith.constant 0.000000e+00 : f32
    %924 = vector.broadcast %cst_356 : f32 to vector<16x16xf32>
    %925 = arith.cmpf ogt, %923, %924 : vector<16x16xf32>
    %cst_357 = arith.constant 2.000000e-01 : f32
    %926 = vector.broadcast %cst_357 : f32 to vector<16x16xf32>
    %927 = arith.mulf %926, %923 : vector<16x16xf32>
    %928 = arith.select %925, %923, %927 : vector<16x16xi1>, vector<16x16xf32>
    %929 = arith.addf %928, %7 : vector<16x16xf32>
    %cst_358 = arith.constant dense<0xFF800000> : vector<16xf32>
    %930 = vector.multi_reduction <maximumf>, %929, %cst_358 [1] : vector<16x16xf32> to vector<16xf32>
    %931 = vector.shape_cast %930 : vector<16xf32> to vector<16x1xf32>
    %932 = vector.broadcast %931 : vector<16x1xf32> to vector<16x16xf32>
    %933 = arith.subf %929, %932 : vector<16x16xf32>
    %934 = math.exp %933 : vector<16x16xf32>
    %cst_359 = arith.constant dense<0.000000e+00> : vector<16xf32>
    %935 = vector.multi_reduction <add>, %934, %cst_359 [1] : vector<16x16xf32> to vector<16xf32>
    %936 = vector.shape_cast %935 : vector<16xf32> to vector<16x1xf32>
    %937 = vector.broadcast %936 : vector<16x1xf32> to vector<16x16xf32>
    %938 = arith.divf %934, %937 : vector<16x16xf32>
    %939 = vector.extract_strided_slice %912 {offsets = [0, 0], sizes = [16, 4], strides = [1, 1]} : vector<16x8xf32> to vector<16x4xf32>
    %cst_360 = arith.constant dense<0.000000e+00> : vector<16x4xf32>
    %940 = tpu.matmul %938, %939, %cst_360 {dimension_numbers = #tpu.dot_dimension_numbers<[1], [0], [0], [1], [0, 0, 1, 1], [], []>} : vector<16x16xf32>, vector<16x4xf32>, vector<16x4xf32> -> vector<16x4xf32>
    %941 = vector.extract_strided_slice %918 {offsets = [0, 1], sizes = [16, 1], strides = [1, 1]} : vector<16x2xf32> to vector<16x1xf32>
    %942 = vector.extract_strided_slice %917 {offsets = [1, 0], sizes = [1, 16], strides = [1, 1]} : vector<2x16xf32> to vector<1x16xf32>
    %943 = vector.broadcast %941 : vector<16x1xf32> to vector<16x16xf32>
    %944 = vector.broadcast %942 : vector<1x16xf32> to vector<16x16xf32>
    %945 = arith.addf %943, %944 : vector<16x16xf32>
    %cst_361 = arith.constant 0.000000e+00 : f32
    %946 = vector.broadcast %cst_361 : f32 to vector<16x16xf32>
    %947 = arith.cmpf ogt, %945, %946 : vector<16x16xf32>
    %cst_362 = arith.constant 2.000000e-01 : f32
    %948 = vector.broadcast %cst_362 : f32 to vector<16x16xf32>
    %949 = arith.mulf %948, %945 : vector<16x16xf32>
    %950 = arith.select %947, %945, %949 : vector<16x16xi1>, vector<16x16xf32>
    %951 = arith.addf %950, %7 : vector<16x16xf32>
    %cst_363 = arith.constant dense<0xFF800000> : vector<16xf32>
    %952 = vector.multi_reduction <maximumf>, %951, %cst_363 [1] : vector<16x16xf32> to vector<16xf32>
    %953 = vector.shape_cast %952 : vector<16xf32> to vector<16x1xf32>
    %954 = vector.broadcast %953 : vector<16x1xf32> to vector<16x16xf32>
    %955 = arith.subf %951, %954 : vector<16x16xf32>
    %956 = math.exp %955 : vector<16x16xf32>
    %cst_364 = arith.constant dense<0.000000e+00> : vector<16xf32>
    %957 = vector.multi_reduction <add>, %956, %cst_364 [1] : vector<16x16xf32> to vector<16xf32>
    %958 = vector.shape_cast %957 : vector<16xf32> to vector<16x1xf32>
    %959 = vector.broadcast %958 : vector<16x1xf32> to vector<16x16xf32>
    %960 = arith.divf %956, %959 : vector<16x16xf32>
    %961 = vector.extract_strided_slice %912 {offsets = [0, 4], sizes = [16, 4], strides = [1, 1]} : vector<16x8xf32> to vector<16x4xf32>
    %cst_365 = arith.constant dense<0.000000e+00> : vector<16x4xf32>
    %962 = tpu.matmul %960, %961, %cst_365 {dimension_numbers = #tpu.dot_dimension_numbers<[1], [0], [0], [1], [0, 0, 1, 1], [], []>} : vector<16x16xf32>, vector<16x4xf32>, vector<16x4xf32> -> vector<16x4xf32>
    %963 = tpu.concatenate %940, %962 in 1 : vector<16x4xf32>, vector<16x4xf32> -> vector<16x8xf32>
    %c12_366 = arith.constant 12 : index
    %c0_367 = arith.constant 0 : index
    %964 = vector.load %arg5[%c12_366, %c0_367] : memref<13x8xf32, #tpu.memory_space<vmem>>, vector<1x8xf32>
    %965 = vector.broadcast %964 : vector<1x8xf32> to vector<16x8xf32>
    %966 = arith.addf %963, %965 : vector<16x8xf32>
    %cst_368 = arith.constant 0.000000e+00 : f32
    %967 = vector.broadcast %cst_368 : f32 to vector<16x8xf32>
    %968 = arith.cmpf ogt, %966, %967 : vector<16x8xf32>
    %cst_369 = arith.constant 0.000000e+00 : f32
    %969 = vector.broadcast %cst_369 : f32 to vector<16x8xf32>
    %970 = arith.minimumf %966, %969 : vector<16x8xf32>
    %971 = math.exp %970 : vector<16x8xf32>
    %cst_370 = arith.constant 1.000000e+00 : f32
    %972 = vector.broadcast %cst_370 : f32 to vector<16x8xf32>
    %973 = arith.subf %971, %972 : vector<16x8xf32>
    %974 = arith.select %968, %966, %973 : vector<16x8xi1>, vector<16x8xf32>
    %c12_371 = arith.constant 12 : index
    %c0_372 = arith.constant 0 : index
    %c0_373 = arith.constant 0 : index
    %975 = vector.load %arg6[%c12_371, %c0_372, %c0_373] : memref<13x8x8xf32, #tpu.memory_space<vmem>>, vector<1x8x8xf32>
    %976 = vector.shape_cast %975 : vector<1x8x8xf32> to vector<8x8xf32>
    %cst_374 = arith.constant dense<0.000000e+00> : vector<16x8xf32>
    %977 = tpu.matmul %974, %976, %cst_374 {dimension_numbers = #tpu.dot_dimension_numbers<[1], [0], [0], [1], [0, 0, 1, 1], [], []>} : vector<16x8xf32>, vector<8x8xf32>, vector<16x8xf32> -> vector<16x8xf32>
    %c12_375 = arith.constant 12 : index
    %c0_376 = arith.constant 0 : index
    %978 = vector.load %arg7[%c12_375, %c0_376] : memref<13x8xf32, #tpu.memory_space<vmem>>, vector<1x8xf32>
    %979 = vector.broadcast %978 : vector<1x8xf32> to vector<16x8xf32>
    %980 = arith.addf %977, %979 : vector<16x8xf32>
    %981 = tpu.concatenate %81, %161, %234, %307, %388, %460, %532, %612, %684, %756, %836, %908, %980 in 1 : vector<16x8xf32>, vector<16x8xf32>, vector<16x8xf32>, vector<16x8xf32>, vector<16x8xf32>, vector<16x8xf32>, vector<16x8xf32>, vector<16x8xf32>, vector<16x8xf32>, vector<16x8xf32>, vector<16x8xf32>, vector<16x8xf32>, vector<16x8xf32> -> vector<16x104xf32>
    %cst_377 = arith.constant 0.000000e+00 : f32
    %982 = vector.broadcast %cst_377 : f32 to vector<16x104xf32>
    %983 = arith.cmpf ogt, %981, %982 : vector<16x104xf32>
    %cst_378 = arith.constant 0.000000e+00 : f32
    %984 = vector.broadcast %cst_378 : f32 to vector<16x104xf32>
    %985 = arith.minimumf %981, %984 : vector<16x104xf32>
    %986 = math.exp %985 : vector<16x104xf32>
    %cst_379 = arith.constant 1.000000e+00 : f32
    %987 = vector.broadcast %cst_379 : f32 to vector<16x104xf32>
    %988 = arith.subf %986, %987 : vector<16x104xf32>
    %989 = arith.select %983, %981, %988 : vector<16x104xi1>, vector<16x104xf32>
    %c0_380 = arith.constant 0 : index
    %c0_381 = arith.constant 0 : index
    %990 = vector.load %arg8[%c0_380, %c0_381] : memref<104x4xf32, #tpu.memory_space<vmem>>, vector<104x4xf32>
    %cst_382 = arith.constant dense<0.000000e+00> : vector<16x4xf32>
    %991 = tpu.matmul %989, %990, %cst_382 {dimension_numbers = #tpu.dot_dimension_numbers<[1], [0], [0], [1], [0, 0, 1, 1], [], []>} : vector<16x104xf32>, vector<104x4xf32>, vector<16x4xf32> -> vector<16x4xf32>
    %c0_383 = arith.constant 0 : index
    %c0_384 = arith.constant 0 : index
    %992 = vector.load %arg9[%c0_383, %c0_384] : memref<1x4xf32, #tpu.memory_space<vmem>>, vector<1x4xf32>
    %993 = vector.broadcast %992 : vector<1x4xf32> to vector<16x4xf32>
    %994 = arith.addf %991, %993 : vector<16x4xf32>
    %cst_385 = arith.constant dense<0xFF800000> : vector<16xf32>
    %995 = vector.multi_reduction <maximumf>, %994, %cst_385 [1] : vector<16x4xf32> to vector<16xf32>
    %996 = vector.shape_cast %995 : vector<16xf32> to vector<16x1xf32>
    %997 = vector.broadcast %996 : vector<16x1xf32> to vector<16x4xf32>
    %998 = arith.subf %994, %997 : vector<16x4xf32>
    %999 = math.exp %998 : vector<16x4xf32>
    %cst_386 = arith.constant dense<0.000000e+00> : vector<16xf32>
    %1000 = vector.multi_reduction <add>, %999, %cst_386 [1] : vector<16x4xf32> to vector<16xf32>
    %1001 = vector.shape_cast %1000 : vector<16xf32> to vector<16x1xf32>
    %1002 = math.log %1001 : vector<16x1xf32>
    %1003 = vector.broadcast %1002 : vector<16x1xf32> to vector<16x4xf32>
    %1004 = arith.subf %998, %1003 : vector<16x4xf32>
    %c0_387 = arith.constant 0 : index
    %c0_388 = arith.constant 0 : index
    %1005 = vector.load %arg10[%c0_387, %c0_388] : memref<16x4xf32, #tpu.memory_space<vmem>>, vector<16x4xf32>
    tpu.vector_store %arg10[%c0_387, %c0_388], %1004 {strides = array<i32>} : memref<16x4xf32, #tpu.memory_space<vmem>>, vector<16x4xf32>,
    return
  }
}

</mosaic_0001>

<llo_original>
// kernel: tpu_custom_call.1
$region0: #{tpu_custom_call.1}
  #allocation0 [shape = 'u32[]', space=smem, size = 0x4, offset = 0x4, fixed_abs, tag = 'smem constant byte address 0x4 - core index']
  #allocation1 [shape = 'u32[144,128]{1,0:T(1,128)}', space=vmem, size = 0x12000, scoped, tag = 'internal scratch']
  %s0 = inlined_call_operand.vmem [shape: f32[16,4], index: 0, kind: input, shape index: {}]
  %s1 = inlined_call_operand.vmem [shape: f32[16,16], index: 1, kind: input, shape index: {}]
  %s2 = inlined_call_operand.vmem [shape: f32[64,16], index: 2, kind: input, shape index: {}]
  %s3 = inlined_call_operand.vmem [shape: f32[13,4,8], index: 3, kind: input, shape index: {}]
  %s4 = inlined_call_operand.vmem [shape: f32[13,8,4], index: 4, kind: input, shape index: {}]
  %s5 = inlined_call_operand.vmem [shape: f32[13,8], index: 5, kind: input, shape index: {}]
  %s6 = inlined_call_operand.vmem [shape: f32[13,8,8], index: 6, kind: input, shape index: {}]
  %s7 = inlined_call_operand.vmem [shape: f32[13,8], index: 7, kind: input, shape index: {}]
  %s8 = inlined_call_operand.vmem [shape: f32[104,4], index: 8, kind: input, shape index: {}]
  %s9 = inlined_call_operand.vmem [shape: f32[1,4], index: 9, kind: input, shape index: {}]
  %s10 = inlined_call_operand.vmem [shape: f32[16,4], index: 10, kind: output, shape index: {}]
  %s11 = sld [smem:[#allocation0]]
  $region50: #{tpu_custom_call.1} parent=0
    _
  %s13 = ssub.s32 1, %s11
  %s14 = scalar_select 0, %s13, %s11
  // Predicated region
  $region2: #{tpu_custom_call.1} parent=0 // pred_check
    _
  $region3: #{tpu_custom_call.1} parent=0 // pred_check_branch
    %16 = sbr.rel (0) target = $region5
  $region4: #{tpu_custom_call.1} parent=0 // pred_region
    _
  $region5: #{tpu_custom_call.1} parent=0 // pred_fallthru
    _
  // Predicated region
  $region6: #{tpu_custom_call.1} parent=0 // pred_check
    _
  $region7: #{tpu_custom_call.1} parent=0 // pred_check_branch
    %18 = sbr.rel (0) target = $region9
  $region8: #{tpu_custom_call.1} parent=0 // pred_region
    _
  $region9: #{tpu_custom_call.1} parent=0 // pred_fallthru
    _
  // Predicated region
  $region10: #{tpu_custom_call.1} parent=0 // pred_check
    _
  $region11: #{tpu_custom_call.1} parent=0 // pred_check_branch
    %20 = sbr.rel (0) target = $region13
  $region12: #{tpu_custom_call.1} parent=0 // pred_region
    _
  $region13: #{tpu_custom_call.1} parent=0 // pred_fallthru
    _
  // Predicated region
  $region14: #{tpu_custom_call.1} parent=0 // pred_check
    _
  $region15: #{tpu_custom_call.1} parent=0 // pred_check_branch
    %22 = sbr.rel (0) target = $region17
  $region16: #{tpu_custom_call.1} parent=0 // pred_region
    _
  $region17: #{tpu_custom_call.1} parent=0 // pred_fallthru
    _
  // Predicated region
  $region18: #{tpu_custom_call.1} parent=0 // pred_check
    _
  $region19: #{tpu_custom_call.1} parent=0 // pred_check_branch
    %24 = sbr.rel (0) target = $region21
  $region20: #{tpu_custom_call.1} parent=0 // pred_region
    _
  $region21: #{tpu_custom_call.1} parent=0 // pred_fallthru
    _
  // Predicated region
  $region22: #{tpu_custom_call.1} parent=0 // pred_check
    _
  $region23: #{tpu_custom_call.1} parent=0 // pred_check_branch
    %26 = sbr.rel (0) target = $region25
  $region24: #{tpu_custom_call.1} parent=0 // pred_region
    _
  $region25: #{tpu_custom_call.1} parent=0 // pred_fallthru
    _
  // Predicated region
  $region26: #{tpu_custom_call.1} parent=0 // pred_check
    _
  $region27: #{tpu_custom_call.1} parent=0 // pred_check_branch
    %28 = sbr.rel (0) target = $region29
  $region28: #{tpu_custom_call.1} parent=0 // pred_region
    _
  $region29: #{tpu_custom_call.1} parent=0 // pred_fallthru
    _
  // Predicated region
  $region30: #{tpu_custom_call.1} parent=0 // pred_check
    _
  $region31: #{tpu_custom_call.1} parent=0 // pred_check_branch
    %30 = sbr.rel (0) target = $region33
  $region32: #{tpu_custom_call.1} parent=0 // pred_region
    _
  $region33: #{tpu_custom_call.1} parent=0 // pred_fallthru
    _
  // Predicated region
  $region34: #{tpu_custom_call.1} parent=0 // pred_check
    _
  $region35: #{tpu_custom_call.1} parent=0 // pred_check_branch
    %32 = sbr.rel (0) target = $region37
  $region36: #{tpu_custom_call.1} parent=0 // pred_region
    _
  $region37: #{tpu_custom_call.1} parent=0 // pred_fallthru
    _
  // Predicated region
  $region38: #{tpu_custom_call.1} parent=0 // pred_check
    _
  $region39: #{tpu_custom_call.1} parent=0 // pred_check_branch
    %34 = sbr.rel (0) target = $region41
  $region40: #{tpu_custom_call.1} parent=0 // pred_region
    _
  $region41: #{tpu_custom_call.1} parent=0 // pred_fallthru
    _
  %v35 = vld [vmem:[%s0] sm:$0xff]
  %v36 = vld [vmem:[%s0 + $0x8] sm:$0xff]
  %v37 = vld [vmem:[%s1] sm:$0xff]
  %v38 = vld [vmem:[%s1 + $0x8] sm:$0xff]
  %v39 = vld [vmem:[%s2] sm:$0xff]
  %v40 = vld [vmem:[%s2 + $0x8] sm:$0xff]
  %v41 = vld [vmem:[%s2 + $0x10] sm:$0xff]
  %v42 = vld [vmem:[%s2 + $0x18] sm:$0xff]
  %v43 = vld [vmem:[%s2 + $0x20] sm:$0xff]
  %v44 = vld [vmem:[%s2 + $0x28] sm:$0xff]
  %v45 = vld [vmem:[%s2 + $0x30] sm:$0xff]
  %v46 = vld [vmem:[%s2 + $0x38] sm:$0xff]
  %vm47 = vcmp.gt.f32.partialorder %v37, 0.0
  %vm48 = vcmp.gt.f32.partialorder %v38, 0.0
  %v49 = vsel %vm47, 0.0, -1e+30
  %v50 = vsel %vm48, 0.0, -1e+30
  %v51 = vand.u32 2147483647, %v35
  %v52 = vand.u32 2147483647, %v36
  %vm53 = vcmask 130048
  %v55 = vsel %vm53, %v39, 0
  %v58 = vsel %vm53, %v40, 0
  %v61 = vsel %vm53, %v41, 0
  %v64 = vsel %vm53, %v42, 0
  %v67 = vsel %vm53, %v43, 0
  %v70 = vsel %vm53, %v44, 0
  %v73 = vsel %vm53, %v45, 0
  %v76 = vsel %vm53, %v46, 0
  %78 = vmatprep.subr.mxu0 0.0
  %79 = vmatpush1.msra.mxu0 0.0
  %80 = vmatprep.subr.mxu0 0.0
  %81 = vmatpush1.msra.mxu0 0.0
  %82 = vmatprep.subr.mxu0 0.0
  %83 = vmatpush1.msra.mxu0 0.0
  %84 = vmatprep.subr.mxu0 0.0
  %85 = vmatpush1.msra.mxu0 0.0
  %86 = vmatprep.subr.mxu0 0.0
  %87 = vmatpush1.msra.mxu0 0.0
  %88 = vmatprep.subr.mxu0 0.0
  %89 = vmatpush1.msra.mxu0 0.0
  %90 = vmatprep.subr.mxu0 0.0
  %91 = vmatpush1.msra.mxu0 0.0
  %92 = vmatprep.subr.mxu0 0.0
  %93 = vmatpush1.msra.mxu0 0.0
  %94 = vmatprep.subr.mxu0 0.0
  %95 = vmatpush1.msra.mxu0 0.0
  %96 = vmatprep.subr.mxu0 0.0
  %97 = vmatpush1.msra.mxu0 0.0
  %98 = vmatprep.subr.mxu0 0.0
  %99 = vmatpush1.msra.mxu0 0.0
  %100 = vmatprep.subr.mxu0 0.0
  %101 = vmatpush1.msra.mxu0 0.0
  %102 = vmatprep.subr.mxu0 0.0
  %103 = vmatpush1.msra.mxu0 0.0
  %104 = vmatprep.subr.mxu0 0.0
  %105 = vmatpush1.msra.mxu0 0.0
  %106 = vmatprep.subr.mxu0 0.0
  %107 = vmatpush1.msra.mxu0 %v52
  %108 = vmatprep.subr.mxu0 0.0
  %109 = vmatpush1.msra.mxu0 %v51
  %110 = vmatprep.subr.mxu0 0.0
  %111 = vmatpush2.msra.mxu0 0.0
  %112 = vmatprep.subr.mxu0 0.0
  %113 = vmatpush2.msra.mxu0 0.0
  %114 = vmatprep.subr.mxu0 0.0
  %115 = vmatpush2.msra.mxu0 0.0
  %116 = vmatprep.subr.mxu0 0.0
  %117 = vmatpush2.msra.mxu0 0.0
  %118 = vmatprep.subr.mxu0 0.0
  %119 = vmatpush2.msra.mxu0 0.0
  %120 = vmatprep.subr.mxu0 0.0
  %121 = vmatpush2.msra.mxu0 0.0
  %122 = vmatprep.subr.mxu0 0.0
  %123 = vmatpush2.msra.mxu0 0.0
  %124 = vmatprep.subr.mxu0 0.0
  %125 = vmatpush2.msra.mxu0 0.0
  %126 = vmatprep.subr.mxu0 0.0
  %127 = vmatpush2.msra.mxu0 0.0
  %128 = vmatprep.subr.mxu0 0.0
  %129 = vmatpush2.msra.mxu0 0.0
  %130 = vmatprep.subr.mxu0 0.0
  %131 = vmatpush2.msra.mxu0 0.0
  %132 = vmatprep.subr.mxu0 0.0
  %133 = vmatpush2.msra.mxu0 0.0
  %134 = vmatprep.subr.mxu0 0.0
  %135 = vmatpush2.msra.mxu0 0.0
  %136 = vmatprep.subr.mxu0 0.0
  %137 = vmatpush2.msra.mxu0 0.0
  %138 = vmatprep.subr.mxu0 0.0
  %139 = vmatpush2.msra.mxu0 0.0
  %140 = vmatprep.subr.mxu0 0.0
  %141 = vmatpush2.msra.mxu0 0.0
  %142 = vmatprep.mubr.f32.mxu0 0.0
  %143 = vmatmul.mubr.f32.gmra.mxu0 %v55
  %v144 = vpop.f32.mrf.mxu0
  %v145 = vadd.f32 0.0, %v144
  %v146 = vpop.f32.mrf.mxu0
  %147 = vmatprep.mubr.f32.mxu0 0.0
  %148 = vmatmul.mubr.f32.gmra.mxu0 %v58
  %v149 = vpop.f32.mrf.mxu0
  %v150 = vadd.f32 0.0, %v149
  %v151 = vpop.f32.mrf.mxu0
  %152 = vmatprep.mubr.f32.mxu0 0.0
  %153 = vmatmul.mubr.f32.gmra.mxu0 %v61
  %v154 = vpop.f32.mrf.mxu0
  %v155 = vadd.f32 0.0, %v154
  %v156 = vpop.f32.mrf.mxu0
  %157 = vmatprep.mubr.f32.mxu0 0.0
  %158 = vmatmul.mubr.f32.gmra.mxu0 %v64
  %v159 = vpop.f32.mrf.mxu0
  %v160 = vadd.f32 0.0, %v159
  %v161 = vpop.f32.mrf.mxu0
  %162 = vmatprep.mubr.f32.mxu0 0.0
  %163 = vmatmul.mubr.f32.gmra.mxu0 %v67
  %v164 = vpop.f32.mrf.mxu0
  %v165 = vadd.f32 0.0, %v164
  %v166 = vpop.f32.mrf.mxu0
  %167 = vmatprep.mubr.f32.mxu0 0.0
  %168 = vmatmul.mubr.f32.gmra.mxu0 %v70
  %v169 = vpop.f32.mrf.mxu0
  %v170 = vadd.f32 0.0, %v169
  %v171 = vpop.f32.mrf.mxu0
  %172 = vmatprep.mubr.f32.mxu0 0.0
  %173 = vmatmul.mubr.f32.gmra.mxu0 %v73
  %v174 = vpop.f32.mrf.mxu0
  %v175 = vadd.f32 0.0, %v174
  %v176 = vpop.f32.mrf.mxu0
  %177 = vmatprep.mubr.f32.mxu0 0.0
  %178 = vmatmul.mubr.f32.gmra.mxu0 %v76
  %v179 = vpop.f32.mrf.mxu0
  %v180 = vadd.f32 0.0, %v179
  %v181 = vpop.f32.mrf.mxu0
  %182 = vdwg.mxu0
  %v183 = vld [vmem:[%s3] sm:$0xf]
  %vm184 = vcmask 31744
  %v186 = vsel %vm184, %v145, 0
  %v189 = vsel %vm184, %v150, 0
  %vm191 = vcmask 1043456
  %v193 = vsel %vm191, %v183, 0
  %195 = vmatprep.subr.mxu0 0.0
  %196 = vmatpush1.msra.mxu0 0.0
  %197 = vmatprep.subr.mxu0 0.0
  %198 = vmatpush1.msra.mxu0 0.0
  %199 = vmatprep.subr.mxu0 0.0
  %200 = vmatpush1.msra.mxu0 0.0
  %201 = vmatprep.subr.mxu0 0.0
  %202 = vmatpush1.msra.mxu0 0.0
  %203 = vmatprep.subr.mxu0 0.0
  %204 = vmatpush1.msra.mxu0 0.0
  %205 = vmatprep.subr.mxu0 0.0
  %206 = vmatpush1.msra.mxu0 0.0
  %207 = vmatprep.subr.mxu0 0.0
  %208 = vmatpush1.msra.mxu0 0.0
  %209 = vmatprep.subr.mxu0 0.0
  %210 = vmatpush1.msra.mxu0 0.0
  %211 = vmatprep.subr.mxu0 0.0
  %212 = vmatpush1.msra.mxu0 0.0
  %213 = vmatprep.subr.mxu0 0.0
  %214 = vmatpush1.msra.mxu0 0.0
  %215 = vmatprep.subr.mxu0 0.0
  %216 = vmatpush1.msra.mxu0 0.0
  %217 = vmatprep.subr.mxu0 0.0
  %218 = vmatpush1.msra.mxu0 0.0
  %219 = vmatprep.subr.mxu0 0.0
  %220 = vmatpush1.msra.mxu0 0.0
  %221 = vmatprep.subr.mxu0 0.0
  %222 = vmatpush1.msra.mxu0 0.0
  %223 = vmatprep.subr.mxu0 0.0
  %224 = vmatpush1.msra.mxu0 0.0
  %225 = vmatprep.subr.mxu0 0.0
  %226 = vmatpush1.msra.mxu0 %v193
  %227 = vmatprep.subr.mxu0 0.0
  %228 = vmatpush2.msra.mxu0 0.0
  %229 = vmatprep.subr.mxu0 0.0
  %230 = vmatpush2.msra.mxu0 0.0
  %231 = vmatprep.subr.mxu0 0.0
  %232 = vmatpush2.msra.mxu0 0.0
  %233 = vmatprep.subr.mxu0 0.0
  %234 = vmatpush2.msra.mxu0 0.0
  %235 = vmatprep.subr.mxu0 0.0
  %236 = vmatpush2.msra.mxu0 0.0
  %237 = vmatprep.subr.mxu0 0.0
  %238 = vmatpush2.msra.mxu0 0.0
  %239 = vmatprep.subr.mxu0 0.0
  %240 = vmatpush2.msra.mxu0 0.0
  %241 = vmatprep.subr.mxu0 0.0
  %242 = vmatpush2.msra.mxu0 0.0
  %243 = vmatprep.subr.mxu0 0.0
  %244 = vmatpush2.msra.mxu0 0.0
  %245 = vmatprep.subr.mxu0 0.0
  %246 = vmatpush2.msra.mxu0 0.0
  %247 = vmatprep.subr.mxu0 0.0
  %248 = vmatpush2.msra.mxu0 0.0
  %249 = vmatprep.subr.mxu0 0.0
  %250 = vmatpush2.msra.mxu0 0.0
  %251 = vmatprep.subr.mxu0 0.0
  %252 = vmatpush2.msra.mxu0 0.0
  %253 = vmatprep.subr.mxu0 0.0
  %254 = vmatpush2.msra.mxu0 0.0
  %255 = vmatprep.subr.mxu0 0.0
  %256 = vmatpush2.msra.mxu0 0.0
  %257 = vmatprep.subr.mxu0 0.0
  %258 = vmatpush2.msra.mxu0 0.0
  %259 = vmatprep.mubr.f32.mxu0 0.0
  %260 = vmatmul.mubr.f32.gmra.mxu0 %v186
  %v261 = vpop.f32.mrf.mxu0
  %v262 = vadd.f32 0.0, %v261
  %v263 = vpop.f32.mrf.mxu0
  %264 = vmatprep.mubr.f32.mxu0 0.0
  %265 = vmatmul.mubr.f32.gmra.mxu0 %v189
  %v266 = vpop.f32.mrf.mxu0
  %v267 = vadd.f32 0.0, %v266
  %v268 = vpop.f32.mrf.mxu0
  %269 = vdwg.mxu0
  %v270 = vld [vmem:[%s4] sm:$0xff]
  %vm271 = vcmask 64512
  %v273 = vsel %vm271, %v262, 0
  %v276 = vsel %vm271, %v267, 0
  %278 = vmatprep.subr.mxu0 0.0
  %279 = vmatpush1.msra.mxu0 0.0
  %280 = vmatprep.subr.mxu0 0.0
  %281 = vmatpush1.msra.mxu0 0.0
  %282 = vmatprep.subr.mxu0 0.0
  %283 = vmatpush1.msra.mxu0 0.0
  %284 = vmatprep.subr.mxu0 0.0
  %285 = vmatpush1.msra.mxu0 0.0
  %286 = vmatprep.subr.mxu0 0.0
  %287 = vmatpush1.msra.mxu0 0.0
  %288 = vmatprep.subr.mxu0 0.0
  %289 = vmatpush1.msra.mxu0 0.0
  %290 = vmatprep.subr.mxu0 0.0
  %291 = vmatpush1.msra.mxu0 0.0
  %292 = vmatprep.subr.mxu0 0.0
  %293 = vmatpush1.msra.mxu0 0.0
  %294 = vmatprep.subr.mxu0 0.0
  %295 = vmatpush1.msra.mxu0 0.0
  %296 = vmatprep.subr.mxu0 0.0
  %297 = vmatpush1.msra.mxu0 0.0
  %298 = vmatprep.subr.mxu0 0.0
  %299 = vmatpush1.msra.mxu0 0.0
  %300 = vmatprep.subr.mxu0 0.0
  %301 = vmatpush1.msra.mxu0 0.0
  %302 = vmatprep.subr.mxu0 0.0
  %303 = vmatpush1.msra.mxu0 0.0
  %304 = vmatprep.subr.mxu0 0.0
  %305 = vmatpush1.msra.mxu0 0.0
  %306 = vmatprep.subr.mxu0 0.0
  %307 = vmatpush1.msra.mxu0 0.0
  %308 = vmatprep.subr.mxu0 0.0
  %309 = vmatpush1.msra.mxu0 %v270
  %310 = vmatprep.subr.mxu0 0.0
  %311 = vmatpush2.msra.mxu0 0.0
  %312 = vmatprep.subr.mxu0 0.0
  %313 = vmatpush2.msra.mxu0 0.0
  %314 = vmatprep.subr.mxu0 0.0
  %315 = vmatpush2.msra.mxu0 0.0
  %316 = vmatprep.subr.mxu0 0.0
  %317 = vmatpush2.msra.mxu0 0.0
  %318 = vmatprep.subr.mxu0 0.0
  %319 = vmatpush2.msra.mxu0 0.0
  %320 = vmatprep.subr.mxu0 0.0
  %321 = vmatpush2.msra.mxu0 0.0
  %322 = vmatprep.subr.mxu0 0.0
  %323 = vmatpush2.msra.mxu0 0.0
  %324 = vmatprep.subr.mxu0 0.0
  %325 = vmatpush2.msra.mxu0 0.0
  %326 = vmatprep.subr.mxu0 0.0
  %327 = vmatpush2.msra.mxu0 0.0
  %328 = vmatprep.subr.mxu0 0.0
  %329 = vmatpush2.msra.mxu0 0.0
  %330 = vmatprep.subr.mxu0 0.0
  %331 = vmatpush2.msra.mxu0 0.0
  %332 = vmatprep.subr.mxu0 0.0
  %333 = vmatpush2.msra.mxu0 0.0
  %334 = vmatprep.subr.mxu0 0.0
  %335 = vmatpush2.msra.mxu0 0.0
  %336 = vmatprep.subr.mxu0 0.0
  %337 = vmatpush2.msra.mxu0 0.0
  %338 = vmatprep.subr.mxu0 0.0
  %339 = vmatpush2.msra.mxu0 0.0
  %340 = vmatprep.subr.mxu0 0.0
  %341 = vmatpush2.msra.mxu0 0.0
  %342 = vmatprep.mubr.f32.mxu0 0.0
  %343 = vmatmul.mubr.f32.gmra.mxu0 %v273
  %v344 = vpop.f32.mrf.mxu0
  %v345 = vadd.f32 0.0, %v344
  %v346 = vpop.f32.mrf.mxu0
  %347 = vmatprep.mubr.f32.mxu0 0.0
  %348 = vmatmul.mubr.f32.gmra.mxu0 %v276
  %v349 = vpop.f32.mrf.mxu0
  %v350 = vadd.f32 0.0, %v349
  %v351 = vpop.f32.mrf.mxu0
  %352 = vdwg.mxu0
  %353 = vxpose.xlu0.b32.start [1/16] %v345, 128
  %354 = vxpose.xlu0.b32.cont [2/16] %v350, 128
  %355 = vxpose.xlu0.b32.cont [3/16] 0.0, 128
  %356 = vxpose.xlu0.b32.cont [4/16] 0.0, 128
  %357 = vxpose.xlu0.b32.cont [5/16] 0.0, 128
  %358 = vxpose.xlu0.b32.cont [6/16] 0.0, 128
  %359 = vxpose.xlu0.b32.cont [7/16] 0.0, 128
  %360 = vxpose.xlu0.b32.cont [8/16] 0.0, 128
  %361 = vxpose.xlu0.b32.cont [9/16] 0.0, 128
  %362 = vxpose.xlu0.b32.cont [10/16] 0.0, 128
  %363 = vxpose.xlu0.b32.cont [11/16] 0.0, 128
  %364 = vxpose.xlu0.b32.cont [12/16] 0.0, 128
  %365 = vxpose.xlu0.b32.cont [13/16] 0.0, 128
  %366 = vxpose.xlu0.b32.cont [14/16] 0.0, 128
  %367 = vxpose.xlu0.b32.cont [15/16] 0.0, 128
  %368 = vxpose.xlu0.b32.end [16/16] 0.0, 128
  %v369 = vpop.trf.xlu0
  %v370 = vpop.trf.xlu0
  %v371 = vpop.trf.xlu0
  %v372 = vpop.trf.xlu0
  %v373 = vpop.trf.xlu0
  %v374 = vpop.trf.xlu0
  %v375 = vpop.trf.xlu0
  %v376 = vpop.trf.xlu0
  %v377 = vpop.trf.xlu0
  %v378 = vpop.trf.xlu0
  %v379 = vpop.trf.xlu0
  %v380 = vpop.trf.xlu0
  %v381 = vpop.trf.xlu0
  %v382 = vpop.trf.xlu0
  %v383 = vpop.trf.xlu0
  %v384 = vpop.trf.xlu0
  %386 = vset.pattern.permute.xlu0 2
  %387 = vperm.xlu0 %386, %v345
  %v388 = vpop.permute.xlu0 %387
  %391 = vset.pattern.permute.xlu0 2
  %392 = vperm.xlu0 %391, %v350
  %v393 = vpop.permute.xlu0 %392
  %v395 = vlaneseq
  %v396 = vshrl.u32 %v395, 7
  %v397 = vsub.s32 0, %v396
  %v398 = vrot.slane %v369, %v397
  %v399 = vadd.f32 %v388, %v398
  %v400 = vadd.f32 %v393, %v398
  %vm401 = vcmp.gt.f32.partialorder %v399, 0.0
  %vm402 = vcmp.gt.f32.partialorder %v400, 0.0
  %v403 = vmul.f32 %v399, 0.2
  %v404 = vmul.f32 %v400, 0.2
  %v405 = vsel %vm401, %v399, %v403
  %v406 = vsel %vm402, %v400, %v404
  %v407 = vadd.f32 %v405, %v49
  %v408 = vadd.f32 %v406, %v50
  %v409 = vsel %vm53, %v407, -inf
  %410 = vmax.xlane.f32.xlu0 %v409
  %v411 = vpop.xlane.xlu0 %410
  %v412 = vsel %vm53, %v408, -inf
  %413 = vmax.xlane.f32.xlu0 %v412
  %v414 = vpop.xlane.xlu0 %413
  %v415 = vsub.f32 %v407, %v411
  %v416 = vsub.f32 %v408, %v414
  %v417 = vmul.f32 %v415, 1.442695
  %v418 = vpow.pop %v417
  %v419 = vmul.f32 %v416, 1.442695
  %v420 = vpow.pop %v419
  %v421 = vsel %vm53, %v418, 0.0
  %422 = vadd.xlane.f32.xlu0 %v421
  %v423 = vpop.xlane.xlu0 %422
  %v424 = vsel %vm53, %v420, 0.0
  %425 = vadd.xlane.f32.xlu0 %v424
  %v426 = vpop.xlane.xlu0 %425
  %v427 = vrcp.pop %v423
  %v428 = vmul.f32 %v418, %v427
  %v429 = vrcp.pop %v426
  %v430 = vmul.f32 %v420, %v429
  %v432 = vsel %vm53, %v428, 0
  %v435 = vsel %vm53, %v430, 0
  %437 = vmatprep.subr.mxu0 0.0
  %438 = vmatpush1.msra.mxu0 0.0
  %439 = vmatprep.subr.mxu0 0.0
  %440 = vmatpush1.msra.mxu0 0.0
  %441 = vmatprep.subr.mxu0 0.0
  %442 = vmatpush1.msra.mxu0 0.0
  %443 = vmatprep.subr.mxu0 0.0
  %444 = vmatpush1.msra.mxu0 0.0
  %445 = vmatprep.subr.mxu0 0.0
  %446 = vmatpush1.msra.mxu0 0.0
  %447 = vmatprep.subr.mxu0 0.0
  %448 = vmatpush1.msra.mxu0 0.0
  %449 = vmatprep.subr.mxu0 0.0
  %450 = vmatpush1.msra.mxu0 0.0
  %451 = vmatprep.subr.mxu0 0.0
  %452 = vmatpush1.msra.mxu0 0.0
  %453 = vmatprep.subr.mxu0 0.0
  %454 = vmatpush1.msra.mxu0 0.0
  %455 = vmatprep.subr.mxu0 0.0
  %456 = vmatpush1.msra.mxu0 0.0
  %457 = vmatprep.subr.mxu0 0.0
  %458 = vmatpush1.msra.mxu0 0.0
  %459 = vmatprep.subr.mxu0 0.0
  %460 = vmatpush1.msra.mxu0 0.0
  %461 = vmatprep.subr.mxu0 0.0
  %462 = vmatpush1.msra.mxu0 0.0
  %463 = vmatprep.subr.mxu0 0.0
  %464 = vmatpush1.msra.mxu0 0.0
  %465 = vmatprep.subr.mxu0 0.0
  %466 = vmatpush1.msra.mxu0 %v267
  %467 = vmatprep.subr.mxu0 0.0
  %468 = vmatpush1.msra.mxu0 %v262
  %469 = vmatprep.subr.mxu0 0.0
  %470 = vmatpush2.msra.mxu0 0.0
  %471 = vmatprep.subr.mxu0 0.0
  %472 = vmatpush2.msra.mxu0 0.0
  %473 = vmatprep.subr.mxu0 0.0
  %474 = vmatpush2.msra.mxu0 0.0
  %475 = vmatprep.subr.mxu0 0.0
  %476 = vmatpush2.msra.mxu0 0.0
  %477 = vmatprep.subr.mxu0 0.0
  %478 = vmatpush2.msra.mxu0 0.0
  %479 = vmatprep.subr.mxu0 0.0
  %480 = vmatpush2.msra.mxu0 0.0
  %481 = vmatprep.subr.mxu0 0.0
  %482 = vmatpush2.msra.mxu0 0.0
  %483 = vmatprep.subr.mxu0 0.0
  %484 = vmatpush2.msra.mxu0 0.0
  %485 = vmatprep.subr.mxu0 0.0
  %486 = vmatpush2.msra.mxu0 0.0
  %487 = vmatprep.subr.mxu0 0.0
  %488 = vmatpush2.msra.mxu0 0.0
  %489 = vmatprep.subr.mxu0 0.0
  %490 = vmatpush2.msra.mxu0 0.0
  %491 = vmatprep.subr.mxu0 0.0
  %492 = vmatpush2.msra.mxu0 0.0
  %493 = vmatprep.subr.mxu0 0.0
  %494 = vmatpush2.msra.mxu0 0.0
  %495 = vmatprep.subr.mxu0 0.0
  %496 = vmatpush2.msra.mxu0 0.0
  %497 = vmatprep.subr.mxu0 0.0
  %498 = vmatpush2.msra.mxu0 0.0
  %499 = vmatprep.subr.mxu0 0.0
  %500 = vmatpush2.msra.mxu0 0.0
  %501 = vmatprep.mubr.f32.mxu0 0.0
  %502 = vmatmul.mubr.f32.gmra.mxu0 %v432
  %v503 = vpop.f32.mrf.mxu0
  %v504 = vadd.f32 0.0, %v503
  %v505 = vpop.f32.mrf.mxu0
  %506 = vmatprep.mubr.f32.mxu0 0.0
  %507 = vmatmul.mubr.f32.gmra.mxu0 %v435
  %v508 = vpop.f32.mrf.mxu0
  %v509 = vadd.f32 0.0, %v508
  %v510 = vpop.f32.mrf.mxu0
  %511 = vdwg.mxu0
  %512 = vset.pattern.permute.xlu0 3
  %513 = vperm.xlu0 %512, %v345
  %v514 = vpop.permute.xlu0 %513
  %516 = vset.pattern.permute.xlu0 3
  %517 = vperm.xlu0 %516, %v350
  %v518 = vpop.permute.xlu0 %517
  %v520 = vlaneseq
  %v521 = vshrl.u32 %v520, 7
  %v522 = vsub.s32 1, %v521
  %v523 = vrot.slane %v369, %v522
  %v524 = vadd.f32 %v514, %v523
  %v525 = vadd.f32 %v518, %v523
  %vm526 = vcmp.gt.f32.partialorder %v524, 0.0
  %vm527 = vcmp.gt.f32.partialorder %v525, 0.0
  %v528 = vmul.f32 %v524, 0.2
  %v529 = vmul.f32 %v525, 0.2
  %v530 = vsel %vm526, %v524, %v528
  %v531 = vsel %vm527, %v525, %v529
  %v532 = vadd.f32 %v530, %v49
  %v533 = vadd.f32 %v531, %v50
  %v534 = vsel %vm53, %v532, -inf
  %535 = vmax.xlane.f32.xlu0 %v534
  %v536 = vpop.xlane.xlu0 %535
  %v537 = vsel %vm53, %v533, -inf
  %538 = vmax.xlane.f32.xlu0 %v537
  %v539 = vpop.xlane.xlu0 %538
  %v540 = vsub.f32 %v532, %v536
  %v541 = vsub.f32 %v533, %v539
  %v542 = vmul.f32 %v540, 1.442695
  %v543 = vpow.pop %v542
  %v544 = vmul.f32 %v541, 1.442695
  %v545 = vpow.pop %v544
  %v546 = vsel %vm53, %v543, 0.0
  %547 = vadd.xlane.f32.xlu0 %v546
  %v548 = vpop.xlane.xlu0 %547
  %v549 = vsel %vm53, %v545, 0.0
  %550 = vadd.xlane.f32.xlu0 %v549
  %v551 = vpop.xlane.xlu0 %550
  %v552 = vrcp.pop %v548
  %v553 = vmul.f32 %v543, %v552
  %v554 = vrcp.pop %v551
  %v555 = vmul.f32 %v545, %v554
  %556 = vrot.lane.b32.xlu0 %v262, 124
  %v557 = vpop.permute.xlu0 %556
  %558 = vrot.lane.b32.xlu0 %v267, 124
  %v559 = vpop.permute.xlu0 %558
  %v563 = vsel %vm53, %v553, 0
  %v566 = vsel %vm53, %v555, 0
  %568 = vmatprep.subr.mxu0 0.0
  %569 = vmatpush1.msra.mxu0 0.0
  %570 = vmatprep.subr.mxu0 0.0
  %571 = vmatpush1.msra.mxu0 0.0
  %572 = vmatprep.subr.mxu0 0.0
  %573 = vmatpush1.msra.mxu0 0.0
  %574 = vmatprep.subr.mxu0 0.0
  %575 = vmatpush1.msra.mxu0 0.0
  %576 = vmatprep.subr.mxu0 0.0
  %577 = vmatpush1.msra.mxu0 0.0
  %578 = vmatprep.subr.mxu0 0.0
  %579 = vmatpush1.msra.mxu0 0.0
  %580 = vmatprep.subr.mxu0 0.0
  %581 = vmatpush1.msra.mxu0 0.0
  %582 = vmatprep.subr.mxu0 0.0
  %583 = vmatpush1.msra.mxu0 0.0
  %584 = vmatprep.subr.mxu0 0.0
  %585 = vmatpush1.msra.mxu0 0.0
  %586 = vmatprep.subr.mxu0 0.0
  %587 = vmatpush1.msra.mxu0 0.0
  %588 = vmatprep.subr.mxu0 0.0
  %589 = vmatpush1.msra.mxu0 0.0
  %590 = vmatprep.subr.mxu0 0.0
  %591 = vmatpush1.msra.mxu0 0.0
  %592 = vmatprep.subr.mxu0 0.0
  %593 = vmatpush1.msra.mxu0 0.0
  %594 = vmatprep.subr.mxu0 0.0
  %595 = vmatpush1.msra.mxu0 0.0
  %596 = vmatprep.subr.mxu0 0.0
  %597 = vmatpush1.msra.mxu0 %v559
  %598 = vmatprep.subr.mxu0 0.0
  %599 = vmatpush1.msra.mxu0 %v557
  %600 = vmatprep.subr.mxu0 0.0
  %601 = vmatpush2.msra.mxu0 0.0
  %602 = vmatprep.subr.mxu0 0.0
  %603 = vmatpush2.msra.mxu0 0.0
  %604 = vmatprep.subr.mxu0 0.0
  %605 = vmatpush2.msra.mxu0 0.0
  %606 = vmatprep.subr.mxu0 0.0
  %607 = vmatpush2.msra.mxu0 0.0
  %608 = vmatprep.subr.mxu0 0.0
  %609 = vmatpush2.msra.mxu0 0.0
  %610 = vmatprep.subr.mxu0 0.0
  %611 = vmatpush2.msra.mxu0 0.0
  %612 = vmatprep.subr.mxu0 0.0
  %613 = vmatpush2.msra.mxu0 0.0
  %614 = vmatprep.subr.mxu0 0.0
  %615 = vmatpush2.msra.mxu0 0.0
  %616 = vmatprep.subr.mxu0 0.0
  %617 = vmatpush2.msra.mxu0 0.0
  %618 = vmatprep.subr.mxu0 0.0
  %619 = vmatpush2.msra.mxu0 0.0
  %620 = vmatprep.subr.mxu0 0.0
  %621 = vmatpush2.msra.mxu0 0.0
  %622 = vmatprep.subr.mxu0 0.0
  %623 = vmatpush2.msra.mxu0 0.0
  %624 = vmatprep.subr.mxu0 0.0
  %625 = vmatpush2.msra.mxu0 0.0
  %626 = vmatprep.subr.mxu0 0.0
  %627 = vmatpush2.msra.mxu0 0.0
  %628 = vmatprep.subr.mxu0 0.0
  %629 = vmatpush2.msra.mxu0 0.0
  %630 = vmatprep.subr.mxu0 0.0
  %631 = vmatpush2.msra.mxu0 0.0
  %632 = vmatprep.mubr.f32.mxu0 0.0
  %633 = vmatmul.mubr.f32.gmra.mxu0 %v563
  %v634 = vpop.f32.mrf.mxu0
  %v635 = vadd.f32 0.0, %v634
  %v636 = vpop.f32.mrf.mxu0
  %637 = vmatprep.mubr.f32.mxu0 0.0
  %638 = vmatmul.mubr.f32.gmra.mxu0 %v566
  %v639 = vpop.f32.mrf.mxu0
  %v640 = vadd.f32 0.0, %v639
  %v641 = vpop.f32.mrf.mxu0
  %642 = vdwg.mxu0
  %645 = vrot.lane.b32.xlu0 %v635, 4
  %v646 = vpop.permute.xlu0 %645
  %647 = vrot.lane.b32.xlu0 %v640, 4
  %v648 = vpop.permute.xlu0 %647
  %v651 = vsel %vm184, %v504, %v646
  %v652 = vsel %vm184, %v509, %v648
  %v653 = vld [vmem:[%s5] sm:$0x1]
  %v654 = vlaneseq
  %v655 = vshrl.u32 %v654, 7
  %v656 = vsub.s32 0, %v655
  %v657 = vrot.slane %v653, %v656
  %v658 = vadd.f32 %v651, %v657
  %v659 = vadd.f32 %v652, %v657
  %vm660 = vcmp.gt.f32.partialorder %v658, 0.0
  %vm661 = vcmp.gt.f32.partialorder %v659, 0.0
  %v662 = vmin.f32 %v658, 0.0
  %v663 = vmin.f32 %v659, 0.0
  %v664 = vmul.f32 %v662, 1.442695
  %v665 = vpow.pop %v664
  %v666 = vmul.f32 %v663, 1.442695
  %v667 = vpow.pop %v666
  %v668 = vsub.f32 %v665, 1.0
  %v669 = vsub.f32 %v667, 1.0
  %v670 = vsel %vm660, %v658, %v668
  %v671 = vsel %vm661, %v659, %v669
  %v672 = vld [vmem:[%s6] sm:$0xff]
  %v673 = vld [vmem:[%s7] sm:$0x1]
  %v674 = vlaneseq
  %v675 = vshrl.u32 %v674, 7
  %v676 = vsub.s32 0, %v675
  %v677 = vrot.slane %v673, %v676
  %v679 = vsel %vm271, %v670, 0
  %v682 = vsel %vm271, %v671, 0
  %684 = vmatprep.subr.mxu0 0.0
  %685 = vmatpush1.msra.mxu0 0.0
  %686 = vmatprep.subr.mxu0 0.0
  %687 = vmatpush1.msra.mxu0 0.0
  %688 = vmatprep.subr.mxu0 0.0
  %689 = vmatpush1.msra.mxu0 0.0
  %690 = vmatprep.subr.mxu0 0.0
  %691 = vmatpush1.msra.mxu0 0.0
  %692 = vmatprep.subr.mxu0 0.0
  %693 = vmatpush1.msra.mxu0 0.0
  %694 = vmatprep.subr.mxu0 0.0
  %695 = vmatpush1.msra.mxu0 0.0
  %696 = vmatprep.subr.mxu0 0.0
  %697 = vmatpush1.msra.mxu0 0.0
  %698 = vmatprep.subr.mxu0 0.0
  %699 = vmatpush1.msra.mxu0 0.0
  %700 = vmatprep.subr.mxu0 0.0
  %701 = vmatpush1.msra.mxu0 0.0
  %702 = vmatprep.subr.mxu0 0.0
  %703 = vmatpush1.msra.mxu0 0.0
  %704 = vmatprep.subr.mxu0 0.0
  %705 = vmatpush1.msra.mxu0 0.0
  %706 = vmatprep.subr.mxu0 0.0
  %707 = vmatpush1.msra.mxu0 0.0
  %708 = vmatprep.subr.mxu0 0.0
  %709 = vmatpush1.msra.mxu0 0.0
  %710 = vmatprep.subr.mxu0 0.0
  %711 = vmatpush1.msra.mxu0 0.0
  %712 = vmatprep.subr.mxu0 0.0
  %713 = vmatpush1.msra.mxu0 0.0
  %714 = vmatprep.subr.mxu0 0.0
  %715 = vmatpush1.msra.mxu0 %v672
  %716 = vmatprep.subr.mxu0 0.0
  %717 = vmatpush2.msra.mxu0 0.0
  %718 = vmatprep.subr.mxu0 0.0
  %719 = vmatpush2.msra.mxu0 0.0
  %720 = vmatprep.subr.mxu0 0.0
  %721 = vmatpush2.msra.mxu0 0.0
  %722 = vmatprep.subr.mxu0 0.0
  %723 = vmatpush2.msra.mxu0 0.0
  %724 = vmatprep.subr.mxu0 0.0
  %725 = vmatpush2.msra.mxu0 0.0
  %726 = vmatprep.subr.mxu0 0.0
  %727 = vmatpush2.msra.mxu0 0.0
  %728 = vmatprep.subr.mxu0 0.0
  %729 = vmatpush2.msra.mxu0 0.0
  %730 = vmatprep.subr.mxu0 0.0
  %731 = vmatpush2.msra.mxu0 0.0
  %732 = vmatprep.subr.mxu0 0.0
  %733 = vmatpush2.msra.mxu0 0.0
  %734 = vmatprep.subr.mxu0 0.0
  %735 = vmatpush2.msra.mxu0 0.0
  %736 = vmatprep.subr.mxu0 0.0
  %737 = vmatpush2.msra.mxu0 0.0
  %738 = vmatprep.subr.mxu0 0.0
  %739 = vmatpush2.msra.mxu0 0.0
  %740 = vmatprep.subr.mxu0 0.0
  %741 = vmatpush2.msra.mxu0 0.0
  %742 = vmatprep.subr.mxu0 0.0
  %743 = vmatpush2.msra.mxu0 0.0
  %744 = vmatprep.subr.mxu0 0.0
  %745 = vmatpush2.msra.mxu0 0.0
  %746 = vmatprep.subr.mxu0 0.0
  %747 = vmatpush2.msra.mxu0 0.0
  %748 = vmatprep.mubr.f32.mxu0 0.0
  %749 = vmatmul.mubr.f32.gmra.mxu0 %v679
  %v750 = vpop.f32.mrf.mxu0
  %v751 = vadd.f32 %v677, %v750
  %v752 = vpop.f32.mrf.mxu0
  %753 = vmatprep.mubr.f32.mxu0 0.0
  %754 = vmatmul.mubr.f32.gmra.mxu0 %v682
  %v755 = vpop.f32.mrf.mxu0
  %v756 = vadd.f32 %v677, %v755
  %v757 = vpop.f32.mrf.mxu0
  %758 = vdwg.mxu0
  %v759 = vand.u32 2147483647, %v155
  %v760 = vand.u32 2147483647, %v160
  %v761 = vand.u32 2147483647, %v165
  %v762 = vand.u32 2147483647, %v170
  %v763 = vand.u32 2147483647, %v175
  %v764 = vand.u32 2147483647, %v180
  %767 = vrot.lane.b32.xlu0 %v761, 4
  %v768 = vpop.permute.xlu0 %767
  %769 = vrot.lane.b32.xlu0 %v762, 4
  %v770 = vpop.permute.xlu0 %769
  %775 = vrot.lane.b32.xlu0 %v763, 8
  %v776 = vpop.permute.xlu0 %775
  %777 = vrot.lane.b32.xlu0 %v764, 8
  %v778 = vpop.permute.xlu0 %777
  %v781 = vsel %vm184, %v759, %v768
  %v782 = vsel %vm184, %v760, %v770
  %v783 = vsel %vm271, %v781, %v776
  %v784 = vsel %vm271, %v782, %v778
  %785 = vmatprep.subr.mxu0 0.0
  %786 = vmatpush1.msra.mxu0 0.0
  %787 = vmatprep.subr.mxu0 0.0
  %788 = vmatpush1.msra.mxu0 0.0
  %789 = vmatprep.subr.mxu0 0.0
  %790 = vmatpush1.msra.mxu0 0.0
  %791 = vmatprep.subr.mxu0 0.0
  %792 = vmatpush1.msra.mxu0 0.0
  %793 = vmatprep.subr.mxu0 0.0
  %794 = vmatpush1.msra.mxu0 0.0
  %795 = vmatprep.subr.mxu0 0.0
  %796 = vmatpush1.msra.mxu0 0.0
  %797 = vmatprep.subr.mxu0 0.0
  %798 = vmatpush1.msra.mxu0 0.0
  %799 = vmatprep.subr.mxu0 0.0
  %800 = vmatpush1.msra.mxu0 0.0
  %801 = vmatprep.subr.mxu0 0.0
  %802 = vmatpush1.msra.mxu0 0.0
  %803 = vmatprep.subr.mxu0 0.0
  %804 = vmatpush1.msra.mxu0 0.0
  %805 = vmatprep.subr.mxu0 0.0
  %806 = vmatpush1.msra.mxu0 0.0
  %807 = vmatprep.subr.mxu0 0.0
  %808 = vmatpush1.msra.mxu0 0.0
  %809 = vmatprep.subr.mxu0 0.0
  %810 = vmatpush1.msra.mxu0 0.0
  %811 = vmatprep.subr.mxu0 0.0
  %812 = vmatpush1.msra.mxu0 0.0
  %813 = vmatprep.subr.mxu0 0.0
  %814 = vmatpush1.msra.mxu0 %v784
  %815 = vmatprep.subr.mxu0 0.0
  %816 = vmatpush1.msra.mxu0 %v783
  %817 = vmatprep.subr.mxu0 0.0
  %818 = vmatpush2.msra.mxu0 0.0
  %819 = vmatprep.subr.mxu0 0.0
  %820 = vmatpush2.msra.mxu0 0.0
  %821 = vmatprep.subr.mxu0 0.0
  %822 = vmatpush2.msra.mxu0 0.0
  %823 = vmatprep.subr.mxu0 0.0
  %824 = vmatpush2.msra.mxu0 0.0
  %825 = vmatprep.subr.mxu0 0.0
  %826 = vmatpush2.msra.mxu0 0.0
  %827 = vmatprep.subr.mxu0 0.0
  %828 = vmatpush2.msra.mxu0 0.0
  %829 = vmatprep.subr.mxu0 0.0
  %830 = vmatpush2.msra.mxu0 0.0
  %831 = vmatprep.subr.mxu0 0.0
  %832 = vmatpush2.msra.mxu0 0.0
  %833 = vmatprep.subr.mxu0 0.0
  %834 = vmatpush2.msra.mxu0 0.0
  %835 = vmatprep.subr.mxu0 0.0
  %836 = vmatpush2.msra.mxu0 0.0
  %837 = vmatprep.subr.mxu0 0.0
  %838 = vmatpush2.msra.mxu0 0.0
  %839 = vmatprep.subr.mxu0 0.0
  %840 = vmatpush2.msra.mxu0 0.0
  %841 = vmatprep.subr.mxu0 0.0
  %842 = vmatpush2.msra.mxu0 0.0
  %843 = vmatprep.subr.mxu0 0.0
  %844 = vmatpush2.msra.mxu0 0.0
  %845 = vmatprep.subr.mxu0 0.0
  %846 = vmatpush2.msra.mxu0 0.0
  %847 = vmatprep.subr.mxu0 0.0
  %848 = vmatpush2.msra.mxu0 0.0
  %849 = vmatprep.mubr.f32.mxu0 0.0
  %850 = vmatmul.mubr.f32.gmra.mxu0 %v55
  %v851 = vpop.f32.mrf.mxu0
  %v852 = vadd.f32 0.0, %v851
  %v853 = vpop.f32.mrf.mxu0
  %854 = vmatprep.mubr.f32.mxu0 0.0
  %855 = vmatmul.mubr.f32.gmra.mxu0 %v58
  %v856 = vpop.f32.mrf.mxu0
  %v857 = vadd.f32 0.0, %v856
  %v858 = vpop.f32.mrf.mxu0
  %859 = vmatprep.mubr.f32.mxu0 0.0
  %860 = vmatmul.mubr.f32.gmra.mxu0 %v61
  %v861 = vpop.f32.mrf.mxu0
  %v862 = vadd.f32 0.0, %v861
  %v863 = vpop.f32.mrf.mxu0
  %864 = vmatprep.mubr.f32.mxu0 0.0
  %865 = vmatmul.mubr.f32.gmra.mxu0 %v64
  %v866 = vpop.f32.mrf.mxu0
  %v867 = vadd.f32 0.0, %v866
  %v868 = vpop.f32.mrf.mxu0
  %869 = vmatprep.mubr.f32.mxu0 0.0
  %870 = vmatmul.mubr.f32.gmra.mxu0 %v67
  %v871 = vpop.f32.mrf.mxu0
  %v872 = vadd.f32 0.0, %v871
  %v873 = vpop.f32.mrf.mxu0
  %874 = vmatprep.mubr.f32.mxu0 0.0
  %875 = vmatmul.mubr.f32.gmra.mxu0 %v70
  %v876 = vpop.f32.mrf.mxu0
  %v877 = vadd.f32 0.0, %v876
  %v878 = vpop.f32.mrf.mxu0
  %879 = vmatprep.mubr.f32.mxu0 0.0
  %880 = vmatmul.mubr.f32.gmra.mxu0 %v73
  %v881 = vpop.f32.mrf.mxu0
  %v882 = vadd.f32 0.0, %v881
  %v883 = vpop.f32.mrf.mxu0
  %884 = vmatprep.mubr.f32.mxu0 0.0
  %885 = vmatmul.mubr.f32.gmra.mxu0 %v76
  %v886 = vpop.f32.mrf.mxu0
  %v887 = vadd.f32 0.0, %v886
  %v888 = vpop.f32.mrf.mxu0
  %889 = vdwg.mxu0
  %s890 = scalar_lea.vmem %s3, 4
  %v891 = vld [vmem:[%s890] sm:$0xf]
  %v893 = vsel %vm184, %v852, 0
  %v896 = vsel %vm184, %v857, 0
  %v899 = vsel %vm191, %v891, 0
  %901 = vmatprep.subr.mxu0 0.0
  %902 = vmatpush1.msra.mxu0 0.0
  %903 = vmatprep.subr.mxu0 0.0
  %904 = vmatpush1.msra.mxu0 0.0
  %905 = vmatprep.subr.mxu0 0.0
  %906 = vmatpush1.msra.mxu0 0.0
  %907 = vmatprep.subr.mxu0 0.0
  %908 = vmatpush1.msra.mxu0 0.0
  %909 = vmatprep.subr.mxu0 0.0
  %910 = vmatpush1.msra.mxu0 0.0
  %911 = vmatprep.subr.mxu0 0.0
  %912 = vmatpush1.msra.mxu0 0.0
  %913 = vmatprep.subr.mxu0 0.0
  %914 = vmatpush1.msra.mxu0 0.0
  %915 = vmatprep.subr.mxu0 0.0
  %916 = vmatpush1.msra.mxu0 0.0
  %917 = vmatprep.subr.mxu0 0.0
  %918 = vmatpush1.msra.mxu0 0.0
  %919 = vmatprep.subr.mxu0 0.0
  %920 = vmatpush1.msra.mxu0 0.0
  %921 = vmatprep.subr.mxu0 0.0
  %922 = vmatpush1.msra.mxu0 0.0
  %923 = vmatprep.subr.mxu0 0.0
  %924 = vmatpush1.msra.mxu0 0.0
  %925 = vmatprep.subr.mxu0 0.0
  %926 = vmatpush1.msra.mxu0 0.0
  %927 = vmatprep.subr.mxu0 0.0
  %928 = vmatpush1.msra.mxu0 0.0
  %929 = vmatprep.subr.mxu0 0.0
  %930 = vmatpush1.msra.mxu0 0.0
  %931 = vmatprep.subr.mxu0 0.0
  %932 = vmatpush1.msra.mxu0 %v899
  %933 = vmatprep.subr.mxu0 0.0
  %934 = vmatpush2.msra.mxu0 0.0
  %935 = vmatprep.subr.mxu0 0.0
  %936 = vmatpush2.msra.mxu0 0.0
  %937 = vmatprep.subr.mxu0 0.0
  %938 = vmatpush2.msra.mxu0 0.0
  %939 = vmatprep.subr.mxu0 0.0
  %940 = vmatpush2.msra.mxu0 0.0
  %941 = vmatprep.subr.mxu0 0.0
  %942 = vmatpush2.msra.mxu0 0.0
  %943 = vmatprep.subr.mxu0 0.0
  %944 = vmatpush2.msra.mxu0 0.0
  %945 = vmatprep.subr.mxu0 0.0
  %946 = vmatpush2.msra.mxu0 0.0
  %947 = vmatprep.subr.mxu0 0.0
  %948 = vmatpush2.msra.mxu0 0.0
  %949 = vmatprep.subr.mxu0 0.0
  %950 = vmatpush2.msra.mxu0 0.0
  %951 = vmatprep.subr.mxu0 0.0
  %952 = vmatpush2.msra.mxu0 0.0
  %953 = vmatprep.subr.mxu0 0.0
  %954 = vmatpush2.msra.mxu0 0.0
  %955 = vmatprep.subr.mxu0 0.0
  %956 = vmatpush2.msra.mxu0 0.0
  %957 = vmatprep.subr.mxu0 0.0
  %958 = vmatpush2.msra.mxu0 0.0
  %959 = vmatprep.subr.mxu0 0.0
  %960 = vmatpush2.msra.mxu0 0.0
  %961 = vmatprep.subr.mxu0 0.0
  %962 = vmatpush2.msra.mxu0 0.0
  %963 = vmatprep.subr.mxu0 0.0
  %964 = vmatpush2.msra.mxu0 0.0
  %965 = vmatprep.mubr.f32.mxu0 0.0
  %966 = vmatmul.mubr.f32.gmra.mxu0 %v893
  %v967 = vpop.f32.mrf.mxu0
  %v968 = vadd.f32 0.0, %v967
  %v969 = vpop.f32.mrf.mxu0
  %970 = vmatprep.mubr.f32.mxu0 0.0
  %971 = vmatmul.mubr.f32.gmra.mxu0 %v896
  %v972 = vpop.f32.mrf.mxu0
  %v973 = vadd.f32 0.0, %v972
  %v974 = vpop.f32.mrf.mxu0
  %975 = vdwg.mxu0
  %s976 = scalar_lea.vmem %s4, 8
  %v977 = vld [vmem:[%s976] sm:$0xff]
  %v979 = vsel %vm271, %v968, 0
  %v982 = vsel %vm271, %v973, 0
  %984 = vmatprep.subr.mxu0 0.0
  %985 = vmatpush1.msra.mxu0 0.0
  %986 = vmatprep.subr.mxu0 0.0
  %987 = vmatpush1.msra.mxu0 0.0
  %988 = vmatprep.subr.mxu0 0.0
  %989 = vmatpush1.msra.mxu0 0.0
  %990 = vmatprep.subr.mxu0 0.0
  %991 = vmatpush1.msra.mxu0 0.0
  %992 = vmatprep.subr.mxu0 0.0
  %993 = vmatpush1.msra.mxu0 0.0
  %994 = vmatprep.subr.mxu0 0.0
  %995 = vmatpush1.msra.mxu0 0.0
  %996 = vmatprep.subr.mxu0 0.0
  %997 = vmatpush1.msra.mxu0 0.0
  %998 = vmatprep.subr.mxu0 0.0
  %999 = vmatpush1.msra.mxu0 0.0
  %1000 = vmatprep.subr.mxu0 0.0
  %1001 = vmatpush1.msra.mxu0 0.0
  %1002 = vmatprep.subr.mxu0 0.0
  %1003 = vmatpush1.msra.mxu0 0.0
  %1004 = vmatprep.subr.mxu0 0.0
  %1005 = vmatpush1.msra.mxu0 0.0
  %1006 = vmatprep.subr.mxu0 0.0
  %1007 = vmatpush1.msra.mxu0 0.0
  %1008 = vmatprep.subr.mxu0 0.0
  %1009 = vmatpush1.msra.mxu0 0.0
  %1010 = vmatprep.subr.mxu0 0.0
  %1011 = vmatpush1.msra.mxu0 0.0
  %1012 = vmatprep.subr.mxu0 0.0
  %1013 = vmatpush1.msra.mxu0 0.0
  %1014 = vmatprep.subr.mxu0 0.0
  %1015 = vmatpush1.msra.mxu0 %v977
  %1016 = vmatprep.subr.mxu0 0.0
  %1017 = vmatpush2.msra.mxu0 0.0
  %1018 = vmatprep.subr.mxu0 0.0
  %1019 = vmatpush2.msra.mxu0 0.0
  %1020 = vmatprep.subr.mxu0 0.0
  %1021 = vmatpush2.msra.mxu0 0.0
  %1022 = vmatprep.subr.mxu0 0.0
  %1023 = vmatpush2.msra.mxu0 0.0
  %1024 = vmatprep.subr.mxu0 0.0
  %1025 = vmatpush2.msra.mxu0 0.0
  %1026 = vmatprep.subr.mxu0 0.0
  %1027 = vmatpush2.msra.mxu0 0.0
  %1028 = vmatprep.subr.mxu0 0.0
  %1029 = vmatpush2.msra.mxu0 0.0
  %1030 = vmatprep.subr.mxu0 0.0
  %1031 = vmatpush2.msra.mxu0 0.0
  %1032 = vmatprep.subr.mxu0 0.0
  %1033 = vmatpush2.msra.mxu0 0.0
  %1034 = vmatprep.subr.mxu0 0.0
  %1035 = vmatpush2.msra.mxu0 0.0
  %1036 = vmatprep.subr.mxu0 0.0
  %1037 = vmatpush2.msra.mxu0 0.0
  %1038 = vmatprep.subr.mxu0 0.0
  %1039 = vmatpush2.msra.mxu0 0.0
  %1040 = vmatprep.subr.mxu0 0.0
  %1041 = vmatpush2.msra.mxu0 0.0
  %1042 = vmatprep.subr.mxu0 0.0
  %1043 = vmatpush2.msra.mxu0 0.0
  %1044 = vmatprep.subr.mxu0 0.0
  %1045 = vmatpush2.msra.mxu0 0.0
  %1046 = vmatprep.subr.mxu0 0.0
  %1047 = vmatpush2.msra.mxu0 0.0
  %1048 = vmatprep.mubr.f32.mxu0 0.0
  %1049 = vmatmul.mubr.f32.gmra.mxu0 %v979
  %v1050 = vpop.f32.mrf.mxu0
  %v1051 = vadd.f32 0.0, %v1050
  %v1052 = vpop.f32.mrf.mxu0
  %1053 = vmatprep.mubr.f32.mxu0 0.0
  %1054 = vmatmul.mubr.f32.gmra.mxu0 %v982
  %v1055 = vpop.f32.mrf.mxu0
  %v1056 = vadd.f32 0.0, %v1055
  %v1057 = vpop.f32.mrf.mxu0
  %1058 = vdwg.mxu0
  %1059 = vxpose.xlu0.b32.start [1/16] %v1051, 128
  %1060 = vxpose.xlu0.b32.cont [2/16] %v1056, 128
  %1061 = vxpose.xlu0.b32.cont [3/16] 0.0, 128
  %1062 = vxpose.xlu0.b32.cont [4/16] 0.0, 128
  %1063 = vxpose.xlu0.b32.cont [5/16] 0.0, 128
  %1064 = vxpose.xlu0.b32.cont [6/16] 0.0, 128
  %1065 = vxpose.xlu0.b32.cont [7/16] 0.0, 128
  %1066 = vxpose.xlu0.b32.cont [8/16] 0.0, 128
  %1067 = vxpose.xlu0.b32.cont [9/16] 0.0, 128
  %1068 = vxpose.xlu0.b32.cont [10/16] 0.0, 128
  %1069 = vxpose.xlu0.b32.cont [11/16] 0.0, 128
  %1070 = vxpose.xlu0.b32.cont [12/16] 0.0, 128
  %1071 = vxpose.xlu0.b32.cont [13/16] 0.0, 128
  %1072 = vxpose.xlu0.b32.cont [14/16] 0.0, 128
  %1073 = vxpose.xlu0.b32.cont [15/16] 0.0, 128
  %1074 = vxpose.xlu0.b32.end [16/16] 0.0, 128
  %v1075 = vpop.trf.xlu0
  %v1076 = vpop.trf.xlu0
  %v1077 = vpop.trf.xlu0
  %v1078 = vpop.trf.xlu0
  %v1079 = vpop.trf.xlu0
  %v1080 = vpop.trf.xlu0
  %v1081 = vpop.trf.xlu0
  %v1082 = vpop.trf.xlu0
  %v1083 = vpop.trf.xlu0
  %v1084 = vpop.trf.xlu0
  %v1085 = vpop.trf.xlu0
  %v1086 = vpop.trf.xlu0
  %v1087 = vpop.trf.xlu0
  %v1088 = vpop.trf.xlu0
  %v1089 = vpop.trf.xlu0
  %v1090 = vpop.trf.xlu0
  %1092 = vset.pattern.permute.xlu0 2
  %1093 = vperm.xlu0 %1092, %v1051
  %v1094 = vpop.permute.xlu0 %1093
  %1097 = vset.pattern.permute.xlu0 2
  %1098 = vperm.xlu0 %1097, %v1056
  %v1099 = vpop.permute.xlu0 %1098
  %v1101 = vlaneseq
  %v1102 = vshrl.u32 %v1101, 7
  %v1103 = vsub.s32 0, %v1102
  %v1104 = vrot.slane %v1075, %v1103
  %v1105 = vadd.f32 %v1094, %v1104
  %v1106 = vadd.f32 %v1099, %v1104
  %vm1107 = vcmp.gt.f32.partialorder %v1105, 0.0
  %vm1108 = vcmp.gt.f32.partialorder %v1106, 0.0
  %v1109 = vmul.f32 %v1105, 0.2
  %v1110 = vmul.f32 %v1106, 0.2
  %v1111 = vsel %vm1107, %v1105, %v1109
  %v1112 = vsel %vm1108, %v1106, %v1110
  %v1113 = vadd.f32 %v1111, %v49
  %v1114 = vadd.f32 %v1112, %v50
  %v1115 = vsel %vm53, %v1113, -inf
  %1116 = vmax.xlane.f32.xlu0 %v1115
  %v1117 = vpop.xlane.xlu0 %1116
  %v1118 = vsel %vm53, %v1114, -inf
  %1119 = vmax.xlane.f32.xlu0 %v1118
  %v1120 = vpop.xlane.xlu0 %1119
  %v1121 = vsub.f32 %v1113, %v1117
  %v1122 = vsub.f32 %v1114, %v1120
  %v1123 = vmul.f32 %v1121, 1.442695
  %v1124 = vpow.pop %v1123
  %v1125 = vmul.f32 %v1122, 1.442695
  %v1126 = vpow.pop %v1125
  %v1127 = vsel %vm53, %v1124, 0.0
  %1128 = vadd.xlane.f32.xlu0 %v1127
  %v1129 = vpop.xlane.xlu0 %1128
  %v1130 = vsel %vm53, %v1126, 0.0
  %1131 = vadd.xlane.f32.xlu0 %v1130
  %v1132 = vpop.xlane.xlu0 %1131
  %v1133 = vrcp.pop %v1129
  %v1134 = vmul.f32 %v1124, %v1133
  %v1135 = vrcp.pop %v1132
  %v1136 = vmul.f32 %v1126, %v1135
  %v1138 = vsel %vm53, %v1134, 0
  %v1141 = vsel %vm53, %v1136, 0
  %1143 = vmatprep.subr.mxu0 0.0
  %1144 = vmatpush1.msra.mxu0 0.0
  %1145 = vmatprep.subr.mxu0 0.0
  %1146 = vmatpush1.msra.mxu0 0.0
  %1147 = vmatprep.subr.mxu0 0.0
  %1148 = vmatpush1.msra.mxu0 0.0
  %1149 = vmatprep.subr.mxu0 0.0
  %1150 = vmatpush1.msra.mxu0 0.0
  %1151 = vmatprep.subr.mxu0 0.0
  %1152 = vmatpush1.msra.mxu0 0.0
  %1153 = vmatprep.subr.mxu0 0.0
  %1154 = vmatpush1.msra.mxu0 0.0
  %1155 = vmatprep.subr.mxu0 0.0
  %1156 = vmatpush1.msra.mxu0 0.0
  %1157 = vmatprep.subr.mxu0 0.0
  %1158 = vmatpush1.msra.mxu0 0.0
  %1159 = vmatprep.subr.mxu0 0.0
  %1160 = vmatpush1.msra.mxu0 0.0
  %1161 = vmatprep.subr.mxu0 0.0
  %1162 = vmatpush1.msra.mxu0 0.0
  %1163 = vmatprep.subr.mxu0 0.0
  %1164 = vmatpush1.msra.mxu0 0.0
  %1165 = vmatprep.subr.mxu0 0.0
  %1166 = vmatpush1.msra.mxu0 0.0
  %1167 = vmatprep.subr.mxu0 0.0
  %1168 = vmatpush1.msra.mxu0 0.0
  %1169 = vmatprep.subr.mxu0 0.0
  %1170 = vmatpush1.msra.mxu0 0.0
  %1171 = vmatprep.subr.mxu0 0.0
  %1172 = vmatpush1.msra.mxu0 %v973
  %1173 = vmatprep.subr.mxu0 0.0
  %1174 = vmatpush1.msra.mxu0 %v968
  %1175 = vmatprep.subr.mxu0 0.0
  %1176 = vmatpush2.msra.mxu0 0.0
  %1177 = vmatprep.subr.mxu0 0.0
  %1178 = vmatpush2.msra.mxu0 0.0
  %1179 = vmatprep.subr.mxu0 0.0
  %1180 = vmatpush2.msra.mxu0 0.0
  %1181 = vmatprep.subr.mxu0 0.0
  %1182 = vmatpush2.msra.mxu0 0.0
  %1183 = vmatprep.subr.mxu0 0.0
  %1184 = vmatpush2.msra.mxu0 0.0
  %1185 = vmatprep.subr.mxu0 0.0
  %1186 = vmatpush2.msra.mxu0 0.0
  %1187 = vmatprep.subr.mxu0 0.0
  %1188 = vmatpush2.msra.mxu0 0.0
  %1189 = vmatprep.subr.mxu0 0.0
  %1190 = vmatpush2.msra.mxu0 0.0
  %1191 = vmatprep.subr.mxu0 0.0
  %1192 = vmatpush2.msra.mxu0 0.0
  %1193 = vmatprep.subr.mxu0 0.0
  %1194 = vmatpush2.msra.mxu0 0.0
  %1195 = vmatprep.subr.mxu0 0.0
  %1196 = vmatpush2.msra.mxu0 0.0
  %1197 = vmatprep.subr.mxu0 0.0
  %1198 = vmatpush2.msra.mxu0 0.0
  %1199 = vmatprep.subr.mxu0 0.0
  %1200 = vmatpush2.msra.mxu0 0.0
  %1201 = vmatprep.subr.mxu0 0.0
  %1202 = vmatpush2.msra.mxu0 0.0
  %1203 = vmatprep.subr.mxu0 0.0
  %1204 = vmatpush2.msra.mxu0 0.0
  %1205 = vmatprep.subr.mxu0 0.0
  %1206 = vmatpush2.msra.mxu0 0.0
  %1207 = vmatprep.mubr.f32.mxu0 0.0
  %1208 = vmatmul.mubr.f32.gmra.mxu0 %v1138
  %v1209 = vpop.f32.mrf.mxu0
  %v1210 = vadd.f32 0.0, %v1209
  %v1211 = vpop.f32.mrf.mxu0
  %1212 = vmatprep.mubr.f32.mxu0 0.0
  %1213 = vmatmul.mubr.f32.gmra.mxu0 %v1141
  %v1214 = vpop.f32.mrf.mxu0
  %v1215 = vadd.f32 0.0, %v1214
  %v1216 = vpop.f32.mrf.mxu0
  %1217 = vdwg.mxu0
  %1218 = vset.pattern.permute.xlu0 3
  %1219 = vperm.xlu0 %1218, %v1051
  %v1220 = vpop.permute.xlu0 %1219
  %1222 = vset.pattern.permute.xlu0 3
  %1223 = vperm.xlu0 %1222, %v1056
  %v1224 = vpop.permute.xlu0 %1223
  %v1226 = vlaneseq
  %v1227 = vshrl.u32 %v1226, 7
  %v1228 = vsub.s32 1, %v1227
  %v1229 = vrot.slane %v1075, %v1228
  %v1230 = vadd.f32 %v1220, %v1229
  %v1231 = vadd.f32 %v1224, %v1229
  %vm1232 = vcmp.gt.f32.partialorder %v1230, 0.0
  %vm1233 = vcmp.gt.f32.partialorder %v1231, 0.0
  %v1234 = vmul.f32 %v1230, 0.2
  %v1235 = vmul.f32 %v1231, 0.2
  %v1236 = vsel %vm1232, %v1230, %v1234
  %v1237 = vsel %vm1233, %v1231, %v1235
  %v1238 = vadd.f32 %v1236, %v49
  %v1239 = vadd.f32 %v1237, %v50
  %v1240 = vsel %vm53, %v1238, -inf
  %1241 = vmax.xlane.f32.xlu0 %v1240
  %v1242 = vpop.xlane.xlu0 %1241
  %v1243 = vsel %vm53, %v1239, -inf
  %1244 = vmax.xlane.f32.xlu0 %v1243
  %v1245 = vpop.xlane.xlu0 %1244
  %v1246 = vsub.f32 %v1238, %v1242
  %v1247 = vsub.f32 %v1239, %v1245
  %v1248 = vmul.f32 %v1246, 1.442695
  %v1249 = vpow.pop %v1248
  %v1250 = vmul.f32 %v1247, 1.442695
  %v1251 = vpow.pop %v1250
  %v1252 = vsel %vm53, %v1249, 0.0
  %1253 = vadd.xlane.f32.xlu0 %v1252
  %v1254 = vpop.xlane.xlu0 %1253
  %v1255 = vsel %vm53, %v1251, 0.0
  %1256 = vadd.xlane.f32.xlu0 %v1255
  %v1257 = vpop.xlane.xlu0 %1256
  %v1258 = vrcp.pop %v1254
  %v1259 = vmul.f32 %v1249, %v1258
  %v1260 = vrcp.pop %v1257
  %v1261 = vmul.f32 %v1251, %v1260
  %1262 = vrot.lane.b32.xlu0 %v968, 124
  %v1263 = vpop.permute.xlu0 %1262
  %1264 = vrot.lane.b32.xlu0 %v973, 124
  %v1265 = vpop.permute.xlu0 %1264
  %v1269 = vsel %vm53, %v1259, 0
  %v1272 = vsel %vm53, %v1261, 0
  %1274 = vmatprep.subr.mxu0 0.0
  %1275 = vmatpush1.msra.mxu0 0.0
  %1276 = vmatprep.subr.mxu0 0.0
  %1277 = vmatpush1.msra.mxu0 0.0
  %1278 = vmatprep.subr.mxu0 0.0
  %1279 = vmatpush1.msra.mxu0 0.0
  %1280 = vmatprep.subr.mxu0 0.0
  %1281 = vmatpush1.msra.mxu0 0.0
  %1282 = vmatprep.subr.mxu0 0.0
  %1283 = vmatpush1.msra.mxu0 0.0
  %1284 = vmatprep.subr.mxu0 0.0
  %1285 = vmatpush1.msra.mxu0 0.0
  %1286 = vmatprep.subr.mxu0 0.0
  %1287 = vmatpush1.msra.mxu0 0.0
  %1288 = vmatprep.subr.mxu0 0.0
  %1289 = vmatpush1.msra.mxu0 0.0
  %1290 = vmatprep.subr.mxu0 0.0
  %1291 = vmatpush1.msra.mxu0 0.0
  %1292 = vmatprep.subr.mxu0 0.0
  %1293 = vmatpush1.msra.mxu0 0.0
  %1294 = vmatprep.subr.mxu0 0.0
  %1295 = vmatpush1.msra.mxu0 0.0
  %1296 = vmatprep.subr.mxu0 0.0
  %1297 = vmatpush1.msra.mxu0 0.0
  %1298 = vmatprep.subr.mxu0 0.0
  %1299 = vmatpush1.msra.mxu0 0.0
  %1300 = vmatprep.subr.mxu0 0.0
  %1301 = vmatpush1.msra.mxu0 0.0
  %1302 = vmatprep.subr.mxu0 0.0
  %1303 = vmatpush1.msra.mxu0 %v1265
  %1304 = vmatprep.subr.mxu0 0.0
  %1305 = vmatpush1.msra.mxu0 %v1263
  %1306 = vmatprep.subr.mxu0 0.0
  %1307 = vmatpush2.msra.mxu0 0.0
  %1308 = vmatprep.subr.mxu0 0.0
  %1309 = vmatpush2.msra.mxu0 0.0
  %1310 = vmatprep.subr.mxu0 0.0
  %1311 = vmatpush2.msra.mxu0 0.0
  %1312 = vmatprep.subr.mxu0 0.0
  %1313 = vmatpush2.msra.mxu0 0.0
  %1314 = vmatprep.subr.mxu0 0.0
  %1315 = vmatpush2.msra.mxu0 0.0
  %1316 = vmatprep.subr.mxu0 0.0
  %1317 = vmatpush2.msra.mxu0 0.0
  %1318 = vmatprep.subr.mxu0 0.0
  %1319 = vmatpush2.msra.mxu0 0.0
  %1320 = vmatprep.subr.mxu0 0.0
  %1321 = vmatpush2.msra.mxu0 0.0
  %1322 = vmatprep.subr.mxu0 0.0
  %1323 = vmatpush2.msra.mxu0 0.0
  %1324 = vmatprep.subr.mxu0 0.0
  %1325 = vmatpush2.msra.mxu0 0.0
  %1326 = vmatprep.subr.mxu0 0.0
  %1327 = vmatpush2.msra.mxu0 0.0
  %1328 = vmatprep.subr.mxu0 0.0
  %1329 = vmatpush2.msra.mxu0 0.0
  %1330 = vmatprep.subr.mxu0 0.0
  %1331 = vmatpush2.msra.mxu0 0.0
  %1332 = vmatprep.subr.mxu0 0.0
  %1333 = vmatpush2.msra.mxu0 0.0
  %1334 = vmatprep.subr.mxu0 0.0
  %1335 = vmatpush2.msra.mxu0 0.0
  %1336 = vmatprep.subr.mxu0 0.0
  %1337 = vmatpush2.msra.mxu0 0.0
  %1338 = vmatprep.mubr.f32.mxu0 0.0
  %1339 = vmatmul.mubr.f32.gmra.mxu0 %v1269
  %v1340 = vpop.f32.mrf.mxu0
  %v1341 = vadd.f32 0.0, %v1340
  %v1342 = vpop.f32.mrf.mxu0
  %1343 = vmatprep.mubr.f32.mxu0 0.0
  %1344 = vmatmul.mubr.f32.gmra.mxu0 %v1272
  %v1345 = vpop.f32.mrf.mxu0
  %v1346 = vadd.f32 0.0, %v1345
  %v1347 = vpop.f32.mrf.mxu0
  %1348 = vdwg.mxu0
  %1351 = vrot.lane.b32.xlu0 %v1341, 4
  %v1352 = vpop.permute.xlu0 %1351
  %1353 = vrot.lane.b32.xlu0 %v1346, 4
  %v1354 = vpop.permute.xlu0 %1353
  %v1357 = vsel %vm184, %v1210, %v1352
  %v1358 = vsel %vm184, %v1215, %v1354
  %v1359 = vld [vmem:[%s5 + $0x1] sm:$0x1]
  %v1360 = vlaneseq
  %v1361 = vshrl.u32 %v1360, 7
  %v1362 = vsub.s32 0, %v1361
  %v1363 = vrot.slane %v1359, %v1362
  %v1364 = vadd.f32 %v1357, %v1363
  %v1365 = vadd.f32 %v1358, %v1363
  %vm1366 = vcmp.gt.f32.partialorder %v1364, 0.0
  %vm1367 = vcmp.gt.f32.partialorder %v1365, 0.0
  %v1368 = vmin.f32 %v1364, 0.0
  %v1369 = vmin.f32 %v1365, 0.0
  %v1370 = vmul.f32 %v1368, 1.442695
  %v1371 = vpow.pop %v1370
  %v1372 = vmul.f32 %v1369, 1.442695
  %v1373 = vpow.pop %v1372
  %v1374 = vsub.f32 %v1371, 1.0
  %v1375 = vsub.f32 %v1373, 1.0
  %v1376 = vsel %vm1366, %v1364, %v1374
  %v1377 = vsel %vm1367, %v1365, %v1375
  %s1378 = scalar_lea.vmem %s6, 8
  %v1379 = vld [vmem:[%s1378] sm:$0xff]
  %v1380 = vld [vmem:[%s7 + $0x1] sm:$0x1]
  %v1381 = vlaneseq
  %v1382 = vshrl.u32 %v1381, 7
  %v1383 = vsub.s32 0, %v1382
  %v1384 = vrot.slane %v1380, %v1383
  %v1386 = vsel %vm271, %v1376, 0
  %v1389 = vsel %vm271, %v1377, 0
  %1391 = vmatprep.subr.mxu0 0.0
  %1392 = vmatpush1.msra.mxu0 0.0
  %1393 = vmatprep.subr.mxu0 0.0
  %1394 = vmatpush1.msra.mxu0 0.0
  %1395 = vmatprep.subr.mxu0 0.0
  %1396 = vmatpush1.msra.mxu0 0.0
  %1397 = vmatprep.subr.mxu0 0.0
  %1398 = vmatpush1.msra.mxu0 0.0
  %1399 = vmatprep.subr.mxu0 0.0
  %1400 = vmatpush1.msra.mxu0 0.0
  %1401 = vmatprep.subr.mxu0 0.0
  %1402 = vmatpush1.msra.mxu0 0.0
  %1403 = vmatprep.subr.mxu0 0.0
  %1404 = vmatpush1.msra.mxu0 0.0
  %1405 = vmatprep.subr.mxu0 0.0
  %1406 = vmatpush1.msra.mxu0 0.0
  %1407 = vmatprep.subr.mxu0 0.0
  %1408 = vmatpush1.msra.mxu0 0.0
  %1409 = vmatprep.subr.mxu0 0.0
  %1410 = vmatpush1.msra.mxu0 0.0
  %1411 = vmatprep.subr.mxu0 0.0
  %1412 = vmatpush1.msra.mxu0 0.0
  %1413 = vmatprep.subr.mxu0 0.0
  %1414 = vmatpush1.msra.mxu0 0.0
  %1415 = vmatprep.subr.mxu0 0.0
  %1416 = vmatpush1.msra.mxu0 0.0
  %1417 = vmatprep.subr.mxu0 0.0
  %1418 = vmatpush1.msra.mxu0 0.0
  %1419 = vmatprep.subr.mxu0 0.0
  %1420 = vmatpush1.msra.mxu0 0.0
  %1421 = vmatprep.subr.mxu0 0.0
  %1422 = vmatpush1.msra.mxu0 %v1379
  %1423 = vmatprep.subr.mxu0 0.0
  %1424 = vmatpush2.msra.mxu0 0.0
  %1425 = vmatprep.subr.mxu0 0.0
  %1426 = vmatpush2.msra.mxu0 0.0
  %1427 = vmatprep.subr.mxu0 0.0
  %1428 = vmatpush2.msra.mxu0 0.0
  %1429 = vmatprep.subr.mxu0 0.0
  %1430 = vmatpush2.msra.mxu0 0.0
  %1431 = vmatprep.subr.mxu0 0.0
  %1432 = vmatpush2.msra.mxu0 0.0
  %1433 = vmatprep.subr.mxu0 0.0
  %1434 = vmatpush2.msra.mxu0 0.0
  %1435 = vmatprep.subr.mxu0 0.0
  %1436 = vmatpush2.msra.mxu0 0.0
  %1437 = vmatprep.subr.mxu0 0.0
  %1438 = vmatpush2.msra.mxu0 0.0
  %1439 = vmatprep.subr.mxu0 0.0
  %1440 = vmatpush2.msra.mxu0 0.0
  %1441 = vmatprep.subr.mxu0 0.0
  %1442 = vmatpush2.msra.mxu0 0.0
  %1443 = vmatprep.subr.mxu0 0.0
  %1444 = vmatpush2.msra.mxu0 0.0
  %1445 = vmatprep.subr.mxu0 0.0
  %1446 = vmatpush2.msra.mxu0 0.0
  %1447 = vmatprep.subr.mxu0 0.0
  %1448 = vmatpush2.msra.mxu0 0.0
  %1449 = vmatprep.subr.mxu0 0.0
  %1450 = vmatpush2.msra.mxu0 0.0
  %1451 = vmatprep.subr.mxu0 0.0
  %1452 = vmatpush2.msra.mxu0 0.0
  %1453 = vmatprep.subr.mxu0 0.0
  %1454 = vmatpush2.msra.mxu0 0.0
  %1455 = vmatprep.mubr.f32.mxu0 0.0
  %1456 = vmatmul.mubr.f32.gmra.mxu0 %v1386
  %v1457 = vpop.f32.mrf.mxu0
  %v1458 = vadd.f32 %v1384, %v1457
  %v1459 = vpop.f32.mrf.mxu0
  %1460 = vmatprep.mubr.f32.mxu0 0.0
  %1461 = vmatmul.mubr.f32.gmra.mxu0 %v1389
  %v1462 = vpop.f32.mrf.mxu0
  %v1463 = vadd.f32 %v1384, %v1462
  %v1464 = vpop.f32.mrf.mxu0
  %1465 = vdwg.mxu0
  %s1466 = scalar_lea.vmem %s3, 8
  %v1467 = vld [vmem:[%s1466] sm:$0xf]
  %1468 = vrot.lane.b32.xlu0 %v852, 124
  %v1469 = vpop.permute.xlu0 %1468
  %1470 = vrot.lane.b32.xlu0 %v857, 124
  %v1471 = vpop.permute.xlu0 %1470
  %v1472 = vsel %vm184, %v1469, 0
  %v1474 = vsel %vm184, %v1471, 0
  %v1477 = vsel %vm191, %v1467, 0
  %1479 = vmatprep.subr.mxu0 0.0
  %1480 = vmatpush1.msra.mxu0 0.0
  %1481 = vmatprep.subr.mxu0 0.0
  %1482 = vmatpush1.msra.mxu0 0.0
  %1483 = vmatprep.subr.mxu0 0.0
  %1484 = vmatpush1.msra.mxu0 0.0
  %1485 = vmatprep.subr.mxu0 0.0
  %1486 = vmatpush1.msra.mxu0 0.0
  %1487 = vmatprep.subr.mxu0 0.0
  %1488 = vmatpush1.msra.mxu0 0.0
  %1489 = vmatprep.subr.mxu0 0.0
  %1490 = vmatpush1.msra.mxu0 0.0
  %1491 = vmatprep.subr.mxu0 0.0
  %1492 = vmatpush1.msra.mxu0 0.0
  %1493 = vmatprep.subr.mxu0 0.0
  %1494 = vmatpush1.msra.mxu0 0.0
  %1495 = vmatprep.subr.mxu0 0.0
  %1496 = vmatpush1.msra.mxu0 0.0
  %1497 = vmatprep.subr.mxu0 0.0
  %1498 = vmatpush1.msra.mxu0 0.0
  %1499 = vmatprep.subr.mxu0 0.0
  %1500 = vmatpush1.msra.mxu0 0.0
  %1501 = vmatprep.subr.mxu0 0.0
  %1502 = vmatpush1.msra.mxu0 0.0
  %1503 = vmatprep.subr.mxu0 0.0
  %1504 = vmatpush1.msra.mxu0 0.0
  %1505 = vmatprep.subr.mxu0 0.0
  %1506 = vmatpush1.msra.mxu0 0.0
  %1507 = vmatprep.subr.mxu0 0.0
  %1508 = vmatpush1.msra.mxu0 0.0
  %1509 = vmatprep.subr.mxu0 0.0
  %1510 = vmatpush1.msra.mxu0 %v1477
  %1511 = vmatprep.subr.mxu0 0.0
  %1512 = vmatpush2.msra.mxu0 0.0
  %1513 = vmatprep.subr.mxu0 0.0
  %1514 = vmatpush2.msra.mxu0 0.0
  %1515 = vmatprep.subr.mxu0 0.0
  %1516 = vmatpush2.msra.mxu0 0.0
  %1517 = vmatprep.subr.mxu0 0.0
  %1518 = vmatpush2.msra.mxu0 0.0
  %1519 = vmatprep.subr.mxu0 0.0
  %1520 = vmatpush2.msra.mxu0 0.0
  %1521 = vmatprep.subr.mxu0 0.0
  %1522 = vmatpush2.msra.mxu0 0.0
  %1523 = vmatprep.subr.mxu0 0.0
  %1524 = vmatpush2.msra.mxu0 0.0
  %1525 = vmatprep.subr.mxu0 0.0
  %1526 = vmatpush2.msra.mxu0 0.0
  %1527 = vmatprep.subr.mxu0 0.0
  %1528 = vmatpush2.msra.mxu0 0.0
  %1529 = vmatprep.subr.mxu0 0.0
  %1530 = vmatpush2.msra.mxu0 0.0
  %1531 = vmatprep.subr.mxu0 0.0
  %1532 = vmatpush2.msra.mxu0 0.0
  %1533 = vmatprep.subr.mxu0 0.0
  %1534 = vmatpush2.msra.mxu0 0.0
  %1535 = vmatprep.subr.mxu0 0.0
  %1536 = vmatpush2.msra.mxu0 0.0
  %1537 = vmatprep.subr.mxu0 0.0
  %1538 = vmatpush2.msra.mxu0 0.0
  %1539 = vmatprep.subr.mxu0 0.0
  %1540 = vmatpush2.msra.mxu0 0.0
  %1541 = vmatprep.subr.mxu0 0.0
  %1542 = vmatpush2.msra.mxu0 0.0
  %1543 = vmatprep.mubr.f32.mxu0 0.0
  %1544 = vmatmul.mubr.f32.gmra.mxu0 %v1472
  %v1545 = vpop.f32.mrf.mxu0
  %v1546 = vadd.f32 0.0, %v1545
  %v1547 = vpop.f32.mrf.mxu0
  %1548 = vmatprep.mubr.f32.mxu0 0.0
  %1549 = vmatmul.mubr.f32.gmra.mxu0 %v1474
  %v1550 = vpop.f32.mrf.mxu0
  %v1551 = vadd.f32 0.0, %v1550
  %v1552 = vpop.f32.mrf.mxu0
  %1553 = vdwg.mxu0
  %s1554 = scalar_lea.vmem %s4, 16
  %v1555 = vld [vmem:[%s1554] sm:$0xff]
  %v1557 = vsel %vm271, %v1546, 0
  %v1560 = vsel %vm271, %v1551, 0
  %1562 = vmatprep.subr.mxu0 0.0
  %1563 = vmatpush1.msra.mxu0 0.0
  %1564 = vmatprep.subr.mxu0 0.0
  %1565 = vmatpush1.msra.mxu0 0.0
  %1566 = vmatprep.subr.mxu0 0.0
  %1567 = vmatpush1.msra.mxu0 0.0
  %1568 = vmatprep.subr.mxu0 0.0
  %1569 = vmatpush1.msra.mxu0 0.0
  %1570 = vmatprep.subr.mxu0 0.0
  %1571 = vmatpush1.msra.mxu0 0.0
  %1572 = vmatprep.subr.mxu0 0.0
  %1573 = vmatpush1.msra.mxu0 0.0
  %1574 = vmatprep.subr.mxu0 0.0
  %1575 = vmatpush1.msra.mxu0 0.0
  %1576 = vmatprep.subr.mxu0 0.0
  %1577 = vmatpush1.msra.mxu0 0.0
  %1578 = vmatprep.subr.mxu0 0.0
  %1579 = vmatpush1.msra.mxu0 0.0
  %1580 = vmatprep.subr.mxu0 0.0
  %1581 = vmatpush1.msra.mxu0 0.0
  %1582 = vmatprep.subr.mxu0 0.0
  %1583 = vmatpush1.msra.mxu0 0.0
  %1584 = vmatprep.subr.mxu0 0.0
  %1585 = vmatpush1.msra.mxu0 0.0
  %1586 = vmatprep.subr.mxu0 0.0
  %1587 = vmatpush1.msra.mxu0 0.0
  %1588 = vmatprep.subr.mxu0 0.0
  %1589 = vmatpush1.msra.mxu0 0.0
  %1590 = vmatprep.subr.mxu0 0.0
  %1591 = vmatpush1.msra.mxu0 0.0
  %1592 = vmatprep.subr.mxu0 0.0
  %1593 = vmatpush1.msra.mxu0 %v1555
  %1594 = vmatprep.subr.mxu0 0.0
  %1595 = vmatpush2.msra.mxu0 0.0
  %1596 = vmatprep.subr.mxu0 0.0
  %1597 = vmatpush2.msra.mxu0 0.0
  %1598 = vmatprep.subr.mxu0 0.0
  %1599 = vmatpush2.msra.mxu0 0.0
  %1600 = vmatprep.subr.mxu0 0.0
  %1601 = vmatpush2.msra.mxu0 0.0
  %1602 = vmatprep.subr.mxu0 0.0
  %1603 = vmatpush2.msra.mxu0 0.0
  %1604 = vmatprep.subr.mxu0 0.0
  %1605 = vmatpush2.msra.mxu0 0.0
  %1606 = vmatprep.subr.mxu0 0.0
  %1607 = vmatpush2.msra.mxu0 0.0
  %1608 = vmatprep.subr.mxu0 0.0
  %1609 = vmatpush2.msra.mxu0 0.0
  %1610 = vmatprep.subr.mxu0 0.0
  %1611 = vmatpush2.msra.mxu0 0.0
  %1612 = vmatprep.subr.mxu0 0.0
  %1613 = vmatpush2.msra.mxu0 0.0
  %1614 = vmatprep.subr.mxu0 0.0
  %1615 = vmatpush2.msra.mxu0 0.0
  %1616 = vmatprep.subr.mxu0 0.0
  %1617 = vmatpush2.msra.mxu0 0.0
  %1618 = vmatprep.subr.mxu0 0.0
  %1619 = vmatpush2.msra.mxu0 0.0
  %1620 = vmatprep.subr.mxu0 0.0
  %1621 = vmatpush2.msra.mxu0 0.0
  %1622 = vmatprep.subr.mxu0 0.0
  %1623 = vmatpush2.msra.mxu0 0.0
  %1624 = vmatprep.subr.mxu0 0.0
  %1625 = vmatpush2.msra.mxu0 0.0
  %1626 = vmatprep.mubr.f32.mxu0 0.0
  %1627 = vmatmul.mubr.f32.gmra.mxu0 %v1557
  %v1628 = vpop.f32.mrf.mxu0
  %v1629 = vadd.f32 0.0, %v1628
  %v1630 = vpop.f32.mrf.mxu0
  %1631 = vmatprep.mubr.f32.mxu0 0.0
  %1632 = vmatmul.mubr.f32.gmra.mxu0 %v1560
  %v1633 = vpop.f32.mrf.mxu0
  %v1634 = vadd.f32 0.0, %v1633
  %v1635 = vpop.f32.mrf.mxu0
  %1636 = vdwg.mxu0
  %1637 = vxpose.xlu0.b32.start [1/16] %v1629, 128
  %1638 = vxpose.xlu0.b32.cont [2/16] %v1634, 128
  %1639 = vxpose.xlu0.b32.cont [3/16] 0.0, 128
  %1640 = vxpose.xlu0.b32.cont [4/16] 0.0, 128
  %1641 = vxpose.xlu0.b32.cont [5/16] 0.0, 128
  %1642 = vxpose.xlu0.b32.cont [6/16] 0.0, 128
  %1643 = vxpose.xlu0.b32.cont [7/16] 0.0, 128
  %1644 = vxpose.xlu0.b32.cont [8/16] 0.0, 128
  %1645 = vxpose.xlu0.b32.cont [9/16] 0.0, 128
  %1646 = vxpose.xlu0.b32.cont [10/16] 0.0, 128
  %1647 = vxpose.xlu0.b32.cont [11/16] 0.0, 128
  %1648 = vxpose.xlu0.b32.cont [12/16] 0.0, 128
  %1649 = vxpose.xlu0.b32.cont [13/16] 0.0, 128
  %1650 = vxpose.xlu0.b32.cont [14/16] 0.0, 128
  %1651 = vxpose.xlu0.b32.cont [15/16] 0.0, 128
  %1652 = vxpose.xlu0.b32.end [16/16] 0.0, 128
  %v1653 = vpop.trf.xlu0
  %v1654 = vpop.trf.xlu0
  %v1655 = vpop.trf.xlu0
  %v1656 = vpop.trf.xlu0
  %v1657 = vpop.trf.xlu0
  %v1658 = vpop.trf.xlu0
  %v1659 = vpop.trf.xlu0
  %v1660 = vpop.trf.xlu0
  %v1661 = vpop.trf.xlu0
  %v1662 = vpop.trf.xlu0
  %v1663 = vpop.trf.xlu0
  %v1664 = vpop.trf.xlu0
  %v1665 = vpop.trf.xlu0
  %v1666 = vpop.trf.xlu0
  %v1667 = vpop.trf.xlu0
  %v1668 = vpop.trf.xlu0
  %1670 = vset.pattern.permute.xlu0 2
  %1671 = vperm.xlu0 %1670, %v1629
  %v1672 = vpop.permute.xlu0 %1671
  %1675 = vset.pattern.permute.xlu0 2
  %1676 = vperm.xlu0 %1675, %v1634
  %v1677 = vpop.permute.xlu0 %1676
  %v1679 = vlaneseq
  %v1680 = vshrl.u32 %v1679, 7
  %v1681 = vsub.s32 0, %v1680
  %v1682 = vrot.slane %v1653, %v1681
  %v1683 = vadd.f32 %v1672, %v1682
  %v1684 = vadd.f32 %v1677, %v1682
  %vm1685 = vcmp.gt.f32.partialorder %v1683, 0.0
  %vm1686 = vcmp.gt.f32.partialorder %v1684, 0.0
  %v1687 = vmul.f32 %v1683, 0.2
  %v1688 = vmul.f32 %v1684, 0.2
  %v1689 = vsel %vm1685, %v1683, %v1687
  %v1690 = vsel %vm1686, %v1684, %v1688
  %v1691 = vadd.f32 %v1689, %v49
  %v1692 = vadd.f32 %v1690, %v50
  %v1693 = vsel %vm53, %v1691, -inf
  %1694 = vmax.xlane.f32.xlu0 %v1693
  %v1695 = vpop.xlane.xlu0 %1694
  %v1696 = vsel %vm53, %v1692, -inf
  %1697 = vmax.xlane.f32.xlu0 %v1696
  %v1698 = vpop.xlane.xlu0 %1697
  %v1699 = vsub.f32 %v1691, %v1695
  %v1700 = vsub.f32 %v1692, %v1698
  %v1701 = vmul.f32 %v1699, 1.442695
  %v1702 = vpow.pop %v1701
  %v1703 = vmul.f32 %v1700, 1.442695
  %v1704 = vpow.pop %v1703
  %v1705 = vsel %vm53, %v1702, 0.0
  %1706 = vadd.xlane.f32.xlu0 %v1705
  %v1707 = vpop.xlane.xlu0 %1706
  %v1708 = vsel %vm53, %v1704, 0.0
  %1709 = vadd.xlane.f32.xlu0 %v1708
  %v1710 = vpop.xlane.xlu0 %1709
  %v1711 = vrcp.pop %v1707
  %v1712 = vmul.f32 %v1702, %v1711
  %v1713 = vrcp.pop %v1710
  %v1714 = vmul.f32 %v1704, %v1713
  %v1716 = vsel %vm53, %v1712, 0
  %v1719 = vsel %vm53, %v1714, 0
  %1721 = vmatprep.subr.mxu0 0.0
  %1722 = vmatpush1.msra.mxu0 0.0
  %1723 = vmatprep.subr.mxu0 0.0
  %1724 = vmatpush1.msra.mxu0 0.0
  %1725 = vmatprep.subr.mxu0 0.0
  %1726 = vmatpush1.msra.mxu0 0.0
  %1727 = vmatprep.subr.mxu0 0.0
  %1728 = vmatpush1.msra.mxu0 0.0
  %1729 = vmatprep.subr.mxu0 0.0
  %1730 = vmatpush1.msra.mxu0 0.0
  %1731 = vmatprep.subr.mxu0 0.0
  %1732 = vmatpush1.msra.mxu0 0.0
  %1733 = vmatprep.subr.mxu0 0.0
  %1734 = vmatpush1.msra.mxu0 0.0
  %1735 = vmatprep.subr.mxu0 0.0
  %1736 = vmatpush1.msra.mxu0 0.0
  %1737 = vmatprep.subr.mxu0 0.0
  %1738 = vmatpush1.msra.mxu0 0.0
  %1739 = vmatprep.subr.mxu0 0.0
  %1740 = vmatpush1.msra.mxu0 0.0
  %1741 = vmatprep.subr.mxu0 0.0
  %1742 = vmatpush1.msra.mxu0 0.0
  %1743 = vmatprep.subr.mxu0 0.0
  %1744 = vmatpush1.msra.mxu0 0.0
  %1745 = vmatprep.subr.mxu0 0.0
  %1746 = vmatpush1.msra.mxu0 0.0
  %1747 = vmatprep.subr.mxu0 0.0
  %1748 = vmatpush1.msra.mxu0 0.0
  %1749 = vmatprep.subr.mxu0 0.0
  %1750 = vmatpush1.msra.mxu0 %v1551
  %1751 = vmatprep.subr.mxu0 0.0
  %1752 = vmatpush1.msra.mxu0 %v1546
  %1753 = vmatprep.subr.mxu0 0.0
  %1754 = vmatpush2.msra.mxu0 0.0
  %1755 = vmatprep.subr.mxu0 0.0
  %1756 = vmatpush2.msra.mxu0 0.0
  %1757 = vmatprep.subr.mxu0 0.0
  %1758 = vmatpush2.msra.mxu0 0.0
  %1759 = vmatprep.subr.mxu0 0.0
  %1760 = vmatpush2.msra.mxu0 0.0
  %1761 = vmatprep.subr.mxu0 0.0
  %1762 = vmatpush2.msra.mxu0 0.0
  %1763 = vmatprep.subr.mxu0 0.0
  %1764 = vmatpush2.msra.mxu0 0.0
  %1765 = vmatprep.subr.mxu0 0.0
  %1766 = vmatpush2.msra.mxu0 0.0
  %1767 = vmatprep.subr.mxu0 0.0
  %1768 = vmatpush2.msra.mxu0 0.0
  %1769 = vmatprep.subr.mxu0 0.0
  %1770 = vmatpush2.msra.mxu0 0.0
  %1771 = vmatprep.subr.mxu0 0.0
  %1772 = vmatpush2.msra.mxu0 0.0
  %1773 = vmatprep.subr.mxu0 0.0
  %1774 = vmatpush2.msra.mxu0 0.0
  %1775 = vmatprep.subr.mxu0 0.0
  %1776 = vmatpush2.msra.mxu0 0.0
  %1777 = vmatprep.subr.mxu0 0.0
  %1778 = vmatpush2.msra.mxu0 0.0
  %1779 = vmatprep.subr.mxu0 0.0
  %1780 = vmatpush2.msra.mxu0 0.0
  %1781 = vmatprep.subr.mxu0 0.0
  %1782 = vmatpush2.msra.mxu0 0.0
  %1783 = vmatprep.subr.mxu0 0.0
  %1784 = vmatpush2.msra.mxu0 0.0
  %1785 = vmatprep.mubr.f32.mxu0 0.0
  %1786 = vmatmul.mubr.f32.gmra.mxu0 %v1716
  %v1787 = vpop.f32.mrf.mxu0
  %v1788 = vadd.f32 0.0, %v1787
  %v1789 = vpop.f32.mrf.mxu0
  %1790 = vmatprep.mubr.f32.mxu0 0.0
  %1791 = vmatmul.mubr.f32.gmra.mxu0 %v1719
  %v1792 = vpop.f32.mrf.mxu0
  %v1793 = vadd.f32 0.0, %v1792
  %v1794 = vpop.f32.mrf.mxu0
  %1795 = vdwg.mxu0
  %1796 = vset.pattern.permute.xlu0 3
  %1797 = vperm.xlu0 %1796, %v1629
  %v1798 = vpop.permute.xlu0 %1797
  %1800 = vset.pattern.permute.xlu0 3
  %1801 = vperm.xlu0 %1800, %v1634
  %v1802 = vpop.permute.xlu0 %1801
  %v1804 = vlaneseq
  %v1805 = vshrl.u32 %v1804, 7
  %v1806 = vsub.s32 1, %v1805
  %v1807 = vrot.slane %v1653, %v1806
  %v1808 = vadd.f32 %v1798, %v1807
  %v1809 = vadd.f32 %v1802, %v1807
  %vm1810 = vcmp.gt.f32.partialorder %v1808, 0.0
  %vm1811 = vcmp.gt.f32.partialorder %v1809, 0.0
  %v1812 = vmul.f32 %v1808, 0.2
  %v1813 = vmul.f32 %v1809, 0.2
  %v1814 = vsel %vm1810, %v1808, %v1812
  %v1815 = vsel %vm1811, %v1809, %v1813
  %v1816 = vadd.f32 %v1814, %v49
  %v1817 = vadd.f32 %v1815, %v50
  %v1818 = vsel %vm53, %v1816, -inf
  %1819 = vmax.xlane.f32.xlu0 %v1818
  %v1820 = vpop.xlane.xlu0 %1819
  %v1821 = vsel %vm53, %v1817, -inf
  %1822 = vmax.xlane.f32.xlu0 %v1821
  %v1823 = vpop.xlane.xlu0 %1822
  %v1824 = vsub.f32 %v1816, %v1820
  %v1825 = vsub.f32 %v1817, %v1823
  %v1826 = vmul.f32 %v1824, 1.442695
  %v1827 = vpow.pop %v1826
  %v1828 = vmul.f32 %v1825, 1.442695
  %v1829 = vpow.pop %v1828
  %v1830 = vsel %vm53, %v1827, 0.0
  %1831 = vadd.xlane.f32.xlu0 %v1830
  %v1832 = vpop.xlane.xlu0 %1831
  %v1833 = vsel %vm53, %v1829, 0.0
  %1834 = vadd.xlane.f32.xlu0 %v1833
  %v1835 = vpop.xlane.xlu0 %1834
  %v1836 = vrcp.pop %v1832
  %v1837 = vmul.f32 %v1827, %v1836
  %v1838 = vrcp.pop %v1835
  %v1839 = vmul.f32 %v1829, %v1838
  %1840 = vrot.lane.b32.xlu0 %v1546, 124
  %v1841 = vpop.permute.xlu0 %1840
  %1842 = vrot.lane.b32.xlu0 %v1551, 124
  %v1843 = vpop.permute.xlu0 %1842
  %v1847 = vsel %vm53, %v1837, 0
  %v1850 = vsel %vm53, %v1839, 0
  %1852 = vmatprep.subr.mxu0 0.0
  %1853 = vmatpush1.msra.mxu0 0.0
  %1854 = vmatprep.subr.mxu0 0.0
  %1855 = vmatpush1.msra.mxu0 0.0
  %1856 = vmatprep.subr.mxu0 0.0
  %1857 = vmatpush1.msra.mxu0 0.0
  %1858 = vmatprep.subr.mxu0 0.0
  %1859 = vmatpush1.msra.mxu0 0.0
  %1860 = vmatprep.subr.mxu0 0.0
  %1861 = vmatpush1.msra.mxu0 0.0
  %1862 = vmatprep.subr.mxu0 0.0
  %1863 = vmatpush1.msra.mxu0 0.0
  %1864 = vmatprep.subr.mxu0 0.0
  %1865 = vmatpush1.msra.mxu0 0.0
  %1866 = vmatprep.subr.mxu0 0.0
  %1867 = vmatpush1.msra.mxu0 0.0
  %1868 = vmatprep.subr.mxu0 0.0
  %1869 = vmatpush1.msra.mxu0 0.0
  %1870 = vmatprep.subr.mxu0 0.0
  %1871 = vmatpush1.msra.mxu0 0.0
  %1872 = vmatprep.subr.mxu0 0.0
  %1873 = vmatpush1.msra.mxu0 0.0
  %1874 = vmatprep.subr.mxu0 0.0
  %1875 = vmatpush1.msra.mxu0 0.0
  %1876 = vmatprep.subr.mxu0 0.0
  %1877 = vmatpush1.msra.mxu0 0.0
  %1878 = vmatprep.subr.mxu0 0.0
  %1879 = vmatpush1.msra.mxu0 0.0
  %1880 = vmatprep.subr.mxu0 0.0
  %1881 = vmatpush1.msra.mxu0 %v1843
  %1882 = vmatprep.subr.mxu0 0.0
  %1883 = vmatpush1.msra.mxu0 %v1841
  %1884 = vmatprep.subr.mxu0 0.0
  %1885 = vmatpush2.msra.mxu0 0.0
  %1886 = vmatprep.subr.mxu0 0.0
  %1887 = vmatpush2.msra.mxu0 0.0
  %1888 = vmatprep.subr.mxu0 0.0
  %1889 = vmatpush2.msra.mxu0 0.0
  %1890 = vmatprep.subr.mxu0 0.0
  %1891 = vmatpush2.msra.mxu0 0.0
  %1892 = vmatprep.subr.mxu0 0.0
  %1893 = vmatpush2.msra.mxu0 0.0
  %1894 = vmatprep.subr.mxu0 0.0
  %1895 = vmatpush2.msra.mxu0 0.0
  %1896 = vmatprep.subr.mxu0 0.0
  %1897 = vmatpush2.msra.mxu0 0.0
  %1898 = vmatprep.subr.mxu0 0.0
  %1899 = vmatpush2.msra.mxu0 0.0
  %1900 = vmatprep.subr.mxu0 0.0
  %1901 = vmatpush2.msra.mxu0 0.0
  %1902 = vmatprep.subr.mxu0 0.0
  %1903 = vmatpush2.msra.mxu0 0.0
  %1904 = vmatprep.subr.mxu0 0.0
  %1905 = vmatpush2.msra.mxu0 0.0
  %1906 = vmatprep.subr.mxu0 0.0
  %1907 = vmatpush2.msra.mxu0 0.0
  %1908 = vmatprep.subr.mxu0 0.0
  %1909 = vmatpush2.msra.mxu0 0.0
  %1910 = vmatprep.subr.mxu0 0.0
  %1911 = vmatpush2.msra.mxu0 0.0
  %1912 = vmatprep.subr.mxu0 0.0
  %1913 = vmatpush2.msra.mxu0 0.0
  %1914 = vmatprep.subr.mxu0 0.0
  %1915 = vmatpush2.msra.mxu0 0.0
  %1916 = vmatprep.mubr.f32.mxu0 0.0
  %1917 = vmatmul.mubr.f32.gmra.mxu0 %v1847
  %v1918 = vpop.f32.mrf.mxu0
  %v1919 = vadd.f32 0.0, %v1918
  %v1920 = vpop.f32.mrf.mxu0
  %1921 = vmatprep.mubr.f32.mxu0 0.0
  %1922 = vmatmul.mubr.f32.gmra.mxu0 %v1850
  %v1923 = vpop.f32.mrf.mxu0
  %v1924 = vadd.f32 0.0, %v1923
  %v1925 = vpop.f32.mrf.mxu0
  %1926 = vdwg.mxu0
  %1929 = vrot.lane.b32.xlu0 %v1919, 4
  %v1930 = vpop.permute.xlu0 %1929
  %1931 = vrot.lane.b32.xlu0 %v1924, 4
  %v1932 = vpop.permute.xlu0 %1931
  %v1935 = vsel %vm184, %v1788, %v1930
  %v1936 = vsel %vm184, %v1793, %v1932
  %v1937 = vld [vmem:[%s5 + $0x2] sm:$0x1]
  %v1938 = vlaneseq
  %v1939 = vshrl.u32 %v1938, 7
  %v1940 = vsub.s32 0, %v1939
  %v1941 = vrot.slane %v1937, %v1940
  %v1942 = vadd.f32 %v1935, %v1941
  %v1943 = vadd.f32 %v1936, %v1941
  %vm1944 = vcmp.gt.f32.partialorder %v1942, 0.0
  %vm1945 = vcmp.gt.f32.partialorder %v1943, 0.0
  %v1946 = vmin.f32 %v1942, 0.0
  %v1947 = vmin.f32 %v1943, 0.0
  %v1948 = vmul.f32 %v1946, 1.442695
  %v1949 = vpow.pop %v1948
  %v1950 = vmul.f32 %v1947, 1.442695
  %v1951 = vpow.pop %v1950
  %v1952 = vsub.f32 %v1949, 1.0
  %v1953 = vsub.f32 %v1951, 1.0
  %v1954 = vsel %vm1944, %v1942, %v1952
  %v1955 = vsel %vm1945, %v1943, %v1953
  %s1956 = scalar_lea.vmem %s6, 16
  %v1957 = vld [vmem:[%s1956] sm:$0xff]
  %v1958 = vld [vmem:[%s7 + $0x2] sm:$0x1]
  %v1959 = vlaneseq
  %v1960 = vshrl.u32 %v1959, 7
  %v1961 = vsub.s32 0, %v1960
  %v1962 = vrot.slane %v1958, %v1961
  %v1964 = vsel %vm271, %v1954, 0
  %v1967 = vsel %vm271, %v1955, 0
  %1969 = vmatprep.subr.mxu0 0.0
  %1970 = vmatpush1.msra.mxu0 0.0
  %1971 = vmatprep.subr.mxu0 0.0
  %1972 = vmatpush1.msra.mxu0 0.0
  %1973 = vmatprep.subr.mxu0 0.0
  %1974 = vmatpush1.msra.mxu0 0.0
  %1975 = vmatprep.subr.mxu0 0.0
  %1976 = vmatpush1.msra.mxu0 0.0
  %1977 = vmatprep.subr.mxu0 0.0
  %1978 = vmatpush1.msra.mxu0 0.0
  %1979 = vmatprep.subr.mxu0 0.0
  %1980 = vmatpush1.msra.mxu0 0.0
  %1981 = vmatprep.subr.mxu0 0.0
  %1982 = vmatpush1.msra.mxu0 0.0
  %1983 = vmatprep.subr.mxu0 0.0
  %1984 = vmatpush1.msra.mxu0 0.0
  %1985 = vmatprep.subr.mxu0 0.0
  %1986 = vmatpush1.msra.mxu0 0.0
  %1987 = vmatprep.subr.mxu0 0.0
  %1988 = vmatpush1.msra.mxu0 0.0
  %1989 = vmatprep.subr.mxu0 0.0
  %1990 = vmatpush1.msra.mxu0 0.0
  %1991 = vmatprep.subr.mxu0 0.0
  %1992 = vmatpush1.msra.mxu0 0.0
  %1993 = vmatprep.subr.mxu0 0.0
  %1994 = vmatpush1.msra.mxu0 0.0
  %1995 = vmatprep.subr.mxu0 0.0
  %1996 = vmatpush1.msra.mxu0 0.0
  %1997 = vmatprep.subr.mxu0 0.0
  %1998 = vmatpush1.msra.mxu0 0.0
  %1999 = vmatprep.subr.mxu0 0.0
  %2000 = vmatpush1.msra.mxu0 %v1957
  %2001 = vmatprep.subr.mxu0 0.0
  %2002 = vmatpush2.msra.mxu0 0.0
  %2003 = vmatprep.subr.mxu0 0.0
  %2004 = vmatpush2.msra.mxu0 0.0
  %2005 = vmatprep.subr.mxu0 0.0
  %2006 = vmatpush2.msra.mxu0 0.0
  %2007 = vmatprep.subr.mxu0 0.0
  %2008 = vmatpush2.msra.mxu0 0.0
  %2009 = vmatprep.subr.mxu0 0.0
  %2010 = vmatpush2.msra.mxu0 0.0
  %2011 = vmatprep.subr.mxu0 0.0
  %2012 = vmatpush2.msra.mxu0 0.0
  %2013 = vmatprep.subr.mxu0 0.0
  %2014 = vmatpush2.msra.mxu0 0.0
  %2015 = vmatprep.subr.mxu0 0.0
  %2016 = vmatpush2.msra.mxu0 0.0
  %2017 = vmatprep.subr.mxu0 0.0
  %2018 = vmatpush2.msra.mxu0 0.0
  %2019 = vmatprep.subr.mxu0 0.0
  %2020 = vmatpush2.msra.mxu0 0.0
  %2021 = vmatprep.subr.mxu0 0.0
  %2022 = vmatpush2.msra.mxu0 0.0
  %2023 = vmatprep.subr.mxu0 0.0
  %2024 = vmatpush2.msra.mxu0 0.0
  %2025 = vmatprep.subr.mxu0 0.0
  %2026 = vmatpush2.msra.mxu0 0.0
  %2027 = vmatprep.subr.mxu0 0.0
  %2028 = vmatpush2.msra.mxu0 0.0
  %2029 = vmatprep.subr.mxu0 0.0
  %2030 = vmatpush2.msra.mxu0 0.0
  %2031 = vmatprep.subr.mxu0 0.0
  %2032 = vmatpush2.msra.mxu0 0.0
  %2033 = vmatprep.mubr.f32.mxu0 0.0
  %2034 = vmatmul.mubr.f32.gmra.mxu0 %v1964
  %v2035 = vpop.f32.mrf.mxu0
  %v2036 = vadd.f32 %v1962, %v2035
  %v2037 = vpop.f32.mrf.mxu0
  %2038 = vmatprep.mubr.f32.mxu0 0.0
  %2039 = vmatmul.mubr.f32.gmra.mxu0 %v1967
  %v2040 = vpop.f32.mrf.mxu0
  %v2041 = vadd.f32 %v1962, %v2040
  %v2042 = vpop.f32.mrf.mxu0
  %2043 = vdwg.mxu0
  %s2044 = scalar_lea.vmem %s3, 12
  %v2045 = vld [vmem:[%s2044] sm:$0xf]
  %2046 = vrot.lane.b32.xlu0 %v852, 120
  %v2047 = vpop.permute.xlu0 %2046
  %2048 = vrot.lane.b32.xlu0 %v857, 120
  %v2049 = vpop.permute.xlu0 %2048
  %v2050 = vsel %vm184, %v2047, 0
  %v2052 = vsel %vm184, %v2049, 0
  %v2055 = vsel %vm191, %v2045, 0
  %2057 = vmatprep.subr.mxu0 0.0
  %2058 = vmatpush1.msra.mxu0 0.0
  %2059 = vmatprep.subr.mxu0 0.0
  %2060 = vmatpush1.msra.mxu0 0.0
  %2061 = vmatprep.subr.mxu0 0.0
  %2062 = vmatpush1.msra.mxu0 0.0
  %2063 = vmatprep.subr.mxu0 0.0
  %2064 = vmatpush1.msra.mxu0 0.0
  %2065 = vmatprep.subr.mxu0 0.0
  %2066 = vmatpush1.msra.mxu0 0.0
  %2067 = vmatprep.subr.mxu0 0.0
  %2068 = vmatpush1.msra.mxu0 0.0
  %2069 = vmatprep.subr.mxu0 0.0
  %2070 = vmatpush1.msra.mxu0 0.0
  %2071 = vmatprep.subr.mxu0 0.0
  %2072 = vmatpush1.msra.mxu0 0.0
  %2073 = vmatprep.subr.mxu0 0.0
  %2074 = vmatpush1.msra.mxu0 0.0
  %2075 = vmatprep.subr.mxu0 0.0
  %2076 = vmatpush1.msra.mxu0 0.0
  %2077 = vmatprep.subr.mxu0 0.0
  %2078 = vmatpush1.msra.mxu0 0.0
  %2079 = vmatprep.subr.mxu0 0.0
  %2080 = vmatpush1.msra.mxu0 0.0
  %2081 = vmatprep.subr.mxu0 0.0
  %2082 = vmatpush1.msra.mxu0 0.0
  %2083 = vmatprep.subr.mxu0 0.0
  %2084 = vmatpush1.msra.mxu0 0.0
  %2085 = vmatprep.subr.mxu0 0.0
  %2086 = vmatpush1.msra.mxu0 0.0
  %2087 = vmatprep.subr.mxu0 0.0
  %2088 = vmatpush1.msra.mxu0 %v2055
  %2089 = vmatprep.subr.mxu0 0.0
  %2090 = vmatpush2.msra.mxu0 0.0
  %2091 = vmatprep.subr.mxu0 0.0
  %2092 = vmatpush2.msra.mxu0 0.0
  %2093 = vmatprep.subr.mxu0 0.0
  %2094 = vmatpush2.msra.mxu0 0.0
  %2095 = vmatprep.subr.mxu0 0.0
  %2096 = vmatpush2.msra.mxu0 0.0
  %2097 = vmatprep.subr.mxu0 0.0
  %2098 = vmatpush2.msra.mxu0 0.0
  %2099 = vmatprep.subr.mxu0 0.0
  %2100 = vmatpush2.msra.mxu0 0.0
  %2101 = vmatprep.subr.mxu0 0.0
  %2102 = vmatpush2.msra.mxu0 0.0
  %2103 = vmatprep.subr.mxu0 0.0
  %2104 = vmatpush2.msra.mxu0 0.0
  %2105 = vmatprep.subr.mxu0 0.0
  %2106 = vmatpush2.msra.mxu0 0.0
  %2107 = vmatprep.subr.mxu0 0.0
  %2108 = vmatpush2.msra.mxu0 0.0
  %2109 = vmatprep.subr.mxu0 0.0
  %2110 = vmatpush2.msra.mxu0 0.0
  %2111 = vmatprep.subr.mxu0 0.0
  %2112 = vmatpush2.msra.mxu0 0.0
  %2113 = vmatprep.subr.mxu0 0.0
  %2114 = vmatpush2.msra.mxu0 0.0
  %2115 = vmatprep.subr.mxu0 0.0
  %2116 = vmatpush2.msra.mxu0 0.0
  %2117 = vmatprep.subr.mxu0 0.0
  %2118 = vmatpush2.msra.mxu0 0.0
  %2119 = vmatprep.subr.mxu0 0.0
  %2120 = vmatpush2.msra.mxu0 0.0
  %2121 = vmatprep.mubr.f32.mxu0 0.0
  %2122 = vmatmul.mubr.f32.gmra.mxu0 %v2050
  %v2123 = vpop.f32.mrf.mxu0
  %v2124 = vadd.f32 0.0, %v2123
  %v2125 = vpop.f32.mrf.mxu0
  %2126 = vmatprep.mubr.f32.mxu0 0.0
  %2127 = vmatmul.mubr.f32.gmra.mxu0 %v2052
  %v2128 = vpop.f32.mrf.mxu0
  %v2129 = vadd.f32 0.0, %v2128
  %v2130 = vpop.f32.mrf.mxu0
  %2131 = vdwg.mxu0
  %s2132 = scalar_lea.vmem %s4, 24
  %v2133 = vld [vmem:[%s2132] sm:$0xff]
  %v2135 = vsel %vm271, %v2124, 0
  %v2138 = vsel %vm271, %v2129, 0
  %2140 = vmatprep.subr.mxu0 0.0
  %2141 = vmatpush1.msra.mxu0 0.0
  %2142 = vmatprep.subr.mxu0 0.0
  %2143 = vmatpush1.msra.mxu0 0.0
  %2144 = vmatprep.subr.mxu0 0.0
  %2145 = vmatpush1.msra.mxu0 0.0
  %2146 = vmatprep.subr.mxu0 0.0
  %2147 = vmatpush1.msra.mxu0 0.0
  %2148 = vmatprep.subr.mxu0 0.0
  %2149 = vmatpush1.msra.mxu0 0.0
  %2150 = vmatprep.subr.mxu0 0.0
  %2151 = vmatpush1.msra.mxu0 0.0
  %2152 = vmatprep.subr.mxu0 0.0
  %2153 = vmatpush1.msra.mxu0 0.0
  %2154 = vmatprep.subr.mxu0 0.0
  %2155 = vmatpush1.msra.mxu0 0.0
  %2156 = vmatprep.subr.mxu0 0.0
  %2157 = vmatpush1.msra.mxu0 0.0
  %2158 = vmatprep.subr.mxu0 0.0
  %2159 = vmatpush1.msra.mxu0 0.0
  %2160 = vmatprep.subr.mxu0 0.0
  %2161 = vmatpush1.msra.mxu0 0.0
  %2162 = vmatprep.subr.mxu0 0.0
  %2163 = vmatpush1.msra.mxu0 0.0
  %2164 = vmatprep.subr.mxu0 0.0
  %2165 = vmatpush1.msra.mxu0 0.0
  %2166 = vmatprep.subr.mxu0 0.0
  %2167 = vmatpush1.msra.mxu0 0.0
  %2168 = vmatprep.subr.mxu0 0.0
  %2169 = vmatpush1.msra.mxu0 0.0
  %2170 = vmatprep.subr.mxu0 0.0
  %2171 = vmatpush1.msra.mxu0 %v2133
  %2172 = vmatprep.subr.mxu0 0.0
  %2173 = vmatpush2.msra.mxu0 0.0
  %2174 = vmatprep.subr.mxu0 0.0
  %2175 = vmatpush2.msra.mxu0 0.0
  %2176 = vmatprep.subr.mxu0 0.0
  %2177 = vmatpush2.msra.mxu0 0.0
  %2178 = vmatprep.subr.mxu0 0.0
  %2179 = vmatpush2.msra.mxu0 0.0
  %2180 = vmatprep.subr.mxu0 0.0
  %2181 = vmatpush2.msra.mxu0 0.0
  %2182 = vmatprep.subr.mxu0 0.0
  %2183 = vmatpush2.msra.mxu0 0.0
  %2184 = vmatprep.subr.mxu0 0.0
  %2185 = vmatpush2.msra.mxu0 0.0
  %2186 = vmatprep.subr.mxu0 0.0
  %2187 = vmatpush2.msra.mxu0 0.0
  %2188 = vmatprep.subr.mxu0 0.0
  %2189 = vmatpush2.msra.mxu0 0.0
  %2190 = vmatprep.subr.mxu0 0.0
  %2191 = vmatpush2.msra.mxu0 0.0
  %2192 = vmatprep.subr.mxu0 0.0
  %2193 = vmatpush2.msra.mxu0 0.0
  %2194 = vmatprep.subr.mxu0 0.0
  %2195 = vmatpush2.msra.mxu0 0.0
  %2196 = vmatprep.subr.mxu0 0.0
  %2197 = vmatpush2.msra.mxu0 0.0
  %2198 = vmatprep.subr.mxu0 0.0
  %2199 = vmatpush2.msra.mxu0 0.0
  %2200 = vmatprep.subr.mxu0 0.0
  %2201 = vmatpush2.msra.mxu0 0.0
  %2202 = vmatprep.subr.mxu0 0.0
  %2203 = vmatpush2.msra.mxu0 0.0
  %2204 = vmatprep.mubr.f32.mxu0 0.0
  %2205 = vmatmul.mubr.f32.gmra.mxu0 %v2135
  %v2206 = vpop.f32.mrf.mxu0
  %v2207 = vadd.f32 0.0, %v2206
  %v2208 = vpop.f32.mrf.mxu0
  %2209 = vmatprep.mubr.f32.mxu0 0.0
  %2210 = vmatmul.mubr.f32.gmra.mxu0 %v2138
  %v2211 = vpop.f32.mrf.mxu0
  %v2212 = vadd.f32 0.0, %v2211
  %v2213 = vpop.f32.mrf.mxu0
  %2214 = vdwg.mxu0
  %2215 = vxpose.xlu0.b32.start [1/16] %v2207, 128
  %2216 = vxpose.xlu0.b32.cont [2/16] %v2212, 128
  %2217 = vxpose.xlu0.b32.cont [3/16] 0.0, 128
  %2218 = vxpose.xlu0.b32.cont [4/16] 0.0, 128
  %2219 = vxpose.xlu0.b32.cont [5/16] 0.0, 128
  %2220 = vxpose.xlu0.b32.cont [6/16] 0.0, 128
  %2221 = vxpose.xlu0.b32.cont [7/16] 0.0, 128
  %2222 = vxpose.xlu0.b32.cont [8/16] 0.0, 128
  %2223 = vxpose.xlu0.b32.cont [9/16] 0.0, 128
  %2224 = vxpose.xlu0.b32.cont [10/16] 0.0, 128
  %2225 = vxpose.xlu0.b32.cont [11/16] 0.0, 128
  %2226 = vxpose.xlu0.b32.cont [12/16] 0.0, 128
  %2227 = vxpose.xlu0.b32.cont [13/16] 0.0, 128
  %2228 = vxpose.xlu0.b32.cont [14/16] 0.0, 128
  %2229 = vxpose.xlu0.b32.cont [15/16] 0.0, 128
  %2230 = vxpose.xlu0.b32.end [16/16] 0.0, 128
  %v2231 = vpop.trf.xlu0
  %v2232 = vpop.trf.xlu0
  %v2233 = vpop.trf.xlu0
  %v2234 = vpop.trf.xlu0
  %v2235 = vpop.trf.xlu0
  %v2236 = vpop.trf.xlu0
  %v2237 = vpop.trf.xlu0
  %v2238 = vpop.trf.xlu0
  %v2239 = vpop.trf.xlu0
  %v2240 = vpop.trf.xlu0
  %v2241 = vpop.trf.xlu0
  %v2242 = vpop.trf.xlu0
  %v2243 = vpop.trf.xlu0
  %v2244 = vpop.trf.xlu0
  %v2245 = vpop.trf.xlu0
  %v2246 = vpop.trf.xlu0
  %2248 = vset.pattern.permute.xlu0 2
  %2249 = vperm.xlu0 %2248, %v2207
  %v2250 = vpop.permute.xlu0 %2249
  %2253 = vset.pattern.permute.xlu0 2
  %2254 = vperm.xlu0 %2253, %v2212
  %v2255 = vpop.permute.xlu0 %2254
  %v2257 = vlaneseq
  %v2258 = vshrl.u32 %v2257, 7
  %v2259 = vsub.s32 0, %v2258
  %v2260 = vrot.slane %v2231, %v2259
  %v2261 = vadd.f32 %v2250, %v2260
  %v2262 = vadd.f32 %v2255, %v2260
  %vm2263 = vcmp.gt.f32.partialorder %v2261, 0.0
  %vm2264 = vcmp.gt.f32.partialorder %v2262, 0.0
  %v2265 = vmul.f32 %v2261, 0.2
  %v2266 = vmul.f32 %v2262, 0.2
  %v2267 = vsel %vm2263, %v2261, %v2265
  %v2268 = vsel %vm2264, %v2262, %v2266
  %v2269 = vadd.f32 %v2267, %v49
  %v2270 = vadd.f32 %v2268, %v50
  %v2271 = vsel %vm53, %v2269, -inf
  %2272 = vmax.xlane.f32.xlu0 %v2271
  %v2273 = vpop.xlane.xlu0 %2272
  %v2274 = vsel %vm53, %v2270, -inf
  %2275 = vmax.xlane.f32.xlu0 %v2274
  %v2276 = vpop.xlane.xlu0 %2275
  %v2277 = vsub.f32 %v2269, %v2273
  %v2278 = vsub.f32 %v2270, %v2276
  %v2279 = vmul.f32 %v2277, 1.442695
  %v2280 = vpow.pop %v2279
  %v2281 = vmul.f32 %v2278, 1.442695
  %v2282 = vpow.pop %v2281
  %v2283 = vsel %vm53, %v2280, 0.0
  %2284 = vadd.xlane.f32.xlu0 %v2283
  %v2285 = vpop.xlane.xlu0 %2284
  %v2286 = vsel %vm53, %v2282, 0.0
  %2287 = vadd.xlane.f32.xlu0 %v2286
  %v2288 = vpop.xlane.xlu0 %2287
  %v2289 = vrcp.pop %v2285
  %v2290 = vmul.f32 %v2280, %v2289
  %v2291 = vrcp.pop %v2288
  %v2292 = vmul.f32 %v2282, %v2291
  %v2294 = vsel %vm53, %v2290, 0
  %v2297 = vsel %vm53, %v2292, 0
  %2299 = vmatprep.subr.mxu0 0.0
  %2300 = vmatpush1.msra.mxu0 0.0
  %2301 = vmatprep.subr.mxu0 0.0
  %2302 = vmatpush1.msra.mxu0 0.0
  %2303 = vmatprep.subr.mxu0 0.0
  %2304 = vmatpush1.msra.mxu0 0.0
  %2305 = vmatprep.subr.mxu0 0.0
  %2306 = vmatpush1.msra.mxu0 0.0
  %2307 = vmatprep.subr.mxu0 0.0
  %2308 = vmatpush1.msra.mxu0 0.0
  %2309 = vmatprep.subr.mxu0 0.0
  %2310 = vmatpush1.msra.mxu0 0.0
  %2311 = vmatprep.subr.mxu0 0.0
  %2312 = vmatpush1.msra.mxu0 0.0
  %2313 = vmatprep.subr.mxu0 0.0
  %2314 = vmatpush1.msra.mxu0 0.0
  %2315 = vmatprep.subr.mxu0 0.0
  %2316 = vmatpush1.msra.mxu0 0.0
  %2317 = vmatprep.subr.mxu0 0.0
  %2318 = vmatpush1.msra.mxu0 0.0
  %2319 = vmatprep.subr.mxu0 0.0
  %2320 = vmatpush1.msra.mxu0 0.0
  %2321 = vmatprep.subr.mxu0 0.0
  %2322 = vmatpush1.msra.mxu0 0.0
  %2323 = vmatprep.subr.mxu0 0.0
  %2324 = vmatpush1.msra.mxu0 0.0
  %2325 = vmatprep.subr.mxu0 0.0
  %2326 = vmatpush1.msra.mxu0 0.0
  %2327 = vmatprep.subr.mxu0 0.0
  %2328 = vmatpush1.msra.mxu0 %v2129
  %2329 = vmatprep.subr.mxu0 0.0
  %2330 = vmatpush1.msra.mxu0 %v2124
  %2331 = vmatprep.subr.mxu0 0.0
  %2332 = vmatpush2.msra.mxu0 0.0
  %2333 = vmatprep.subr.mxu0 0.0
  %2334 = vmatpush2.msra.mxu0 0.0
  %2335 = vmatprep.subr.mxu0 0.0
  %2336 = vmatpush2.msra.mxu0 0.0
  %2337 = vmatprep.subr.mxu0 0.0
  %2338 = vmatpush2.msra.mxu0 0.0
  %2339 = vmatprep.subr.mxu0 0.0
  %2340 = vmatpush2.msra.mxu0 0.0
  %2341 = vmatprep.subr.mxu0 0.0
  %2342 = vmatpush2.msra.mxu0 0.0
  %2343 = vmatprep.subr.mxu0 0.0
  %2344 = vmatpush2.msra.mxu0 0.0
  %2345 = vmatprep.subr.mxu0 0.0
  %2346 = vmatpush2.msra.mxu0 0.0
  %2347 = vmatprep.subr.mxu0 0.0
  %2348 = vmatpush2.msra.mxu0 0.0
  %2349 = vmatprep.subr.mxu0 0.0
  %2350 = vmatpush2.msra.mxu0 0.0
  %2351 = vmatprep.subr.mxu0 0.0
  %2352 = vmatpush2.msra.mxu0 0.0
  %2353 = vmatprep.subr.mxu0 0.0
  %2354 = vmatpush2.msra.mxu0 0.0
  %2355 = vmatprep.subr.mxu0 0.0
  %2356 = vmatpush2.msra.mxu0 0.0
  %2357 = vmatprep.subr.mxu0 0.0
  %2358 = vmatpush2.msra.mxu0 0.0
  %2359 = vmatprep.subr.mxu0 0.0
  %2360 = vmatpush2.msra.mxu0 0.0
  %2361 = vmatprep.subr.mxu0 0.0
  %2362 = vmatpush2.msra.mxu0 0.0
  %2363 = vmatprep.mubr.f32.mxu0 0.0
  %2364 = vmatmul.mubr.f32.gmra.mxu0 %v2294
  %v2365 = vpop.f32.mrf.mxu0
  %v2366 = vadd.f32 0.0, %v2365
  %v2367 = vpop.f32.mrf.mxu0
  %2368 = vmatprep.mubr.f32.mxu0 0.0
  %2369 = vmatmul.mubr.f32.gmra.mxu0 %v2297
  %v2370 = vpop.f32.mrf.mxu0
  %v2371 = vadd.f32 0.0, %v2370
  %v2372 = vpop.f32.mrf.mxu0
  %2373 = vdwg.mxu0
  %2374 = vset.pattern.permute.xlu0 3
  %2375 = vperm.xlu0 %2374, %v2207
  %v2376 = vpop.permute.xlu0 %2375
  %2378 = vset.pattern.permute.xlu0 3
  %2379 = vperm.xlu0 %2378, %v2212
  %v2380 = vpop.permute.xlu0 %2379
  %v2382 = vlaneseq
  %v2383 = vshrl.u32 %v2382, 7
  %v2384 = vsub.s32 1, %v2383
  %v2385 = vrot.slane %v2231, %v2384
  %v2386 = vadd.f32 %v2376, %v2385
  %v2387 = vadd.f32 %v2380, %v2385
  %vm2388 = vcmp.gt.f32.partialorder %v2386, 0.0
  %vm2389 = vcmp.gt.f32.partialorder %v2387, 0.0
  %v2390 = vmul.f32 %v2386, 0.2
  %v2391 = vmul.f32 %v2387, 0.2
  %v2392 = vsel %vm2388, %v2386, %v2390
  %v2393 = vsel %vm2389, %v2387, %v2391
  %v2394 = vadd.f32 %v2392, %v49
  %v2395 = vadd.f32 %v2393, %v50
  %v2396 = vsel %vm53, %v2394, -inf
  %2397 = vmax.xlane.f32.xlu0 %v2396
  %v2398 = vpop.xlane.xlu0 %2397
  %v2399 = vsel %vm53, %v2395, -inf
  %2400 = vmax.xlane.f32.xlu0 %v2399
  %v2401 = vpop.xlane.xlu0 %2400
  %v2402 = vsub.f32 %v2394, %v2398
  %v2403 = vsub.f32 %v2395, %v2401
  %v2404 = vmul.f32 %v2402, 1.442695
  %v2405 = vpow.pop %v2404
  %v2406 = vmul.f32 %v2403, 1.442695
  %v2407 = vpow.pop %v2406
  %v2408 = vsel %vm53, %v2405, 0.0
  %2409 = vadd.xlane.f32.xlu0 %v2408
  %v2410 = vpop.xlane.xlu0 %2409
  %v2411 = vsel %vm53, %v2407, 0.0
  %2412 = vadd.xlane.f32.xlu0 %v2411
  %v2413 = vpop.xlane.xlu0 %2412
  %v2414 = vrcp.pop %v2410
  %v2415 = vmul.f32 %v2405, %v2414
  %v2416 = vrcp.pop %v2413
  %v2417 = vmul.f32 %v2407, %v2416
  %2418 = vrot.lane.b32.xlu0 %v2124, 124
  %v2419 = vpop.permute.xlu0 %2418
  %2420 = vrot.lane.b32.xlu0 %v2129, 124
  %v2421 = vpop.permute.xlu0 %2420
  %v2425 = vsel %vm53, %v2415, 0
  %v2428 = vsel %vm53, %v2417, 0
  %2430 = vmatprep.subr.mxu0 0.0
  %2431 = vmatpush1.msra.mxu0 0.0
  %2432 = vmatprep.subr.mxu0 0.0
  %2433 = vmatpush1.msra.mxu0 0.0
  %2434 = vmatprep.subr.mxu0 0.0
  %2435 = vmatpush1.msra.mxu0 0.0
  %2436 = vmatprep.subr.mxu0 0.0
  %2437 = vmatpush1.msra.mxu0 0.0
  %2438 = vmatprep.subr.mxu0 0.0
  %2439 = vmatpush1.msra.mxu0 0.0
  %2440 = vmatprep.subr.mxu0 0.0
  %2441 = vmatpush1.msra.mxu0 0.0
  %2442 = vmatprep.subr.mxu0 0.0
  %2443 = vmatpush1.msra.mxu0 0.0
  %2444 = vmatprep.subr.mxu0 0.0
  %2445 = vmatpush1.msra.mxu0 0.0
  %2446 = vmatprep.subr.mxu0 0.0
  %2447 = vmatpush1.msra.mxu0 0.0
  %2448 = vmatprep.subr.mxu0 0.0
  %2449 = vmatpush1.msra.mxu0 0.0
  %2450 = vmatprep.subr.mxu0 0.0
  %2451 = vmatpush1.msra.mxu0 0.0
  %2452 = vmatprep.subr.mxu0 0.0
  %2453 = vmatpush1.msra.mxu0 0.0
  %2454 = vmatprep.subr.mxu0 0.0
  %2455 = vmatpush1.msra.mxu0 0.0
  %2456 = vmatprep.subr.mxu0 0.0
  %2457 = vmatpush1.msra.mxu0 0.0
  %2458 = vmatprep.subr.mxu0 0.0
  %2459 = vmatpush1.msra.mxu0 %v2421
  %2460 = vmatprep.subr.mxu0 0.0
  %2461 = vmatpush1.msra.mxu0 %v2419
  %2462 = vmatprep.subr.mxu0 0.0
  %2463 = vmatpush2.msra.mxu0 0.0
  %2464 = vmatprep.subr.mxu0 0.0
  %2465 = vmatpush2.msra.mxu0 0.0
  %2466 = vmatprep.subr.mxu0 0.0
  %2467 = vmatpush2.msra.mxu0 0.0
  %2468 = vmatprep.subr.mxu0 0.0
  %2469 = vmatpush2.msra.mxu0 0.0
  %2470 = vmatprep.subr.mxu0 0.0
  %2471 = vmatpush2.msra.mxu0 0.0
  %2472 = vmatprep.subr.mxu0 0.0
  %2473 = vmatpush2.msra.mxu0 0.0
  %2474 = vmatprep.subr.mxu0 0.0
  %2475 = vmatpush2.msra.mxu0 0.0
  %2476 = vmatprep.subr.mxu0 0.0
  %2477 = vmatpush2.msra.mxu0 0.0
  %2478 = vmatprep.subr.mxu0 0.0
  %2479 = vmatpush2.msra.mxu0 0.0
  %2480 = vmatprep.subr.mxu0 0.0
  %2481 = vmatpush2.msra.mxu0 0.0
  %2482 = vmatprep.subr.mxu0 0.0
  %2483 = vmatpush2.msra.mxu0 0.0
  %2484 = vmatprep.subr.mxu0 0.0
  %2485 = vmatpush2.msra.mxu0 0.0
  %2486 = vmatprep.subr.mxu0 0.0
  %2487 = vmatpush2.msra.mxu0 0.0
  %2488 = vmatprep.subr.mxu0 0.0
  %2489 = vmatpush2.msra.mxu0 0.0
  %2490 = vmatprep.subr.mxu0 0.0
  %2491 = vmatpush2.msra.mxu0 0.0
  %2492 = vmatprep.subr.mxu0 0.0
  %2493 = vmatpush2.msra.mxu0 0.0
  %2494 = vmatprep.mubr.f32.mxu0 0.0
  %2495 = vmatmul.mubr.f32.gmra.mxu0 %v2425
  %v2496 = vpop.f32.mrf.mxu0
  %v2497 = vadd.f32 0.0, %v2496
  %v2498 = vpop.f32.mrf.mxu0
  %2499 = vmatprep.mubr.f32.mxu0 0.0
  %2500 = vmatmul.mubr.f32.gmra.mxu0 %v2428
  %v2501 = vpop.f32.mrf.mxu0
  %v2502 = vadd.f32 0.0, %v2501
  %v2503 = vpop.f32.mrf.mxu0
  %2504 = vdwg.mxu0
  %2507 = vrot.lane.b32.xlu0 %v2497, 4
  %v2508 = vpop.permute.xlu0 %2507
  %2509 = vrot.lane.b32.xlu0 %v2502, 4
  %v2510 = vpop.permute.xlu0 %2509
  %v2513 = vsel %vm184, %v2366, %v2508
  %v2514 = vsel %vm184, %v2371, %v2510
  %v2515 = vld [vmem:[%s5 + $0x3] sm:$0x1]
  %v2516 = vlaneseq
  %v2517 = vshrl.u32 %v2516, 7
  %v2518 = vsub.s32 0, %v2517
  %v2519 = vrot.slane %v2515, %v2518
  %v2520 = vadd.f32 %v2513, %v2519
  %v2521 = vadd.f32 %v2514, %v2519
  %vm2522 = vcmp.gt.f32.partialorder %v2520, 0.0
  %vm2523 = vcmp.gt.f32.partialorder %v2521, 0.0
  %v2524 = vmin.f32 %v2520, 0.0
  %v2525 = vmin.f32 %v2521, 0.0
  %v2526 = vmul.f32 %v2524, 1.442695
  %v2527 = vpow.pop %v2526
  %v2528 = vmul.f32 %v2525, 1.442695
  %v2529 = vpow.pop %v2528
  %v2530 = vsub.f32 %v2527, 1.0
  %v2531 = vsub.f32 %v2529, 1.0
  %v2532 = vsel %vm2522, %v2520, %v2530
  %v2533 = vsel %vm2523, %v2521, %v2531
  %s2534 = scalar_lea.vmem %s6, 24
  %v2535 = vld [vmem:[%s2534] sm:$0xff]
  %v2536 = vld [vmem:[%s7 + $0x3] sm:$0x1]
  %v2537 = vlaneseq
  %v2538 = vshrl.u32 %v2537, 7
  %v2539 = vsub.s32 0, %v2538
  %v2540 = vrot.slane %v2536, %v2539
  %v2542 = vsel %vm271, %v2532, 0
  %v2545 = vsel %vm271, %v2533, 0
  %2547 = vmatprep.subr.mxu0 0.0
  %2548 = vmatpush1.msra.mxu0 0.0
  %2549 = vmatprep.subr.mxu0 0.0
  %2550 = vmatpush1.msra.mxu0 0.0
  %2551 = vmatprep.subr.mxu0 0.0
  %2552 = vmatpush1.msra.mxu0 0.0
  %2553 = vmatprep.subr.mxu0 0.0
  %2554 = vmatpush1.msra.mxu0 0.0
  %2555 = vmatprep.subr.mxu0 0.0
  %2556 = vmatpush1.msra.mxu0 0.0
  %2557 = vmatprep.subr.mxu0 0.0
  %2558 = vmatpush1.msra.mxu0 0.0
  %2559 = vmatprep.subr.mxu0 0.0
  %2560 = vmatpush1.msra.mxu0 0.0
  %2561 = vmatprep.subr.mxu0 0.0
  %2562 = vmatpush1.msra.mxu0 0.0
  %2563 = vmatprep.subr.mxu0 0.0
  %2564 = vmatpush1.msra.mxu0 0.0
  %2565 = vmatprep.subr.mxu0 0.0
  %2566 = vmatpush1.msra.mxu0 0.0
  %2567 = vmatprep.subr.mxu0 0.0
  %2568 = vmatpush1.msra.mxu0 0.0
  %2569 = vmatprep.subr.mxu0 0.0
  %2570 = vmatpush1.msra.mxu0 0.0
  %2571 = vmatprep.subr.mxu0 0.0
  %2572 = vmatpush1.msra.mxu0 0.0
  %2573 = vmatprep.subr.mxu0 0.0
  %2574 = vmatpush1.msra.mxu0 0.0
  %2575 = vmatprep.subr.mxu0 0.0
  %2576 = vmatpush1.msra.mxu0 0.0
  %2577 = vmatprep.subr.mxu0 0.0
  %2578 = vmatpush1.msra.mxu0 %v2535
  %2579 = vmatprep.subr.mxu0 0.0
  %2580 = vmatpush2.msra.mxu0 0.0
  %2581 = vmatprep.subr.mxu0 0.0
  %2582 = vmatpush2.msra.mxu0 0.0
  %2583 = vmatprep.subr.mxu0 0.0
  %2584 = vmatpush2.msra.mxu0 0.0
  %2585 = vmatprep.subr.mxu0 0.0
  %2586 = vmatpush2.msra.mxu0 0.0
  %2587 = vmatprep.subr.mxu0 0.0
  %2588 = vmatpush2.msra.mxu0 0.0
  %2589 = vmatprep.subr.mxu0 0.0
  %2590 = vmatpush2.msra.mxu0 0.0
  %2591 = vmatprep.subr.mxu0 0.0
  %2592 = vmatpush2.msra.mxu0 0.0
  %2593 = vmatprep.subr.mxu0 0.0
  %2594 = vmatpush2.msra.mxu0 0.0
  %2595 = vmatprep.subr.mxu0 0.0
  %2596 = vmatpush2.msra.mxu0 0.0
  %2597 = vmatprep.subr.mxu0 0.0
  %2598 = vmatpush2.msra.mxu0 0.0
  %2599 = vmatprep.subr.mxu0 0.0
  %2600 = vmatpush2.msra.mxu0 0.0
  %2601 = vmatprep.subr.mxu0 0.0
  %2602 = vmatpush2.msra.mxu0 0.0
  %2603 = vmatprep.subr.mxu0 0.0
  %2604 = vmatpush2.msra.mxu0 0.0
  %2605 = vmatprep.subr.mxu0 0.0
  %2606 = vmatpush2.msra.mxu0 0.0
  %2607 = vmatprep.subr.mxu0 0.0
  %2608 = vmatpush2.msra.mxu0 0.0
  %2609 = vmatprep.subr.mxu0 0.0
  %2610 = vmatpush2.msra.mxu0 0.0
  %2611 = vmatprep.mubr.f32.mxu0 0.0
  %2612 = vmatmul.mubr.f32.gmra.mxu0 %v2542
  %v2613 = vpop.f32.mrf.mxu0
  %v2614 = vadd.f32 %v2540, %v2613
  %v2615 = vpop.f32.mrf.mxu0
  %2616 = vmatprep.mubr.f32.mxu0 0.0
  %2617 = vmatmul.mubr.f32.gmra.mxu0 %v2545
  %v2618 = vpop.f32.mrf.mxu0
  %v2619 = vadd.f32 %v2540, %v2618
  %v2620 = vpop.f32.mrf.mxu0
  %2621 = vdwg.mxu0
  %v2622 = vand.u32 2147483647, %v862
  %v2623 = vand.u32 2147483647, %v867
  %v2624 = vand.u32 2147483647, %v872
  %v2625 = vand.u32 2147483647, %v877
  %v2626 = vand.u32 2147483647, %v882
  %v2627 = vand.u32 2147483647, %v887
  %2630 = vrot.lane.b32.xlu0 %v2624, 4
  %v2631 = vpop.permute.xlu0 %2630
  %2632 = vrot.lane.b32.xlu0 %v2625, 4
  %v2633 = vpop.permute.xlu0 %2632
  %2638 = vrot.lane.b32.xlu0 %v2626, 8
  %v2639 = vpop.permute.xlu0 %2638
  %2640 = vrot.lane.b32.xlu0 %v2627, 8
  %v2641 = vpop.permute.xlu0 %2640
  %v2644 = vsel %vm184, %v2622, %v2631
  %v2645 = vsel %vm184, %v2623, %v2633
  %v2646 = vsel %vm271, %v2644, %v2639
  %v2647 = vsel %vm271, %v2645, %v2641
  %2648 = vmatprep.subr.mxu0 0.0
  %2649 = vmatpush1.msra.mxu0 0.0
  %2650 = vmatprep.subr.mxu0 0.0
  %2651 = vmatpush1.msra.mxu0 0.0
  %2652 = vmatprep.subr.mxu0 0.0
  %2653 = vmatpush1.msra.mxu0 0.0
  %2654 = vmatprep.subr.mxu0 0.0
  %2655 = vmatpush1.msra.mxu0 0.0
  %2656 = vmatprep.subr.mxu0 0.0
  %2657 = vmatpush1.msra.mxu0 0.0
  %2658 = vmatprep.subr.mxu0 0.0
  %2659 = vmatpush1.msra.mxu0 0.0
  %2660 = vmatprep.subr.mxu0 0.0
  %2661 = vmatpush1.msra.mxu0 0.0
  %2662 = vmatprep.subr.mxu0 0.0
  %2663 = vmatpush1.msra.mxu0 0.0
  %2664 = vmatprep.subr.mxu0 0.0
  %2665 = vmatpush1.msra.mxu0 0.0
  %2666 = vmatprep.subr.mxu0 0.0
  %2667 = vmatpush1.msra.mxu0 0.0
  %2668 = vmatprep.subr.mxu0 0.0
  %2669 = vmatpush1.msra.mxu0 0.0
  %2670 = vmatprep.subr.mxu0 0.0
  %2671 = vmatpush1.msra.mxu0 0.0
  %2672 = vmatprep.subr.mxu0 0.0
  %2673 = vmatpush1.msra.mxu0 0.0
  %2674 = vmatprep.subr.mxu0 0.0
  %2675 = vmatpush1.msra.mxu0 0.0
  %2676 = vmatprep.subr.mxu0 0.0
  %2677 = vmatpush1.msra.mxu0 %v2647
  %2678 = vmatprep.subr.mxu0 0.0
  %2679 = vmatpush1.msra.mxu0 %v2646
  %2680 = vmatprep.subr.mxu0 0.0
  %2681 = vmatpush2.msra.mxu0 0.0
  %2682 = vmatprep.subr.mxu0 0.0
  %2683 = vmatpush2.msra.mxu0 0.0
  %2684 = vmatprep.subr.mxu0 0.0
  %2685 = vmatpush2.msra.mxu0 0.0
  %2686 = vmatprep.subr.mxu0 0.0
  %2687 = vmatpush2.msra.mxu0 0.0
  %2688 = vmatprep.subr.mxu0 0.0
  %2689 = vmatpush2.msra.mxu0 0.0
  %2690 = vmatprep.subr.mxu0 0.0
  %2691 = vmatpush2.msra.mxu0 0.0
  %2692 = vmatprep.subr.mxu0 0.0
  %2693 = vmatpush2.msra.mxu0 0.0
  %2694 = vmatprep.subr.mxu0 0.0
  %2695 = vmatpush2.msra.mxu0 0.0
  %2696 = vmatprep.subr.mxu0 0.0
  %2697 = vmatpush2.msra.mxu0 0.0
  %2698 = vmatprep.subr.mxu0 0.0
  %2699 = vmatpush2.msra.mxu0 0.0
  %2700 = vmatprep.subr.mxu0 0.0
  %2701 = vmatpush2.msra.mxu0 0.0
  %2702 = vmatprep.subr.mxu0 0.0
  %2703 = vmatpush2.msra.mxu0 0.0
  %2704 = vmatprep.subr.mxu0 0.0
  %2705 = vmatpush2.msra.mxu0 0.0
  %2706 = vmatprep.subr.mxu0 0.0
  %2707 = vmatpush2.msra.mxu0 0.0
  %2708 = vmatprep.subr.mxu0 0.0
  %2709 = vmatpush2.msra.mxu0 0.0
  %2710 = vmatprep.subr.mxu0 0.0
  %2711 = vmatpush2.msra.mxu0 0.0
  %2712 = vmatprep.mubr.f32.mxu0 0.0
  %2713 = vmatmul.mubr.f32.gmra.mxu0 %v55
  %v2714 = vpop.f32.mrf.mxu0
  %v2715 = vadd.f32 0.0, %v2714
  %v2716 = vpop.f32.mrf.mxu0
  %2717 = vmatprep.mubr.f32.mxu0 0.0
  %2718 = vmatmul.mubr.f32.gmra.mxu0 %v58
  %v2719 = vpop.f32.mrf.mxu0
  %v2720 = vadd.f32 0.0, %v2719
  %v2721 = vpop.f32.mrf.mxu0
  %2722 = vmatprep.mubr.f32.mxu0 0.0
  %2723 = vmatmul.mubr.f32.gmra.mxu0 %v61
  %v2724 = vpop.f32.mrf.mxu0
  %v2725 = vpop.f32.mrf.mxu0
  %2726 = vmatprep.mubr.f32.mxu0 0.0
  %2727 = vmatmul.mubr.f32.gmra.mxu0 %v64
  %v2728 = vpop.f32.mrf.mxu0
  %v2729 = vpop.f32.mrf.mxu0
  %2730 = vmatprep.mubr.f32.mxu0 0.0
  %2731 = vmatmul.mubr.f32.gmra.mxu0 %v67
  %v2732 = vpop.f32.mrf.mxu0
  %v2733 = vpop.f32.mrf.mxu0
  %2734 = vmatprep.mubr.f32.mxu0 0.0
  %2735 = vmatmul.mubr.f32.gmra.mxu0 %v70
  %v2736 = vpop.f32.mrf.mxu0
  %v2737 = vpop.f32.mrf.mxu0
  %2738 = vmatprep.mubr.f32.mxu0 0.0
  %2739 = vmatmul.mubr.f32.gmra.mxu0 %v73
  %v2740 = vpop.f32.mrf.mxu0
  %v2741 = vpop.f32.mrf.mxu0
  %2742 = vmatprep.mubr.f32.mxu0 0.0
  %2743 = vmatmul.mubr.f32.gmra.mxu0 %v76
  %v2744 = vpop.f32.mrf.mxu0
  %v2745 = vpop.f32.mrf.mxu0
  %2746 = vdwg.mxu0
  %s2747 = scalar_lea.vmem %s3, 16
  %v2748 = vld [vmem:[%s2747] sm:$0xf]
  %v2750 = vsel %vm184, %v2715, 0
  %v2753 = vsel %vm184, %v2720, 0
  %v2756 = vsel %vm191, %v2748, 0
  %2758 = vmatprep.subr.mxu0 0.0
  %2759 = vmatpush1.msra.mxu0 0.0
  %2760 = vmatprep.subr.mxu0 0.0
  %2761 = vmatpush1.msra.mxu0 0.0
  %2762 = vmatprep.subr.mxu0 0.0
  %2763 = vmatpush1.msra.mxu0 0.0
  %2764 = vmatprep.subr.mxu0 0.0
  %2765 = vmatpush1.msra.mxu0 0.0
  %2766 = vmatprep.subr.mxu0 0.0
  %2767 = vmatpush1.msra.mxu0 0.0
  %2768 = vmatprep.subr.mxu0 0.0
  %2769 = vmatpush1.msra.mxu0 0.0
  %2770 = vmatprep.subr.mxu0 0.0
  %2771 = vmatpush1.msra.mxu0 0.0
  %2772 = vmatprep.subr.mxu0 0.0
  %2773 = vmatpush1.msra.mxu0 0.0
  %2774 = vmatprep.subr.mxu0 0.0
  %2775 = vmatpush1.msra.mxu0 0.0
  %2776 = vmatprep.subr.mxu0 0.0
  %2777 = vmatpush1.msra.mxu0 0.0
  %2778 = vmatprep.subr.mxu0 0.0
  %2779 = vmatpush1.msra.mxu0 0.0
  %2780 = vmatprep.subr.mxu0 0.0
  %2781 = vmatpush1.msra.mxu0 0.0
  %2782 = vmatprep.subr.mxu0 0.0
  %2783 = vmatpush1.msra.mxu0 0.0
  %2784 = vmatprep.subr.mxu0 0.0
  %2785 = vmatpush1.msra.mxu0 0.0
  %2786 = vmatprep.subr.mxu0 0.0
  %2787 = vmatpush1.msra.mxu0 0.0
  %2788 = vmatprep.subr.mxu0 0.0
  %2789 = vmatpush1.msra.mxu0 %v2756
  %2790 = vmatprep.subr.mxu0 0.0
  %2791 = vmatpush2.msra.mxu0 0.0
  %2792 = vmatprep.subr.mxu0 0.0
  %2793 = vmatpush2.msra.mxu0 0.0
  %2794 = vmatprep.subr.mxu0 0.0
  %2795 = vmatpush2.msra.mxu0 0.0
  %2796 = vmatprep.subr.mxu0 0.0
  %2797 = vmatpush2.msra.mxu0 0.0
  %2798 = vmatprep.subr.mxu0 0.0
  %2799 = vmatpush2.msra.mxu0 0.0
  %2800 = vmatprep.subr.mxu0 0.0
  %2801 = vmatpush2.msra.mxu0 0.0
  %2802 = vmatprep.subr.mxu0 0.0
  %2803 = vmatpush2.msra.mxu0 0.0
  %2804 = vmatprep.subr.mxu0 0.0
  %2805 = vmatpush2.msra.mxu0 0.0
  %2806 = vmatprep.subr.mxu0 0.0
  %2807 = vmatpush2.msra.mxu0 0.0
  %2808 = vmatprep.subr.mxu0 0.0
  %2809 = vmatpush2.msra.mxu0 0.0
  %2810 = vmatprep.subr.mxu0 0.0
  %2811 = vmatpush2.msra.mxu0 0.0
  %2812 = vmatprep.subr.mxu0 0.0
  %2813 = vmatpush2.msra.mxu0 0.0
  %2814 = vmatprep.subr.mxu0 0.0
  %2815 = vmatpush2.msra.mxu0 0.0
  %2816 = vmatprep.subr.mxu0 0.0
  %2817 = vmatpush2.msra.mxu0 0.0
  %2818 = vmatprep.subr.mxu0 0.0
  %2819 = vmatpush2.msra.mxu0 0.0
  %2820 = vmatprep.subr.mxu0 0.0
  %2821 = vmatpush2.msra.mxu0 0.0
  %2822 = vmatprep.mubr.f32.mxu0 0.0
  %2823 = vmatmul.mubr.f32.gmra.mxu0 %v2750
  %v2824 = vpop.f32.mrf.mxu0
  %v2825 = vadd.f32 0.0, %v2824
  %v2826 = vpop.f32.mrf.mxu0
  %2827 = vmatprep.mubr.f32.mxu0 0.0
  %2828 = vmatmul.mubr.f32.gmra.mxu0 %v2753
  %v2829 = vpop.f32.mrf.mxu0
  %v2830 = vadd.f32 0.0, %v2829
  %v2831 = vpop.f32.mrf.mxu0
  %2832 = vdwg.mxu0
  %s2833 = scalar_lea.vmem %s4, 32
  %v2834 = vld [vmem:[%s2833] sm:$0xff]
  %v2836 = vsel %vm271, %v2825, 0
  %v2839 = vsel %vm271, %v2830, 0
  %2841 = vmatprep.subr.mxu0 0.0
  %2842 = vmatpush1.msra.mxu0 0.0
  %2843 = vmatprep.subr.mxu0 0.0
  %2844 = vmatpush1.msra.mxu0 0.0
  %2845 = vmatprep.subr.mxu0 0.0
  %2846 = vmatpush1.msra.mxu0 0.0
  %2847 = vmatprep.subr.mxu0 0.0
  %2848 = vmatpush1.msra.mxu0 0.0
  %2849 = vmatprep.subr.mxu0 0.0
  %2850 = vmatpush1.msra.mxu0 0.0
  %2851 = vmatprep.subr.mxu0 0.0
  %2852 = vmatpush1.msra.mxu0 0.0
  %2853 = vmatprep.subr.mxu0 0.0
  %2854 = vmatpush1.msra.mxu0 0.0
  %2855 = vmatprep.subr.mxu0 0.0
  %2856 = vmatpush1.msra.mxu0 0.0
  %2857 = vmatprep.subr.mxu0 0.0
  %2858 = vmatpush1.msra.mxu0 0.0
  %2859 = vmatprep.subr.mxu0 0.0
  %2860 = vmatpush1.msra.mxu0 0.0
  %2861 = vmatprep.subr.mxu0 0.0
  %2862 = vmatpush1.msra.mxu0 0.0
  %2863 = vmatprep.subr.mxu0 0.0
  %2864 = vmatpush1.msra.mxu0 0.0
  %2865 = vmatprep.subr.mxu0 0.0
  %2866 = vmatpush1.msra.mxu0 0.0
  %2867 = vmatprep.subr.mxu0 0.0
  %2868 = vmatpush1.msra.mxu0 0.0
  %2869 = vmatprep.subr.mxu0 0.0
  %2870 = vmatpush1.msra.mxu0 0.0
  %2871 = vmatprep.subr.mxu0 0.0
  %2872 = vmatpush1.msra.mxu0 %v2834
  %2873 = vmatprep.subr.mxu0 0.0
  %2874 = vmatpush2.msra.mxu0 0.0
  %2875 = vmatprep.subr.mxu0 0.0
  %2876 = vmatpush2.msra.mxu0 0.0
  %2877 = vmatprep.subr.mxu0 0.0
  %2878 = vmatpush2.msra.mxu0 0.0
  %2879 = vmatprep.subr.mxu0 0.0
  %2880 = vmatpush2.msra.mxu0 0.0
  %2881 = vmatprep.subr.mxu0 0.0
  %2882 = vmatpush2.msra.mxu0 0.0
  %2883 = vmatprep.subr.mxu0 0.0
  %2884 = vmatpush2.msra.mxu0 0.0
  %2885 = vmatprep.subr.mxu0 0.0
  %2886 = vmatpush2.msra.mxu0 0.0
  %2887 = vmatprep.subr.mxu0 0.0
  %2888 = vmatpush2.msra.mxu0 0.0
  %2889 = vmatprep.subr.mxu0 0.0
  %2890 = vmatpush2.msra.mxu0 0.0
  %2891 = vmatprep.subr.mxu0 0.0
  %2892 = vmatpush2.msra.mxu0 0.0
  %2893 = vmatprep.subr.mxu0 0.0
  %2894 = vmatpush2.msra.mxu0 0.0
  %2895 = vmatprep.subr.mxu0 0.0
  %2896 = vmatpush2.msra.mxu0 0.0
  %2897 = vmatprep.subr.mxu0 0.0
  %2898 = vmatpush2.msra.mxu0 0.0
  %2899 = vmatprep.subr.mxu0 0.0
  %2900 = vmatpush2.msra.mxu0 0.0
  %2901 = vmatprep.subr.mxu0 0.0
  %2902 = vmatpush2.msra.mxu0 0.0
  %2903 = vmatprep.subr.mxu0 0.0
  %2904 = vmatpush2.msra.mxu0 0.0
  %2905 = vmatprep.mubr.f32.mxu0 0.0
  %2906 = vmatmul.mubr.f32.gmra.mxu0 %v2836
  %v2907 = vpop.f32.mrf.mxu0
  %v2908 = vadd.f32 0.0, %v2907
  %v2909 = vpop.f32.mrf.mxu0
  %2910 = vmatprep.mubr.f32.mxu0 0.0
  %2911 = vmatmul.mubr.f32.gmra.mxu0 %v2839
  %v2912 = vpop.f32.mrf.mxu0
  %v2913 = vadd.f32 0.0, %v2912
  %v2914 = vpop.f32.mrf.mxu0
  %2915 = vdwg.mxu0
  %2916 = vxpose.xlu0.b32.start [1/16] %v2908, 128
  %2917 = vxpose.xlu0.b32.cont [2/16] %v2913, 128
  %2918 = vxpose.xlu0.b32.cont [3/16] 0.0, 128
  %2919 = vxpose.xlu0.b32.cont [4/16] 0.0, 128
  %2920 = vxpose.xlu0.b32.cont [5/16] 0.0, 128
  %2921 = vxpose.xlu0.b32.cont [6/16] 0.0, 128
  %2922 = vxpose.xlu0.b32.cont [7/16] 0.0, 128
  %2923 = vxpose.xlu0.b32.cont [8/16] 0.0, 128
  %2924 = vxpose.xlu0.b32.cont [9/16] 0.0, 128
  %2925 = vxpose.xlu0.b32.cont [10/16] 0.0, 128
  %2926 = vxpose.xlu0.b32.cont [11/16] 0.0, 128
  %2927 = vxpose.xlu0.b32.cont [12/16] 0.0, 128
  %2928 = vxpose.xlu0.b32.cont [13/16] 0.0, 128
  %2929 = vxpose.xlu0.b32.cont [14/16] 0.0, 128
  %2930 = vxpose.xlu0.b32.cont [15/16] 0.0, 128
  %2931 = vxpose.xlu0.b32.end [16/16] 0.0, 128
  %v2932 = vpop.trf.xlu0
  %v2933 = vpop.trf.xlu0
  %v2934 = vpop.trf.xlu0
  %v2935 = vpop.trf.xlu0
  %v2936 = vpop.trf.xlu0
  %v2937 = vpop.trf.xlu0
  %v2938 = vpop.trf.xlu0
  %v2939 = vpop.trf.xlu0
  %v2940 = vpop.trf.xlu0
  %v2941 = vpop.trf.xlu0
  %v2942 = vpop.trf.xlu0
  %v2943 = vpop.trf.xlu0
  %v2944 = vpop.trf.xlu0
  %v2945 = vpop.trf.xlu0
  %v2946 = vpop.trf.xlu0
  %v2947 = vpop.trf.xlu0
  %2949 = vset.pattern.permute.xlu0 2
  %2950 = vperm.xlu0 %2949, %v2908
  %v2951 = vpop.permute.xlu0 %2950
  %2954 = vset.pattern.permute.xlu0 2
  %2955 = vperm.xlu0 %2954, %v2913
  %v2956 = vpop.permute.xlu0 %2955
  %v2958 = vlaneseq
  %v2959 = vshrl.u32 %v2958, 7
  %v2960 = vsub.s32 0, %v2959
  %v2961 = vrot.slane %v2932, %v2960
  %v2962 = vadd.f32 %v2951, %v2961
  %v2963 = vadd.f32 %v2956, %v2961
  %vm2964 = vcmp.gt.f32.partialorder %v2962, 0.0
  %vm2965 = vcmp.gt.f32.partialorder %v2963, 0.0
  %v2966 = vmul.f32 %v2962, 0.2
  %v2967 = vmul.f32 %v2963, 0.2
  %v2968 = vsel %vm2964, %v2962, %v2966
  %v2969 = vsel %vm2965, %v2963, %v2967
  %v2970 = vadd.f32 %v2968, %v49
  %v2971 = vadd.f32 %v2969, %v50
  %v2972 = vsel %vm53, %v2970, -inf
  %2973 = vmax.xlane.f32.xlu0 %v2972
  %v2974 = vpop.xlane.xlu0 %2973
  %v2975 = vsel %vm53, %v2971, -inf
  %2976 = vmax.xlane.f32.xlu0 %v2975
  %v2977 = vpop.xlane.xlu0 %2976
  %v2978 = vsub.f32 %v2970, %v2974
  %v2979 = vsub.f32 %v2971, %v2977
  %v2980 = vmul.f32 %v2978, 1.442695
  %v2981 = vpow.pop %v2980
  %v2982 = vmul.f32 %v2979, 1.442695
  %v2983 = vpow.pop %v2982
  %v2984 = vsel %vm53, %v2981, 0.0
  %2985 = vadd.xlane.f32.xlu0 %v2984
  %v2986 = vpop.xlane.xlu0 %2985
  %v2987 = vsel %vm53, %v2983, 0.0
  %2988 = vadd.xlane.f32.xlu0 %v2987
  %v2989 = vpop.xlane.xlu0 %2988
  %v2990 = vrcp.pop %v2986
  %v2991 = vmul.f32 %v2981, %v2990
  %v2992 = vrcp.pop %v2989
  %v2993 = vmul.f32 %v2983, %v2992
  %v2995 = vsel %vm53, %v2991, 0
  %v2998 = vsel %vm53, %v2993, 0
  %3000 = vmatprep.subr.mxu0 0.0
  %3001 = vmatpush1.msra.mxu0 0.0
  %3002 = vmatprep.subr.mxu0 0.0
  %3003 = vmatpush1.msra.mxu0 0.0
  %3004 = vmatprep.subr.mxu0 0.0
  %3005 = vmatpush1.msra.mxu0 0.0
  %3006 = vmatprep.subr.mxu0 0.0
  %3007 = vmatpush1.msra.mxu0 0.0
  %3008 = vmatprep.subr.mxu0 0.0
  %3009 = vmatpush1.msra.mxu0 0.0
  %3010 = vmatprep.subr.mxu0 0.0
  %3011 = vmatpush1.msra.mxu0 0.0
  %3012 = vmatprep.subr.mxu0 0.0
  %3013 = vmatpush1.msra.mxu0 0.0
  %3014 = vmatprep.subr.mxu0 0.0
  %3015 = vmatpush1.msra.mxu0 0.0
  %3016 = vmatprep.subr.mxu0 0.0
  %3017 = vmatpush1.msra.mxu0 0.0
  %3018 = vmatprep.subr.mxu0 0.0
  %3019 = vmatpush1.msra.mxu0 0.0
  %3020 = vmatprep.subr.mxu0 0.0
  %3021 = vmatpush1.msra.mxu0 0.0
  %3022 = vmatprep.subr.mxu0 0.0
  %3023 = vmatpush1.msra.mxu0 0.0
  %3024 = vmatprep.subr.mxu0 0.0
  %3025 = vmatpush1.msra.mxu0 0.0
  %3026 = vmatprep.subr.mxu0 0.0
  %3027 = vmatpush1.msra.mxu0 0.0
  %3028 = vmatprep.subr.mxu0 0.0
  %3029 = vmatpush1.msra.mxu0 %v2830
  %3030 = vmatprep.subr.mxu0 0.0
  %3031 = vmatpush1.msra.mxu0 %v2825
  %3032 = vmatprep.subr.mxu0 0.0
  %3033 = vmatpush2.msra.mxu0 0.0
  %3034 = vmatprep.subr.mxu0 0.0
  %3035 = vmatpush2.msra.mxu0 0.0
  %3036 = vmatprep.subr.mxu0 0.0
  %3037 = vmatpush2.msra.mxu0 0.0
  %3038 = vmatprep.subr.mxu0 0.0
  %3039 = vmatpush2.msra.mxu0 0.0
  %3040 = vmatprep.subr.mxu0 0.0
  %3041 = vmatpush2.msra.mxu0 0.0
  %3042 = vmatprep.subr.mxu0 0.0
  %3043 = vmatpush2.msra.mxu0 0.0
  %3044 = vmatprep.subr.mxu0 0.0
  %3045 = vmatpush2.msra.mxu0 0.0
  %3046 = vmatprep.subr.mxu0 0.0
  %3047 = vmatpush2.msra.mxu0 0.0
  %3048 = vmatprep.subr.mxu0 0.0
  %3049 = vmatpush2.msra.mxu0 0.0
  %3050 = vmatprep.subr.mxu0 0.0
  %3051 = vmatpush2.msra.mxu0 0.0
  %3052 = vmatprep.subr.mxu0 0.0
  %3053 = vmatpush2.msra.mxu0 0.0
  %3054 = vmatprep.subr.mxu0 0.0
  %3055 = vmatpush2.msra.mxu0 0.0
  %3056 = vmatprep.subr.mxu0 0.0
  %3057 = vmatpush2.msra.mxu0 0.0
  %3058 = vmatprep.subr.mxu0 0.0
  %3059 = vmatpush2.msra.mxu0 0.0
  %3060 = vmatprep.subr.mxu0 0.0
  %3061 = vmatpush2.msra.mxu0 0.0
  %3062 = vmatprep.subr.mxu0 0.0
  %3063 = vmatpush2.msra.mxu0 0.0
  %3064 = vmatprep.mubr.f32.mxu0 0.0
  %3065 = vmatmul.mubr.f32.gmra.mxu0 %v2995
  %v3066 = vpop.f32.mrf.mxu0
  %v3067 = vadd.f32 0.0, %v3066
  %v3068 = vpop.f32.mrf.mxu0
  %3069 = vmatprep.mubr.f32.mxu0 0.0
  %3070 = vmatmul.mubr.f32.gmra.mxu0 %v2998
  %v3071 = vpop.f32.mrf.mxu0
  %v3072 = vadd.f32 0.0, %v3071
  %v3073 = vpop.f32.mrf.mxu0
  %3074 = vdwg.mxu0
  %3075 = vset.pattern.permute.xlu0 3
  %3076 = vperm.xlu0 %3075, %v2908
  %v3077 = vpop.permute.xlu0 %3076
  %3079 = vset.pattern.permute.xlu0 3
  %3080 = vperm.xlu0 %3079, %v2913
  %v3081 = vpop.permute.xlu0 %3080
  %v3083 = vlaneseq
  %v3084 = vshrl.u32 %v3083, 7
  %v3085 = vsub.s32 1, %v3084
  %v3086 = vrot.slane %v2932, %v3085
  %v3087 = vadd.f32 %v3077, %v3086
  %v3088 = vadd.f32 %v3081, %v3086
  %vm3089 = vcmp.gt.f32.partialorder %v3087, 0.0
  %vm3090 = vcmp.gt.f32.partialorder %v3088, 0.0
  %v3091 = vmul.f32 %v3087, 0.2
  %v3092 = vmul.f32 %v3088, 0.2
  %v3093 = vsel %vm3089, %v3087, %v3091
  %v3094 = vsel %vm3090, %v3088, %v3092
  %v3095 = vadd.f32 %v3093, %v49
  %v3096 = vadd.f32 %v3094, %v50
  %v3097 = vsel %vm53, %v3095, -inf
  %3098 = vmax.xlane.f32.xlu0 %v3097
  %v3099 = vpop.xlane.xlu0 %3098
  %v3100 = vsel %vm53, %v3096, -inf
  %3101 = vmax.xlane.f32.xlu0 %v3100
  %v3102 = vpop.xlane.xlu0 %3101
  %v3103 = vsub.f32 %v3095, %v3099
  %v3104 = vsub.f32 %v3096, %v3102
  %v3105 = vmul.f32 %v3103, 1.442695
  %v3106 = vpow.pop %v3105
  %v3107 = vmul.f32 %v3104, 1.442695
  %v3108 = vpow.pop %v3107
  %v3109 = vsel %vm53, %v3106, 0.0
  %3110 = vadd.xlane.f32.xlu0 %v3109
  %v3111 = vpop.xlane.xlu0 %3110
  %v3112 = vsel %vm53, %v3108, 0.0
  %3113 = vadd.xlane.f32.xlu0 %v3112
  %v3114 = vpop.xlane.xlu0 %3113
  %v3115 = vrcp.pop %v3111
  %v3116 = vmul.f32 %v3106, %v3115
  %v3117 = vrcp.pop %v3114
  %v3118 = vmul.f32 %v3108, %v3117
  %3119 = vrot.lane.b32.xlu0 %v2825, 124
  %v3120 = vpop.permute.xlu0 %3119
  %3121 = vrot.lane.b32.xlu0 %v2830, 124
  %v3122 = vpop.permute.xlu0 %3121
  %v3126 = vsel %vm53, %v3116, 0
  %v3129 = vsel %vm53, %v3118, 0
  %3131 = vmatprep.subr.mxu0 0.0
  %3132 = vmatpush1.msra.mxu0 0.0
  %3133 = vmatprep.subr.mxu0 0.0
  %3134 = vmatpush1.msra.mxu0 0.0
  %3135 = vmatprep.subr.mxu0 0.0
  %3136 = vmatpush1.msra.mxu0 0.0
  %3137 = vmatprep.subr.mxu0 0.0
  %3138 = vmatpush1.msra.mxu0 0.0
  %3139 = vmatprep.subr.mxu0 0.0
  %3140 = vmatpush1.msra.mxu0 0.0
  %3141 = vmatprep.subr.mxu0 0.0
  %3142 = vmatpush1.msra.mxu0 0.0
  %3143 = vmatprep.subr.mxu0 0.0
  %3144 = vmatpush1.msra.mxu0 0.0
  %3145 = vmatprep.subr.mxu0 0.0
  %3146 = vmatpush1.msra.mxu0 0.0
  %3147 = vmatprep.subr.mxu0 0.0
  %3148 = vmatpush1.msra.mxu0 0.0
  %3149 = vmatprep.subr.mxu0 0.0
  %3150 = vmatpush1.msra.mxu0 0.0
  %3151 = vmatprep.subr.mxu0 0.0
  %3152 = vmatpush1.msra.mxu0 0.0
  %3153 = vmatprep.subr.mxu0 0.0
  %3154 = vmatpush1.msra.mxu0 0.0
  %3155 = vmatprep.subr.mxu0 0.0
  %3156 = vmatpush1.msra.mxu0 0.0
  %3157 = vmatprep.subr.mxu0 0.0
  %3158 = vmatpush1.msra.mxu0 0.0
  %3159 = vmatprep.subr.mxu0 0.0
  %3160 = vmatpush1.msra.mxu0 %v3122
  %3161 = vmatprep.subr.mxu0 0.0
  %3162 = vmatpush1.msra.mxu0 %v3120
  %3163 = vmatprep.subr.mxu0 0.0
  %3164 = vmatpush2.msra.mxu0 0.0
  %3165 = vmatprep.subr.mxu0 0.0
  %3166 = vmatpush2.msra.mxu0 0.0
  %3167 = vmatprep.subr.mxu0 0.0
  %3168 = vmatpush2.msra.mxu0 0.0
  %3169 = vmatprep.subr.mxu0 0.0
  %3170 = vmatpush2.msra.mxu0 0.0
  %3171 = vmatprep.subr.mxu0 0.0
  %3172 = vmatpush2.msra.mxu0 0.0
  %3173 = vmatprep.subr.mxu0 0.0
  %3174 = vmatpush2.msra.mxu0 0.0
  %3175 = vmatprep.subr.mxu0 0.0
  %3176 = vmatpush2.msra.mxu0 0.0
  %3177 = vmatprep.subr.mxu0 0.0
  %3178 = vmatpush2.msra.mxu0 0.0
  %3179 = vmatprep.subr.mxu0 0.0
  %3180 = vmatpush2.msra.mxu0 0.0
  %3181 = vmatprep.subr.mxu0 0.0
  %3182 = vmatpush2.msra.mxu0 0.0
  %3183 = vmatprep.subr.mxu0 0.0
  %3184 = vmatpush2.msra.mxu0 0.0
  %3185 = vmatprep.subr.mxu0 0.0
  %3186 = vmatpush2.msra.mxu0 0.0
  %3187 = vmatprep.subr.mxu0 0.0
  %3188 = vmatpush2.msra.mxu0 0.0
  %3189 = vmatprep.subr.mxu0 0.0
  %3190 = vmatpush2.msra.mxu0 0.0
  %3191 = vmatprep.subr.mxu0 0.0
  %3192 = vmatpush2.msra.mxu0 0.0
  %3193 = vmatprep.subr.mxu0 0.0
  %3194 = vmatpush2.msra.mxu0 0.0
  %3195 = vmatprep.mubr.f32.mxu0 0.0
  %3196 = vmatmul.mubr.f32.gmra.mxu0 %v3126
  %v3197 = vpop.f32.mrf.mxu0
  %v3198 = vadd.f32 0.0, %v3197
  %v3199 = vpop.f32.mrf.mxu0
  %3200 = vmatprep.mubr.f32.mxu0 0.0
  %3201 = vmatmul.mubr.f32.gmra.mxu0 %v3129
  %v3202 = vpop.f32.mrf.mxu0
  %v3203 = vadd.f32 0.0, %v3202
  %v3204 = vpop.f32.mrf.mxu0
  %3205 = vdwg.mxu0
  %3208 = vrot.lane.b32.xlu0 %v3198, 4
  %v3209 = vpop.permute.xlu0 %3208
  %3210 = vrot.lane.b32.xlu0 %v3203, 4
  %v3211 = vpop.permute.xlu0 %3210
  %v3214 = vsel %vm184, %v3067, %v3209
  %v3215 = vsel %vm184, %v3072, %v3211
  %v3216 = vld [vmem:[%s5 + $0x4] sm:$0x1]
  %v3217 = vlaneseq
  %v3218 = vshrl.u32 %v3217, 7
  %v3219 = vsub.s32 0, %v3218
  %v3220 = vrot.slane %v3216, %v3219
  %v3221 = vadd.f32 %v3214, %v3220
  %v3222 = vadd.f32 %v3215, %v3220
  %vm3223 = vcmp.gt.f32.partialorder %v3221, 0.0
  %vm3224 = vcmp.gt.f32.partialorder %v3222, 0.0
  %v3225 = vmin.f32 %v3221, 0.0
  %v3226 = vmin.f32 %v3222, 0.0
  %v3227 = vmul.f32 %v3225, 1.442695
  %v3228 = vpow.pop %v3227
  %v3229 = vmul.f32 %v3226, 1.442695
  %v3230 = vpow.pop %v3229
  %v3231 = vsub.f32 %v3228, 1.0
  %v3232 = vsub.f32 %v3230, 1.0
  %v3233 = vsel %vm3223, %v3221, %v3231
  %v3234 = vsel %vm3224, %v3222, %v3232
  %s3235 = scalar_lea.vmem %s6, 32
  %v3236 = vld [vmem:[%s3235] sm:$0xff]
  %v3237 = vld [vmem:[%s7 + $0x4] sm:$0x1]
  %v3238 = vlaneseq
  %v3239 = vshrl.u32 %v3238, 7
  %v3240 = vsub.s32 0, %v3239
  %v3241 = vrot.slane %v3237, %v3240
  %v3243 = vsel %vm271, %v3233, 0
  %v3246 = vsel %vm271, %v3234, 0
  %3248 = vmatprep.subr.mxu0 0.0
  %3249 = vmatpush1.msra.mxu0 0.0
  %3250 = vmatprep.subr.mxu0 0.0
  %3251 = vmatpush1.msra.mxu0 0.0
  %3252 = vmatprep.subr.mxu0 0.0
  %3253 = vmatpush1.msra.mxu0 0.0
  %3254 = vmatprep.subr.mxu0 0.0
  %3255 = vmatpush1.msra.mxu0 0.0
  %3256 = vmatprep.subr.mxu0 0.0
  %3257 = vmatpush1.msra.mxu0 0.0
  %3258 = vmatprep.subr.mxu0 0.0
  %3259 = vmatpush1.msra.mxu0 0.0
  %3260 = vmatprep.subr.mxu0 0.0
  %3261 = vmatpush1.msra.mxu0 0.0
  %3262 = vmatprep.subr.mxu0 0.0
  %3263 = vmatpush1.msra.mxu0 0.0
  %3264 = vmatprep.subr.mxu0 0.0
  %3265 = vmatpush1.msra.mxu0 0.0
  %3266 = vmatprep.subr.mxu0 0.0
  %3267 = vmatpush1.msra.mxu0 0.0
  %3268 = vmatprep.subr.mxu0 0.0
  %3269 = vmatpush1.msra.mxu0 0.0
  %3270 = vmatprep.subr.mxu0 0.0
  %3271 = vmatpush1.msra.mxu0 0.0
  %3272 = vmatprep.subr.mxu0 0.0
  %3273 = vmatpush1.msra.mxu0 0.0
  %3274 = vmatprep.subr.mxu0 0.0
  %3275 = vmatpush1.msra.mxu0 0.0
  %3276 = vmatprep.subr.mxu0 0.0
  %3277 = vmatpush1.msra.mxu0 0.0
  %3278 = vmatprep.subr.mxu0 0.0
  %3279 = vmatpush1.msra.mxu0 %v3236
  %3280 = vmatprep.subr.mxu0 0.0
  %3281 = vmatpush2.msra.mxu0 0.0
  %3282 = vmatprep.subr.mxu0 0.0
  %3283 = vmatpush2.msra.mxu0 0.0
  %3284 = vmatprep.subr.mxu0 0.0
  %3285 = vmatpush2.msra.mxu0 0.0
  %3286 = vmatprep.subr.mxu0 0.0
  %3287 = vmatpush2.msra.mxu0 0.0
  %3288 = vmatprep.subr.mxu0 0.0
  %3289 = vmatpush2.msra.mxu0 0.0
  %3290 = vmatprep.subr.mxu0 0.0
  %3291 = vmatpush2.msra.mxu0 0.0
  %3292 = vmatprep.subr.mxu0 0.0
  %3293 = vmatpush2.msra.mxu0 0.0
  %3294 = vmatprep.subr.mxu0 0.0
  %3295 = vmatpush2.msra.mxu0 0.0
  %3296 = vmatprep.subr.mxu0 0.0
  %3297 = vmatpush2.msra.mxu0 0.0
  %3298 = vmatprep.subr.mxu0 0.0
  %3299 = vmatpush2.msra.mxu0 0.0
  %3300 = vmatprep.subr.mxu0 0.0
  %3301 = vmatpush2.msra.mxu0 0.0
  %3302 = vmatprep.subr.mxu0 0.0
  %3303 = vmatpush2.msra.mxu0 0.0
  %3304 = vmatprep.subr.mxu0 0.0
  %3305 = vmatpush2.msra.mxu0 0.0
  %3306 = vmatprep.subr.mxu0 0.0
  %3307 = vmatpush2.msra.mxu0 0.0
  %3308 = vmatprep.subr.mxu0 0.0
  %3309 = vmatpush2.msra.mxu0 0.0
  %3310 = vmatprep.subr.mxu0 0.0
  %3311 = vmatpush2.msra.mxu0 0.0
  %3312 = vmatprep.mubr.f32.mxu0 0.0
  %3313 = vmatmul.mubr.f32.gmra.mxu0 %v3243
  %v3314 = vpop.f32.mrf.mxu0
  %v3315 = vadd.f32 %v3241, %v3314
  %v3316 = vpop.f32.mrf.mxu0
  %3317 = vmatprep.mubr.f32.mxu0 0.0
  %3318 = vmatmul.mubr.f32.gmra.mxu0 %v3246
  %v3319 = vpop.f32.mrf.mxu0
  %v3320 = vadd.f32 %v3241, %v3319
  %v3321 = vpop.f32.mrf.mxu0
  %3322 = vdwg.mxu0
  %s3323 = scalar_lea.vmem %s3, 20
  %v3324 = vld [vmem:[%s3323] sm:$0xf]
  %3325 = vrot.lane.b32.xlu0 %v2715, 124
  %v3326 = vpop.permute.xlu0 %3325
  %3327 = vrot.lane.b32.xlu0 %v2720, 124
  %v3328 = vpop.permute.xlu0 %3327
  %v3329 = vsel %vm184, %v3326, 0
  %v3331 = vsel %vm184, %v3328, 0
  %v3334 = vsel %vm191, %v3324, 0
  %3336 = vmatprep.subr.mxu0 0.0
  %3337 = vmatpush1.msra.mxu0 0.0
  %3338 = vmatprep.subr.mxu0 0.0
  %3339 = vmatpush1.msra.mxu0 0.0
  %3340 = vmatprep.subr.mxu0 0.0
  %3341 = vmatpush1.msra.mxu0 0.0
  %3342 = vmatprep.subr.mxu0 0.0
  %3343 = vmatpush1.msra.mxu0 0.0
  %3344 = vmatprep.subr.mxu0 0.0
  %3345 = vmatpush1.msra.mxu0 0.0
  %3346 = vmatprep.subr.mxu0 0.0
  %3347 = vmatpush1.msra.mxu0 0.0
  %3348 = vmatprep.subr.mxu0 0.0
  %3349 = vmatpush1.msra.mxu0 0.0
  %3350 = vmatprep.subr.mxu0 0.0
  %3351 = vmatpush1.msra.mxu0 0.0
  %3352 = vmatprep.subr.mxu0 0.0
  %3353 = vmatpush1.msra.mxu0 0.0
  %3354 = vmatprep.subr.mxu0 0.0
  %3355 = vmatpush1.msra.mxu0 0.0
  %3356 = vmatprep.subr.mxu0 0.0
  %3357 = vmatpush1.msra.mxu0 0.0
  %3358 = vmatprep.subr.mxu0 0.0
  %3359 = vmatpush1.msra.mxu0 0.0
  %3360 = vmatprep.subr.mxu0 0.0
  %3361 = vmatpush1.msra.mxu0 0.0
  %3362 = vmatprep.subr.mxu0 0.0
  %3363 = vmatpush1.msra.mxu0 0.0
  %3364 = vmatprep.subr.mxu0 0.0
  %3365 = vmatpush1.msra.mxu0 0.0
  %3366 = vmatprep.subr.mxu0 0.0
  %3367 = vmatpush1.msra.mxu0 %v3334
  %3368 = vmatprep.subr.mxu0 0.0
  %3369 = vmatpush2.msra.mxu0 0.0
  %3370 = vmatprep.subr.mxu0 0.0
  %3371 = vmatpush2.msra.mxu0 0.0
  %3372 = vmatprep.subr.mxu0 0.0
  %3373 = vmatpush2.msra.mxu0 0.0
  %3374 = vmatprep.subr.mxu0 0.0
  %3375 = vmatpush2.msra.mxu0 0.0
  %3376 = vmatprep.subr.mxu0 0.0
  %3377 = vmatpush2.msra.mxu0 0.0
  %3378 = vmatprep.subr.mxu0 0.0
  %3379 = vmatpush2.msra.mxu0 0.0
  %3380 = vmatprep.subr.mxu0 0.0
  %3381 = vmatpush2.msra.mxu0 0.0
  %3382 = vmatprep.subr.mxu0 0.0
  %3383 = vmatpush2.msra.mxu0 0.0
  %3384 = vmatprep.subr.mxu0 0.0
  %3385 = vmatpush2.msra.mxu0 0.0
  %3386 = vmatprep.subr.mxu0 0.0
  %3387 = vmatpush2.msra.mxu0 0.0
  %3388 = vmatprep.subr.mxu0 0.0
  %3389 = vmatpush2.msra.mxu0 0.0
  %3390 = vmatprep.subr.mxu0 0.0
  %3391 = vmatpush2.msra.mxu0 0.0
  %3392 = vmatprep.subr.mxu0 0.0
  %3393 = vmatpush2.msra.mxu0 0.0
  %3394 = vmatprep.subr.mxu0 0.0
  %3395 = vmatpush2.msra.mxu0 0.0
  %3396 = vmatprep.subr.mxu0 0.0
  %3397 = vmatpush2.msra.mxu0 0.0
  %3398 = vmatprep.subr.mxu0 0.0
  %3399 = vmatpush2.msra.mxu0 0.0
  %3400 = vmatprep.mubr.f32.mxu0 0.0
  %3401 = vmatmul.mubr.f32.gmra.mxu0 %v3329
  %v3402 = vpop.f32.mrf.mxu0
  %v3403 = vadd.f32 0.0, %v3402
  %v3404 = vpop.f32.mrf.mxu0
  %3405 = vmatprep.mubr.f32.mxu0 0.0
  %3406 = vmatmul.mubr.f32.gmra.mxu0 %v3331
  %v3407 = vpop.f32.mrf.mxu0
  %v3408 = vadd.f32 0.0, %v3407
  %v3409 = vpop.f32.mrf.mxu0
  %3410 = vdwg.mxu0
  %s3411 = scalar_lea.vmem %s4, 40
  %v3412 = vld [vmem:[%s3411] sm:$0xff]
  %v3414 = vsel %vm271, %v3403, 0
  %v3417 = vsel %vm271, %v3408, 0
  %3419 = vmatprep.subr.mxu0 0.0
  %3420 = vmatpush1.msra.mxu0 0.0
  %3421 = vmatprep.subr.mxu0 0.0
  %3422 = vmatpush1.msra.mxu0 0.0
  %3423 = vmatprep.subr.mxu0 0.0
  %3424 = vmatpush1.msra.mxu0 0.0
  %3425 = vmatprep.subr.mxu0 0.0
  %3426 = vmatpush1.msra.mxu0 0.0
  %3427 = vmatprep.subr.mxu0 0.0
  %3428 = vmatpush1.msra.mxu0 0.0
  %3429 = vmatprep.subr.mxu0 0.0
  %3430 = vmatpush1.msra.mxu0 0.0
  %3431 = vmatprep.subr.mxu0 0.0
  %3432 = vmatpush1.msra.mxu0 0.0
  %3433 = vmatprep.subr.mxu0 0.0
  %3434 = vmatpush1.msra.mxu0 0.0
  %3435 = vmatprep.subr.mxu0 0.0
  %3436 = vmatpush1.msra.mxu0 0.0
  %3437 = vmatprep.subr.mxu0 0.0
  %3438 = vmatpush1.msra.mxu0 0.0
  %3439 = vmatprep.subr.mxu0 0.0
  %3440 = vmatpush1.msra.mxu0 0.0
  %3441 = vmatprep.subr.mxu0 0.0
  %3442 = vmatpush1.msra.mxu0 0.0
  %3443 = vmatprep.subr.mxu0 0.0
  %3444 = vmatpush1.msra.mxu0 0.0
  %3445 = vmatprep.subr.mxu0 0.0
  %3446 = vmatpush1.msra.mxu0 0.0
  %3447 = vmatprep.subr.mxu0 0.0
  %3448 = vmatpush1.msra.mxu0 0.0
  %3449 = vmatprep.subr.mxu0 0.0
  %3450 = vmatpush1.msra.mxu0 %v3412
  %3451 = vmatprep.subr.mxu0 0.0
  %3452 = vmatpush2.msra.mxu0 0.0
  %3453 = vmatprep.subr.mxu0 0.0
  %3454 = vmatpush2.msra.mxu0 0.0
  %3455 = vmatprep.subr.mxu0 0.0
  %3456 = vmatpush2.msra.mxu0 0.0
  %3457 = vmatprep.subr.mxu0 0.0
  %3458 = vmatpush2.msra.mxu0 0.0
  %3459 = vmatprep.subr.mxu0 0.0
  %3460 = vmatpush2.msra.mxu0 0.0
  %3461 = vmatprep.subr.mxu0 0.0
  %3462 = vmatpush2.msra.mxu0 0.0
  %3463 = vmatprep.subr.mxu0 0.0
  %3464 = vmatpush2.msra.mxu0 0.0
  %3465 = vmatprep.subr.mxu0 0.0
  %3466 = vmatpush2.msra.mxu0 0.0
  %3467 = vmatprep.subr.mxu0 0.0
  %3468 = vmatpush2.msra.mxu0 0.0
  %3469 = vmatprep.subr.mxu0 0.0
  %3470 = vmatpush2.msra.mxu0 0.0
  %3471 = vmatprep.subr.mxu0 0.0
  %3472 = vmatpush2.msra.mxu0 0.0
  %3473 = vmatprep.subr.mxu0 0.0
  %3474 = vmatpush2.msra.mxu0 0.0
  %3475 = vmatprep.subr.mxu0 0.0
  %3476 = vmatpush2.msra.mxu0 0.0
  %3477 = vmatprep.subr.mxu0 0.0
  %3478 = vmatpush2.msra.mxu0 0.0
  %3479 = vmatprep.subr.mxu0 0.0
  %3480 = vmatpush2.msra.mxu0 0.0
  %3481 = vmatprep.subr.mxu0 0.0
  %3482 = vmatpush2.msra.mxu0 0.0
  %3483 = vmatprep.mubr.f32.mxu0 0.0
  %3484 = vmatmul.mubr.f32.gmra.mxu0 %v3414
  %v3485 = vpop.f32.mrf.mxu0
  %v3486 = vadd.f32 0.0, %v3485
  %v3487 = vpop.f32.mrf.mxu0
  %3488 = vmatprep.mubr.f32.mxu0 0.0
  %3489 = vmatmul.mubr.f32.gmra.mxu0 %v3417
  %v3490 = vpop.f32.mrf.mxu0
  %v3491 = vadd.f32 0.0, %v3490
  %v3492 = vpop.f32.mrf.mxu0
  %3493 = vdwg.mxu0
  %3494 = vxpose.xlu0.b32.start [1/16] %v3486, 128
  %3495 = vxpose.xlu0.b32.cont [2/16] %v3491, 128
  %3496 = vxpose.xlu0.b32.cont [3/16] 0.0, 128
  %3497 = vxpose.xlu0.b32.cont [4/16] 0.0, 128
  %3498 = vxpose.xlu0.b32.cont [5/16] 0.0, 128
  %3499 = vxpose.xlu0.b32.cont [6/16] 0.0, 128
  %3500 = vxpose.xlu0.b32.cont [7/16] 0.0, 128
  %3501 = vxpose.xlu0.b32.cont [8/16] 0.0, 128
  %3502 = vxpose.xlu0.b32.cont [9/16] 0.0, 128
  %3503 = vxpose.xlu0.b32.cont [10/16] 0.0, 128
  %3504 = vxpose.xlu0.b32.cont [11/16] 0.0, 128
  %3505 = vxpose.xlu0.b32.cont [12/16] 0.0, 128
  %3506 = vxpose.xlu0.b32.cont [13/16] 0.0, 128
  %3507 = vxpose.xlu0.b32.cont [14/16] 0.0, 128
  %3508 = vxpose.xlu0.b32.cont [15/16] 0.0, 128
  %3509 = vxpose.xlu0.b32.end [16/16] 0.0, 128
  %v3510 = vpop.trf.xlu0
  %v3511 = vpop.trf.xlu0
  %v3512 = vpop.trf.xlu0
  %v3513 = vpop.trf.xlu0
  %v3514 = vpop.trf.xlu0
  %v3515 = vpop.trf.xlu0
  %v3516 = vpop.trf.xlu0
  %v3517 = vpop.trf.xlu0
  %v3518 = vpop.trf.xlu0
  %v3519 = vpop.trf.xlu0
  %v3520 = vpop.trf.xlu0
  %v3521 = vpop.trf.xlu0
  %v3522 = vpop.trf.xlu0
  %v3523 = vpop.trf.xlu0
  %v3524 = vpop.trf.xlu0
  %v3525 = vpop.trf.xlu0
  %3527 = vset.pattern.permute.xlu0 2
  %3528 = vperm.xlu0 %3527, %v3486
  %v3529 = vpop.permute.xlu0 %3528
  %3532 = vset.pattern.permute.xlu0 2
  %3533 = vperm.xlu0 %3532, %v3491
  %v3534 = vpop.permute.xlu0 %3533
  %v3536 = vlaneseq
  %v3537 = vshrl.u32 %v3536, 7
  %v3538 = vsub.s32 0, %v3537
  %v3539 = vrot.slane %v3510, %v3538
  %v3540 = vadd.f32 %v3529, %v3539
  %v3541 = vadd.f32 %v3534, %v3539
  %vm3542 = vcmp.gt.f32.partialorder %v3540, 0.0
  %vm3543 = vcmp.gt.f32.partialorder %v3541, 0.0
  %v3544 = vmul.f32 %v3540, 0.2
  %v3545 = vmul.f32 %v3541, 0.2
  %v3546 = vsel %vm3542, %v3540, %v3544
  %v3547 = vsel %vm3543, %v3541, %v3545
  %v3548 = vadd.f32 %v3546, %v49
  %v3549 = vadd.f32 %v3547, %v50
  %v3550 = vsel %vm53, %v3548, -inf
  %3551 = vmax.xlane.f32.xlu0 %v3550
  %v3552 = vpop.xlane.xlu0 %3551
  %v3553 = vsel %vm53, %v3549, -inf
  %3554 = vmax.xlane.f32.xlu0 %v3553
  %v3555 = vpop.xlane.xlu0 %3554
  %v3556 = vsub.f32 %v3548, %v3552
  %v3557 = vsub.f32 %v3549, %v3555
  %v3558 = vmul.f32 %v3556, 1.442695
  %v3559 = vpow.pop %v3558
  %v3560 = vmul.f32 %v3557, 1.442695
  %v3561 = vpow.pop %v3560
  %v3562 = vsel %vm53, %v3559, 0.0
  %3563 = vadd.xlane.f32.xlu0 %v3562
  %v3564 = vpop.xlane.xlu0 %3563
  %v3565 = vsel %vm53, %v3561, 0.0
  %3566 = vadd.xlane.f32.xlu0 %v3565
  %v3567 = vpop.xlane.xlu0 %3566
  %v3568 = vrcp.pop %v3564
  %v3569 = vmul.f32 %v3559, %v3568
  %v3570 = vrcp.pop %v3567
  %v3571 = vmul.f32 %v3561, %v3570
  %v3573 = vsel %vm53, %v3569, 0
  %v3576 = vsel %vm53, %v3571, 0
  %3578 = vmatprep.subr.mxu0 0.0
  %3579 = vmatpush1.msra.mxu0 0.0
  %3580 = vmatprep.subr.mxu0 0.0
  %3581 = vmatpush1.msra.mxu0 0.0
  %3582 = vmatprep.subr.mxu0 0.0
  %3583 = vmatpush1.msra.mxu0 0.0
  %3584 = vmatprep.subr.mxu0 0.0
  %3585 = vmatpush1.msra.mxu0 0.0
  %3586 = vmatprep.subr.mxu0 0.0
  %3587 = vmatpush1.msra.mxu0 0.0
  %3588 = vmatprep.subr.mxu0 0.0
  %3589 = vmatpush1.msra.mxu0 0.0
  %3590 = vmatprep.subr.mxu0 0.0
  %3591 = vmatpush1.msra.mxu0 0.0
  %3592 = vmatprep.subr.mxu0 0.0
  %3593 = vmatpush1.msra.mxu0 0.0
  %3594 = vmatprep.subr.mxu0 0.0
  %3595 = vmatpush1.msra.mxu0 0.0
  %3596 = vmatprep.subr.mxu0 0.0
  %3597 = vmatpush1.msra.mxu0 0.0
  %3598 = vmatprep.subr.mxu0 0.0
  %3599 = vmatpush1.msra.mxu0 0.0
  %3600 = vmatprep.subr.mxu0 0.0
  %3601 = vmatpush1.msra.mxu0 0.0
  %3602 = vmatprep.subr.mxu0 0.0
  %3603 = vmatpush1.msra.mxu0 0.0
  %3604 = vmatprep.subr.mxu0 0.0
  %3605 = vmatpush1.msra.mxu0 0.0
  %3606 = vmatprep.subr.mxu0 0.0
  %3607 = vmatpush1.msra.mxu0 %v3408
  %3608 = vmatprep.subr.mxu0 0.0
  %3609 = vmatpush1.msra.mxu0 %v3403
  %3610 = vmatprep.subr.mxu0 0.0
  %3611 = vmatpush2.msra.mxu0 0.0
  %3612 = vmatprep.subr.mxu0 0.0
  %3613 = vmatpush2.msra.mxu0 0.0
  %3614 = vmatprep.subr.mxu0 0.0
  %3615 = vmatpush2.msra.mxu0 0.0
  %3616 = vmatprep.subr.mxu0 0.0
  %3617 = vmatpush2.msra.mxu0 0.0
  %3618 = vmatprep.subr.mxu0 0.0
  %3619 = vmatpush2.msra.mxu0 0.0
  %3620 = vmatprep.subr.mxu0 0.0
  %3621 = vmatpush2.msra.mxu0 0.0
  %3622 = vmatprep.subr.mxu0 0.0
  %3623 = vmatpush2.msra.mxu0 0.0
  %3624 = vmatprep.subr.mxu0 0.0
  %3625 = vmatpush2.msra.mxu0 0.0
  %3626 = vmatprep.subr.mxu0 0.0
  %3627 = vmatpush2.msra.mxu0 0.0
  %3628 = vmatprep.subr.mxu0 0.0
  %3629 = vmatpush2.msra.mxu0 0.0
  %3630 = vmatprep.subr.mxu0 0.0
  %3631 = vmatpush2.msra.mxu0 0.0
  %3632 = vmatprep.subr.mxu0 0.0
  %3633 = vmatpush2.msra.mxu0 0.0
  %3634 = vmatprep.subr.mxu0 0.0
  %3635 = vmatpush2.msra.mxu0 0.0
  %3636 = vmatprep.subr.mxu0 0.0
  %3637 = vmatpush2.msra.mxu0 0.0
  %3638 = vmatprep.subr.mxu0 0.0
  %3639 = vmatpush2.msra.mxu0 0.0
  %3640 = vmatprep.subr.mxu0 0.0
  %3641 = vmatpush2.msra.mxu0 0.0
  %3642 = vmatprep.mubr.f32.mxu0 0.0
  %3643 = vmatmul.mubr.f32.gmra.mxu0 %v3573
  %v3644 = vpop.f32.mrf.mxu0
  %v3645 = vadd.f32 0.0, %v3644
  %v3646 = vpop.f32.mrf.mxu0
  %3647 = vmatprep.mubr.f32.mxu0 0.0
  %3648 = vmatmul.mubr.f32.gmra.mxu0 %v3576
  %v3649 = vpop.f32.mrf.mxu0
  %v3650 = vadd.f32 0.0, %v3649
  %v3651 = vpop.f32.mrf.mxu0
  %3652 = vdwg.mxu0
  %3653 = vset.pattern.permute.xlu0 3
  %3654 = vperm.xlu0 %3653, %v3486
  %v3655 = vpop.permute.xlu0 %3654
  %3657 = vset.pattern.permute.xlu0 3
  %3658 = vperm.xlu0 %3657, %v3491
  %v3659 = vpop.permute.xlu0 %3658
  %v3661 = vlaneseq
  %v3662 = vshrl.u32 %v3661, 7
  %v3663 = vsub.s32 1, %v3662
  %v3664 = vrot.slane %v3510, %v3663
  %v3665 = vadd.f32 %v3655, %v3664
  %v3666 = vadd.f32 %v3659, %v3664
  %vm3667 = vcmp.gt.f32.partialorder %v3665, 0.0
  %vm3668 = vcmp.gt.f32.partialorder %v3666, 0.0
  %v3669 = vmul.f32 %v3665, 0.2
  %v3670 = vmul.f32 %v3666, 0.2
  %v3671 = vsel %vm3667, %v3665, %v3669
  %v3672 = vsel %vm3668, %v3666, %v3670
  %v3673 = vadd.f32 %v3671, %v49
  %v3674 = vadd.f32 %v3672, %v50
  %v3675 = vsel %vm53, %v3673, -inf
  %3676 = vmax.xlane.f32.xlu0 %v3675
  %v3677 = vpop.xlane.xlu0 %3676
  %v3678 = vsel %vm53, %v3674, -inf
  %3679 = vmax.xlane.f32.xlu0 %v3678
  %v3680 = vpop.xlane.xlu0 %3679
  %v3681 = vsub.f32 %v3673, %v3677
  %v3682 = vsub.f32 %v3674, %v3680
  %v3683 = vmul.f32 %v3681, 1.442695
  %v3684 = vpow.pop %v3683
  %v3685 = vmul.f32 %v3682, 1.442695
  %v3686 = vpow.pop %v3685
  %v3687 = vsel %vm53, %v3684, 0.0
  %3688 = vadd.xlane.f32.xlu0 %v3687
  %v3689 = vpop.xlane.xlu0 %3688
  %v3690 = vsel %vm53, %v3686, 0.0
  %3691 = vadd.xlane.f32.xlu0 %v3690
  %v3692 = vpop.xlane.xlu0 %3691
  %v3693 = vrcp.pop %v3689
  %v3694 = vmul.f32 %v3684, %v3693
  %v3695 = vrcp.pop %v3692
  %v3696 = vmul.f32 %v3686, %v3695
  %3697 = vrot.lane.b32.xlu0 %v3403, 124
  %v3698 = vpop.permute.xlu0 %3697
  %3699 = vrot.lane.b32.xlu0 %v3408, 124
  %v3700 = vpop.permute.xlu0 %3699
  %v3704 = vsel %vm53, %v3694, 0
  %v3707 = vsel %vm53, %v3696, 0
  %3709 = vmatprep.subr.mxu0 0.0
  %3710 = vmatpush1.msra.mxu0 0.0
  %3711 = vmatprep.subr.mxu0 0.0
  %3712 = vmatpush1.msra.mxu0 0.0
  %3713 = vmatprep.subr.mxu0 0.0
  %3714 = vmatpush1.msra.mxu0 0.0
  %3715 = vmatprep.subr.mxu0 0.0
  %3716 = vmatpush1.msra.mxu0 0.0
  %3717 = vmatprep.subr.mxu0 0.0
  %3718 = vmatpush1.msra.mxu0 0.0
  %3719 = vmatprep.subr.mxu0 0.0
  %3720 = vmatpush1.msra.mxu0 0.0
  %3721 = vmatprep.subr.mxu0 0.0
  %3722 = vmatpush1.msra.mxu0 0.0
  %3723 = vmatprep.subr.mxu0 0.0
  %3724 = vmatpush1.msra.mxu0 0.0
  %3725 = vmatprep.subr.mxu0 0.0
  %3726 = vmatpush1.msra.mxu0 0.0
  %3727 = vmatprep.subr.mxu0 0.0
  %3728 = vmatpush1.msra.mxu0 0.0
  %3729 = vmatprep.subr.mxu0 0.0
  %3730 = vmatpush1.msra.mxu0 0.0
  %3731 = vmatprep.subr.mxu0 0.0
  %3732 = vmatpush1.msra.mxu0 0.0
  %3733 = vmatprep.subr.mxu0 0.0
  %3734 = vmatpush1.msra.mxu0 0.0
  %3735 = vmatprep.subr.mxu0 0.0
  %3736 = vmatpush1.msra.mxu0 0.0
  %3737 = vmatprep.subr.mxu0 0.0
  %3738 = vmatpush1.msra.mxu0 %v3700
  %3739 = vmatprep.subr.mxu0 0.0
  %3740 = vmatpush1.msra.mxu0 %v3698
  %3741 = vmatprep.subr.mxu0 0.0
  %3742 = vmatpush2.msra.mxu0 0.0
  %3743 = vmatprep.subr.mxu0 0.0
  %3744 = vmatpush2.msra.mxu0 0.0
  %3745 = vmatprep.subr.mxu0 0.0
  %3746 = vmatpush2.msra.mxu0 0.0
  %3747 = vmatprep.subr.mxu0 0.0
  %3748 = vmatpush2.msra.mxu0 0.0
  %3749 = vmatprep.subr.mxu0 0.0
  %3750 = vmatpush2.msra.mxu0 0.0
  %3751 = vmatprep.subr.mxu0 0.0
  %3752 = vmatpush2.msra.mxu0 0.0
  %3753 = vmatprep.subr.mxu0 0.0
  %3754 = vmatpush2.msra.mxu0 0.0
  %3755 = vmatprep.subr.mxu0 0.0
  %3756 = vmatpush2.msra.mxu0 0.0
  %3757 = vmatprep.subr.mxu0 0.0
  %3758 = vmatpush2.msra.mxu0 0.0
  %3759 = vmatprep.subr.mxu0 0.0
  %3760 = vmatpush2.msra.mxu0 0.0
  %3761 = vmatprep.subr.mxu0 0.0
  %3762 = vmatpush2.msra.mxu0 0.0
  %3763 = vmatprep.subr.mxu0 0.0
  %3764 = vmatpush2.msra.mxu0 0.0
  %3765 = vmatprep.subr.mxu0 0.0
  %3766 = vmatpush2.msra.mxu0 0.0
  %3767 = vmatprep.subr.mxu0 0.0
  %3768 = vmatpush2.msra.mxu0 0.0
  %3769 = vmatprep.subr.mxu0 0.0
  %3770 = vmatpush2.msra.mxu0 0.0
  %3771 = vmatprep.subr.mxu0 0.0
  %3772 = vmatpush2.msra.mxu0 0.0
  %3773 = vmatprep.mubr.f32.mxu0 0.0
  %3774 = vmatmul.mubr.f32.gmra.mxu0 %v3704
  %v3775 = vpop.f32.mrf.mxu0
  %v3776 = vadd.f32 0.0, %v3775
  %v3777 = vpop.f32.mrf.mxu0
  %3778 = vmatprep.mubr.f32.mxu0 0.0
  %3779 = vmatmul.mubr.f32.gmra.mxu0 %v3707
  %v3780 = vpop.f32.mrf.mxu0
  %v3781 = vadd.f32 0.0, %v3780
  %v3782 = vpop.f32.mrf.mxu0
  %3783 = vdwg.mxu0
  %3786 = vrot.lane.b32.xlu0 %v3776, 4
  %v3787 = vpop.permute.xlu0 %3786
  %3788 = vrot.lane.b32.xlu0 %v3781, 4
  %v3789 = vpop.permute.xlu0 %3788
  %v3792 = vsel %vm184, %v3645, %v3787
  %v3793 = vsel %vm184, %v3650, %v3789
  %v3794 = vld [vmem:[%s5 + $0x5] sm:$0x1]
  %v3795 = vlaneseq
  %v3796 = vshrl.u32 %v3795, 7
  %v3797 = vsub.s32 0, %v3796
  %v3798 = vrot.slane %v3794, %v3797
  %v3799 = vadd.f32 %v3792, %v3798
  %v3800 = vadd.f32 %v3793, %v3798
  %vm3801 = vcmp.gt.f32.partialorder %v3799, 0.0
  %vm3802 = vcmp.gt.f32.partialorder %v3800, 0.0
  %v3803 = vmin.f32 %v3799, 0.0
  %v3804 = vmin.f32 %v3800, 0.0
  %v3805 = vmul.f32 %v3803, 1.442695
  %v3806 = vpow.pop %v3805
  %v3807 = vmul.f32 %v3804, 1.442695
  %v3808 = vpow.pop %v3807
  %v3809 = vsub.f32 %v3806, 1.0
  %v3810 = vsub.f32 %v3808, 1.0
  %v3811 = vsel %vm3801, %v3799, %v3809
  %v3812 = vsel %vm3802, %v3800, %v3810
  %s3813 = scalar_lea.vmem %s6, 40
  %v3814 = vld [vmem:[%s3813] sm:$0xff]
  %v3815 = vld [vmem:[%s7 + $0x5] sm:$0x1]
  %v3816 = vlaneseq
  %v3817 = vshrl.u32 %v3816, 7
  %v3818 = vsub.s32 0, %v3817
  %v3819 = vrot.slane %v3815, %v3818
  %v3821 = vsel %vm271, %v3811, 0
  %v3824 = vsel %vm271, %v3812, 0
  %3826 = vmatprep.subr.mxu0 0.0
  %3827 = vmatpush1.msra.mxu0 0.0
  %3828 = vmatprep.subr.mxu0 0.0
  %3829 = vmatpush1.msra.mxu0 0.0
  %3830 = vmatprep.subr.mxu0 0.0
  %3831 = vmatpush1.msra.mxu0 0.0
  %3832 = vmatprep.subr.mxu0 0.0
  %3833 = vmatpush1.msra.mxu0 0.0
  %3834 = vmatprep.subr.mxu0 0.0
  %3835 = vmatpush1.msra.mxu0 0.0
  %3836 = vmatprep.subr.mxu0 0.0
  %3837 = vmatpush1.msra.mxu0 0.0
  %3838 = vmatprep.subr.mxu0 0.0
  %3839 = vmatpush1.msra.mxu0 0.0
  %3840 = vmatprep.subr.mxu0 0.0
  %3841 = vmatpush1.msra.mxu0 0.0
  %3842 = vmatprep.subr.mxu0 0.0
  %3843 = vmatpush1.msra.mxu0 0.0
  %3844 = vmatprep.subr.mxu0 0.0
  %3845 = vmatpush1.msra.mxu0 0.0
  %3846 = vmatprep.subr.mxu0 0.0
  %3847 = vmatpush1.msra.mxu0 0.0
  %3848 = vmatprep.subr.mxu0 0.0
  %3849 = vmatpush1.msra.mxu0 0.0
  %3850 = vmatprep.subr.mxu0 0.0
  %3851 = vmatpush1.msra.mxu0 0.0
  %3852 = vmatprep.subr.mxu0 0.0
  %3853 = vmatpush1.msra.mxu0 0.0
  %3854 = vmatprep.subr.mxu0 0.0
  %3855 = vmatpush1.msra.mxu0 0.0
  %3856 = vmatprep.subr.mxu0 0.0
  %3857 = vmatpush1.msra.mxu0 %v3814
  %3858 = vmatprep.subr.mxu0 0.0
  %3859 = vmatpush2.msra.mxu0 0.0
  %3860 = vmatprep.subr.mxu0 0.0
  %3861 = vmatpush2.msra.mxu0 0.0
  %3862 = vmatprep.subr.mxu0 0.0
  %3863 = vmatpush2.msra.mxu0 0.0
  %3864 = vmatprep.subr.mxu0 0.0
  %3865 = vmatpush2.msra.mxu0 0.0
  %3866 = vmatprep.subr.mxu0 0.0
  %3867 = vmatpush2.msra.mxu0 0.0
  %3868 = vmatprep.subr.mxu0 0.0
  %3869 = vmatpush2.msra.mxu0 0.0
  %3870 = vmatprep.subr.mxu0 0.0
  %3871 = vmatpush2.msra.mxu0 0.0
  %3872 = vmatprep.subr.mxu0 0.0
  %3873 = vmatpush2.msra.mxu0 0.0
  %3874 = vmatprep.subr.mxu0 0.0
  %3875 = vmatpush2.msra.mxu0 0.0
  %3876 = vmatprep.subr.mxu0 0.0
  %3877 = vmatpush2.msra.mxu0 0.0
  %3878 = vmatprep.subr.mxu0 0.0
  %3879 = vmatpush2.msra.mxu0 0.0
  %3880 = vmatprep.subr.mxu0 0.0
  %3881 = vmatpush2.msra.mxu0 0.0
  %3882 = vmatprep.subr.mxu0 0.0
  %3883 = vmatpush2.msra.mxu0 0.0
  %3884 = vmatprep.subr.mxu0 0.0
  %3885 = vmatpush2.msra.mxu0 0.0
  %3886 = vmatprep.subr.mxu0 0.0
  %3887 = vmatpush2.msra.mxu0 0.0
  %3888 = vmatprep.subr.mxu0 0.0
  %3889 = vmatpush2.msra.mxu0 0.0
  %3890 = vmatprep.mubr.f32.mxu0 0.0
  %3891 = vmatmul.mubr.f32.gmra.mxu0 %v3821
  %v3892 = vpop.f32.mrf.mxu0
  %v3893 = vadd.f32 %v3819, %v3892
  %v3894 = vpop.f32.mrf.mxu0
  %3895 = vmatprep.mubr.f32.mxu0 0.0
  %3896 = vmatmul.mubr.f32.gmra.mxu0 %v3824
  %v3897 = vpop.f32.mrf.mxu0
  %v3898 = vadd.f32 %v3819, %v3897
  %v3899 = vpop.f32.mrf.mxu0
  %3900 = vdwg.mxu0
  %s3901 = scalar_lea.vmem %s3, 24
  %v3902 = vld [vmem:[%s3901] sm:$0xf]
  %3903 = vrot.lane.b32.xlu0 %v2715, 120
  %v3904 = vpop.permute.xlu0 %3903
  %3905 = vrot.lane.b32.xlu0 %v2720, 120
  %v3906 = vpop.permute.xlu0 %3905
  %v3907 = vsel %vm184, %v3904, 0
  %v3909 = vsel %vm184, %v3906, 0
  %v3912 = vsel %vm191, %v3902, 0
  %3914 = vmatprep.subr.mxu0 0.0
  %3915 = vmatpush1.msra.mxu0 0.0
  %3916 = vmatprep.subr.mxu0 0.0
  %3917 = vmatpush1.msra.mxu0 0.0
  %3918 = vmatprep.subr.mxu0 0.0
  %3919 = vmatpush1.msra.mxu0 0.0
  %3920 = vmatprep.subr.mxu0 0.0
  %3921 = vmatpush1.msra.mxu0 0.0
  %3922 = vmatprep.subr.mxu0 0.0
  %3923 = vmatpush1.msra.mxu0 0.0
  %3924 = vmatprep.subr.mxu0 0.0
  %3925 = vmatpush1.msra.mxu0 0.0
  %3926 = vmatprep.subr.mxu0 0.0
  %3927 = vmatpush1.msra.mxu0 0.0
  %3928 = vmatprep.subr.mxu0 0.0
  %3929 = vmatpush1.msra.mxu0 0.0
  %3930 = vmatprep.subr.mxu0 0.0
  %3931 = vmatpush1.msra.mxu0 0.0
  %3932 = vmatprep.subr.mxu0 0.0
  %3933 = vmatpush1.msra.mxu0 0.0
  %3934 = vmatprep.subr.mxu0 0.0
  %3935 = vmatpush1.msra.mxu0 0.0
  %3936 = vmatprep.subr.mxu0 0.0
  %3937 = vmatpush1.msra.mxu0 0.0
  %3938 = vmatprep.subr.mxu0 0.0
  %3939 = vmatpush1.msra.mxu0 0.0
  %3940 = vmatprep.subr.mxu0 0.0
  %3941 = vmatpush1.msra.mxu0 0.0
  %3942 = vmatprep.subr.mxu0 0.0
  %3943 = vmatpush1.msra.mxu0 0.0
  %3944 = vmatprep.subr.mxu0 0.0
  %3945 = vmatpush1.msra.mxu0 %v3912
  %3946 = vmatprep.subr.mxu0 0.0
  %3947 = vmatpush2.msra.mxu0 0.0
  %3948 = vmatprep.subr.mxu0 0.0
  %3949 = vmatpush2.msra.mxu0 0.0
  %3950 = vmatprep.subr.mxu0 0.0
  %3951 = vmatpush2.msra.mxu0 0.0
  %3952 = vmatprep.subr.mxu0 0.0
  %3953 = vmatpush2.msra.mxu0 0.0
  %3954 = vmatprep.subr.mxu0 0.0
  %3955 = vmatpush2.msra.mxu0 0.0
  %3956 = vmatprep.subr.mxu0 0.0
  %3957 = vmatpush2.msra.mxu0 0.0
  %3958 = vmatprep.subr.mxu0 0.0
  %3959 = vmatpush2.msra.mxu0 0.0
  %3960 = vmatprep.subr.mxu0 0.0
  %3961 = vmatpush2.msra.mxu0 0.0
  %3962 = vmatprep.subr.mxu0 0.0
  %3963 = vmatpush2.msra.mxu0 0.0
  %3964 = vmatprep.subr.mxu0 0.0
  %3965 = vmatpush2.msra.mxu0 0.0
  %3966 = vmatprep.subr.mxu0 0.0
  %3967 = vmatpush2.msra.mxu0 0.0
  %3968 = vmatprep.subr.mxu0 0.0
  %3969 = vmatpush2.msra.mxu0 0.0
  %3970 = vmatprep.subr.mxu0 0.0
  %3971 = vmatpush2.msra.mxu0 0.0
  %3972 = vmatprep.subr.mxu0 0.0
  %3973 = vmatpush2.msra.mxu0 0.0
  %3974 = vmatprep.subr.mxu0 0.0
  %3975 = vmatpush2.msra.mxu0 0.0
  %3976 = vmatprep.subr.mxu0 0.0
  %3977 = vmatpush2.msra.mxu0 0.0
  %3978 = vmatprep.mubr.f32.mxu0 0.0
  %3979 = vmatmul.mubr.f32.gmra.mxu0 %v3907
  %v3980 = vpop.f32.mrf.mxu0
  %v3981 = vadd.f32 0.0, %v3980
  %v3982 = vpop.f32.mrf.mxu0
  %3983 = vmatprep.mubr.f32.mxu0 0.0
  %3984 = vmatmul.mubr.f32.gmra.mxu0 %v3909
  %v3985 = vpop.f32.mrf.mxu0
  %v3986 = vadd.f32 0.0, %v3985
  %v3987 = vpop.f32.mrf.mxu0
  %3988 = vdwg.mxu0
  %s3989 = scalar_lea.vmem %s4, 48
  %v3990 = vld [vmem:[%s3989] sm:$0xff]
  %v3992 = vsel %vm271, %v3981, 0
  %v3995 = vsel %vm271, %v3986, 0
  %3997 = vmatprep.subr.mxu0 0.0
  %3998 = vmatpush1.msra.mxu0 0.0
  %3999 = vmatprep.subr.mxu0 0.0
  %4000 = vmatpush1.msra.mxu0 0.0
  %4001 = vmatprep.subr.mxu0 0.0
  %4002 = vmatpush1.msra.mxu0 0.0
  %4003 = vmatprep.subr.mxu0 0.0
  %4004 = vmatpush1.msra.mxu0 0.0
  %4005 = vmatprep.subr.mxu0 0.0
  %4006 = vmatpush1.msra.mxu0 0.0
  %4007 = vmatprep.subr.mxu0 0.0
  %4008 = vmatpush1.msra.mxu0 0.0
  %4009 = vmatprep.subr.mxu0 0.0
  %4010 = vmatpush1.msra.mxu0 0.0
  %4011 = vmatprep.subr.mxu0 0.0
  %4012 = vmatpush1.msra.mxu0 0.0
  %4013 = vmatprep.subr.mxu0 0.0
  %4014 = vmatpush1.msra.mxu0 0.0
  %4015 = vmatprep.subr.mxu0 0.0
  %4016 = vmatpush1.msra.mxu0 0.0
  %4017 = vmatprep.subr.mxu0 0.0
  %4018 = vmatpush1.msra.mxu0 0.0
  %4019 = vmatprep.subr.mxu0 0.0
  %4020 = vmatpush1.msra.mxu0 0.0
  %4021 = vmatprep.subr.mxu0 0.0
  %4022 = vmatpush1.msra.mxu0 0.0
  %4023 = vmatprep.subr.mxu0 0.0
  %4024 = vmatpush1.msra.mxu0 0.0
  %4025 = vmatprep.subr.mxu0 0.0
  %4026 = vmatpush1.msra.mxu0 0.0
  %4027 = vmatprep.subr.mxu0 0.0
  %4028 = vmatpush1.msra.mxu0 %v3990
  %4029 = vmatprep.subr.mxu0 0.0
  %4030 = vmatpush2.msra.mxu0 0.0
  %4031 = vmatprep.subr.mxu0 0.0
  %4032 = vmatpush2.msra.mxu0 0.0
  %4033 = vmatprep.subr.mxu0 0.0
  %4034 = vmatpush2.msra.mxu0 0.0
  %4035 = vmatprep.subr.mxu0 0.0
  %4036 = vmatpush2.msra.mxu0 0.0
  %4037 = vmatprep.subr.mxu0 0.0
  %4038 = vmatpush2.msra.mxu0 0.0
  %4039 = vmatprep.subr.mxu0 0.0
  %4040 = vmatpush2.msra.mxu0 0.0
  %4041 = vmatprep.subr.mxu0 0.0
  %4042 = vmatpush2.msra.mxu0 0.0
  %4043 = vmatprep.subr.mxu0 0.0
  %4044 = vmatpush2.msra.mxu0 0.0
  %4045 = vmatprep.subr.mxu0 0.0
  %4046 = vmatpush2.msra.mxu0 0.0
  %4047 = vmatprep.subr.mxu0 0.0
  %4048 = vmatpush2.msra.mxu0 0.0
  %4049 = vmatprep.subr.mxu0 0.0
  %4050 = vmatpush2.msra.mxu0 0.0
  %4051 = vmatprep.subr.mxu0 0.0
  %4052 = vmatpush2.msra.mxu0 0.0
  %4053 = vmatprep.subr.mxu0 0.0
  %4054 = vmatpush2.msra.mxu0 0.0
  %4055 = vmatprep.subr.mxu0 0.0
  %4056 = vmatpush2.msra.mxu0 0.0
  %4057 = vmatprep.subr.mxu0 0.0
  %4058 = vmatpush2.msra.mxu0 0.0
  %4059 = vmatprep.subr.mxu0 0.0
  %4060 = vmatpush2.msra.mxu0 0.0
  %4061 = vmatprep.mubr.f32.mxu0 0.0
  %4062 = vmatmul.mubr.f32.gmra.mxu0 %v3992
  %v4063 = vpop.f32.mrf.mxu0
  %v4064 = vadd.f32 0.0, %v4063
  %v4065 = vpop.f32.mrf.mxu0
  %4066 = vmatprep.mubr.f32.mxu0 0.0
  %4067 = vmatmul.mubr.f32.gmra.mxu0 %v3995
  %v4068 = vpop.f32.mrf.mxu0
  %v4069 = vadd.f32 0.0, %v4068
  %v4070 = vpop.f32.mrf.mxu0
  %4071 = vdwg.mxu0
  %4072 = vxpose.xlu0.b32.start [1/16] %v4064, 128
  %4073 = vxpose.xlu0.b32.cont [2/16] %v4069, 128
  %4074 = vxpose.xlu0.b32.cont [3/16] 0.0, 128
  %4075 = vxpose.xlu0.b32.cont [4/16] 0.0, 128
  %4076 = vxpose.xlu0.b32.cont [5/16] 0.0, 128
  %4077 = vxpose.xlu0.b32.cont [6/16] 0.0, 128
  %4078 = vxpose.xlu0.b32.cont [7/16] 0.0, 128
  %4079 = vxpose.xlu0.b32.cont [8/16] 0.0, 128
  %4080 = vxpose.xlu0.b32.cont [9/16] 0.0, 128
  %4081 = vxpose.xlu0.b32.cont [10/16] 0.0, 128
  %4082 = vxpose.xlu0.b32.cont [11/16] 0.0, 128
  %4083 = vxpose.xlu0.b32.cont [12/16] 0.0, 128
  %4084 = vxpose.xlu0.b32.cont [13/16] 0.0, 128
  %4085 = vxpose.xlu0.b32.cont [14/16] 0.0, 128
  %4086 = vxpose.xlu0.b32.cont [15/16] 0.0, 128
  %4087 = vxpose.xlu0.b32.end [16/16] 0.0, 128
  %v4088 = vpop.trf.xlu0
  %v4089 = vpop.trf.xlu0
  %v4090 = vpop.trf.xlu0
  %v4091 = vpop.trf.xlu0
  %v4092 = vpop.trf.xlu0
  %v4093 = vpop.trf.xlu0
  %v4094 = vpop.trf.xlu0
  %v4095 = vpop.trf.xlu0
  %v4096 = vpop.trf.xlu0
  %v4097 = vpop.trf.xlu0
  %v4098 = vpop.trf.xlu0
  %v4099 = vpop.trf.xlu0
  %v4100 = vpop.trf.xlu0
  %v4101 = vpop.trf.xlu0
  %v4102 = vpop.trf.xlu0
  %v4103 = vpop.trf.xlu0
  %4105 = vset.pattern.permute.xlu0 2
  %4106 = vperm.xlu0 %4105, %v4064
  %v4107 = vpop.permute.xlu0 %4106
  %4110 = vset.pattern.permute.xlu0 2
  %4111 = vperm.xlu0 %4110, %v4069
  %v4112 = vpop.permute.xlu0 %4111
  %v4114 = vlaneseq
  %v4115 = vshrl.u32 %v4114, 7
  %v4116 = vsub.s32 0, %v4115
  %v4117 = vrot.slane %v4088, %v4116
  %v4118 = vadd.f32 %v4107, %v4117
  %v4119 = vadd.f32 %v4112, %v4117
  %vm4120 = vcmp.gt.f32.partialorder %v4118, 0.0
  %vm4121 = vcmp.gt.f32.partialorder %v4119, 0.0
  %v4122 = vmul.f32 %v4118, 0.2
  %v4123 = vmul.f32 %v4119, 0.2
  %v4124 = vsel %vm4120, %v4118, %v4122
  %v4125 = vsel %vm4121, %v4119, %v4123
  %v4126 = vadd.f32 %v4124, %v49
  %v4127 = vadd.f32 %v4125, %v50
  %v4128 = vsel %vm53, %v4126, -inf
  %4129 = vmax.xlane.f32.xlu0 %v4128
  %v4130 = vpop.xlane.xlu0 %4129
  %v4131 = vsel %vm53, %v4127, -inf
  %4132 = vmax.xlane.f32.xlu0 %v4131
  %v4133 = vpop.xlane.xlu0 %4132
  %v4134 = vsub.f32 %v4126, %v4130
  %v4135 = vsub.f32 %v4127, %v4133
  %v4136 = vmul.f32 %v4134, 1.442695
  %v4137 = vpow.pop %v4136
  %v4138 = vmul.f32 %v4135, 1.442695
  %v4139 = vpow.pop %v4138
  %v4140 = vsel %vm53, %v4137, 0.0
  %4141 = vadd.xlane.f32.xlu0 %v4140
  %v4142 = vpop.xlane.xlu0 %4141
  %v4143 = vsel %vm53, %v4139, 0.0
  %4144 = vadd.xlane.f32.xlu0 %v4143
  %v4145 = vpop.xlane.xlu0 %4144
  %v4146 = vrcp.pop %v4142
  %v4147 = vmul.f32 %v4137, %v4146
  %v4148 = vrcp.pop %v4145
  %v4149 = vmul.f32 %v4139, %v4148
  %v4151 = vsel %vm53, %v4147, 0
  %v4154 = vsel %vm53, %v4149, 0
  %4156 = vmatprep.subr.mxu0 0.0
  %4157 = vmatpush1.msra.mxu0 0.0
  %4158 = vmatprep.subr.mxu0 0.0
  %4159 = vmatpush1.msra.mxu0 0.0
  %4160 = vmatprep.subr.mxu0 0.0
  %4161 = vmatpush1.msra.mxu0 0.0
  %4162 = vmatprep.subr.mxu0 0.0
  %4163 = vmatpush1.msra.mxu0 0.0
  %4164 = vmatprep.subr.mxu0 0.0
  %4165 = vmatpush1.msra.mxu0 0.0
  %4166 = vmatprep.subr.mxu0 0.0
  %4167 = vmatpush1.msra.mxu0 0.0
  %4168 = vmatprep.subr.mxu0 0.0
  %4169 = vmatpush1.msra.mxu0 0.0
  %4170 = vmatprep.subr.mxu0 0.0
  %4171 = vmatpush1.msra.mxu0 0.0
  %4172 = vmatprep.subr.mxu0 0.0
  %4173 = vmatpush1.msra.mxu0 0.0
  %4174 = vmatprep.subr.mxu0 0.0
  %4175 = vmatpush1.msra.mxu0 0.0
  %4176 = vmatprep.subr.mxu0 0.0
  %4177 = vmatpush1.msra.mxu0 0.0
  %4178 = vmatprep.subr.mxu0 0.0
  %4179 = vmatpush1.msra.mxu0 0.0
  %4180 = vmatprep.subr.mxu0 0.0
  %4181 = vmatpush1.msra.mxu0 0.0
  %4182 = vmatprep.subr.mxu0 0.0
  %4183 = vmatpush1.msra.mxu0 0.0
  %4184 = vmatprep.subr.mxu0 0.0
  %4185 = vmatpush1.msra.mxu0 %v3986
  %4186 = vmatprep.subr.mxu0 0.0
  %4187 = vmatpush1.msra.mxu0 %v3981
  %4188 = vmatprep.subr.mxu0 0.0
  %4189 = vmatpush2.msra.mxu0 0.0
  %4190 = vmatprep.subr.mxu0 0.0
  %4191 = vmatpush2.msra.mxu0 0.0
  %4192 = vmatprep.subr.mxu0 0.0
  %4193 = vmatpush2.msra.mxu0 0.0
  %4194 = vmatprep.subr.mxu0 0.0
  %4195 = vmatpush2.msra.mxu0 0.0
  %4196 = vmatprep.subr.mxu0 0.0
  %4197 = vmatpush2.msra.mxu0 0.0
  %4198 = vmatprep.subr.mxu0 0.0
  %4199 = vmatpush2.msra.mxu0 0.0
  %4200 = vmatprep.subr.mxu0 0.0
  %4201 = vmatpush2.msra.mxu0 0.0
  %4202 = vmatprep.subr.mxu0 0.0
  %4203 = vmatpush2.msra.mxu0 0.0
  %4204 = vmatprep.subr.mxu0 0.0
  %4205 = vmatpush2.msra.mxu0 0.0
  %4206 = vmatprep.subr.mxu0 0.0
  %4207 = vmatpush2.msra.mxu0 0.0
  %4208 = vmatprep.subr.mxu0 0.0
  %4209 = vmatpush2.msra.mxu0 0.0
  %4210 = vmatprep.subr.mxu0 0.0
  %4211 = vmatpush2.msra.mxu0 0.0
  %4212 = vmatprep.subr.mxu0 0.0
  %4213 = vmatpush2.msra.mxu0 0.0
  %4214 = vmatprep.subr.mxu0 0.0
  %4215 = vmatpush2.msra.mxu0 0.0
  %4216 = vmatprep.subr.mxu0 0.0
  %4217 = vmatpush2.msra.mxu0 0.0
  %4218 = vmatprep.subr.mxu0 0.0
  %4219 = vmatpush2.msra.mxu0 0.0
  %4220 = vmatprep.mubr.f32.mxu0 0.0
  %4221 = vmatmul.mubr.f32.gmra.mxu0 %v4151
  %v4222 = vpop.f32.mrf.mxu0
  %v4223 = vadd.f32 0.0, %v4222
  %v4224 = vpop.f32.mrf.mxu0
  %4225 = vmatprep.mubr.f32.mxu0 0.0
  %4226 = vmatmul.mubr.f32.gmra.mxu0 %v4154
  %v4227 = vpop.f32.mrf.mxu0
  %v4228 = vadd.f32 0.0, %v4227
  %v4229 = vpop.f32.mrf.mxu0
  %4230 = vdwg.mxu0
  %4231 = vset.pattern.permute.xlu0 3
  %4232 = vperm.xlu0 %4231, %v4064
  %v4233 = vpop.permute.xlu0 %4232
  %4235 = vset.pattern.permute.xlu0 3
  %4236 = vperm.xlu0 %4235, %v4069
  %v4237 = vpop.permute.xlu0 %4236
  %v4239 = vlaneseq
  %v4240 = vshrl.u32 %v4239, 7
  %v4241 = vsub.s32 1, %v4240
  %v4242 = vrot.slane %v4088, %v4241
  %v4243 = vadd.f32 %v4233, %v4242
  %v4244 = vadd.f32 %v4237, %v4242
  %vm4245 = vcmp.gt.f32.partialorder %v4243, 0.0
  %vm4246 = vcmp.gt.f32.partialorder %v4244, 0.0
  %v4247 = vmul.f32 %v4243, 0.2
  %v4248 = vmul.f32 %v4244, 0.2
  %v4249 = vsel %vm4245, %v4243, %v4247
  %v4250 = vsel %vm4246, %v4244, %v4248
  %v4251 = vadd.f32 %v4249, %v49
  %v4252 = vadd.f32 %v4250, %v50
  %v4253 = vsel %vm53, %v4251, -inf
  %4254 = vmax.xlane.f32.xlu0 %v4253
  %v4255 = vpop.xlane.xlu0 %4254
  %v4256 = vsel %vm53, %v4252, -inf
  %4257 = vmax.xlane.f32.xlu0 %v4256
  %v4258 = vpop.xlane.xlu0 %4257
  %v4259 = vsub.f32 %v4251, %v4255
  %v4260 = vsub.f32 %v4252, %v4258
  %v4261 = vmul.f32 %v4259, 1.442695
  %v4262 = vpow.pop %v4261
  %v4263 = vmul.f32 %v4260, 1.442695
  %v4264 = vpow.pop %v4263
  %v4265 = vsel %vm53, %v4262, 0.0
  %4266 = vadd.xlane.f32.xlu0 %v4265
  %v4267 = vpop.xlane.xlu0 %4266
  %v4268 = vsel %vm53, %v4264, 0.0
  %4269 = vadd.xlane.f32.xlu0 %v4268
  %v4270 = vpop.xlane.xlu0 %4269
  %v4271 = vrcp.pop %v4267
  %v4272 = vmul.f32 %v4262, %v4271
  %v4273 = vrcp.pop %v4270
  %v4274 = vmul.f32 %v4264, %v4273
  %4275 = vrot.lane.b32.xlu0 %v3981, 124
  %v4276 = vpop.permute.xlu0 %4275
  %4277 = vrot.lane.b32.xlu0 %v3986, 124
  %v4278 = vpop.permute.xlu0 %4277
  %v4282 = vsel %vm53, %v4272, 0
  %v4285 = vsel %vm53, %v4274, 0
  %4287 = vmatprep.subr.mxu0 0.0
  %4288 = vmatpush1.msra.mxu0 0.0
  %4289 = vmatprep.subr.mxu0 0.0
  %4290 = vmatpush1.msra.mxu0 0.0
  %4291 = vmatprep.subr.mxu0 0.0
  %4292 = vmatpush1.msra.mxu0 0.0
  %4293 = vmatprep.subr.mxu0 0.0
  %4294 = vmatpush1.msra.mxu0 0.0
  %4295 = vmatprep.subr.mxu0 0.0
  %4296 = vmatpush1.msra.mxu0 0.0
  %4297 = vmatprep.subr.mxu0 0.0
  %4298 = vmatpush1.msra.mxu0 0.0
  %4299 = vmatprep.subr.mxu0 0.0
  %4300 = vmatpush1.msra.mxu0 0.0
  %4301 = vmatprep.subr.mxu0 0.0
  %4302 = vmatpush1.msra.mxu0 0.0
  %4303 = vmatprep.subr.mxu0 0.0
  %4304 = vmatpush1.msra.mxu0 0.0
  %4305 = vmatprep.subr.mxu0 0.0
  %4306 = vmatpush1.msra.mxu0 0.0
  %4307 = vmatprep.subr.mxu0 0.0
  %4308 = vmatpush1.msra.mxu0 0.0
  %4309 = vmatprep.subr.mxu0 0.0
  %4310 = vmatpush1.msra.mxu0 0.0
  %4311 = vmatprep.subr.mxu0 0.0
  %4312 = vmatpush1.msra.mxu0 0.0
  %4313 = vmatprep.subr.mxu0 0.0
  %4314 = vmatpush1.msra.mxu0 0.0
  %4315 = vmatprep.subr.mxu0 0.0
  %4316 = vmatpush1.msra.mxu0 %v4278
  %4317 = vmatprep.subr.mxu0 0.0
  %4318 = vmatpush1.msra.mxu0 %v4276
  %4319 = vmatprep.subr.mxu0 0.0
  %4320 = vmatpush2.msra.mxu0 0.0
  %4321 = vmatprep.subr.mxu0 0.0
  %4322 = vmatpush2.msra.mxu0 0.0
  %4323 = vmatprep.subr.mxu0 0.0
  %4324 = vmatpush2.msra.mxu0 0.0
  %4325 = vmatprep.subr.mxu0 0.0
  %4326 = vmatpush2.msra.mxu0 0.0
  %4327 = vmatprep.subr.mxu0 0.0
  %4328 = vmatpush2.msra.mxu0 0.0
  %4329 = vmatprep.subr.mxu0 0.0
  %4330 = vmatpush2.msra.mxu0 0.0
  %4331 = vmatprep.subr.mxu0 0.0
  %4332 = vmatpush2.msra.mxu0 0.0
  %4333 = vmatprep.subr.mxu0 0.0
  %4334 = vmatpush2.msra.mxu0 0.0
  %4335 = vmatprep.subr.mxu0 0.0
  %4336 = vmatpush2.msra.mxu0 0.0
  %4337 = vmatprep.subr.mxu0 0.0
  %4338 = vmatpush2.msra.mxu0 0.0
  %4339 = vmatprep.subr.mxu0 0.0
  %4340 = vmatpush2.msra.mxu0 0.0
  %4341 = vmatprep.subr.mxu0 0.0
  %4342 = vmatpush2.msra.mxu0 0.0
  %4343 = vmatprep.subr.mxu0 0.0
  %4344 = vmatpush2.msra.mxu0 0.0
  %4345 = vmatprep.subr.mxu0 0.0
  %4346 = vmatpush2.msra.mxu0 0.0
  %4347 = vmatprep.subr.mxu0 0.0
  %4348 = vmatpush2.msra.mxu0 0.0
  %4349 = vmatprep.subr.mxu0 0.0
  %4350 = vmatpush2.msra.mxu0 0.0
  %4351 = vmatprep.mubr.f32.mxu0 0.0
  %4352 = vmatmul.mubr.f32.gmra.mxu0 %v4282
  %v4353 = vpop.f32.mrf.mxu0
  %v4354 = vadd.f32 0.0, %v4353
  %v4355 = vpop.f32.mrf.mxu0
  %4356 = vmatprep.mubr.f32.mxu0 0.0
  %4357 = vmatmul.mubr.f32.gmra.mxu0 %v4285
  %v4358 = vpop.f32.mrf.mxu0
  %v4359 = vadd.f32 0.0, %v4358
  %v4360 = vpop.f32.mrf.mxu0
  %4361 = vdwg.mxu0
  %4364 = vrot.lane.b32.xlu0 %v4354, 4
  %v4365 = vpop.permute.xlu0 %4364
  %4366 = vrot.lane.b32.xlu0 %v4359, 4
  %v4367 = vpop.permute.xlu0 %4366
  %v4370 = vsel %vm184, %v4223, %v4365
  %v4371 = vsel %vm184, %v4228, %v4367
  %v4372 = vld [vmem:[%s5 + $0x6] sm:$0x1]
  %v4373 = vlaneseq
  %v4374 = vshrl.u32 %v4373, 7
  %v4375 = vsub.s32 0, %v4374
  %v4376 = vrot.slane %v4372, %v4375
  %v4377 = vadd.f32 %v4370, %v4376
  %v4378 = vadd.f32 %v4371, %v4376
  %vm4379 = vcmp.gt.f32.partialorder %v4377, 0.0
  %vm4380 = vcmp.gt.f32.partialorder %v4378, 0.0
  %v4381 = vmin.f32 %v4377, 0.0
  %v4382 = vmin.f32 %v4378, 0.0
  %v4383 = vmul.f32 %v4381, 1.442695
  %v4384 = vpow.pop %v4383
  %v4385 = vmul.f32 %v4382, 1.442695
  %v4386 = vpow.pop %v4385
  %v4387 = vsub.f32 %v4384, 1.0
  %v4388 = vsub.f32 %v4386, 1.0
  %v4389 = vsel %vm4379, %v4377, %v4387
  %v4390 = vsel %vm4380, %v4378, %v4388
  %s4391 = scalar_lea.vmem %s6, 48
  %v4392 = vld [vmem:[%s4391] sm:$0xff]
  %v4393 = vld [vmem:[%s7 + $0x6] sm:$0x1]
  %v4394 = vlaneseq
  %v4395 = vshrl.u32 %v4394, 7
  %v4396 = vsub.s32 0, %v4395
  %v4397 = vrot.slane %v4393, %v4396
  %v4399 = vsel %vm271, %v4389, 0
  %v4402 = vsel %vm271, %v4390, 0
  %4404 = vmatprep.subr.mxu0 0.0
  %4405 = vmatpush1.msra.mxu0 0.0
  %4406 = vmatprep.subr.mxu0 0.0
  %4407 = vmatpush1.msra.mxu0 0.0
  %4408 = vmatprep.subr.mxu0 0.0
  %4409 = vmatpush1.msra.mxu0 0.0
  %4410 = vmatprep.subr.mxu0 0.0
  %4411 = vmatpush1.msra.mxu0 0.0
  %4412 = vmatprep.subr.mxu0 0.0
  %4413 = vmatpush1.msra.mxu0 0.0
  %4414 = vmatprep.subr.mxu0 0.0
  %4415 = vmatpush1.msra.mxu0 0.0
  %4416 = vmatprep.subr.mxu0 0.0
  %4417 = vmatpush1.msra.mxu0 0.0
  %4418 = vmatprep.subr.mxu0 0.0
  %4419 = vmatpush1.msra.mxu0 0.0
  %4420 = vmatprep.subr.mxu0 0.0
  %4421 = vmatpush1.msra.mxu0 0.0
  %4422 = vmatprep.subr.mxu0 0.0
  %4423 = vmatpush1.msra.mxu0 0.0
  %4424 = vmatprep.subr.mxu0 0.0
  %4425 = vmatpush1.msra.mxu0 0.0
  %4426 = vmatprep.subr.mxu0 0.0
  %4427 = vmatpush1.msra.mxu0 0.0
  %4428 = vmatprep.subr.mxu0 0.0
  %4429 = vmatpush1.msra.mxu0 0.0
  %4430 = vmatprep.subr.mxu0 0.0
  %4431 = vmatpush1.msra.mxu0 0.0
  %4432 = vmatprep.subr.mxu0 0.0
  %4433 = vmatpush1.msra.mxu0 0.0
  %4434 = vmatprep.subr.mxu0 0.0
  %4435 = vmatpush1.msra.mxu0 %v4392
  %4436 = vmatprep.subr.mxu0 0.0
  %4437 = vmatpush2.msra.mxu0 0.0
  %4438 = vmatprep.subr.mxu0 0.0
  %4439 = vmatpush2.msra.mxu0 0.0
  %4440 = vmatprep.subr.mxu0 0.0
  %4441 = vmatpush2.msra.mxu0 0.0
  %4442 = vmatprep.subr.mxu0 0.0
  %4443 = vmatpush2.msra.mxu0 0.0
  %4444 = vmatprep.subr.mxu0 0.0
  %4445 = vmatpush2.msra.mxu0 0.0
  %4446 = vmatprep.subr.mxu0 0.0
  %4447 = vmatpush2.msra.mxu0 0.0
  %4448 = vmatprep.subr.mxu0 0.0
  %4449 = vmatpush2.msra.mxu0 0.0
  %4450 = vmatprep.subr.mxu0 0.0
  %4451 = vmatpush2.msra.mxu0 0.0
  %4452 = vmatprep.subr.mxu0 0.0
  %4453 = vmatpush2.msra.mxu0 0.0
  %4454 = vmatprep.subr.mxu0 0.0
  %4455 = vmatpush2.msra.mxu0 0.0
  %4456 = vmatprep.subr.mxu0 0.0
  %4457 = vmatpush2.msra.mxu0 0.0
  %4458 = vmatprep.subr.mxu0 0.0
  %4459 = vmatpush2.msra.mxu0 0.0
  %4460 = vmatprep.subr.mxu0 0.0
  %4461 = vmatpush2.msra.mxu0 0.0
  %4462 = vmatprep.subr.mxu0 0.0
  %4463 = vmatpush2.msra.mxu0 0.0
  %4464 = vmatprep.subr.mxu0 0.0
  %4465 = vmatpush2.msra.mxu0 0.0
  %4466 = vmatprep.subr.mxu0 0.0
  %4467 = vmatpush2.msra.mxu0 0.0
  %4468 = vmatprep.mubr.f32.mxu0 0.0
  %4469 = vmatmul.mubr.f32.gmra.mxu0 %v4399
  %v4470 = vpop.f32.mrf.mxu0
  %v4471 = vadd.f32 %v4397, %v4470
  %v4472 = vpop.f32.mrf.mxu0
  %4473 = vmatprep.mubr.f32.mxu0 0.0
  %4474 = vmatmul.mubr.f32.gmra.mxu0 %v4402
  %v4475 = vpop.f32.mrf.mxu0
  %v4476 = vadd.f32 %v4397, %v4475
  %v4477 = vpop.f32.mrf.mxu0
  %4478 = vdwg.mxu0
  %4481 = vrot.lane.b32.xlu0 %v2622, 124
  %v4482 = vpop.permute.xlu0 %4481
  %4483 = vrot.lane.b32.xlu0 %v2623, 124
  %v4484 = vpop.permute.xlu0 %4483
  %4487 = vrot.lane.b32.xlu0 %v2626, 4
  %v4488 = vpop.permute.xlu0 %4487
  %4489 = vrot.lane.b32.xlu0 %v2627, 4
  %v4490 = vpop.permute.xlu0 %4489
  %v4493 = vsel %vm184, %v4482, %v2624
  %v4494 = vsel %vm184, %v4484, %v2625
  %v4495 = vsel %vm271, %v4493, %v4488
  %v4496 = vsel %vm271, %v4494, %v4490
  %4497 = vmatprep.subr.mxu0 0.0
  %4498 = vmatpush1.msra.mxu0 0.0
  %4499 = vmatprep.subr.mxu0 0.0
  %4500 = vmatpush1.msra.mxu0 0.0
  %4501 = vmatprep.subr.mxu0 0.0
  %4502 = vmatpush1.msra.mxu0 0.0
  %4503 = vmatprep.subr.mxu0 0.0
  %4504 = vmatpush1.msra.mxu0 0.0
  %4505 = vmatprep.subr.mxu0 0.0
  %4506 = vmatpush1.msra.mxu0 0.0
  %4507 = vmatprep.subr.mxu0 0.0
  %4508 = vmatpush1.msra.mxu0 0.0
  %4509 = vmatprep.subr.mxu0 0.0
  %4510 = vmatpush1.msra.mxu0 0.0
  %4511 = vmatprep.subr.mxu0 0.0
  %4512 = vmatpush1.msra.mxu0 0.0
  %4513 = vmatprep.subr.mxu0 0.0
  %4514 = vmatpush1.msra.mxu0 0.0
  %4515 = vmatprep.subr.mxu0 0.0
  %4516 = vmatpush1.msra.mxu0 0.0
  %4517 = vmatprep.subr.mxu0 0.0
  %4518 = vmatpush1.msra.mxu0 0.0
  %4519 = vmatprep.subr.mxu0 0.0
  %4520 = vmatpush1.msra.mxu0 0.0
  %4521 = vmatprep.subr.mxu0 0.0
  %4522 = vmatpush1.msra.mxu0 0.0
  %4523 = vmatprep.subr.mxu0 0.0
  %4524 = vmatpush1.msra.mxu0 0.0
  %4525 = vmatprep.subr.mxu0 0.0
  %4526 = vmatpush1.msra.mxu0 %v4496
  %4527 = vmatprep.subr.mxu0 0.0
  %4528 = vmatpush1.msra.mxu0 %v4495
  %4529 = vmatprep.subr.mxu0 0.0
  %4530 = vmatpush2.msra.mxu0 0.0
  %4531 = vmatprep.subr.mxu0 0.0
  %4532 = vmatpush2.msra.mxu0 0.0
  %4533 = vmatprep.subr.mxu0 0.0
  %4534 = vmatpush2.msra.mxu0 0.0
  %4535 = vmatprep.subr.mxu0 0.0
  %4536 = vmatpush2.msra.mxu0 0.0
  %4537 = vmatprep.subr.mxu0 0.0
  %4538 = vmatpush2.msra.mxu0 0.0
  %4539 = vmatprep.subr.mxu0 0.0
  %4540 = vmatpush2.msra.mxu0 0.0
  %4541 = vmatprep.subr.mxu0 0.0
  %4542 = vmatpush2.msra.mxu0 0.0
  %4543 = vmatprep.subr.mxu0 0.0
  %4544 = vmatpush2.msra.mxu0 0.0
  %4545 = vmatprep.subr.mxu0 0.0
  %4546 = vmatpush2.msra.mxu0 0.0
  %4547 = vmatprep.subr.mxu0 0.0
  %4548 = vmatpush2.msra.mxu0 0.0
  %4549 = vmatprep.subr.mxu0 0.0
  %4550 = vmatpush2.msra.mxu0 0.0
  %4551 = vmatprep.subr.mxu0 0.0
  %4552 = vmatpush2.msra.mxu0 0.0
  %4553 = vmatprep.subr.mxu0 0.0
  %4554 = vmatpush2.msra.mxu0 0.0
  %4555 = vmatprep.subr.mxu0 0.0
  %4556 = vmatpush2.msra.mxu0 0.0
  %4557 = vmatprep.subr.mxu0 0.0
  %4558 = vmatpush2.msra.mxu0 0.0
  %4559 = vmatprep.subr.mxu0 0.0
  %4560 = vmatpush2.msra.mxu0 0.0
  %4561 = vmatprep.mubr.f32.mxu0 0.0
  %4562 = vmatmul.mubr.f32.gmra.mxu0 %v55
  %v4563 = vpop.f32.mrf.mxu0
  %v4564 = vadd.f32 0.0, %v4563
  %v4565 = vpop.f32.mrf.mxu0
  %4566 = vmatprep.mubr.f32.mxu0 0.0
  %4567 = vmatmul.mubr.f32.gmra.mxu0 %v58
  %v4568 = vpop.f32.mrf.mxu0
  %v4569 = vadd.f32 0.0, %v4568
  %v4570 = vpop.f32.mrf.mxu0
  %4571 = vmatprep.mubr.f32.mxu0 0.0
  %4572 = vmatmul.mubr.f32.gmra.mxu0 %v61
  %v4573 = vpop.f32.mrf.mxu0
  %v4574 = vpop.f32.mrf.mxu0
  %4575 = vmatprep.mubr.f32.mxu0 0.0
  %4576 = vmatmul.mubr.f32.gmra.mxu0 %v64
  %v4577 = vpop.f32.mrf.mxu0
  %v4578 = vpop.f32.mrf.mxu0
  %4579 = vmatprep.mubr.f32.mxu0 0.0
  %4580 = vmatmul.mubr.f32.gmra.mxu0 %v67
  %v4581 = vpop.f32.mrf.mxu0
  %v4582 = vpop.f32.mrf.mxu0
  %4583 = vmatprep.mubr.f32.mxu0 0.0
  %4584 = vmatmul.mubr.f32.gmra.mxu0 %v70
  %v4585 = vpop.f32.mrf.mxu0
  %v4586 = vpop.f32.mrf.mxu0
  %4587 = vmatprep.mubr.f32.mxu0 0.0
  %4588 = vmatmul.mubr.f32.gmra.mxu0 %v73
  %v4589 = vpop.f32.mrf.mxu0
  %v4590 = vpop.f32.mrf.mxu0
  %4591 = vmatprep.mubr.f32.mxu0 0.0
  %4592 = vmatmul.mubr.f32.gmra.mxu0 %v76
  %v4593 = vpop.f32.mrf.mxu0
  %v4594 = vpop.f32.mrf.mxu0
  %4595 = vdwg.mxu0
  %s4596 = scalar_lea.vmem %s3, 28
  %v4597 = vld [vmem:[%s4596] sm:$0xf]
  %v4599 = vsel %vm184, %v4564, 0
  %v4602 = vsel %vm184, %v4569, 0
  %v4605 = vsel %vm191, %v4597, 0
  %4607 = vmatprep.subr.mxu0 0.0
  %4608 = vmatpush1.msra.mxu0 0.0
  %4609 = vmatprep.subr.mxu0 0.0
  %4610 = vmatpush1.msra.mxu0 0.0
  %4611 = vmatprep.subr.mxu0 0.0
  %4612 = vmatpush1.msra.mxu0 0.0
  %4613 = vmatprep.subr.mxu0 0.0
  %4614 = vmatpush1.msra.mxu0 0.0
  %4615 = vmatprep.subr.mxu0 0.0
  %4616 = vmatpush1.msra.mxu0 0.0
  %4617 = vmatprep.subr.mxu0 0.0
  %4618 = vmatpush1.msra.mxu0 0.0
  %4619 = vmatprep.subr.mxu0 0.0
  %4620 = vmatpush1.msra.mxu0 0.0
  %4621 = vmatprep.subr.mxu0 0.0
  %4622 = vmatpush1.msra.mxu0 0.0
  %4623 = vmatprep.subr.mxu0 0.0
  %4624 = vmatpush1.msra.mxu0 0.0
  %4625 = vmatprep.subr.mxu0 0.0
  %4626 = vmatpush1.msra.mxu0 0.0
  %4627 = vmatprep.subr.mxu0 0.0
  %4628 = vmatpush1.msra.mxu0 0.0
  %4629 = vmatprep.subr.mxu0 0.0
  %4630 = vmatpush1.msra.mxu0 0.0
  %4631 = vmatprep.subr.mxu0 0.0
  %4632 = vmatpush1.msra.mxu0 0.0
  %4633 = vmatprep.subr.mxu0 0.0
  %4634 = vmatpush1.msra.mxu0 0.0
  %4635 = vmatprep.subr.mxu0 0.0
  %4636 = vmatpush1.msra.mxu0 0.0
  %4637 = vmatprep.subr.mxu0 0.0
  %4638 = vmatpush1.msra.mxu0 %v4605
  %4639 = vmatprep.subr.mxu0 0.0
  %4640 = vmatpush2.msra.mxu0 0.0
  %4641 = vmatprep.subr.mxu0 0.0
  %4642 = vmatpush2.msra.mxu0 0.0
  %4643 = vmatprep.subr.mxu0 0.0
  %4644 = vmatpush2.msra.mxu0 0.0
  %4645 = vmatprep.subr.mxu0 0.0
  %4646 = vmatpush2.msra.mxu0 0.0
  %4647 = vmatprep.subr.mxu0 0.0
  %4648 = vmatpush2.msra.mxu0 0.0
  %4649 = vmatprep.subr.mxu0 0.0
  %4650 = vmatpush2.msra.mxu0 0.0
  %4651 = vmatprep.subr.mxu0 0.0
  %4652 = vmatpush2.msra.mxu0 0.0
  %4653 = vmatprep.subr.mxu0 0.0
  %4654 = vmatpush2.msra.mxu0 0.0
  %4655 = vmatprep.subr.mxu0 0.0
  %4656 = vmatpush2.msra.mxu0 0.0
  %4657 = vmatprep.subr.mxu0 0.0
  %4658 = vmatpush2.msra.mxu0 0.0
  %4659 = vmatprep.subr.mxu0 0.0
  %4660 = vmatpush2.msra.mxu0 0.0
  %4661 = vmatprep.subr.mxu0 0.0
  %4662 = vmatpush2.msra.mxu0 0.0
  %4663 = vmatprep.subr.mxu0 0.0
  %4664 = vmatpush2.msra.mxu0 0.0
  %4665 = vmatprep.subr.mxu0 0.0
  %4666 = vmatpush2.msra.mxu0 0.0
  %4667 = vmatprep.subr.mxu0 0.0
  %4668 = vmatpush2.msra.mxu0 0.0
  %4669 = vmatprep.subr.mxu0 0.0
  %4670 = vmatpush2.msra.mxu0 0.0
  %4671 = vmatprep.mubr.f32.mxu0 0.0
  %4672 = vmatmul.mubr.f32.gmra.mxu0 %v4599
  %v4673 = vpop.f32.mrf.mxu0
  %v4674 = vadd.f32 0.0, %v4673
  %v4675 = vpop.f32.mrf.mxu0
  %4676 = vmatprep.mubr.f32.mxu0 0.0
  %4677 = vmatmul.mubr.f32.gmra.mxu0 %v4602
  %v4678 = vpop.f32.mrf.mxu0
  %v4679 = vadd.f32 0.0, %v4678
  %v4680 = vpop.f32.mrf.mxu0
  %4681 = vdwg.mxu0
  %s4682 = scalar_lea.vmem %s4, 56
  %v4683 = vld [vmem:[%s4682] sm:$0xff]
  %v4685 = vsel %vm271, %v4674, 0
  %v4688 = vsel %vm271, %v4679, 0
  %4690 = vmatprep.subr.mxu0 0.0
  %4691 = vmatpush1.msra.mxu0 0.0
  %4692 = vmatprep.subr.mxu0 0.0
  %4693 = vmatpush1.msra.mxu0 0.0
  %4694 = vmatprep.subr.mxu0 0.0
  %4695 = vmatpush1.msra.mxu0 0.0
  %4696 = vmatprep.subr.mxu0 0.0
  %4697 = vmatpush1.msra.mxu0 0.0
  %4698 = vmatprep.subr.mxu0 0.0
  %4699 = vmatpush1.msra.mxu0 0.0
  %4700 = vmatprep.subr.mxu0 0.0
  %4701 = vmatpush1.msra.mxu0 0.0
  %4702 = vmatprep.subr.mxu0 0.0
  %4703 = vmatpush1.msra.mxu0 0.0
  %4704 = vmatprep.subr.mxu0 0.0
  %4705 = vmatpush1.msra.mxu0 0.0
  %4706 = vmatprep.subr.mxu0 0.0
  %4707 = vmatpush1.msra.mxu0 0.0
  %4708 = vmatprep.subr.mxu0 0.0
  %4709 = vmatpush1.msra.mxu0 0.0
  %4710 = vmatprep.subr.mxu0 0.0
  %4711 = vmatpush1.msra.mxu0 0.0
  %4712 = vmatprep.subr.mxu0 0.0
  %4713 = vmatpush1.msra.mxu0 0.0
  %4714 = vmatprep.subr.mxu0 0.0
  %4715 = vmatpush1.msra.mxu0 0.0
  %4716 = vmatprep.subr.mxu0 0.0
  %4717 = vmatpush1.msra.mxu0 0.0
  %4718 = vmatprep.subr.mxu0 0.0
  %4719 = vmatpush1.msra.mxu0 0.0
  %4720 = vmatprep.subr.mxu0 0.0
  %4721 = vmatpush1.msra.mxu0 %v4683
  %4722 = vmatprep.subr.mxu0 0.0
  %4723 = vmatpush2.msra.mxu0 0.0
  %4724 = vmatprep.subr.mxu0 0.0
  %4725 = vmatpush2.msra.mxu0 0.0
  %4726 = vmatprep.subr.mxu0 0.0
  %4727 = vmatpush2.msra.mxu0 0.0
  %4728 = vmatprep.subr.mxu0 0.0
  %4729 = vmatpush2.msra.mxu0 0.0
  %4730 = vmatprep.subr.mxu0 0.0
  %4731 = vmatpush2.msra.mxu0 0.0
  %4732 = vmatprep.subr.mxu0 0.0
  %4733 = vmatpush2.msra.mxu0 0.0
  %4734 = vmatprep.subr.mxu0 0.0
  %4735 = vmatpush2.msra.mxu0 0.0
  %4736 = vmatprep.subr.mxu0 0.0
  %4737 = vmatpush2.msra.mxu0 0.0
  %4738 = vmatprep.subr.mxu0 0.0
  %4739 = vmatpush2.msra.mxu0 0.0
  %4740 = vmatprep.subr.mxu0 0.0
  %4741 = vmatpush2.msra.mxu0 0.0
  %4742 = vmatprep.subr.mxu0 0.0
  %4743 = vmatpush2.msra.mxu0 0.0
  %4744 = vmatprep.subr.mxu0 0.0
  %4745 = vmatpush2.msra.mxu0 0.0
  %4746 = vmatprep.subr.mxu0 0.0
  %4747 = vmatpush2.msra.mxu0 0.0
  %4748 = vmatprep.subr.mxu0 0.0
  %4749 = vmatpush2.msra.mxu0 0.0
  %4750 = vmatprep.subr.mxu0 0.0
  %4751 = vmatpush2.msra.mxu0 0.0
  %4752 = vmatprep.subr.mxu0 0.0
  %4753 = vmatpush2.msra.mxu0 0.0
  %4754 = vmatprep.mubr.f32.mxu0 0.0
  %4755 = vmatmul.mubr.f32.gmra.mxu0 %v4685
  %v4756 = vpop.f32.mrf.mxu0
  %v4757 = vadd.f32 0.0, %v4756
  %v4758 = vpop.f32.mrf.mxu0
  %4759 = vmatprep.mubr.f32.mxu0 0.0
  %4760 = vmatmul.mubr.f32.gmra.mxu0 %v4688
  %v4761 = vpop.f32.mrf.mxu0
  %v4762 = vadd.f32 0.0, %v4761
  %v4763 = vpop.f32.mrf.mxu0
  %4764 = vdwg.mxu0
  %4765 = vxpose.xlu0.b32.start [1/16] %v4757, 128
  %4766 = vxpose.xlu0.b32.cont [2/16] %v4762, 128
  %4767 = vxpose.xlu0.b32.cont [3/16] 0.0, 128
  %4768 = vxpose.xlu0.b32.cont [4/16] 0.0, 128
  %4769 = vxpose.xlu0.b32.cont [5/16] 0.0, 128
  %4770 = vxpose.xlu0.b32.cont [6/16] 0.0, 128
  %4771 = vxpose.xlu0.b32.cont [7/16] 0.0, 128
  %4772 = vxpose.xlu0.b32.cont [8/16] 0.0, 128
  %4773 = vxpose.xlu0.b32.cont [9/16] 0.0, 128
  %4774 = vxpose.xlu0.b32.cont [10/16] 0.0, 128
  %4775 = vxpose.xlu0.b32.cont [11/16] 0.0, 128
  %4776 = vxpose.xlu0.b32.cont [12/16] 0.0, 128
  %4777 = vxpose.xlu0.b32.cont [13/16] 0.0, 128
  %4778 = vxpose.xlu0.b32.cont [14/16] 0.0, 128
  %4779 = vxpose.xlu0.b32.cont [15/16] 0.0, 128
  %4780 = vxpose.xlu0.b32.end [16/16] 0.0, 128
  %v4781 = vpop.trf.xlu0
  %v4782 = vpop.trf.xlu0
  %v4783 = vpop.trf.xlu0
  %v4784 = vpop.trf.xlu0
  %v4785 = vpop.trf.xlu0
  %v4786 = vpop.trf.xlu0
  %v4787 = vpop.trf.xlu0
  %v4788 = vpop.trf.xlu0
  %v4789 = vpop.trf.xlu0
  %v4790 = vpop.trf.xlu0
  %v4791 = vpop.trf.xlu0
  %v4792 = vpop.trf.xlu0
  %v4793 = vpop.trf.xlu0
  %v4794 = vpop.trf.xlu0
  %v4795 = vpop.trf.xlu0
  %v4796 = vpop.trf.xlu0
  %4798 = vset.pattern.permute.xlu0 2
  %4799 = vperm.xlu0 %4798, %v4757
  %v4800 = vpop.permute.xlu0 %4799
  %4803 = vset.pattern.permute.xlu0 2
  %4804 = vperm.xlu0 %4803, %v4762
  %v4805 = vpop.permute.xlu0 %4804
  %v4807 = vlaneseq
  %v4808 = vshrl.u32 %v4807, 7
  %v4809 = vsub.s32 0, %v4808
  %v4810 = vrot.slane %v4781, %v4809
  %v4811 = vadd.f32 %v4800, %v4810
  %v4812 = vadd.f32 %v4805, %v4810
  %vm4813 = vcmp.gt.f32.partialorder %v4811, 0.0
  %vm4814 = vcmp.gt.f32.partialorder %v4812, 0.0
  %v4815 = vmul.f32 %v4811, 0.2
  %v4816 = vmul.f32 %v4812, 0.2
  %v4817 = vsel %vm4813, %v4811, %v4815
  %v4818 = vsel %vm4814, %v4812, %v4816
  %v4819 = vadd.f32 %v4817, %v49
  %v4820 = vadd.f32 %v4818, %v50
  %v4821 = vsel %vm53, %v4819, -inf
  %4822 = vmax.xlane.f32.xlu0 %v4821
  %v4823 = vpop.xlane.xlu0 %4822
  %v4824 = vsel %vm53, %v4820, -inf
  %4825 = vmax.xlane.f32.xlu0 %v4824
  %v4826 = vpop.xlane.xlu0 %4825
  %v4827 = vsub.f32 %v4819, %v4823
  %v4828 = vsub.f32 %v4820, %v4826
  %v4829 = vmul.f32 %v4827, 1.442695
  %v4830 = vpow.pop %v4829
  %v4831 = vmul.f32 %v4828, 1.442695
  %v4832 = vpow.pop %v4831
  %v4833 = vsel %vm53, %v4830, 0.0
  %4834 = vadd.xlane.f32.xlu0 %v4833
  %v4835 = vpop.xlane.xlu0 %4834
  %v4836 = vsel %vm53, %v4832, 0.0
  %4837 = vadd.xlane.f32.xlu0 %v4836
  %v4838 = vpop.xlane.xlu0 %4837
  %v4839 = vrcp.pop %v4835
  %v4840 = vmul.f32 %v4830, %v4839
  %v4841 = vrcp.pop %v4838
  %v4842 = vmul.f32 %v4832, %v4841
  %v4844 = vsel %vm53, %v4840, 0
  %v4847 = vsel %vm53, %v4842, 0
  %4849 = vmatprep.subr.mxu0 0.0
  %4850 = vmatpush1.msra.mxu0 0.0
  %4851 = vmatprep.subr.mxu0 0.0
  %4852 = vmatpush1.msra.mxu0 0.0
  %4853 = vmatprep.subr.mxu0 0.0
  %4854 = vmatpush1.msra.mxu0 0.0
  %4855 = vmatprep.subr.mxu0 0.0
  %4856 = vmatpush1.msra.mxu0 0.0
  %4857 = vmatprep.subr.mxu0 0.0
  %4858 = vmatpush1.msra.mxu0 0.0
  %4859 = vmatprep.subr.mxu0 0.0
  %4860 = vmatpush1.msra.mxu0 0.0
  %4861 = vmatprep.subr.mxu0 0.0
  %4862 = vmatpush1.msra.mxu0 0.0
  %4863 = vmatprep.subr.mxu0 0.0
  %4864 = vmatpush1.msra.mxu0 0.0
  %4865 = vmatprep.subr.mxu0 0.0
  %4866 = vmatpush1.msra.mxu0 0.0
  %4867 = vmatprep.subr.mxu0 0.0
  %4868 = vmatpush1.msra.mxu0 0.0
  %4869 = vmatprep.subr.mxu0 0.0
  %4870 = vmatpush1.msra.mxu0 0.0
  %4871 = vmatprep.subr.mxu0 0.0
  %4872 = vmatpush1.msra.mxu0 0.0
  %4873 = vmatprep.subr.mxu0 0.0
  %4874 = vmatpush1.msra.mxu0 0.0
  %4875 = vmatprep.subr.mxu0 0.0
  %4876 = vmatpush1.msra.mxu0 0.0
  %4877 = vmatprep.subr.mxu0 0.0
  %4878 = vmatpush1.msra.mxu0 %v4679
  %4879 = vmatprep.subr.mxu0 0.0
  %4880 = vmatpush1.msra.mxu0 %v4674
  %4881 = vmatprep.subr.mxu0 0.0
  %4882 = vmatpush2.msra.mxu0 0.0
  %4883 = vmatprep.subr.mxu0 0.0
  %4884 = vmatpush2.msra.mxu0 0.0
  %4885 = vmatprep.subr.mxu0 0.0
  %4886 = vmatpush2.msra.mxu0 0.0
  %4887 = vmatprep.subr.mxu0 0.0
  %4888 = vmatpush2.msra.mxu0 0.0
  %4889 = vmatprep.subr.mxu0 0.0
  %4890 = vmatpush2.msra.mxu0 0.0
  %4891 = vmatprep.subr.mxu0 0.0
  %4892 = vmatpush2.msra.mxu0 0.0
  %4893 = vmatprep.subr.mxu0 0.0
  %4894 = vmatpush2.msra.mxu0 0.0
  %4895 = vmatprep.subr.mxu0 0.0
  %4896 = vmatpush2.msra.mxu0 0.0
  %4897 = vmatprep.subr.mxu0 0.0
  %4898 = vmatpush2.msra.mxu0 0.0
  %4899 = vmatprep.subr.mxu0 0.0
  %4900 = vmatpush2.msra.mxu0 0.0
  %4901 = vmatprep.subr.mxu0 0.0
  %4902 = vmatpush2.msra.mxu0 0.0
  %4903 = vmatprep.subr.mxu0 0.0
  %4904 = vmatpush2.msra.mxu0 0.0
  %4905 = vmatprep.subr.mxu0 0.0
  %4906 = vmatpush2.msra.mxu0 0.0
  %4907 = vmatprep.subr.mxu0 0.0
  %4908 = vmatpush2.msra.mxu0 0.0
  %4909 = vmatprep.subr.mxu0 0.0
  %4910 = vmatpush2.msra.mxu0 0.0
  %4911 = vmatprep.subr.mxu0 0.0
  %4912 = vmatpush2.msra.mxu0 0.0
  %4913 = vmatprep.mubr.f32.mxu0 0.0
  %4914 = vmatmul.mubr.f32.gmra.mxu0 %v4844
  %v4915 = vpop.f32.mrf.mxu0
  %v4916 = vadd.f32 0.0, %v4915
  %v4917 = vpop.f32.mrf.mxu0
  %4918 = vmatprep.mubr.f32.mxu0 0.0
  %4919 = vmatmul.mubr.f32.gmra.mxu0 %v4847
  %v4920 = vpop.f32.mrf.mxu0
  %v4921 = vadd.f32 0.0, %v4920
  %v4922 = vpop.f32.mrf.mxu0
  %4923 = vdwg.mxu0
  %4924 = vset.pattern.permute.xlu0 3
  %4925 = vperm.xlu0 %4924, %v4757
  %v4926 = vpop.permute.xlu0 %4925
  %4928 = vset.pattern.permute.xlu0 3
  %4929 = vperm.xlu0 %4928, %v4762
  %v4930 = vpop.permute.xlu0 %4929
  %v4932 = vlaneseq
  %v4933 = vshrl.u32 %v4932, 7
  %v4934 = vsub.s32 1, %v4933
  %v4935 = vrot.slane %v4781, %v4934
  %v4936 = vadd.f32 %v4926, %v4935
  %v4937 = vadd.f32 %v4930, %v4935
  %vm4938 = vcmp.gt.f32.partialorder %v4936, 0.0
  %vm4939 = vcmp.gt.f32.partialorder %v4937, 0.0
  %v4940 = vmul.f32 %v4936, 0.2
  %v4941 = vmul.f32 %v4937, 0.2
  %v4942 = vsel %vm4938, %v4936, %v4940
  %v4943 = vsel %vm4939, %v4937, %v4941
  %v4944 = vadd.f32 %v4942, %v49
  %v4945 = vadd.f32 %v4943, %v50
  %v4946 = vsel %vm53, %v4944, -inf
  %4947 = vmax.xlane.f32.xlu0 %v4946
  %v4948 = vpop.xlane.xlu0 %4947
  %v4949 = vsel %vm53, %v4945, -inf
  %4950 = vmax.xlane.f32.xlu0 %v4949
  %v4951 = vpop.xlane.xlu0 %4950
  %v4952 = vsub.f32 %v4944, %v4948
  %v4953 = vsub.f32 %v4945, %v4951
  %v4954 = vmul.f32 %v4952, 1.442695
  %v4955 = vpow.pop %v4954
  %v4956 = vmul.f32 %v4953, 1.442695
  %v4957 = vpow.pop %v4956
  %v4958 = vsel %vm53, %v4955, 0.0
  %4959 = vadd.xlane.f32.xlu0 %v4958
  %v4960 = vpop.xlane.xlu0 %4959
  %v4961 = vsel %vm53, %v4957, 0.0
  %4962 = vadd.xlane.f32.xlu0 %v4961
  %v4963 = vpop.xlane.xlu0 %4962
  %v4964 = vrcp.pop %v4960
  %v4965 = vmul.f32 %v4955, %v4964
  %v4966 = vrcp.pop %v4963
  %v4967 = vmul.f32 %v4957, %v4966
  %4968 = vrot.lane.b32.xlu0 %v4674, 124
  %v4969 = vpop.permute.xlu0 %4968
  %4970 = vrot.lane.b32.xlu0 %v4679, 124
  %v4971 = vpop.permute.xlu0 %4970
  %v4975 = vsel %vm53, %v4965, 0
  %v4978 = vsel %vm53, %v4967, 0
  %4980 = vmatprep.subr.mxu0 0.0
  %4981 = vmatpush1.msra.mxu0 0.0
  %4982 = vmatprep.subr.mxu0 0.0
  %4983 = vmatpush1.msra.mxu0 0.0
  %4984 = vmatprep.subr.mxu0 0.0
  %4985 = vmatpush1.msra.mxu0 0.0
  %4986 = vmatprep.subr.mxu0 0.0
  %4987 = vmatpush1.msra.mxu0 0.0
  %4988 = vmatprep.subr.mxu0 0.0
  %4989 = vmatpush1.msra.mxu0 0.0
  %4990 = vmatprep.subr.mxu0 0.0
  %4991 = vmatpush1.msra.mxu0 0.0
  %4992 = vmatprep.subr.mxu0 0.0
  %4993 = vmatpush1.msra.mxu0 0.0
  %4994 = vmatprep.subr.mxu0 0.0
  %4995 = vmatpush1.msra.mxu0 0.0
  %4996 = vmatprep.subr.mxu0 0.0
  %4997 = vmatpush1.msra.mxu0 0.0
  %4998 = vmatprep.subr.mxu0 0.0
  %4999 = vmatpush1.msra.mxu0 0.0
  %5000 = vmatprep.subr.mxu0 0.0
  %5001 = vmatpush1.msra.mxu0 0.0
  %5002 = vmatprep.subr.mxu0 0.0
  %5003 = vmatpush1.msra.mxu0 0.0
  %5004 = vmatprep.subr.mxu0 0.0
  %5005 = vmatpush1.msra.mxu0 0.0
  %5006 = vmatprep.subr.mxu0 0.0
  %5007 = vmatpush1.msra.mxu0 0.0
  %5008 = vmatprep.subr.mxu0 0.0
  %5009 = vmatpush1.msra.mxu0 %v4971
  %5010 = vmatprep.subr.mxu0 0.0
  %5011 = vmatpush1.msra.mxu0 %v4969
  %5012 = vmatprep.subr.mxu0 0.0
  %5013 = vmatpush2.msra.mxu0 0.0
  %5014 = vmatprep.subr.mxu0 0.0
  %5015 = vmatpush2.msra.mxu0 0.0
  %5016 = vmatprep.subr.mxu0 0.0
  %5017 = vmatpush2.msra.mxu0 0.0
  %5018 = vmatprep.subr.mxu0 0.0
  %5019 = vmatpush2.msra.mxu0 0.0
  %5020 = vmatprep.subr.mxu0 0.0
  %5021 = vmatpush2.msra.mxu0 0.0
  %5022 = vmatprep.subr.mxu0 0.0
  %5023 = vmatpush2.msra.mxu0 0.0
  %5024 = vmatprep.subr.mxu0 0.0
  %5025 = vmatpush2.msra.mxu0 0.0
  %5026 = vmatprep.subr.mxu0 0.0
  %5027 = vmatpush2.msra.mxu0 0.0
  %5028 = vmatprep.subr.mxu0 0.0
  %5029 = vmatpush2.msra.mxu0 0.0
  %5030 = vmatprep.subr.mxu0 0.0
  %5031 = vmatpush2.msra.mxu0 0.0
  %5032 = vmatprep.subr.mxu0 0.0
  %5033 = vmatpush2.msra.mxu0 0.0
  %5034 = vmatprep.subr.mxu0 0.0
  %5035 = vmatpush2.msra.mxu0 0.0
  %5036 = vmatprep.subr.mxu0 0.0
  %5037 = vmatpush2.msra.mxu0 0.0
  %5038 = vmatprep.subr.mxu0 0.0
  %5039 = vmatpush2.msra.mxu0 0.0
  %5040 = vmatprep.subr.mxu0 0.0
  %5041 = vmatpush2.msra.mxu0 0.0
  %5042 = vmatprep.subr.mxu0 0.0
  %5043 = vmatpush2.msra.mxu0 0.0
  %5044 = vmatprep.mubr.f32.mxu0 0.0
  %5045 = vmatmul.mubr.f32.gmra.mxu0 %v4975
  %v5046 = vpop.f32.mrf.mxu0
  %v5047 = vadd.f32 0.0, %v5046
  %v5048 = vpop.f32.mrf.mxu0
  %5049 = vmatprep.mubr.f32.mxu0 0.0
  %5050 = vmatmul.mubr.f32.gmra.mxu0 %v4978
  %v5051 = vpop.f32.mrf.mxu0
  %v5052 = vadd.f32 0.0, %v5051
  %v5053 = vpop.f32.mrf.mxu0
  %5054 = vdwg.mxu0
  %5057 = vrot.lane.b32.xlu0 %v5047, 4
  %v5058 = vpop.permute.xlu0 %5057
  %5059 = vrot.lane.b32.xlu0 %v5052, 4
  %v5060 = vpop.permute.xlu0 %5059
  %v5063 = vsel %vm184, %v4916, %v5058
  %v5064 = vsel %vm184, %v4921, %v5060
  %v5065 = vld [vmem:[%s5 + $0x7] sm:$0x1]
  %v5066 = vlaneseq
  %v5067 = vshrl.u32 %v5066, 7
  %v5068 = vsub.s32 0, %v5067
  %v5069 = vrot.slane %v5065, %v5068
  %v5070 = vadd.f32 %v5063, %v5069
  %v5071 = vadd.f32 %v5064, %v5069
  %vm5072 = vcmp.gt.f32.partialorder %v5070, 0.0
  %vm5073 = vcmp.gt.f32.partialorder %v5071, 0.0
  %v5074 = vmin.f32 %v5070, 0.0
  %v5075 = vmin.f32 %v5071, 0.0
  %v5076 = vmul.f32 %v5074, 1.442695
  %v5077 = vpow.pop %v5076
  %v5078 = vmul.f32 %v5075, 1.442695
  %v5079 = vpow.pop %v5078
  %v5080 = vsub.f32 %v5077, 1.0
  %v5081 = vsub.f32 %v5079, 1.0
  %v5082 = vsel %vm5072, %v5070, %v5080
  %v5083 = vsel %vm5073, %v5071, %v5081
  %s5084 = scalar_lea.vmem %s6, 56
  %v5085 = vld [vmem:[%s5084] sm:$0xff]
  %v5086 = vld [vmem:[%s7 + $0x7] sm:$0x1]
  %v5087 = vlaneseq
  %v5088 = vshrl.u32 %v5087, 7
  %v5089 = vsub.s32 0, %v5088
  %v5090 = vrot.slane %v5086, %v5089
  %v5092 = vsel %vm271, %v5082, 0
  %v5095 = vsel %vm271, %v5083, 0
  %5097 = vmatprep.subr.mxu0 0.0
  %5098 = vmatpush1.msra.mxu0 0.0
  %5099 = vmatprep.subr.mxu0 0.0
  %5100 = vmatpush1.msra.mxu0 0.0
  %5101 = vmatprep.subr.mxu0 0.0
  %5102 = vmatpush1.msra.mxu0 0.0
  %5103 = vmatprep.subr.mxu0 0.0
  %5104 = vmatpush1.msra.mxu0 0.0
  %5105 = vmatprep.subr.mxu0 0.0
  %5106 = vmatpush1.msra.mxu0 0.0
  %5107 = vmatprep.subr.mxu0 0.0
  %5108 = vmatpush1.msra.mxu0 0.0
  %5109 = vmatprep.subr.mxu0 0.0
  %5110 = vmatpush1.msra.mxu0 0.0
  %5111 = vmatprep.subr.mxu0 0.0
  %5112 = vmatpush1.msra.mxu0 0.0
  %5113 = vmatprep.subr.mxu0 0.0
  %5114 = vmatpush1.msra.mxu0 0.0
  %5115 = vmatprep.subr.mxu0 0.0
  %5116 = vmatpush1.msra.mxu0 0.0
  %5117 = vmatprep.subr.mxu0 0.0
  %5118 = vmatpush1.msra.mxu0 0.0
  %5119 = vmatprep.subr.mxu0 0.0
  %5120 = vmatpush1.msra.mxu0 0.0
  %5121 = vmatprep.subr.mxu0 0.0
  %5122 = vmatpush1.msra.mxu0 0.0
  %5123 = vmatprep.subr.mxu0 0.0
  %5124 = vmatpush1.msra.mxu0 0.0
  %5125 = vmatprep.subr.mxu0 0.0
  %5126 = vmatpush1.msra.mxu0 0.0
  %5127 = vmatprep.subr.mxu0 0.0
  %5128 = vmatpush1.msra.mxu0 %v5085
  %5129 = vmatprep.subr.mxu0 0.0
  %5130 = vmatpush2.msra.mxu0 0.0
  %5131 = vmatprep.subr.mxu0 0.0
  %5132 = vmatpush2.msra.mxu0 0.0
  %5133 = vmatprep.subr.mxu0 0.0
  %5134 = vmatpush2.msra.mxu0 0.0
  %5135 = vmatprep.subr.mxu0 0.0
  %5136 = vmatpush2.msra.mxu0 0.0
  %5137 = vmatprep.subr.mxu0 0.0
  %5138 = vmatpush2.msra.mxu0 0.0
  %5139 = vmatprep.subr.mxu0 0.0
  %5140 = vmatpush2.msra.mxu0 0.0
  %5141 = vmatprep.subr.mxu0 0.0
  %5142 = vmatpush2.msra.mxu0 0.0
  %5143 = vmatprep.subr.mxu0 0.0
  %5144 = vmatpush2.msra.mxu0 0.0
  %5145 = vmatprep.subr.mxu0 0.0
  %5146 = vmatpush2.msra.mxu0 0.0
  %5147 = vmatprep.subr.mxu0 0.0
  %5148 = vmatpush2.msra.mxu0 0.0
  %5149 = vmatprep.subr.mxu0 0.0
  %5150 = vmatpush2.msra.mxu0 0.0
  %5151 = vmatprep.subr.mxu0 0.0
  %5152 = vmatpush2.msra.mxu0 0.0
  %5153 = vmatprep.subr.mxu0 0.0
  %5154 = vmatpush2.msra.mxu0 0.0
  %5155 = vmatprep.subr.mxu0 0.0
  %5156 = vmatpush2.msra.mxu0 0.0
  %5157 = vmatprep.subr.mxu0 0.0
  %5158 = vmatpush2.msra.mxu0 0.0
  %5159 = vmatprep.subr.mxu0 0.0
  %5160 = vmatpush2.msra.mxu0 0.0
  %5161 = vmatprep.mubr.f32.mxu0 0.0
  %5162 = vmatmul.mubr.f32.gmra.mxu0 %v5092
  %v5163 = vpop.f32.mrf.mxu0
  %v5164 = vadd.f32 %v5090, %v5163
  %v5165 = vpop.f32.mrf.mxu0
  %5166 = vmatprep.mubr.f32.mxu0 0.0
  %5167 = vmatmul.mubr.f32.gmra.mxu0 %v5095
  %v5168 = vpop.f32.mrf.mxu0
  %v5169 = vadd.f32 %v5090, %v5168
  %v5170 = vpop.f32.mrf.mxu0
  %5171 = vdwg.mxu0
  %s5172 = scalar_lea.vmem %s3, 32
  %v5173 = vld [vmem:[%s5172] sm:$0xf]
  %5174 = vrot.lane.b32.xlu0 %v4564, 124
  %v5175 = vpop.permute.xlu0 %5174
  %5176 = vrot.lane.b32.xlu0 %v4569, 124
  %v5177 = vpop.permute.xlu0 %5176
  %v5178 = vsel %vm184, %v5175, 0
  %v5180 = vsel %vm184, %v5177, 0
  %v5183 = vsel %vm191, %v5173, 0
  %5185 = vmatprep.subr.mxu0 0.0
  %5186 = vmatpush1.msra.mxu0 0.0
  %5187 = vmatprep.subr.mxu0 0.0
  %5188 = vmatpush1.msra.mxu0 0.0
  %5189 = vmatprep.subr.mxu0 0.0
  %5190 = vmatpush1.msra.mxu0 0.0
  %5191 = vmatprep.subr.mxu0 0.0
  %5192 = vmatpush1.msra.mxu0 0.0
  %5193 = vmatprep.subr.mxu0 0.0
  %5194 = vmatpush1.msra.mxu0 0.0
  %5195 = vmatprep.subr.mxu0 0.0
  %5196 = vmatpush1.msra.mxu0 0.0
  %5197 = vmatprep.subr.mxu0 0.0
  %5198 = vmatpush1.msra.mxu0 0.0
  %5199 = vmatprep.subr.mxu0 0.0
  %5200 = vmatpush1.msra.mxu0 0.0
  %5201 = vmatprep.subr.mxu0 0.0
  %5202 = vmatpush1.msra.mxu0 0.0
  %5203 = vmatprep.subr.mxu0 0.0
  %5204 = vmatpush1.msra.mxu0 0.0
  %5205 = vmatprep.subr.mxu0 0.0
  %5206 = vmatpush1.msra.mxu0 0.0
  %5207 = vmatprep.subr.mxu0 0.0
  %5208 = vmatpush1.msra.mxu0 0.0
  %5209 = vmatprep.subr.mxu0 0.0
  %5210 = vmatpush1.msra.mxu0 0.0
  %5211 = vmatprep.subr.mxu0 0.0
  %5212 = vmatpush1.msra.mxu0 0.0
  %5213 = vmatprep.subr.mxu0 0.0
  %5214 = vmatpush1.msra.mxu0 0.0
  %5215 = vmatprep.subr.mxu0 0.0
  %5216 = vmatpush1.msra.mxu0 %v5183
  %5217 = vmatprep.subr.mxu0 0.0
  %5218 = vmatpush2.msra.mxu0 0.0
  %5219 = vmatprep.subr.mxu0 0.0
  %5220 = vmatpush2.msra.mxu0 0.0
  %5221 = vmatprep.subr.mxu0 0.0
  %5222 = vmatpush2.msra.mxu0 0.0
  %5223 = vmatprep.subr.mxu0 0.0
  %5224 = vmatpush2.msra.mxu0 0.0
  %5225 = vmatprep.subr.mxu0 0.0
  %5226 = vmatpush2.msra.mxu0 0.0
  %5227 = vmatprep.subr.mxu0 0.0
  %5228 = vmatpush2.msra.mxu0 0.0
  %5229 = vmatprep.subr.mxu0 0.0
  %5230 = vmatpush2.msra.mxu0 0.0
  %5231 = vmatprep.subr.mxu0 0.0
  %5232 = vmatpush2.msra.mxu0 0.0
  %5233 = vmatprep.subr.mxu0 0.0
  %5234 = vmatpush2.msra.mxu0 0.0
  %5235 = vmatprep.subr.mxu0 0.0
  %5236 = vmatpush2.msra.mxu0 0.0
  %5237 = vmatprep.subr.mxu0 0.0
  %5238 = vmatpush2.msra.mxu0 0.0
  %5239 = vmatprep.subr.mxu0 0.0
  %5240 = vmatpush2.msra.mxu0 0.0
  %5241 = vmatprep.subr.mxu0 0.0
  %5242 = vmatpush2.msra.mxu0 0.0
  %5243 = vmatprep.subr.mxu0 0.0
  %5244 = vmatpush2.msra.mxu0 0.0
  %5245 = vmatprep.subr.mxu0 0.0
  %5246 = vmatpush2.msra.mxu0 0.0
  %5247 = vmatprep.subr.mxu0 0.0
  %5248 = vmatpush2.msra.mxu0 0.0
  %5249 = vmatprep.mubr.f32.mxu0 0.0
  %5250 = vmatmul.mubr.f32.gmra.mxu0 %v5178
  %v5251 = vpop.f32.mrf.mxu0
  %v5252 = vadd.f32 0.0, %v5251
  %v5253 = vpop.f32.mrf.mxu0
  %5254 = vmatprep.mubr.f32.mxu0 0.0
  %5255 = vmatmul.mubr.f32.gmra.mxu0 %v5180
  %v5256 = vpop.f32.mrf.mxu0
  %v5257 = vadd.f32 0.0, %v5256
  %v5258 = vpop.f32.mrf.mxu0
  %5259 = vdwg.mxu0
  %s5260 = scalar_lea.vmem %s4, 64
  %v5261 = vld [vmem:[%s5260] sm:$0xff]
  %v5263 = vsel %vm271, %v5252, 0
  %v5266 = vsel %vm271, %v5257, 0
  %5268 = vmatprep.subr.mxu0 0.0
  %5269 = vmatpush1.msra.mxu0 0.0
  %5270 = vmatprep.subr.mxu0 0.0
  %5271 = vmatpush1.msra.mxu0 0.0
  %5272 = vmatprep.subr.mxu0 0.0
  %5273 = vmatpush1.msra.mxu0 0.0
  %5274 = vmatprep.subr.mxu0 0.0
  %5275 = vmatpush1.msra.mxu0 0.0
  %5276 = vmatprep.subr.mxu0 0.0
  %5277 = vmatpush1.msra.mxu0 0.0
  %5278 = vmatprep.subr.mxu0 0.0
  %5279 = vmatpush1.msra.mxu0 0.0
  %5280 = vmatprep.subr.mxu0 0.0
  %5281 = vmatpush1.msra.mxu0 0.0
  %5282 = vmatprep.subr.mxu0 0.0
  %5283 = vmatpush1.msra.mxu0 0.0
  %5284 = vmatprep.subr.mxu0 0.0
  %5285 = vmatpush1.msra.mxu0 0.0
  %5286 = vmatprep.subr.mxu0 0.0
  %5287 = vmatpush1.msra.mxu0 0.0
  %5288 = vmatprep.subr.mxu0 0.0
  %5289 = vmatpush1.msra.mxu0 0.0
  %5290 = vmatprep.subr.mxu0 0.0
  %5291 = vmatpush1.msra.mxu0 0.0
  %5292 = vmatprep.subr.mxu0 0.0
  %5293 = vmatpush1.msra.mxu0 0.0
  %5294 = vmatprep.subr.mxu0 0.0
  %5295 = vmatpush1.msra.mxu0 0.0
  %5296 = vmatprep.subr.mxu0 0.0
  %5297 = vmatpush1.msra.mxu0 0.0
  %5298 = vmatprep.subr.mxu0 0.0
  %5299 = vmatpush1.msra.mxu0 %v5261
  %5300 = vmatprep.subr.mxu0 0.0
  %5301 = vmatpush2.msra.mxu0 0.0
  %5302 = vmatprep.subr.mxu0 0.0
  %5303 = vmatpush2.msra.mxu0 0.0
  %5304 = vmatprep.subr.mxu0 0.0
  %5305 = vmatpush2.msra.mxu0 0.0
  %5306 = vmatprep.subr.mxu0 0.0
  %5307 = vmatpush2.msra.mxu0 0.0
  %5308 = vmatprep.subr.mxu0 0.0
  %5309 = vmatpush2.msra.mxu0 0.0
  %5310 = vmatprep.subr.mxu0 0.0
  %5311 = vmatpush2.msra.mxu0 0.0
  %5312 = vmatprep.subr.mxu0 0.0
  %5313 = vmatpush2.msra.mxu0 0.0
  %5314 = vmatprep.subr.mxu0 0.0
  %5315 = vmatpush2.msra.mxu0 0.0
  %5316 = vmatprep.subr.mxu0 0.0
  %5317 = vmatpush2.msra.mxu0 0.0
  %5318 = vmatprep.subr.mxu0 0.0
  %5319 = vmatpush2.msra.mxu0 0.0
  %5320 = vmatprep.subr.mxu0 0.0
  %5321 = vmatpush2.msra.mxu0 0.0
  %5322 = vmatprep.subr.mxu0 0.0
  %5323 = vmatpush2.msra.mxu0 0.0
  %5324 = vmatprep.subr.mxu0 0.0
  %5325 = vmatpush2.msra.mxu0 0.0
  %5326 = vmatprep.subr.mxu0 0.0
  %5327 = vmatpush2.msra.mxu0 0.0
  %5328 = vmatprep.subr.mxu0 0.0
  %5329 = vmatpush2.msra.mxu0 0.0
  %5330 = vmatprep.subr.mxu0 0.0
  %5331 = vmatpush2.msra.mxu0 0.0
  %5332 = vmatprep.mubr.f32.mxu0 0.0
  %5333 = vmatmul.mubr.f32.gmra.mxu0 %v5263
  %v5334 = vpop.f32.mrf.mxu0
  %v5335 = vadd.f32 0.0, %v5334
  %v5336 = vpop.f32.mrf.mxu0
  %5337 = vmatprep.mubr.f32.mxu0 0.0
  %5338 = vmatmul.mubr.f32.gmra.mxu0 %v5266
  %v5339 = vpop.f32.mrf.mxu0
  %v5340 = vadd.f32 0.0, %v5339
  %v5341 = vpop.f32.mrf.mxu0
  %5342 = vdwg.mxu0
  %5343 = vxpose.xlu0.b32.start [1/16] %v5335, 128
  %5344 = vxpose.xlu0.b32.cont [2/16] %v5340, 128
  %5345 = vxpose.xlu0.b32.cont [3/16] 0.0, 128
  %5346 = vxpose.xlu0.b32.cont [4/16] 0.0, 128
  %5347 = vxpose.xlu0.b32.cont [5/16] 0.0, 128
  %5348 = vxpose.xlu0.b32.cont [6/16] 0.0, 128
  %5349 = vxpose.xlu0.b32.cont [7/16] 0.0, 128
  %5350 = vxpose.xlu0.b32.cont [8/16] 0.0, 128
  %5351 = vxpose.xlu0.b32.cont [9/16] 0.0, 128
  %5352 = vxpose.xlu0.b32.cont [10/16] 0.0, 128
  %5353 = vxpose.xlu0.b32.cont [11/16] 0.0, 128
  %5354 = vxpose.xlu0.b32.cont [12/16] 0.0, 128
  %5355 = vxpose.xlu0.b32.cont [13/16] 0.0, 128
  %5356 = vxpose.xlu0.b32.cont [14/16] 0.0, 128
  %5357 = vxpose.xlu0.b32.cont [15/16] 0.0, 128
  %5358 = vxpose.xlu0.b32.end [16/16] 0.0, 128
  %v5359 = vpop.trf.xlu0
  %v5360 = vpop.trf.xlu0
  %v5361 = vpop.trf.xlu0
  %v5362 = vpop.trf.xlu0
  %v5363 = vpop.trf.xlu0
  %v5364 = vpop.trf.xlu0
  %v5365 = vpop.trf.xlu0
  %v5366 = vpop.trf.xlu0
  %v5367 = vpop.trf.xlu0
  %v5368 = vpop.trf.xlu0
  %v5369 = vpop.trf.xlu0
  %v5370 = vpop.trf.xlu0
  %v5371 = vpop.trf.xlu0
  %v5372 = vpop.trf.xlu0
  %v5373 = vpop.trf.xlu0
  %v5374 = vpop.trf.xlu0
  %5376 = vset.pattern.permute.xlu0 2
  %5377 = vperm.xlu0 %5376, %v5335
  %v5378 = vpop.permute.xlu0 %5377
  %5381 = vset.pattern.permute.xlu0 2
  %5382 = vperm.xlu0 %5381, %v5340
  %v5383 = vpop.permute.xlu0 %5382
  %v5385 = vlaneseq
  %v5386 = vshrl.u32 %v5385, 7
  %v5387 = vsub.s32 0, %v5386
  %v5388 = vrot.slane %v5359, %v5387
  %v5389 = vadd.f32 %v5378, %v5388
  %v5390 = vadd.f32 %v5383, %v5388
  %vm5391 = vcmp.gt.f32.partialorder %v5389, 0.0
  %vm5392 = vcmp.gt.f32.partialorder %v5390, 0.0
  %v5393 = vmul.f32 %v5389, 0.2
  %v5394 = vmul.f32 %v5390, 0.2
  %v5395 = vsel %vm5391, %v5389, %v5393
  %v5396 = vsel %vm5392, %v5390, %v5394
  %v5397 = vadd.f32 %v5395, %v49
  %v5398 = vadd.f32 %v5396, %v50
  %v5399 = vsel %vm53, %v5397, -inf
  %5400 = vmax.xlane.f32.xlu0 %v5399
  %v5401 = vpop.xlane.xlu0 %5400
  %v5402 = vsel %vm53, %v5398, -inf
  %5403 = vmax.xlane.f32.xlu0 %v5402
  %v5404 = vpop.xlane.xlu0 %5403
  %v5405 = vsub.f32 %v5397, %v5401
  %v5406 = vsub.f32 %v5398, %v5404
  %v5407 = vmul.f32 %v5405, 1.442695
  %v5408 = vpow.pop %v5407
  %v5409 = vmul.f32 %v5406, 1.442695
  %v5410 = vpow.pop %v5409
  %v5411 = vsel %vm53, %v5408, 0.0
  %5412 = vadd.xlane.f32.xlu0 %v5411
  %v5413 = vpop.xlane.xlu0 %5412
  %v5414 = vsel %vm53, %v5410, 0.0
  %5415 = vadd.xlane.f32.xlu0 %v5414
  %v5416 = vpop.xlane.xlu0 %5415
  %v5417 = vrcp.pop %v5413
  %v5418 = vmul.f32 %v5408, %v5417
  %v5419 = vrcp.pop %v5416
  %v5420 = vmul.f32 %v5410, %v5419
  %v5422 = vsel %vm53, %v5418, 0
  %v5425 = vsel %vm53, %v5420, 0
  %5427 = vmatprep.subr.mxu0 0.0
  %5428 = vmatpush1.msra.mxu0 0.0
  %5429 = vmatprep.subr.mxu0 0.0
  %5430 = vmatpush1.msra.mxu0 0.0
  %5431 = vmatprep.subr.mxu0 0.0
  %5432 = vmatpush1.msra.mxu0 0.0
  %5433 = vmatprep.subr.mxu0 0.0
  %5434 = vmatpush1.msra.mxu0 0.0
  %5435 = vmatprep.subr.mxu0 0.0
  %5436 = vmatpush1.msra.mxu0 0.0
  %5437 = vmatprep.subr.mxu0 0.0
  %5438 = vmatpush1.msra.mxu0 0.0
  %5439 = vmatprep.subr.mxu0 0.0
  %5440 = vmatpush1.msra.mxu0 0.0
  %5441 = vmatprep.subr.mxu0 0.0
  %5442 = vmatpush1.msra.mxu0 0.0
  %5443 = vmatprep.subr.mxu0 0.0
  %5444 = vmatpush1.msra.mxu0 0.0
  %5445 = vmatprep.subr.mxu0 0.0
  %5446 = vmatpush1.msra.mxu0 0.0
  %5447 = vmatprep.subr.mxu0 0.0
  %5448 = vmatpush1.msra.mxu0 0.0
  %5449 = vmatprep.subr.mxu0 0.0
  %5450 = vmatpush1.msra.mxu0 0.0
  %5451 = vmatprep.subr.mxu0 0.0
  %5452 = vmatpush1.msra.mxu0 0.0
  %5453 = vmatprep.subr.mxu0 0.0
  %5454 = vmatpush1.msra.mxu0 0.0
  %5455 = vmatprep.subr.mxu0 0.0
  %5456 = vmatpush1.msra.mxu0 %v5257
  %5457 = vmatprep.subr.mxu0 0.0
  %5458 = vmatpush1.msra.mxu0 %v5252
  %5459 = vmatprep.subr.mxu0 0.0
  %5460 = vmatpush2.msra.mxu0 0.0
  %5461 = vmatprep.subr.mxu0 0.0
  %5462 = vmatpush2.msra.mxu0 0.0
  %5463 = vmatprep.subr.mxu0 0.0
  %5464 = vmatpush2.msra.mxu0 0.0
  %5465 = vmatprep.subr.mxu0 0.0
  %5466 = vmatpush2.msra.mxu0 0.0
  %5467 = vmatprep.subr.mxu0 0.0
  %5468 = vmatpush2.msra.mxu0 0.0
  %5469 = vmatprep.subr.mxu0 0.0
  %5470 = vmatpush2.msra.mxu0 0.0
  %5471 = vmatprep.subr.mxu0 0.0
  %5472 = vmatpush2.msra.mxu0 0.0
  %5473 = vmatprep.subr.mxu0 0.0
  %5474 = vmatpush2.msra.mxu0 0.0
  %5475 = vmatprep.subr.mxu0 0.0
  %5476 = vmatpush2.msra.mxu0 0.0
  %5477 = vmatprep.subr.mxu0 0.0
  %5478 = vmatpush2.msra.mxu0 0.0
  %5479 = vmatprep.subr.mxu0 0.0
  %5480 = vmatpush2.msra.mxu0 0.0
  %5481 = vmatprep.subr.mxu0 0.0
  %5482 = vmatpush2.msra.mxu0 0.0
  %5483 = vmatprep.subr.mxu0 0.0
  %5484 = vmatpush2.msra.mxu0 0.0
  %5485 = vmatprep.subr.mxu0 0.0
  %5486 = vmatpush2.msra.mxu0 0.0
  %5487 = vmatprep.subr.mxu0 0.0
  %5488 = vmatpush2.msra.mxu0 0.0
  %5489 = vmatprep.subr.mxu0 0.0
  %5490 = vmatpush2.msra.mxu0 0.0
  %5491 = vmatprep.mubr.f32.mxu0 0.0
  %5492 = vmatmul.mubr.f32.gmra.mxu0 %v5422
  %v5493 = vpop.f32.mrf.mxu0
  %v5494 = vadd.f32 0.0, %v5493
  %v5495 = vpop.f32.mrf.mxu0
  %5496 = vmatprep.mubr.f32.mxu0 0.0
  %5497 = vmatmul.mubr.f32.gmra.mxu0 %v5425
  %v5498 = vpop.f32.mrf.mxu0
  %v5499 = vadd.f32 0.0, %v5498
  %v5500 = vpop.f32.mrf.mxu0
  %5501 = vdwg.mxu0
  %5502 = vset.pattern.permute.xlu0 3
  %5503 = vperm.xlu0 %5502, %v5335
  %v5504 = vpop.permute.xlu0 %5503
  %5506 = vset.pattern.permute.xlu0 3
  %5507 = vperm.xlu0 %5506, %v5340
  %v5508 = vpop.permute.xlu0 %5507
  %v5510 = vlaneseq
  %v5511 = vshrl.u32 %v5510, 7
  %v5512 = vsub.s32 1, %v5511
  %v5513 = vrot.slane %v5359, %v5512
  %v5514 = vadd.f32 %v5504, %v5513
  %v5515 = vadd.f32 %v5508, %v5513
  %vm5516 = vcmp.gt.f32.partialorder %v5514, 0.0
  %vm5517 = vcmp.gt.f32.partialorder %v5515, 0.0
  %v5518 = vmul.f32 %v5514, 0.2
  %v5519 = vmul.f32 %v5515, 0.2
  %v5520 = vsel %vm5516, %v5514, %v5518
  %v5521 = vsel %vm5517, %v5515, %v5519
  %v5522 = vadd.f32 %v5520, %v49
  %v5523 = vadd.f32 %v5521, %v50
  %v5524 = vsel %vm53, %v5522, -inf
  %5525 = vmax.xlane.f32.xlu0 %v5524
  %v5526 = vpop.xlane.xlu0 %5525
  %v5527 = vsel %vm53, %v5523, -inf
  %5528 = vmax.xlane.f32.xlu0 %v5527
  %v5529 = vpop.xlane.xlu0 %5528
  %v5530 = vsub.f32 %v5522, %v5526
  %v5531 = vsub.f32 %v5523, %v5529
  %v5532 = vmul.f32 %v5530, 1.442695
  %v5533 = vpow.pop %v5532
  %v5534 = vmul.f32 %v5531, 1.442695
  %v5535 = vpow.pop %v5534
  %v5536 = vsel %vm53, %v5533, 0.0
  %5537 = vadd.xlane.f32.xlu0 %v5536
  %v5538 = vpop.xlane.xlu0 %5537
  %v5539 = vsel %vm53, %v5535, 0.0
  %5540 = vadd.xlane.f32.xlu0 %v5539
  %v5541 = vpop.xlane.xlu0 %5540
  %v5542 = vrcp.pop %v5538
  %v5543 = vmul.f32 %v5533, %v5542
  %v5544 = vrcp.pop %v5541
  %v5545 = vmul.f32 %v5535, %v5544
  %5546 = vrot.lane.b32.xlu0 %v5252, 124
  %v5547 = vpop.permute.xlu0 %5546
  %5548 = vrot.lane.b32.xlu0 %v5257, 124
  %v5549 = vpop.permute.xlu0 %5548
  %v5553 = vsel %vm53, %v5543, 0
  %v5556 = vsel %vm53, %v5545, 0
  %5558 = vmatprep.subr.mxu0 0.0
  %5559 = vmatpush1.msra.mxu0 0.0
  %5560 = vmatprep.subr.mxu0 0.0
  %5561 = vmatpush1.msra.mxu0 0.0
  %5562 = vmatprep.subr.mxu0 0.0
  %5563 = vmatpush1.msra.mxu0 0.0
  %5564 = vmatprep.subr.mxu0 0.0
  %5565 = vmatpush1.msra.mxu0 0.0
  %5566 = vmatprep.subr.mxu0 0.0
  %5567 = vmatpush1.msra.mxu0 0.0
  %5568 = vmatprep.subr.mxu0 0.0
  %5569 = vmatpush1.msra.mxu0 0.0
  %5570 = vmatprep.subr.mxu0 0.0
  %5571 = vmatpush1.msra.mxu0 0.0
  %5572 = vmatprep.subr.mxu0 0.0
  %5573 = vmatpush1.msra.mxu0 0.0
  %5574 = vmatprep.subr.mxu0 0.0
  %5575 = vmatpush1.msra.mxu0 0.0
  %5576 = vmatprep.subr.mxu0 0.0
  %5577 = vmatpush1.msra.mxu0 0.0
  %5578 = vmatprep.subr.mxu0 0.0
  %5579 = vmatpush1.msra.mxu0 0.0
  %5580 = vmatprep.subr.mxu0 0.0
  %5581 = vmatpush1.msra.mxu0 0.0
  %5582 = vmatprep.subr.mxu0 0.0
  %5583 = vmatpush1.msra.mxu0 0.0
  %5584 = vmatprep.subr.mxu0 0.0
  %5585 = vmatpush1.msra.mxu0 0.0
  %5586 = vmatprep.subr.mxu0 0.0
  %5587 = vmatpush1.msra.mxu0 %v5549
  %5588 = vmatprep.subr.mxu0 0.0
  %5589 = vmatpush1.msra.mxu0 %v5547
  %5590 = vmatprep.subr.mxu0 0.0
  %5591 = vmatpush2.msra.mxu0 0.0
  %5592 = vmatprep.subr.mxu0 0.0
  %5593 = vmatpush2.msra.mxu0 0.0
  %5594 = vmatprep.subr.mxu0 0.0
  %5595 = vmatpush2.msra.mxu0 0.0
  %5596 = vmatprep.subr.mxu0 0.0
  %5597 = vmatpush2.msra.mxu0 0.0
  %5598 = vmatprep.subr.mxu0 0.0
  %5599 = vmatpush2.msra.mxu0 0.0
  %5600 = vmatprep.subr.mxu0 0.0
  %5601 = vmatpush2.msra.mxu0 0.0
  %5602 = vmatprep.subr.mxu0 0.0
  %5603 = vmatpush2.msra.mxu0 0.0
  %5604 = vmatprep.subr.mxu0 0.0
  %5605 = vmatpush2.msra.mxu0 0.0
  %5606 = vmatprep.subr.mxu0 0.0
  %5607 = vmatpush2.msra.mxu0 0.0
  %5608 = vmatprep.subr.mxu0 0.0
  %5609 = vmatpush2.msra.mxu0 0.0
  %5610 = vmatprep.subr.mxu0 0.0
  %5611 = vmatpush2.msra.mxu0 0.0
  %5612 = vmatprep.subr.mxu0 0.0
  %5613 = vmatpush2.msra.mxu0 0.0
  %5614 = vmatprep.subr.mxu0 0.0
  %5615 = vmatpush2.msra.mxu0 0.0
  %5616 = vmatprep.subr.mxu0 0.0
  %5617 = vmatpush2.msra.mxu0 0.0
  %5618 = vmatprep.subr.mxu0 0.0
  %5619 = vmatpush2.msra.mxu0 0.0
  %5620 = vmatprep.subr.mxu0 0.0
  %5621 = vmatpush2.msra.mxu0 0.0
  %5622 = vmatprep.mubr.f32.mxu0 0.0
  %5623 = vmatmul.mubr.f32.gmra.mxu0 %v5553
  %v5624 = vpop.f32.mrf.mxu0
  %v5625 = vadd.f32 0.0, %v5624
  %v5626 = vpop.f32.mrf.mxu0
  %5627 = vmatprep.mubr.f32.mxu0 0.0
  %5628 = vmatmul.mubr.f32.gmra.mxu0 %v5556
  %v5629 = vpop.f32.mrf.mxu0
  %v5630 = vadd.f32 0.0, %v5629
  %v5631 = vpop.f32.mrf.mxu0
  %5632 = vdwg.mxu0
  %5635 = vrot.lane.b32.xlu0 %v5625, 4
  %v5636 = vpop.permute.xlu0 %5635
  %5637 = vrot.lane.b32.xlu0 %v5630, 4
  %v5638 = vpop.permute.xlu0 %5637
  %v5641 = vsel %vm184, %v5494, %v5636
  %v5642 = vsel %vm184, %v5499, %v5638
  %v5643 = vld [vmem:[%s5 + $0x8] sm:$0x1]
  %v5644 = vlaneseq
  %v5645 = vshrl.u32 %v5644, 7
  %v5646 = vsub.s32 0, %v5645
  %v5647 = vrot.slane %v5643, %v5646
  %v5648 = vadd.f32 %v5641, %v5647
  %v5649 = vadd.f32 %v5642, %v5647
  %vm5650 = vcmp.gt.f32.partialorder %v5648, 0.0
  %vm5651 = vcmp.gt.f32.partialorder %v5649, 0.0
  %v5652 = vmin.f32 %v5648, 0.0
  %v5653 = vmin.f32 %v5649, 0.0
  %v5654 = vmul.f32 %v5652, 1.442695
  %v5655 = vpow.pop %v5654
  %v5656 = vmul.f32 %v5653, 1.442695
  %v5657 = vpow.pop %v5656
  %v5658 = vsub.f32 %v5655, 1.0
  %v5659 = vsub.f32 %v5657, 1.0
  %v5660 = vsel %vm5650, %v5648, %v5658
  %v5661 = vsel %vm5651, %v5649, %v5659
  %s5662 = scalar_lea.vmem %s6, 64
  %v5663 = vld [vmem:[%s5662] sm:$0xff]
  %v5664 = vld [vmem:[%s7 + $0x8] sm:$0x1]
  %v5665 = vlaneseq
  %v5666 = vshrl.u32 %v5665, 7
  %v5667 = vsub.s32 0, %v5666
  %v5668 = vrot.slane %v5664, %v5667
  %v5670 = vsel %vm271, %v5660, 0
  %v5673 = vsel %vm271, %v5661, 0
  %5675 = vmatprep.subr.mxu0 0.0
  %5676 = vmatpush1.msra.mxu0 0.0
  %5677 = vmatprep.subr.mxu0 0.0
  %5678 = vmatpush1.msra.mxu0 0.0
  %5679 = vmatprep.subr.mxu0 0.0
  %5680 = vmatpush1.msra.mxu0 0.0
  %5681 = vmatprep.subr.mxu0 0.0
  %5682 = vmatpush1.msra.mxu0 0.0
  %5683 = vmatprep.subr.mxu0 0.0
  %5684 = vmatpush1.msra.mxu0 0.0
  %5685 = vmatprep.subr.mxu0 0.0
  %5686 = vmatpush1.msra.mxu0 0.0
  %5687 = vmatprep.subr.mxu0 0.0
  %5688 = vmatpush1.msra.mxu0 0.0
  %5689 = vmatprep.subr.mxu0 0.0
  %5690 = vmatpush1.msra.mxu0 0.0
  %5691 = vmatprep.subr.mxu0 0.0
  %5692 = vmatpush1.msra.mxu0 0.0
  %5693 = vmatprep.subr.mxu0 0.0
  %5694 = vmatpush1.msra.mxu0 0.0
  %5695 = vmatprep.subr.mxu0 0.0
  %5696 = vmatpush1.msra.mxu0 0.0
  %5697 = vmatprep.subr.mxu0 0.0
  %5698 = vmatpush1.msra.mxu0 0.0
  %5699 = vmatprep.subr.mxu0 0.0
  %5700 = vmatpush1.msra.mxu0 0.0
  %5701 = vmatprep.subr.mxu0 0.0
  %5702 = vmatpush1.msra.mxu0 0.0
  %5703 = vmatprep.subr.mxu0 0.0
  %5704 = vmatpush1.msra.mxu0 0.0
  %5705 = vmatprep.subr.mxu0 0.0
  %5706 = vmatpush1.msra.mxu0 %v5663
  %5707 = vmatprep.subr.mxu0 0.0
  %5708 = vmatpush2.msra.mxu0 0.0
  %5709 = vmatprep.subr.mxu0 0.0
  %5710 = vmatpush2.msra.mxu0 0.0
  %5711 = vmatprep.subr.mxu0 0.0
  %5712 = vmatpush2.msra.mxu0 0.0
  %5713 = vmatprep.subr.mxu0 0.0
  %5714 = vmatpush2.msra.mxu0 0.0
  %5715 = vmatprep.subr.mxu0 0.0
  %5716 = vmatpush2.msra.mxu0 0.0
  %5717 = vmatprep.subr.mxu0 0.0
  %5718 = vmatpush2.msra.mxu0 0.0
  %5719 = vmatprep.subr.mxu0 0.0
  %5720 = vmatpush2.msra.mxu0 0.0
  %5721 = vmatprep.subr.mxu0 0.0
  %5722 = vmatpush2.msra.mxu0 0.0
  %5723 = vmatprep.subr.mxu0 0.0
  %5724 = vmatpush2.msra.mxu0 0.0
  %5725 = vmatprep.subr.mxu0 0.0
  %5726 = vmatpush2.msra.mxu0 0.0
  %5727 = vmatprep.subr.mxu0 0.0
  %5728 = vmatpush2.msra.mxu0 0.0
  %5729 = vmatprep.subr.mxu0 0.0
  %5730 = vmatpush2.msra.mxu0 0.0
  %5731 = vmatprep.subr.mxu0 0.0
  %5732 = vmatpush2.msra.mxu0 0.0
  %5733 = vmatprep.subr.mxu0 0.0
  %5734 = vmatpush2.msra.mxu0 0.0
  %5735 = vmatprep.subr.mxu0 0.0
  %5736 = vmatpush2.msra.mxu0 0.0
  %5737 = vmatprep.subr.mxu0 0.0
  %5738 = vmatpush2.msra.mxu0 0.0
  %5739 = vmatprep.mubr.f32.mxu0 0.0
  %5740 = vmatmul.mubr.f32.gmra.mxu0 %v5670
  %v5741 = vpop.f32.mrf.mxu0
  %v5742 = vadd.f32 %v5668, %v5741
  %v5743 = vpop.f32.mrf.mxu0
  %5744 = vmatprep.mubr.f32.mxu0 0.0
  %5745 = vmatmul.mubr.f32.gmra.mxu0 %v5673
  %v5746 = vpop.f32.mrf.mxu0
  %v5747 = vadd.f32 %v5668, %v5746
  %v5748 = vpop.f32.mrf.mxu0
  %5749 = vdwg.mxu0
  %s5750 = scalar_lea.vmem %s3, 36
  %v5751 = vld [vmem:[%s5750] sm:$0xf]
  %5752 = vrot.lane.b32.xlu0 %v4564, 120
  %v5753 = vpop.permute.xlu0 %5752
  %5754 = vrot.lane.b32.xlu0 %v4569, 120
  %v5755 = vpop.permute.xlu0 %5754
  %v5756 = vsel %vm184, %v5753, 0
  %v5758 = vsel %vm184, %v5755, 0
  %v5761 = vsel %vm191, %v5751, 0
  %5763 = vmatprep.subr.mxu0 0.0
  %5764 = vmatpush1.msra.mxu0 0.0
  %5765 = vmatprep.subr.mxu0 0.0
  %5766 = vmatpush1.msra.mxu0 0.0
  %5767 = vmatprep.subr.mxu0 0.0
  %5768 = vmatpush1.msra.mxu0 0.0
  %5769 = vmatprep.subr.mxu0 0.0
  %5770 = vmatpush1.msra.mxu0 0.0
  %5771 = vmatprep.subr.mxu0 0.0
  %5772 = vmatpush1.msra.mxu0 0.0
  %5773 = vmatprep.subr.mxu0 0.0
  %5774 = vmatpush1.msra.mxu0 0.0
  %5775 = vmatprep.subr.mxu0 0.0
  %5776 = vmatpush1.msra.mxu0 0.0
  %5777 = vmatprep.subr.mxu0 0.0
  %5778 = vmatpush1.msra.mxu0 0.0
  %5779 = vmatprep.subr.mxu0 0.0
  %5780 = vmatpush1.msra.mxu0 0.0
  %5781 = vmatprep.subr.mxu0 0.0
  %5782 = vmatpush1.msra.mxu0 0.0
  %5783 = vmatprep.subr.mxu0 0.0
  %5784 = vmatpush1.msra.mxu0 0.0
  %5785 = vmatprep.subr.mxu0 0.0
  %5786 = vmatpush1.msra.mxu0 0.0
  %5787 = vmatprep.subr.mxu0 0.0
  %5788 = vmatpush1.msra.mxu0 0.0
  %5789 = vmatprep.subr.mxu0 0.0
  %5790 = vmatpush1.msra.mxu0 0.0
  %5791 = vmatprep.subr.mxu0 0.0
  %5792 = vmatpush1.msra.mxu0 0.0
  %5793 = vmatprep.subr.mxu0 0.0
  %5794 = vmatpush1.msra.mxu0 %v5761
  %5795 = vmatprep.subr.mxu0 0.0
  %5796 = vmatpush2.msra.mxu0 0.0
  %5797 = vmatprep.subr.mxu0 0.0
  %5798 = vmatpush2.msra.mxu0 0.0
  %5799 = vmatprep.subr.mxu0 0.0
  %5800 = vmatpush2.msra.mxu0 0.0
  %5801 = vmatprep.subr.mxu0 0.0
  %5802 = vmatpush2.msra.mxu0 0.0
  %5803 = vmatprep.subr.mxu0 0.0
  %5804 = vmatpush2.msra.mxu0 0.0
  %5805 = vmatprep.subr.mxu0 0.0
  %5806 = vmatpush2.msra.mxu0 0.0
  %5807 = vmatprep.subr.mxu0 0.0
  %5808 = vmatpush2.msra.mxu0 0.0
  %5809 = vmatprep.subr.mxu0 0.0
  %5810 = vmatpush2.msra.mxu0 0.0
  %5811 = vmatprep.subr.mxu0 0.0
  %5812 = vmatpush2.msra.mxu0 0.0
  %5813 = vmatprep.subr.mxu0 0.0
  %5814 = vmatpush2.msra.mxu0 0.0
  %5815 = vmatprep.subr.mxu0 0.0
  %5816 = vmatpush2.msra.mxu0 0.0
  %5817 = vmatprep.subr.mxu0 0.0
  %5818 = vmatpush2.msra.mxu0 0.0
  %5819 = vmatprep.subr.mxu0 0.0
  %5820 = vmatpush2.msra.mxu0 0.0
  %5821 = vmatprep.subr.mxu0 0.0
  %5822 = vmatpush2.msra.mxu0 0.0
  %5823 = vmatprep.subr.mxu0 0.0
  %5824 = vmatpush2.msra.mxu0 0.0
  %5825 = vmatprep.subr.mxu0 0.0
  %5826 = vmatpush2.msra.mxu0 0.0
  %5827 = vmatprep.mubr.f32.mxu0 0.0
  %5828 = vmatmul.mubr.f32.gmra.mxu0 %v5756
  %v5829 = vpop.f32.mrf.mxu0
  %v5830 = vadd.f32 0.0, %v5829
  %v5831 = vpop.f32.mrf.mxu0
  %5832 = vmatprep.mubr.f32.mxu0 0.0
  %5833 = vmatmul.mubr.f32.gmra.mxu0 %v5758
  %v5834 = vpop.f32.mrf.mxu0
  %v5835 = vadd.f32 0.0, %v5834
  %v5836 = vpop.f32.mrf.mxu0
  %5837 = vdwg.mxu0
  %s5838 = scalar_lea.vmem %s4, 72
  %v5839 = vld [vmem:[%s5838] sm:$0xff]
  %v5841 = vsel %vm271, %v5830, 0
  %v5844 = vsel %vm271, %v5835, 0
  %5846 = vmatprep.subr.mxu0 0.0
  %5847 = vmatpush1.msra.mxu0 0.0
  %5848 = vmatprep.subr.mxu0 0.0
  %5849 = vmatpush1.msra.mxu0 0.0
  %5850 = vmatprep.subr.mxu0 0.0
  %5851 = vmatpush1.msra.mxu0 0.0
  %5852 = vmatprep.subr.mxu0 0.0
  %5853 = vmatpush1.msra.mxu0 0.0
  %5854 = vmatprep.subr.mxu0 0.0
  %5855 = vmatpush1.msra.mxu0 0.0
  %5856 = vmatprep.subr.mxu0 0.0
  %5857 = vmatpush1.msra.mxu0 0.0
  %5858 = vmatprep.subr.mxu0 0.0
  %5859 = vmatpush1.msra.mxu0 0.0
  %5860 = vmatprep.subr.mxu0 0.0
  %5861 = vmatpush1.msra.mxu0 0.0
  %5862 = vmatprep.subr.mxu0 0.0
  %5863 = vmatpush1.msra.mxu0 0.0
  %5864 = vmatprep.subr.mxu0 0.0
  %5865 = vmatpush1.msra.mxu0 0.0
  %5866 = vmatprep.subr.mxu0 0.0
  %5867 = vmatpush1.msra.mxu0 0.0
  %5868 = vmatprep.subr.mxu0 0.0
  %5869 = vmatpush1.msra.mxu0 0.0
  %5870 = vmatprep.subr.mxu0 0.0
  %5871 = vmatpush1.msra.mxu0 0.0
  %5872 = vmatprep.subr.mxu0 0.0
  %5873 = vmatpush1.msra.mxu0 0.0
  %5874 = vmatprep.subr.mxu0 0.0
  %5875 = vmatpush1.msra.mxu0 0.0
  %5876 = vmatprep.subr.mxu0 0.0
  %5877 = vmatpush1.msra.mxu0 %v5839
  %5878 = vmatprep.subr.mxu0 0.0
  %5879 = vmatpush2.msra.mxu0 0.0
  %5880 = vmatprep.subr.mxu0 0.0
  %5881 = vmatpush2.msra.mxu0 0.0
  %5882 = vmatprep.subr.mxu0 0.0
  %5883 = vmatpush2.msra.mxu0 0.0
  %5884 = vmatprep.subr.mxu0 0.0
  %5885 = vmatpush2.msra.mxu0 0.0
  %5886 = vmatprep.subr.mxu0 0.0
  %5887 = vmatpush2.msra.mxu0 0.0
  %5888 = vmatprep.subr.mxu0 0.0
  %5889 = vmatpush2.msra.mxu0 0.0
  %5890 = vmatprep.subr.mxu0 0.0
  %5891 = vmatpush2.msra.mxu0 0.0
  %5892 = vmatprep.subr.mxu0 0.0
  %5893 = vmatpush2.msra.mxu0 0.0
  %5894 = vmatprep.subr.mxu0 0.0
  %5895 = vmatpush2.msra.mxu0 0.0
  %5896 = vmatprep.subr.mxu0 0.0
  %5897 = vmatpush2.msra.mxu0 0.0
  %5898 = vmatprep.subr.mxu0 0.0
  %5899 = vmatpush2.msra.mxu0 0.0
  %5900 = vmatprep.subr.mxu0 0.0
  %5901 = vmatpush2.msra.mxu0 0.0
  %5902 = vmatprep.subr.mxu0 0.0
  %5903 = vmatpush2.msra.mxu0 0.0
  %5904 = vmatprep.subr.mxu0 0.0
  %5905 = vmatpush2.msra.mxu0 0.0
  %5906 = vmatprep.subr.mxu0 0.0
  %5907 = vmatpush2.msra.mxu0 0.0
  %5908 = vmatprep.subr.mxu0 0.0
  %5909 = vmatpush2.msra.mxu0 0.0
  %5910 = vmatprep.mubr.f32.mxu0 0.0
  %5911 = vmatmul.mubr.f32.gmra.mxu0 %v5841
  %v5912 = vpop.f32.mrf.mxu0
  %v5913 = vadd.f32 0.0, %v5912
  %v5914 = vpop.f32.mrf.mxu0
  %5915 = vmatprep.mubr.f32.mxu0 0.0
  %5916 = vmatmul.mubr.f32.gmra.mxu0 %v5844
  %v5917 = vpop.f32.mrf.mxu0
  %v5918 = vadd.f32 0.0, %v5917
  %v5919 = vpop.f32.mrf.mxu0
  %5920 = vdwg.mxu0
  %5921 = vxpose.xlu0.b32.start [1/16] %v5913, 128
  %5922 = vxpose.xlu0.b32.cont [2/16] %v5918, 128
  %5923 = vxpose.xlu0.b32.cont [3/16] 0.0, 128
  %5924 = vxpose.xlu0.b32.cont [4/16] 0.0, 128
  %5925 = vxpose.xlu0.b32.cont [5/16] 0.0, 128
  %5926 = vxpose.xlu0.b32.cont [6/16] 0.0, 128
  %5927 = vxpose.xlu0.b32.cont [7/16] 0.0, 128
  %5928 = vxpose.xlu0.b32.cont [8/16] 0.0, 128
  %5929 = vxpose.xlu0.b32.cont [9/16] 0.0, 128
  %5930 = vxpose.xlu0.b32.cont [10/16] 0.0, 128
  %5931 = vxpose.xlu0.b32.cont [11/16] 0.0, 128
  %5932 = vxpose.xlu0.b32.cont [12/16] 0.0, 128
  %5933 = vxpose.xlu0.b32.cont [13/16] 0.0, 128
  %5934 = vxpose.xlu0.b32.cont [14/16] 0.0, 128
  %5935 = vxpose.xlu0.b32.cont [15/16] 0.0, 128
  %5936 = vxpose.xlu0.b32.end [16/16] 0.0, 128
  %v5937 = vpop.trf.xlu0
  %v5938 = vpop.trf.xlu0
  %v5939 = vpop.trf.xlu0
  %v5940 = vpop.trf.xlu0
  %v5941 = vpop.trf.xlu0
  %v5942 = vpop.trf.xlu0
  %v5943 = vpop.trf.xlu0
  %v5944 = vpop.trf.xlu0
  %v5945 = vpop.trf.xlu0
  %v5946 = vpop.trf.xlu0
  %v5947 = vpop.trf.xlu0
  %v5948 = vpop.trf.xlu0
  %v5949 = vpop.trf.xlu0
  %v5950 = vpop.trf.xlu0
  %v5951 = vpop.trf.xlu0
  %v5952 = vpop.trf.xlu0
  %5954 = vset.pattern.permute.xlu0 2
  %5955 = vperm.xlu0 %5954, %v5913
  %v5956 = vpop.permute.xlu0 %5955
  %5959 = vset.pattern.permute.xlu0 2
  %5960 = vperm.xlu0 %5959, %v5918
  %v5961 = vpop.permute.xlu0 %5960
  %v5963 = vlaneseq
  %v5964 = vshrl.u32 %v5963, 7
  %v5965 = vsub.s32 0, %v5964
  %v5966 = vrot.slane %v5937, %v5965
  %v5967 = vadd.f32 %v5956, %v5966
  %v5968 = vadd.f32 %v5961, %v5966
  %vm5969 = vcmp.gt.f32.partialorder %v5967, 0.0
  %vm5970 = vcmp.gt.f32.partialorder %v5968, 0.0
  %v5971 = vmul.f32 %v5967, 0.2
  %v5972 = vmul.f32 %v5968, 0.2
  %v5973 = vsel %vm5969, %v5967, %v5971
  %v5974 = vsel %vm5970, %v5968, %v5972
  %v5975 = vadd.f32 %v5973, %v49
  %v5976 = vadd.f32 %v5974, %v50
  %v5977 = vsel %vm53, %v5975, -inf
  %5978 = vmax.xlane.f32.xlu0 %v5977
  %v5979 = vpop.xlane.xlu0 %5978
  %v5980 = vsel %vm53, %v5976, -inf
  %5981 = vmax.xlane.f32.xlu0 %v5980
  %v5982 = vpop.xlane.xlu0 %5981
  %v5983 = vsub.f32 %v5975, %v5979
  %v5984 = vsub.f32 %v5976, %v5982
  %v5985 = vmul.f32 %v5983, 1.442695
  %v5986 = vpow.pop %v5985
  %v5987 = vmul.f32 %v5984, 1.442695
  %v5988 = vpow.pop %v5987
  %v5989 = vsel %vm53, %v5986, 0.0
  %5990 = vadd.xlane.f32.xlu0 %v5989
  %v5991 = vpop.xlane.xlu0 %5990
  %v5992 = vsel %vm53, %v5988, 0.0
  %5993 = vadd.xlane.f32.xlu0 %v5992
  %v5994 = vpop.xlane.xlu0 %5993
  %v5995 = vrcp.pop %v5991
  %v5996 = vmul.f32 %v5986, %v5995
  %v5997 = vrcp.pop %v5994
  %v5998 = vmul.f32 %v5988, %v5997
  %v6000 = vsel %vm53, %v5996, 0
  %v6003 = vsel %vm53, %v5998, 0
  %6005 = vmatprep.subr.mxu0 0.0
  %6006 = vmatpush1.msra.mxu0 0.0
  %6007 = vmatprep.subr.mxu0 0.0
  %6008 = vmatpush1.msra.mxu0 0.0
  %6009 = vmatprep.subr.mxu0 0.0
  %6010 = vmatpush1.msra.mxu0 0.0
  %6011 = vmatprep.subr.mxu0 0.0
  %6012 = vmatpush1.msra.mxu0 0.0
  %6013 = vmatprep.subr.mxu0 0.0
  %6014 = vmatpush1.msra.mxu0 0.0
  %6015 = vmatprep.subr.mxu0 0.0
  %6016 = vmatpush1.msra.mxu0 0.0
  %6017 = vmatprep.subr.mxu0 0.0
  %6018 = vmatpush1.msra.mxu0 0.0
  %6019 = vmatprep.subr.mxu0 0.0
  %6020 = vmatpush1.msra.mxu0 0.0
  %6021 = vmatprep.subr.mxu0 0.0
  %6022 = vmatpush1.msra.mxu0 0.0
  %6023 = vmatprep.subr.mxu0 0.0
  %6024 = vmatpush1.msra.mxu0 0.0
  %6025 = vmatprep.subr.mxu0 0.0
  %6026 = vmatpush1.msra.mxu0 0.0
  %6027 = vmatprep.subr.mxu0 0.0
  %6028 = vmatpush1.msra.mxu0 0.0
  %6029 = vmatprep.subr.mxu0 0.0
  %6030 = vmatpush1.msra.mxu0 0.0
  %6031 = vmatprep.subr.mxu0 0.0
  %6032 = vmatpush1.msra.mxu0 0.0
  %6033 = vmatprep.subr.mxu0 0.0
  %6034 = vmatpush1.msra.mxu0 %v5835
  %6035 = vmatprep.subr.mxu0 0.0
  %6036 = vmatpush1.msra.mxu0 %v5830
  %6037 = vmatprep.subr.mxu0 0.0
  %6038 = vmatpush2.msra.mxu0 0.0
  %6039 = vmatprep.subr.mxu0 0.0
  %6040 = vmatpush2.msra.mxu0 0.0
  %6041 = vmatprep.subr.mxu0 0.0
  %6042 = vmatpush2.msra.mxu0 0.0
  %6043 = vmatprep.subr.mxu0 0.0
  %6044 = vmatpush2.msra.mxu0 0.0
  %6045 = vmatprep.subr.mxu0 0.0
  %6046 = vmatpush2.msra.mxu0 0.0
  %6047 = vmatprep.subr.mxu0 0.0
  %6048 = vmatpush2.msra.mxu0 0.0
  %6049 = vmatprep.subr.mxu0 0.0
  %6050 = vmatpush2.msra.mxu0 0.0
  %6051 = vmatprep.subr.mxu0 0.0
  %6052 = vmatpush2.msra.mxu0 0.0
  %6053 = vmatprep.subr.mxu0 0.0
  %6054 = vmatpush2.msra.mxu0 0.0
  %6055 = vmatprep.subr.mxu0 0.0
  %6056 = vmatpush2.msra.mxu0 0.0
  %6057 = vmatprep.subr.mxu0 0.0
  %6058 = vmatpush2.msra.mxu0 0.0
  %6059 = vmatprep.subr.mxu0 0.0
  %6060 = vmatpush2.msra.mxu0 0.0
  %6061 = vmatprep.subr.mxu0 0.0
  %6062 = vmatpush2.msra.mxu0 0.0
  %6063 = vmatprep.subr.mxu0 0.0
  %6064 = vmatpush2.msra.mxu0 0.0
  %6065 = vmatprep.subr.mxu0 0.0
  %6066 = vmatpush2.msra.mxu0 0.0
  %6067 = vmatprep.subr.mxu0 0.0
  %6068 = vmatpush2.msra.mxu0 0.0
  %6069 = vmatprep.mubr.f32.mxu0 0.0
  %6070 = vmatmul.mubr.f32.gmra.mxu0 %v6000
  %v6071 = vpop.f32.mrf.mxu0
  %v6072 = vadd.f32 0.0, %v6071
  %v6073 = vpop.f32.mrf.mxu0
  %6074 = vmatprep.mubr.f32.mxu0 0.0
  %6075 = vmatmul.mubr.f32.gmra.mxu0 %v6003
  %v6076 = vpop.f32.mrf.mxu0
  %v6077 = vadd.f32 0.0, %v6076
  %v6078 = vpop.f32.mrf.mxu0
  %6079 = vdwg.mxu0
  %6080 = vset.pattern.permute.xlu0 3
  %6081 = vperm.xlu0 %6080, %v5913
  %v6082 = vpop.permute.xlu0 %6081
  %6084 = vset.pattern.permute.xlu0 3
  %6085 = vperm.xlu0 %6084, %v5918
  %v6086 = vpop.permute.xlu0 %6085
  %v6088 = vlaneseq
  %v6089 = vshrl.u32 %v6088, 7
  %v6090 = vsub.s32 1, %v6089
  %v6091 = vrot.slane %v5937, %v6090
  %v6092 = vadd.f32 %v6082, %v6091
  %v6093 = vadd.f32 %v6086, %v6091
  %vm6094 = vcmp.gt.f32.partialorder %v6092, 0.0
  %vm6095 = vcmp.gt.f32.partialorder %v6093, 0.0
  %v6096 = vmul.f32 %v6092, 0.2
  %v6097 = vmul.f32 %v6093, 0.2
  %v6098 = vsel %vm6094, %v6092, %v6096
  %v6099 = vsel %vm6095, %v6093, %v6097
  %v6100 = vadd.f32 %v6098, %v49
  %v6101 = vadd.f32 %v6099, %v50
  %v6102 = vsel %vm53, %v6100, -inf
  %6103 = vmax.xlane.f32.xlu0 %v6102
  %v6104 = vpop.xlane.xlu0 %6103
  %v6105 = vsel %vm53, %v6101, -inf
  %6106 = vmax.xlane.f32.xlu0 %v6105
  %v6107 = vpop.xlane.xlu0 %6106
  %v6108 = vsub.f32 %v6100, %v6104
  %v6109 = vsub.f32 %v6101, %v6107
  %v6110 = vmul.f32 %v6108, 1.442695
  %v6111 = vpow.pop %v6110
  %v6112 = vmul.f32 %v6109, 1.442695
  %v6113 = vpow.pop %v6112
  %v6114 = vsel %vm53, %v6111, 0.0
  %6115 = vadd.xlane.f32.xlu0 %v6114
  %v6116 = vpop.xlane.xlu0 %6115
  %v6117 = vsel %vm53, %v6113, 0.0
  %6118 = vadd.xlane.f32.xlu0 %v6117
  %v6119 = vpop.xlane.xlu0 %6118
  %v6120 = vrcp.pop %v6116
  %v6121 = vmul.f32 %v6111, %v6120
  %v6122 = vrcp.pop %v6119
  %v6123 = vmul.f32 %v6113, %v6122
  %6124 = vrot.lane.b32.xlu0 %v5830, 124
  %v6125 = vpop.permute.xlu0 %6124
  %6126 = vrot.lane.b32.xlu0 %v5835, 124
  %v6127 = vpop.permute.xlu0 %6126
  %v6131 = vsel %vm53, %v6121, 0
  %v6134 = vsel %vm53, %v6123, 0
  %6136 = vmatprep.subr.mxu0 0.0
  %6137 = vmatpush1.msra.mxu0 0.0
  %6138 = vmatprep.subr.mxu0 0.0
  %6139 = vmatpush1.msra.mxu0 0.0
  %6140 = vmatprep.subr.mxu0 0.0
  %6141 = vmatpush1.msra.mxu0 0.0
  %6142 = vmatprep.subr.mxu0 0.0
  %6143 = vmatpush1.msra.mxu0 0.0
  %6144 = vmatprep.subr.mxu0 0.0
  %6145 = vmatpush1.msra.mxu0 0.0
  %6146 = vmatprep.subr.mxu0 0.0
  %6147 = vmatpush1.msra.mxu0 0.0
  %6148 = vmatprep.subr.mxu0 0.0
  %6149 = vmatpush1.msra.mxu0 0.0
  %6150 = vmatprep.subr.mxu0 0.0
  %6151 = vmatpush1.msra.mxu0 0.0
  %6152 = vmatprep.subr.mxu0 0.0
  %6153 = vmatpush1.msra.mxu0 0.0
  %6154 = vmatprep.subr.mxu0 0.0
  %6155 = vmatpush1.msra.mxu0 0.0
  %6156 = vmatprep.subr.mxu0 0.0
  %6157 = vmatpush1.msra.mxu0 0.0
  %6158 = vmatprep.subr.mxu0 0.0
  %6159 = vmatpush1.msra.mxu0 0.0
  %6160 = vmatprep.subr.mxu0 0.0
  %6161 = vmatpush1.msra.mxu0 0.0
  %6162 = vmatprep.subr.mxu0 0.0
  %6163 = vmatpush1.msra.mxu0 0.0
  %6164 = vmatprep.subr.mxu0 0.0
  %6165 = vmatpush1.msra.mxu0 %v6127
  %6166 = vmatprep.subr.mxu0 0.0
  %6167 = vmatpush1.msra.mxu0 %v6125
  %6168 = vmatprep.subr.mxu0 0.0
  %6169 = vmatpush2.msra.mxu0 0.0
  %6170 = vmatprep.subr.mxu0 0.0
  %6171 = vmatpush2.msra.mxu0 0.0
  %6172 = vmatprep.subr.mxu0 0.0
  %6173 = vmatpush2.msra.mxu0 0.0
  %6174 = vmatprep.subr.mxu0 0.0
  %6175 = vmatpush2.msra.mxu0 0.0
  %6176 = vmatprep.subr.mxu0 0.0
  %6177 = vmatpush2.msra.mxu0 0.0
  %6178 = vmatprep.subr.mxu0 0.0
  %6179 = vmatpush2.msra.mxu0 0.0
  %6180 = vmatprep.subr.mxu0 0.0
  %6181 = vmatpush2.msra.mxu0 0.0
  %6182 = vmatprep.subr.mxu0 0.0
  %6183 = vmatpush2.msra.mxu0 0.0
  %6184 = vmatprep.subr.mxu0 0.0
  %6185 = vmatpush2.msra.mxu0 0.0
  %6186 = vmatprep.subr.mxu0 0.0
  %6187 = vmatpush2.msra.mxu0 0.0
  %6188 = vmatprep.subr.mxu0 0.0
  %6189 = vmatpush2.msra.mxu0 0.0
  %6190 = vmatprep.subr.mxu0 0.0
  %6191 = vmatpush2.msra.mxu0 0.0
  %6192 = vmatprep.subr.mxu0 0.0
  %6193 = vmatpush2.msra.mxu0 0.0
  %6194 = vmatprep.subr.mxu0 0.0
  %6195 = vmatpush2.msra.mxu0 0.0
  %6196 = vmatprep.subr.mxu0 0.0
  %6197 = vmatpush2.msra.mxu0 0.0
  %6198 = vmatprep.subr.mxu0 0.0
  %6199 = vmatpush2.msra.mxu0 0.0
  %6200 = vmatprep.mubr.f32.mxu0 0.0
  %6201 = vmatmul.mubr.f32.gmra.mxu0 %v6131
  %v6202 = vpop.f32.mrf.mxu0
  %v6203 = vadd.f32 0.0, %v6202
  %v6204 = vpop.f32.mrf.mxu0
  %6205 = vmatprep.mubr.f32.mxu0 0.0
  %6206 = vmatmul.mubr.f32.gmra.mxu0 %v6134
  %v6207 = vpop.f32.mrf.mxu0
  %v6208 = vadd.f32 0.0, %v6207
  %v6209 = vpop.f32.mrf.mxu0
  %6210 = vdwg.mxu0
  %6213 = vrot.lane.b32.xlu0 %v6203, 4
  %v6214 = vpop.permute.xlu0 %6213
  %6215 = vrot.lane.b32.xlu0 %v6208, 4
  %v6216 = vpop.permute.xlu0 %6215
  %v6219 = vsel %vm184, %v6072, %v6214
  %v6220 = vsel %vm184, %v6077, %v6216
  %v6221 = vld [vmem:[%s5 + $0x9] sm:$0x1]
  %v6222 = vlaneseq
  %v6223 = vshrl.u32 %v6222, 7
  %v6224 = vsub.s32 0, %v6223
  %v6225 = vrot.slane %v6221, %v6224
  %v6226 = vadd.f32 %v6219, %v6225
  %v6227 = vadd.f32 %v6220, %v6225
  %vm6228 = vcmp.gt.f32.partialorder %v6226, 0.0
  %vm6229 = vcmp.gt.f32.partialorder %v6227, 0.0
  %v6230 = vmin.f32 %v6226, 0.0
  %v6231 = vmin.f32 %v6227, 0.0
  %v6232 = vmul.f32 %v6230, 1.442695
  %v6233 = vpow.pop %v6232
  %v6234 = vmul.f32 %v6231, 1.442695
  %v6235 = vpow.pop %v6234
  %v6236 = vsub.f32 %v6233, 1.0
  %v6237 = vsub.f32 %v6235, 1.0
  %v6238 = vsel %vm6228, %v6226, %v6236
  %v6239 = vsel %vm6229, %v6227, %v6237
  %s6240 = scalar_lea.vmem %s6, 72
  %v6241 = vld [vmem:[%s6240] sm:$0xff]
  %v6242 = vld [vmem:[%s7 + $0x9] sm:$0x1]
  %v6243 = vlaneseq
  %v6244 = vshrl.u32 %v6243, 7
  %v6245 = vsub.s32 0, %v6244
  %v6246 = vrot.slane %v6242, %v6245
  %v6248 = vsel %vm271, %v6238, 0
  %v6251 = vsel %vm271, %v6239, 0
  %6253 = vmatprep.subr.mxu0 0.0
  %6254 = vmatpush1.msra.mxu0 0.0
  %6255 = vmatprep.subr.mxu0 0.0
  %6256 = vmatpush1.msra.mxu0 0.0
  %6257 = vmatprep.subr.mxu0 0.0
  %6258 = vmatpush1.msra.mxu0 0.0
  %6259 = vmatprep.subr.mxu0 0.0
  %6260 = vmatpush1.msra.mxu0 0.0
  %6261 = vmatprep.subr.mxu0 0.0
  %6262 = vmatpush1.msra.mxu0 0.0
  %6263 = vmatprep.subr.mxu0 0.0
  %6264 = vmatpush1.msra.mxu0 0.0
  %6265 = vmatprep.subr.mxu0 0.0
  %6266 = vmatpush1.msra.mxu0 0.0
  %6267 = vmatprep.subr.mxu0 0.0
  %6268 = vmatpush1.msra.mxu0 0.0
  %6269 = vmatprep.subr.mxu0 0.0
  %6270 = vmatpush1.msra.mxu0 0.0
  %6271 = vmatprep.subr.mxu0 0.0
  %6272 = vmatpush1.msra.mxu0 0.0
  %6273 = vmatprep.subr.mxu0 0.0
  %6274 = vmatpush1.msra.mxu0 0.0
  %6275 = vmatprep.subr.mxu0 0.0
  %6276 = vmatpush1.msra.mxu0 0.0
  %6277 = vmatprep.subr.mxu0 0.0
  %6278 = vmatpush1.msra.mxu0 0.0
  %6279 = vmatprep.subr.mxu0 0.0
  %6280 = vmatpush1.msra.mxu0 0.0
  %6281 = vmatprep.subr.mxu0 0.0
  %6282 = vmatpush1.msra.mxu0 0.0
  %6283 = vmatprep.subr.mxu0 0.0
  %6284 = vmatpush1.msra.mxu0 %v6241
  %6285 = vmatprep.subr.mxu0 0.0
  %6286 = vmatpush2.msra.mxu0 0.0
  %6287 = vmatprep.subr.mxu0 0.0
  %6288 = vmatpush2.msra.mxu0 0.0
  %6289 = vmatprep.subr.mxu0 0.0
  %6290 = vmatpush2.msra.mxu0 0.0
  %6291 = vmatprep.subr.mxu0 0.0
  %6292 = vmatpush2.msra.mxu0 0.0
  %6293 = vmatprep.subr.mxu0 0.0
  %6294 = vmatpush2.msra.mxu0 0.0
  %6295 = vmatprep.subr.mxu0 0.0
  %6296 = vmatpush2.msra.mxu0 0.0
  %6297 = vmatprep.subr.mxu0 0.0
  %6298 = vmatpush2.msra.mxu0 0.0
  %6299 = vmatprep.subr.mxu0 0.0
  %6300 = vmatpush2.msra.mxu0 0.0
  %6301 = vmatprep.subr.mxu0 0.0
  %6302 = vmatpush2.msra.mxu0 0.0
  %6303 = vmatprep.subr.mxu0 0.0
  %6304 = vmatpush2.msra.mxu0 0.0
  %6305 = vmatprep.subr.mxu0 0.0
  %6306 = vmatpush2.msra.mxu0 0.0
  %6307 = vmatprep.subr.mxu0 0.0
  %6308 = vmatpush2.msra.mxu0 0.0
  %6309 = vmatprep.subr.mxu0 0.0
  %6310 = vmatpush2.msra.mxu0 0.0
  %6311 = vmatprep.subr.mxu0 0.0
  %6312 = vmatpush2.msra.mxu0 0.0
  %6313 = vmatprep.subr.mxu0 0.0
  %6314 = vmatpush2.msra.mxu0 0.0
  %6315 = vmatprep.subr.mxu0 0.0
  %6316 = vmatpush2.msra.mxu0 0.0
  %6317 = vmatprep.mubr.f32.mxu0 0.0
  %6318 = vmatmul.mubr.f32.gmra.mxu0 %v6248
  %v6319 = vpop.f32.mrf.mxu0
  %v6320 = vadd.f32 %v6246, %v6319
  %v6321 = vpop.f32.mrf.mxu0
  %6322 = vmatprep.mubr.f32.mxu0 0.0
  %6323 = vmatmul.mubr.f32.gmra.mxu0 %v6251
  %v6324 = vpop.f32.mrf.mxu0
  %v6325 = vadd.f32 %v6246, %v6324
  %v6326 = vpop.f32.mrf.mxu0
  %6327 = vdwg.mxu0
  %6328 = vrot.lane.b32.xlu0 %v2622, 120
  %v6329 = vpop.permute.xlu0 %6328
  %6330 = vrot.lane.b32.xlu0 %v2623, 120
  %v6331 = vpop.permute.xlu0 %6330
  %6334 = vrot.lane.b32.xlu0 %v2624, 124
  %v6335 = vpop.permute.xlu0 %6334
  %6336 = vrot.lane.b32.xlu0 %v2625, 124
  %v6337 = vpop.permute.xlu0 %6336
  %v6340 = vsel %vm184, %v6329, %v6335
  %v6341 = vsel %vm184, %v6331, %v6337
  %v6342 = vsel %vm271, %v6340, %v2626
  %v6343 = vsel %vm271, %v6341, %v2627
  %6344 = vmatprep.subr.mxu0 0.0
  %6345 = vmatpush1.msra.mxu0 0.0
  %6346 = vmatprep.subr.mxu0 0.0
  %6347 = vmatpush1.msra.mxu0 0.0
  %6348 = vmatprep.subr.mxu0 0.0
  %6349 = vmatpush1.msra.mxu0 0.0
  %6350 = vmatprep.subr.mxu0 0.0
  %6351 = vmatpush1.msra.mxu0 0.0
  %6352 = vmatprep.subr.mxu0 0.0
  %6353 = vmatpush1.msra.mxu0 0.0
  %6354 = vmatprep.subr.mxu0 0.0
  %6355 = vmatpush1.msra.mxu0 0.0
  %6356 = vmatprep.subr.mxu0 0.0
  %6357 = vmatpush1.msra.mxu0 0.0
  %6358 = vmatprep.subr.mxu0 0.0
  %6359 = vmatpush1.msra.mxu0 0.0
  %6360 = vmatprep.subr.mxu0 0.0
  %6361 = vmatpush1.msra.mxu0 0.0
  %6362 = vmatprep.subr.mxu0 0.0
  %6363 = vmatpush1.msra.mxu0 0.0
  %6364 = vmatprep.subr.mxu0 0.0
  %6365 = vmatpush1.msra.mxu0 0.0
  %6366 = vmatprep.subr.mxu0 0.0
  %6367 = vmatpush1.msra.mxu0 0.0
  %6368 = vmatprep.subr.mxu0 0.0
  %6369 = vmatpush1.msra.mxu0 0.0
  %6370 = vmatprep.subr.mxu0 0.0
  %6371 = vmatpush1.msra.mxu0 0.0
  %6372 = vmatprep.subr.mxu0 0.0
  %6373 = vmatpush1.msra.mxu0 %v6343
  %6374 = vmatprep.subr.mxu0 0.0
  %6375 = vmatpush1.msra.mxu0 %v6342
  %6376 = vmatprep.subr.mxu0 0.0
  %6377 = vmatpush2.msra.mxu0 0.0
  %6378 = vmatprep.subr.mxu0 0.0
  %6379 = vmatpush2.msra.mxu0 0.0
  %6380 = vmatprep.subr.mxu0 0.0
  %6381 = vmatpush2.msra.mxu0 0.0
  %6382 = vmatprep.subr.mxu0 0.0
  %6383 = vmatpush2.msra.mxu0 0.0
  %6384 = vmatprep.subr.mxu0 0.0
  %6385 = vmatpush2.msra.mxu0 0.0
  %6386 = vmatprep.subr.mxu0 0.0
  %6387 = vmatpush2.msra.mxu0 0.0
  %6388 = vmatprep.subr.mxu0 0.0
  %6389 = vmatpush2.msra.mxu0 0.0
  %6390 = vmatprep.subr.mxu0 0.0
  %6391 = vmatpush2.msra.mxu0 0.0
  %6392 = vmatprep.subr.mxu0 0.0
  %6393 = vmatpush2.msra.mxu0 0.0
  %6394 = vmatprep.subr.mxu0 0.0
  %6395 = vmatpush2.msra.mxu0 0.0
  %6396 = vmatprep.subr.mxu0 0.0
  %6397 = vmatpush2.msra.mxu0 0.0
  %6398 = vmatprep.subr.mxu0 0.0
  %6399 = vmatpush2.msra.mxu0 0.0
  %6400 = vmatprep.subr.mxu0 0.0
  %6401 = vmatpush2.msra.mxu0 0.0
  %6402 = vmatprep.subr.mxu0 0.0
  %6403 = vmatpush2.msra.mxu0 0.0
  %6404 = vmatprep.subr.mxu0 0.0
  %6405 = vmatpush2.msra.mxu0 0.0
  %6406 = vmatprep.subr.mxu0 0.0
  %6407 = vmatpush2.msra.mxu0 0.0
  %6408 = vmatprep.mubr.f32.mxu0 0.0
  %6409 = vmatmul.mubr.f32.gmra.mxu0 %v55
  %v6410 = vpop.f32.mrf.mxu0
  %v6411 = vadd.f32 0.0, %v6410
  %v6412 = vpop.f32.mrf.mxu0
  %6413 = vmatprep.mubr.f32.mxu0 0.0
  %6414 = vmatmul.mubr.f32.gmra.mxu0 %v58
  %v6415 = vpop.f32.mrf.mxu0
  %v6416 = vadd.f32 0.0, %v6415
  %v6417 = vpop.f32.mrf.mxu0
  %6418 = vmatprep.mubr.f32.mxu0 0.0
  %6419 = vmatmul.mubr.f32.gmra.mxu0 %v61
  %v6420 = vpop.f32.mrf.mxu0
  %v6421 = vpop.f32.mrf.mxu0
  %6422 = vmatprep.mubr.f32.mxu0 0.0
  %6423 = vmatmul.mubr.f32.gmra.mxu0 %v64
  %v6424 = vpop.f32.mrf.mxu0
  %v6425 = vpop.f32.mrf.mxu0
  %6426 = vmatprep.mubr.f32.mxu0 0.0
  %6427 = vmatmul.mubr.f32.gmra.mxu0 %v67
  %v6428 = vpop.f32.mrf.mxu0
  %v6429 = vpop.f32.mrf.mxu0
  %6430 = vmatprep.mubr.f32.mxu0 0.0
  %6431 = vmatmul.mubr.f32.gmra.mxu0 %v70
  %v6432 = vpop.f32.mrf.mxu0
  %v6433 = vpop.f32.mrf.mxu0
  %6434 = vmatprep.mubr.f32.mxu0 0.0
  %6435 = vmatmul.mubr.f32.gmra.mxu0 %v73
  %v6436 = vpop.f32.mrf.mxu0
  %v6437 = vpop.f32.mrf.mxu0
  %6438 = vmatprep.mubr.f32.mxu0 0.0
  %6439 = vmatmul.mubr.f32.gmra.mxu0 %v76
  %v6440 = vpop.f32.mrf.mxu0
  %v6441 = vpop.f32.mrf.mxu0
  %6442 = vdwg.mxu0
  %s6443 = scalar_lea.vmem %s3, 40
  %v6444 = vld [vmem:[%s6443] sm:$0xf]
  %v6446 = vsel %vm184, %v6411, 0
  %v6449 = vsel %vm184, %v6416, 0
  %v6452 = vsel %vm191, %v6444, 0
  %6454 = vmatprep.subr.mxu0 0.0
  %6455 = vmatpush1.msra.mxu0 0.0
  %6456 = vmatprep.subr.mxu0 0.0
  %6457 = vmatpush1.msra.mxu0 0.0
  %6458 = vmatprep.subr.mxu0 0.0
  %6459 = vmatpush1.msra.mxu0 0.0
  %6460 = vmatprep.subr.mxu0 0.0
  %6461 = vmatpush1.msra.mxu0 0.0
  %6462 = vmatprep.subr.mxu0 0.0
  %6463 = vmatpush1.msra.mxu0 0.0
  %6464 = vmatprep.subr.mxu0 0.0
  %6465 = vmatpush1.msra.mxu0 0.0
  %6466 = vmatprep.subr.mxu0 0.0
  %6467 = vmatpush1.msra.mxu0 0.0
  %6468 = vmatprep.subr.mxu0 0.0
  %6469 = vmatpush1.msra.mxu0 0.0
  %6470 = vmatprep.subr.mxu0 0.0
  %6471 = vmatpush1.msra.mxu0 0.0
  %6472 = vmatprep.subr.mxu0 0.0
  %6473 = vmatpush1.msra.mxu0 0.0
  %6474 = vmatprep.subr.mxu0 0.0
  %6475 = vmatpush1.msra.mxu0 0.0
  %6476 = vmatprep.subr.mxu0 0.0
  %6477 = vmatpush1.msra.mxu0 0.0
  %6478 = vmatprep.subr.mxu0 0.0
  %6479 = vmatpush1.msra.mxu0 0.0
  %6480 = vmatprep.subr.mxu0 0.0
  %6481 = vmatpush1.msra.mxu0 0.0
  %6482 = vmatprep.subr.mxu0 0.0
  %6483 = vmatpush1.msra.mxu0 0.0
  %6484 = vmatprep.subr.mxu0 0.0
  %6485 = vmatpush1.msra.mxu0 %v6452
  %6486 = vmatprep.subr.mxu0 0.0
  %6487 = vmatpush2.msra.mxu0 0.0
  %6488 = vmatprep.subr.mxu0 0.0
  %6489 = vmatpush2.msra.mxu0 0.0
  %6490 = vmatprep.subr.mxu0 0.0
  %6491 = vmatpush2.msra.mxu0 0.0
  %6492 = vmatprep.subr.mxu0 0.0
  %6493 = vmatpush2.msra.mxu0 0.0
  %6494 = vmatprep.subr.mxu0 0.0
  %6495 = vmatpush2.msra.mxu0 0.0
  %6496 = vmatprep.subr.mxu0 0.0
  %6497 = vmatpush2.msra.mxu0 0.0
  %6498 = vmatprep.subr.mxu0 0.0
  %6499 = vmatpush2.msra.mxu0 0.0
  %6500 = vmatprep.subr.mxu0 0.0
  %6501 = vmatpush2.msra.mxu0 0.0
  %6502 = vmatprep.subr.mxu0 0.0
  %6503 = vmatpush2.msra.mxu0 0.0
  %6504 = vmatprep.subr.mxu0 0.0
  %6505 = vmatpush2.msra.mxu0 0.0
  %6506 = vmatprep.subr.mxu0 0.0
  %6507 = vmatpush2.msra.mxu0 0.0
  %6508 = vmatprep.subr.mxu0 0.0
  %6509 = vmatpush2.msra.mxu0 0.0
  %6510 = vmatprep.subr.mxu0 0.0
  %6511 = vmatpush2.msra.mxu0 0.0
  %6512 = vmatprep.subr.mxu0 0.0
  %6513 = vmatpush2.msra.mxu0 0.0
  %6514 = vmatprep.subr.mxu0 0.0
  %6515 = vmatpush2.msra.mxu0 0.0
  %6516 = vmatprep.subr.mxu0 0.0
  %6517 = vmatpush2.msra.mxu0 0.0
  %6518 = vmatprep.mubr.f32.mxu0 0.0
  %6519 = vmatmul.mubr.f32.gmra.mxu0 %v6446
  %v6520 = vpop.f32.mrf.mxu0
  %v6521 = vadd.f32 0.0, %v6520
  %v6522 = vpop.f32.mrf.mxu0
  %6523 = vmatprep.mubr.f32.mxu0 0.0
  %6524 = vmatmul.mubr.f32.gmra.mxu0 %v6449
  %v6525 = vpop.f32.mrf.mxu0
  %v6526 = vadd.f32 0.0, %v6525
  %v6527 = vpop.f32.mrf.mxu0
  %6528 = vdwg.mxu0
  %s6529 = scalar_lea.vmem %s4, 80
  %v6530 = vld [vmem:[%s6529] sm:$0xff]
  %v6532 = vsel %vm271, %v6521, 0
  %v6535 = vsel %vm271, %v6526, 0
  %6537 = vmatprep.subr.mxu0 0.0
  %6538 = vmatpush1.msra.mxu0 0.0
  %6539 = vmatprep.subr.mxu0 0.0
  %6540 = vmatpush1.msra.mxu0 0.0
  %6541 = vmatprep.subr.mxu0 0.0
  %6542 = vmatpush1.msra.mxu0 0.0
  %6543 = vmatprep.subr.mxu0 0.0
  %6544 = vmatpush1.msra.mxu0 0.0
  %6545 = vmatprep.subr.mxu0 0.0
  %6546 = vmatpush1.msra.mxu0 0.0
  %6547 = vmatprep.subr.mxu0 0.0
  %6548 = vmatpush1.msra.mxu0 0.0
  %6549 = vmatprep.subr.mxu0 0.0
  %6550 = vmatpush1.msra.mxu0 0.0
  %6551 = vmatprep.subr.mxu0 0.0
  %6552 = vmatpush1.msra.mxu0 0.0
  %6553 = vmatprep.subr.mxu0 0.0
  %6554 = vmatpush1.msra.mxu0 0.0
  %6555 = vmatprep.subr.mxu0 0.0
  %6556 = vmatpush1.msra.mxu0 0.0
  %6557 = vmatprep.subr.mxu0 0.0
  %6558 = vmatpush1.msra.mxu0 0.0
  %6559 = vmatprep.subr.mxu0 0.0
  %6560 = vmatpush1.msra.mxu0 0.0
  %6561 = vmatprep.subr.mxu0 0.0
  %6562 = vmatpush1.msra.mxu0 0.0
  %6563 = vmatprep.subr.mxu0 0.0
  %6564 = vmatpush1.msra.mxu0 0.0
  %6565 = vmatprep.subr.mxu0 0.0
  %6566 = vmatpush1.msra.mxu0 0.0
  %6567 = vmatprep.subr.mxu0 0.0
  %6568 = vmatpush1.msra.mxu0 %v6530
  %6569 = vmatprep.subr.mxu0 0.0
  %6570 = vmatpush2.msra.mxu0 0.0
  %6571 = vmatprep.subr.mxu0 0.0
  %6572 = vmatpush2.msra.mxu0 0.0
  %6573 = vmatprep.subr.mxu0 0.0
  %6574 = vmatpush2.msra.mxu0 0.0
  %6575 = vmatprep.subr.mxu0 0.0
  %6576 = vmatpush2.msra.mxu0 0.0
  %6577 = vmatprep.subr.mxu0 0.0
  %6578 = vmatpush2.msra.mxu0 0.0
  %6579 = vmatprep.subr.mxu0 0.0
  %6580 = vmatpush2.msra.mxu0 0.0
  %6581 = vmatprep.subr.mxu0 0.0
  %6582 = vmatpush2.msra.mxu0 0.0
  %6583 = vmatprep.subr.mxu0 0.0
  %6584 = vmatpush2.msra.mxu0 0.0
  %6585 = vmatprep.subr.mxu0 0.0
  %6586 = vmatpush2.msra.mxu0 0.0
  %6587 = vmatprep.subr.mxu0 0.0
  %6588 = vmatpush2.msra.mxu0 0.0
  %6589 = vmatprep.subr.mxu0 0.0
  %6590 = vmatpush2.msra.mxu0 0.0
  %6591 = vmatprep.subr.mxu0 0.0
  %6592 = vmatpush2.msra.mxu0 0.0
  %6593 = vmatprep.subr.mxu0 0.0
  %6594 = vmatpush2.msra.mxu0 0.0
  %6595 = vmatprep.subr.mxu0 0.0
  %6596 = vmatpush2.msra.mxu0 0.0
  %6597 = vmatprep.subr.mxu0 0.0
  %6598 = vmatpush2.msra.mxu0 0.0
  %6599 = vmatprep.subr.mxu0 0.0
  %6600 = vmatpush2.msra.mxu0 0.0
  %6601 = vmatprep.mubr.f32.mxu0 0.0
  %6602 = vmatmul.mubr.f32.gmra.mxu0 %v6532
  %v6603 = vpop.f32.mrf.mxu0
  %v6604 = vadd.f32 0.0, %v6603
  %v6605 = vpop.f32.mrf.mxu0
  %6606 = vmatprep.mubr.f32.mxu0 0.0
  %6607 = vmatmul.mubr.f32.gmra.mxu0 %v6535
  %v6608 = vpop.f32.mrf.mxu0
  %v6609 = vadd.f32 0.0, %v6608
  %v6610 = vpop.f32.mrf.mxu0
  %6611 = vdwg.mxu0
  %6612 = vxpose.xlu0.b32.start [1/16] %v6604, 128
  %6613 = vxpose.xlu0.b32.cont [2/16] %v6609, 128
  %6614 = vxpose.xlu0.b32.cont [3/16] 0.0, 128
  %6615 = vxpose.xlu0.b32.cont [4/16] 0.0, 128
  %6616 = vxpose.xlu0.b32.cont [5/16] 0.0, 128
  %6617 = vxpose.xlu0.b32.cont [6/16] 0.0, 128
  %6618 = vxpose.xlu0.b32.cont [7/16] 0.0, 128
  %6619 = vxpose.xlu0.b32.cont [8/16] 0.0, 128
  %6620 = vxpose.xlu0.b32.cont [9/16] 0.0, 128
  %6621 = vxpose.xlu0.b32.cont [10/16] 0.0, 128
  %6622 = vxpose.xlu0.b32.cont [11/16] 0.0, 128
  %6623 = vxpose.xlu0.b32.cont [12/16] 0.0, 128
  %6624 = vxpose.xlu0.b32.cont [13/16] 0.0, 128
  %6625 = vxpose.xlu0.b32.cont [14/16] 0.0, 128
  %6626 = vxpose.xlu0.b32.cont [15/16] 0.0, 128
  %6627 = vxpose.xlu0.b32.end [16/16] 0.0, 128
  %v6628 = vpop.trf.xlu0
  %v6629 = vpop.trf.xlu0
  %v6630 = vpop.trf.xlu0
  %v6631 = vpop.trf.xlu0
  %v6632 = vpop.trf.xlu0
  %v6633 = vpop.trf.xlu0
  %v6634 = vpop.trf.xlu0
  %v6635 = vpop.trf.xlu0
  %v6636 = vpop.trf.xlu0
  %v6637 = vpop.trf.xlu0
  %v6638 = vpop.trf.xlu0
  %v6639 = vpop.trf.xlu0
  %v6640 = vpop.trf.xlu0
  %v6641 = vpop.trf.xlu0
  %v6642 = vpop.trf.xlu0
  %v6643 = vpop.trf.xlu0
  %6645 = vset.pattern.permute.xlu0 2
  %6646 = vperm.xlu0 %6645, %v6604
  %v6647 = vpop.permute.xlu0 %6646
  %6650 = vset.pattern.permute.xlu0 2
  %6651 = vperm.xlu0 %6650, %v6609
  %v6652 = vpop.permute.xlu0 %6651
  %v6654 = vlaneseq
  %v6655 = vshrl.u32 %v6654, 7
  %v6656 = vsub.s32 0, %v6655
  %v6657 = vrot.slane %v6628, %v6656
  %v6658 = vadd.f32 %v6647, %v6657
  %v6659 = vadd.f32 %v6652, %v6657
  %vm6660 = vcmp.gt.f32.partialorder %v6658, 0.0
  %vm6661 = vcmp.gt.f32.partialorder %v6659, 0.0
  %v6662 = vmul.f32 %v6658, 0.2
  %v6663 = vmul.f32 %v6659, 0.2
  %v6664 = vsel %vm6660, %v6658, %v6662
  %v6665 = vsel %vm6661, %v6659, %v6663
  %v6666 = vadd.f32 %v6664, %v49
  %v6667 = vadd.f32 %v6665, %v50
  %v6668 = vsel %vm53, %v6666, -inf
  %6669 = vmax.xlane.f32.xlu0 %v6668
  %v6670 = vpop.xlane.xlu0 %6669
  %v6671 = vsel %vm53, %v6667, -inf
  %6672 = vmax.xlane.f32.xlu0 %v6671
  %v6673 = vpop.xlane.xlu0 %6672
  %v6674 = vsub.f32 %v6666, %v6670
  %v6675 = vsub.f32 %v6667, %v6673
  %v6676 = vmul.f32 %v6674, 1.442695
  %v6677 = vpow.pop %v6676
  %v6678 = vmul.f32 %v6675, 1.442695
  %v6679 = vpow.pop %v6678
  %v6680 = vsel %vm53, %v6677, 0.0
  %6681 = vadd.xlane.f32.xlu0 %v6680
  %v6682 = vpop.xlane.xlu0 %6681
  %v6683 = vsel %vm53, %v6679, 0.0
  %6684 = vadd.xlane.f32.xlu0 %v6683
  %v6685 = vpop.xlane.xlu0 %6684
  %v6686 = vrcp.pop %v6682
  %v6687 = vmul.f32 %v6677, %v6686
  %v6688 = vrcp.pop %v6685
  %v6689 = vmul.f32 %v6679, %v6688
  %v6691 = vsel %vm53, %v6687, 0
  %v6694 = vsel %vm53, %v6689, 0
  %6696 = vmatprep.subr.mxu0 0.0
  %6697 = vmatpush1.msra.mxu0 0.0
  %6698 = vmatprep.subr.mxu0 0.0
  %6699 = vmatpush1.msra.mxu0 0.0
  %6700 = vmatprep.subr.mxu0 0.0
  %6701 = vmatpush1.msra.mxu0 0.0
  %6702 = vmatprep.subr.mxu0 0.0
  %6703 = vmatpush1.msra.mxu0 0.0
  %6704 = vmatprep.subr.mxu0 0.0
  %6705 = vmatpush1.msra.mxu0 0.0
  %6706 = vmatprep.subr.mxu0 0.0
  %6707 = vmatpush1.msra.mxu0 0.0
  %6708 = vmatprep.subr.mxu0 0.0
  %6709 = vmatpush1.msra.mxu0 0.0
  %6710 = vmatprep.subr.mxu0 0.0
  %6711 = vmatpush1.msra.mxu0 0.0
  %6712 = vmatprep.subr.mxu0 0.0
  %6713 = vmatpush1.msra.mxu0 0.0
  %6714 = vmatprep.subr.mxu0 0.0
  %6715 = vmatpush1.msra.mxu0 0.0
  %6716 = vmatprep.subr.mxu0 0.0
  %6717 = vmatpush1.msra.mxu0 0.0
  %6718 = vmatprep.subr.mxu0 0.0
  %6719 = vmatpush1.msra.mxu0 0.0
  %6720 = vmatprep.subr.mxu0 0.0
  %6721 = vmatpush1.msra.mxu0 0.0
  %6722 = vmatprep.subr.mxu0 0.0
  %6723 = vmatpush1.msra.mxu0 0.0
  %6724 = vmatprep.subr.mxu0 0.0
  %6725 = vmatpush1.msra.mxu0 %v6526
  %6726 = vmatprep.subr.mxu0 0.0
  %6727 = vmatpush1.msra.mxu0 %v6521
  %6728 = vmatprep.subr.mxu0 0.0
  %6729 = vmatpush2.msra.mxu0 0.0
  %6730 = vmatprep.subr.mxu0 0.0
  %6731 = vmatpush2.msra.mxu0 0.0
  %6732 = vmatprep.subr.mxu0 0.0
  %6733 = vmatpush2.msra.mxu0 0.0
  %6734 = vmatprep.subr.mxu0 0.0
  %6735 = vmatpush2.msra.mxu0 0.0
  %6736 = vmatprep.subr.mxu0 0.0
  %6737 = vmatpush2.msra.mxu0 0.0
  %6738 = vmatprep.subr.mxu0 0.0
  %6739 = vmatpush2.msra.mxu0 0.0
  %6740 = vmatprep.subr.mxu0 0.0
  %6741 = vmatpush2.msra.mxu0 0.0
  %6742 = vmatprep.subr.mxu0 0.0
  %6743 = vmatpush2.msra.mxu0 0.0
  %6744 = vmatprep.subr.mxu0 0.0
  %6745 = vmatpush2.msra.mxu0 0.0
  %6746 = vmatprep.subr.mxu0 0.0
  %6747 = vmatpush2.msra.mxu0 0.0
  %6748 = vmatprep.subr.mxu0 0.0
  %6749 = vmatpush2.msra.mxu0 0.0
  %6750 = vmatprep.subr.mxu0 0.0
  %6751 = vmatpush2.msra.mxu0 0.0
  %6752 = vmatprep.subr.mxu0 0.0
  %6753 = vmatpush2.msra.mxu0 0.0
  %6754 = vmatprep.subr.mxu0 0.0
  %6755 = vmatpush2.msra.mxu0 0.0
  %6756 = vmatprep.subr.mxu0 0.0
  %6757 = vmatpush2.msra.mxu0 0.0
  %6758 = vmatprep.subr.mxu0 0.0
  %6759 = vmatpush2.msra.mxu0 0.0
  %6760 = vmatprep.mubr.f32.mxu0 0.0
  %6761 = vmatmul.mubr.f32.gmra.mxu0 %v6691
  %v6762 = vpop.f32.mrf.mxu0
  %v6763 = vadd.f32 0.0, %v6762
  %v6764 = vpop.f32.mrf.mxu0
  %6765 = vmatprep.mubr.f32.mxu0 0.0
  %6766 = vmatmul.mubr.f32.gmra.mxu0 %v6694
  %v6767 = vpop.f32.mrf.mxu0
  %v6768 = vadd.f32 0.0, %v6767
  %v6769 = vpop.f32.mrf.mxu0
  %6770 = vdwg.mxu0
  %6771 = vset.pattern.permute.xlu0 3
  %6772 = vperm.xlu0 %6771, %v6604
  %v6773 = vpop.permute.xlu0 %6772
  %6775 = vset.pattern.permute.xlu0 3
  %6776 = vperm.xlu0 %6775, %v6609
  %v6777 = vpop.permute.xlu0 %6776
  %v6779 = vlaneseq
  %v6780 = vshrl.u32 %v6779, 7
  %v6781 = vsub.s32 1, %v6780
  %v6782 = vrot.slane %v6628, %v6781
  %v6783 = vadd.f32 %v6773, %v6782
  %v6784 = vadd.f32 %v6777, %v6782
  %vm6785 = vcmp.gt.f32.partialorder %v6783, 0.0
  %vm6786 = vcmp.gt.f32.partialorder %v6784, 0.0
  %v6787 = vmul.f32 %v6783, 0.2
  %v6788 = vmul.f32 %v6784, 0.2
  %v6789 = vsel %vm6785, %v6783, %v6787
  %v6790 = vsel %vm6786, %v6784, %v6788
  %v6791 = vadd.f32 %v6789, %v49
  %v6792 = vadd.f32 %v6790, %v50
  %v6793 = vsel %vm53, %v6791, -inf
  %6794 = vmax.xlane.f32.xlu0 %v6793
  %v6795 = vpop.xlane.xlu0 %6794
  %v6796 = vsel %vm53, %v6792, -inf
  %6797 = vmax.xlane.f32.xlu0 %v6796
  %v6798 = vpop.xlane.xlu0 %6797
  %v6799 = vsub.f32 %v6791, %v6795
  %v6800 = vsub.f32 %v6792, %v6798
  %v6801 = vmul.f32 %v6799, 1.442695
  %v6802 = vpow.pop %v6801
  %v6803 = vmul.f32 %v6800, 1.442695
  %v6804 = vpow.pop %v6803
  %v6805 = vsel %vm53, %v6802, 0.0
  %6806 = vadd.xlane.f32.xlu0 %v6805
  %v6807 = vpop.xlane.xlu0 %6806
  %v6808 = vsel %vm53, %v6804, 0.0
  %6809 = vadd.xlane.f32.xlu0 %v6808
  %v6810 = vpop.xlane.xlu0 %6809
  %v6811 = vrcp.pop %v6807
  %v6812 = vmul.f32 %v6802, %v6811
  %v6813 = vrcp.pop %v6810
  %v6814 = vmul.f32 %v6804, %v6813
  %6815 = vrot.lane.b32.xlu0 %v6521, 124
  %v6816 = vpop.permute.xlu0 %6815
  %6817 = vrot.lane.b32.xlu0 %v6526, 124
  %v6818 = vpop.permute.xlu0 %6817
  %v6822 = vsel %vm53, %v6812, 0
  %v6825 = vsel %vm53, %v6814, 0
  %6827 = vmatprep.subr.mxu0 0.0
  %6828 = vmatpush1.msra.mxu0 0.0
  %6829 = vmatprep.subr.mxu0 0.0
  %6830 = vmatpush1.msra.mxu0 0.0
  %6831 = vmatprep.subr.mxu0 0.0
  %6832 = vmatpush1.msra.mxu0 0.0
  %6833 = vmatprep.subr.mxu0 0.0
  %6834 = vmatpush1.msra.mxu0 0.0
  %6835 = vmatprep.subr.mxu0 0.0
  %6836 = vmatpush1.msra.mxu0 0.0
  %6837 = vmatprep.subr.mxu0 0.0
  %6838 = vmatpush1.msra.mxu0 0.0
  %6839 = vmatprep.subr.mxu0 0.0
  %6840 = vmatpush1.msra.mxu0 0.0
  %6841 = vmatprep.subr.mxu0 0.0
  %6842 = vmatpush1.msra.mxu0 0.0
  %6843 = vmatprep.subr.mxu0 0.0
  %6844 = vmatpush1.msra.mxu0 0.0
  %6845 = vmatprep.subr.mxu0 0.0
  %6846 = vmatpush1.msra.mxu0 0.0
  %6847 = vmatprep.subr.mxu0 0.0
  %6848 = vmatpush1.msra.mxu0 0.0
  %6849 = vmatprep.subr.mxu0 0.0
  %6850 = vmatpush1.msra.mxu0 0.0
  %6851 = vmatprep.subr.mxu0 0.0
  %6852 = vmatpush1.msra.mxu0 0.0
  %6853 = vmatprep.subr.mxu0 0.0
  %6854 = vmatpush1.msra.mxu0 0.0
  %6855 = vmatprep.subr.mxu0 0.0
  %6856 = vmatpush1.msra.mxu0 %v6818
  %6857 = vmatprep.subr.mxu0 0.0
  %6858 = vmatpush1.msra.mxu0 %v6816
  %6859 = vmatprep.subr.mxu0 0.0
  %6860 = vmatpush2.msra.mxu0 0.0
  %6861 = vmatprep.subr.mxu0 0.0
  %6862 = vmatpush2.msra.mxu0 0.0
  %6863 = vmatprep.subr.mxu0 0.0
  %6864 = vmatpush2.msra.mxu0 0.0
  %6865 = vmatprep.subr.mxu0 0.0
  %6866 = vmatpush2.msra.mxu0 0.0
  %6867 = vmatprep.subr.mxu0 0.0
  %6868 = vmatpush2.msra.mxu0 0.0
  %6869 = vmatprep.subr.mxu0 0.0
  %6870 = vmatpush2.msra.mxu0 0.0
  %6871 = vmatprep.subr.mxu0 0.0
  %6872 = vmatpush2.msra.mxu0 0.0
  %6873 = vmatprep.subr.mxu0 0.0
  %6874 = vmatpush2.msra.mxu0 0.0
  %6875 = vmatprep.subr.mxu0 0.0
  %6876 = vmatpush2.msra.mxu0 0.0
  %6877 = vmatprep.subr.mxu0 0.0
  %6878 = vmatpush2.msra.mxu0 0.0
  %6879 = vmatprep.subr.mxu0 0.0
  %6880 = vmatpush2.msra.mxu0 0.0
  %6881 = vmatprep.subr.mxu0 0.0
  %6882 = vmatpush2.msra.mxu0 0.0
  %6883 = vmatprep.subr.mxu0 0.0
  %6884 = vmatpush2.msra.mxu0 0.0
  %6885 = vmatprep.subr.mxu0 0.0
  %6886 = vmatpush2.msra.mxu0 0.0
  %6887 = vmatprep.subr.mxu0 0.0
  %6888 = vmatpush2.msra.mxu0 0.0
  %6889 = vmatprep.subr.mxu0 0.0
  %6890 = vmatpush2.msra.mxu0 0.0
  %6891 = vmatprep.mubr.f32.mxu0 0.0
  %6892 = vmatmul.mubr.f32.gmra.mxu0 %v6822
  %v6893 = vpop.f32.mrf.mxu0
  %v6894 = vadd.f32 0.0, %v6893
  %v6895 = vpop.f32.mrf.mxu0
  %6896 = vmatprep.mubr.f32.mxu0 0.0
  %6897 = vmatmul.mubr.f32.gmra.mxu0 %v6825
  %v6898 = vpop.f32.mrf.mxu0
  %v6899 = vadd.f32 0.0, %v6898
  %v6900 = vpop.f32.mrf.mxu0
  %6901 = vdwg.mxu0
  %6904 = vrot.lane.b32.xlu0 %v6894, 4
  %v6905 = vpop.permute.xlu0 %6904
  %6906 = vrot.lane.b32.xlu0 %v6899, 4
  %v6907 = vpop.permute.xlu0 %6906
  %v6910 = vsel %vm184, %v6763, %v6905
  %v6911 = vsel %vm184, %v6768, %v6907
  %v6912 = vld [vmem:[%s5 + $0xa] sm:$0x1]
  %v6913 = vlaneseq
  %v6914 = vshrl.u32 %v6913, 7
  %v6915 = vsub.s32 0, %v6914
  %v6916 = vrot.slane %v6912, %v6915
  %v6917 = vadd.f32 %v6910, %v6916
  %v6918 = vadd.f32 %v6911, %v6916
  %vm6919 = vcmp.gt.f32.partialorder %v6917, 0.0
  %vm6920 = vcmp.gt.f32.partialorder %v6918, 0.0
  %v6921 = vmin.f32 %v6917, 0.0
  %v6922 = vmin.f32 %v6918, 0.0
  %v6923 = vmul.f32 %v6921, 1.442695
  %v6924 = vpow.pop %v6923
  %v6925 = vmul.f32 %v6922, 1.442695
  %v6926 = vpow.pop %v6925
  %v6927 = vsub.f32 %v6924, 1.0
  %v6928 = vsub.f32 %v6926, 1.0
  %v6929 = vsel %vm6919, %v6917, %v6927
  %v6930 = vsel %vm6920, %v6918, %v6928
  %s6931 = scalar_lea.vmem %s6, 80
  %v6932 = vld [vmem:[%s6931] sm:$0xff]
  %v6933 = vld [vmem:[%s7 + $0xa] sm:$0x1]
  %v6934 = vlaneseq
  %v6935 = vshrl.u32 %v6934, 7
  %v6936 = vsub.s32 0, %v6935
  %v6937 = vrot.slane %v6933, %v6936
  %v6939 = vsel %vm271, %v6929, 0
  %v6942 = vsel %vm271, %v6930, 0
  %6944 = vmatprep.subr.mxu0 0.0
  %6945 = vmatpush1.msra.mxu0 0.0
  %6946 = vmatprep.subr.mxu0 0.0
  %6947 = vmatpush1.msra.mxu0 0.0
  %6948 = vmatprep.subr.mxu0 0.0
  %6949 = vmatpush1.msra.mxu0 0.0
  %6950 = vmatprep.subr.mxu0 0.0
  %6951 = vmatpush1.msra.mxu0 0.0
  %6952 = vmatprep.subr.mxu0 0.0
  %6953 = vmatpush1.msra.mxu0 0.0
  %6954 = vmatprep.subr.mxu0 0.0
  %6955 = vmatpush1.msra.mxu0 0.0
  %6956 = vmatprep.subr.mxu0 0.0
  %6957 = vmatpush1.msra.mxu0 0.0
  %6958 = vmatprep.subr.mxu0 0.0
  %6959 = vmatpush1.msra.mxu0 0.0
  %6960 = vmatprep.subr.mxu0 0.0
  %6961 = vmatpush1.msra.mxu0 0.0
  %6962 = vmatprep.subr.mxu0 0.0
  %6963 = vmatpush1.msra.mxu0 0.0
  %6964 = vmatprep.subr.mxu0 0.0
  %6965 = vmatpush1.msra.mxu0 0.0
  %6966 = vmatprep.subr.mxu0 0.0
  %6967 = vmatpush1.msra.mxu0 0.0
  %6968 = vmatprep.subr.mxu0 0.0
  %6969 = vmatpush1.msra.mxu0 0.0
  %6970 = vmatprep.subr.mxu0 0.0
  %6971 = vmatpush1.msra.mxu0 0.0
  %6972 = vmatprep.subr.mxu0 0.0
  %6973 = vmatpush1.msra.mxu0 0.0
  %6974 = vmatprep.subr.mxu0 0.0
  %6975 = vmatpush1.msra.mxu0 %v6932
  %6976 = vmatprep.subr.mxu0 0.0
  %6977 = vmatpush2.msra.mxu0 0.0
  %6978 = vmatprep.subr.mxu0 0.0
  %6979 = vmatpush2.msra.mxu0 0.0
  %6980 = vmatprep.subr.mxu0 0.0
  %6981 = vmatpush2.msra.mxu0 0.0
  %6982 = vmatprep.subr.mxu0 0.0
  %6983 = vmatpush2.msra.mxu0 0.0
  %6984 = vmatprep.subr.mxu0 0.0
  %6985 = vmatpush2.msra.mxu0 0.0
  %6986 = vmatprep.subr.mxu0 0.0
  %6987 = vmatpush2.msra.mxu0 0.0
  %6988 = vmatprep.subr.mxu0 0.0
  %6989 = vmatpush2.msra.mxu0 0.0
  %6990 = vmatprep.subr.mxu0 0.0
  %6991 = vmatpush2.msra.mxu0 0.0
  %6992 = vmatprep.subr.mxu0 0.0
  %6993 = vmatpush2.msra.mxu0 0.0
  %6994 = vmatprep.subr.mxu0 0.0
  %6995 = vmatpush2.msra.mxu0 0.0
  %6996 = vmatprep.subr.mxu0 0.0
  %6997 = vmatpush2.msra.mxu0 0.0
  %6998 = vmatprep.subr.mxu0 0.0
  %6999 = vmatpush2.msra.mxu0 0.0
  %7000 = vmatprep.subr.mxu0 0.0
  %7001 = vmatpush2.msra.mxu0 0.0
  %7002 = vmatprep.subr.mxu0 0.0
  %7003 = vmatpush2.msra.mxu0 0.0
  %7004 = vmatprep.subr.mxu0 0.0
  %7005 = vmatpush2.msra.mxu0 0.0
  %7006 = vmatprep.subr.mxu0 0.0
  %7007 = vmatpush2.msra.mxu0 0.0
  %7008 = vmatprep.mubr.f32.mxu0 0.0
  %7009 = vmatmul.mubr.f32.gmra.mxu0 %v6939
  %v7010 = vpop.f32.mrf.mxu0
  %v7011 = vadd.f32 %v6937, %v7010
  %v7012 = vpop.f32.mrf.mxu0
  %7013 = vmatprep.mubr.f32.mxu0 0.0
  %7014 = vmatmul.mubr.f32.gmra.mxu0 %v6942
  %v7015 = vpop.f32.mrf.mxu0
  %v7016 = vadd.f32 %v6937, %v7015
  %v7017 = vpop.f32.mrf.mxu0
  %7018 = vdwg.mxu0
  %s7019 = scalar_lea.vmem %s3, 44
  %v7020 = vld [vmem:[%s7019] sm:$0xf]
  %7021 = vrot.lane.b32.xlu0 %v6411, 124
  %v7022 = vpop.permute.xlu0 %7021
  %7023 = vrot.lane.b32.xlu0 %v6416, 124
  %v7024 = vpop.permute.xlu0 %7023
  %v7025 = vsel %vm184, %v7022, 0
  %v7027 = vsel %vm184, %v7024, 0
  %v7030 = vsel %vm191, %v7020, 0
  %7032 = vmatprep.subr.mxu0 0.0
  %7033 = vmatpush1.msra.mxu0 0.0
  %7034 = vmatprep.subr.mxu0 0.0
  %7035 = vmatpush1.msra.mxu0 0.0
  %7036 = vmatprep.subr.mxu0 0.0
  %7037 = vmatpush1.msra.mxu0 0.0
  %7038 = vmatprep.subr.mxu0 0.0
  %7039 = vmatpush1.msra.mxu0 0.0
  %7040 = vmatprep.subr.mxu0 0.0
  %7041 = vmatpush1.msra.mxu0 0.0
  %7042 = vmatprep.subr.mxu0 0.0
  %7043 = vmatpush1.msra.mxu0 0.0
  %7044 = vmatprep.subr.mxu0 0.0
  %7045 = vmatpush1.msra.mxu0 0.0
  %7046 = vmatprep.subr.mxu0 0.0
  %7047 = vmatpush1.msra.mxu0 0.0
  %7048 = vmatprep.subr.mxu0 0.0
  %7049 = vmatpush1.msra.mxu0 0.0
  %7050 = vmatprep.subr.mxu0 0.0
  %7051 = vmatpush1.msra.mxu0 0.0
  %7052 = vmatprep.subr.mxu0 0.0
  %7053 = vmatpush1.msra.mxu0 0.0
  %7054 = vmatprep.subr.mxu0 0.0
  %7055 = vmatpush1.msra.mxu0 0.0
  %7056 = vmatprep.subr.mxu0 0.0
  %7057 = vmatpush1.msra.mxu0 0.0
  %7058 = vmatprep.subr.mxu0 0.0
  %7059 = vmatpush1.msra.mxu0 0.0
  %7060 = vmatprep.subr.mxu0 0.0
  %7061 = vmatpush1.msra.mxu0 0.0
  %7062 = vmatprep.subr.mxu0 0.0
  %7063 = vmatpush1.msra.mxu0 %v7030
  %7064 = vmatprep.subr.mxu0 0.0
  %7065 = vmatpush2.msra.mxu0 0.0
  %7066 = vmatprep.subr.mxu0 0.0
  %7067 = vmatpush2.msra.mxu0 0.0
  %7068 = vmatprep.subr.mxu0 0.0
  %7069 = vmatpush2.msra.mxu0 0.0
  %7070 = vmatprep.subr.mxu0 0.0
  %7071 = vmatpush2.msra.mxu0 0.0
  %7072 = vmatprep.subr.mxu0 0.0
  %7073 = vmatpush2.msra.mxu0 0.0
  %7074 = vmatprep.subr.mxu0 0.0
  %7075 = vmatpush2.msra.mxu0 0.0
  %7076 = vmatprep.subr.mxu0 0.0
  %7077 = vmatpush2.msra.mxu0 0.0
  %7078 = vmatprep.subr.mxu0 0.0
  %7079 = vmatpush2.msra.mxu0 0.0
  %7080 = vmatprep.subr.mxu0 0.0
  %7081 = vmatpush2.msra.mxu0 0.0
  %7082 = vmatprep.subr.mxu0 0.0
  %7083 = vmatpush2.msra.mxu0 0.0
  %7084 = vmatprep.subr.mxu0 0.0
  %7085 = vmatpush2.msra.mxu0 0.0
  %7086 = vmatprep.subr.mxu0 0.0
  %7087 = vmatpush2.msra.mxu0 0.0
  %7088 = vmatprep.subr.mxu0 0.0
  %7089 = vmatpush2.msra.mxu0 0.0
  %7090 = vmatprep.subr.mxu0 0.0
  %7091 = vmatpush2.msra.mxu0 0.0
  %7092 = vmatprep.subr.mxu0 0.0
  %7093 = vmatpush2.msra.mxu0 0.0
  %7094 = vmatprep.subr.mxu0 0.0
  %7095 = vmatpush2.msra.mxu0 0.0
  %7096 = vmatprep.mubr.f32.mxu0 0.0
  %7097 = vmatmul.mubr.f32.gmra.mxu0 %v7025
  %v7098 = vpop.f32.mrf.mxu0
  %v7099 = vadd.f32 0.0, %v7098
  %v7100 = vpop.f32.mrf.mxu0
  %7101 = vmatprep.mubr.f32.mxu0 0.0
  %7102 = vmatmul.mubr.f32.gmra.mxu0 %v7027
  %v7103 = vpop.f32.mrf.mxu0
  %v7104 = vadd.f32 0.0, %v7103
  %v7105 = vpop.f32.mrf.mxu0
  %7106 = vdwg.mxu0
  %s7107 = scalar_lea.vmem %s4, 88
  %v7108 = vld [vmem:[%s7107] sm:$0xff]
  %v7110 = vsel %vm271, %v7099, 0
  %v7113 = vsel %vm271, %v7104, 0
  %7115 = vmatprep.subr.mxu0 0.0
  %7116 = vmatpush1.msra.mxu0 0.0
  %7117 = vmatprep.subr.mxu0 0.0
  %7118 = vmatpush1.msra.mxu0 0.0
  %7119 = vmatprep.subr.mxu0 0.0
  %7120 = vmatpush1.msra.mxu0 0.0
  %7121 = vmatprep.subr.mxu0 0.0
  %7122 = vmatpush1.msra.mxu0 0.0
  %7123 = vmatprep.subr.mxu0 0.0
  %7124 = vmatpush1.msra.mxu0 0.0
  %7125 = vmatprep.subr.mxu0 0.0
  %7126 = vmatpush1.msra.mxu0 0.0
  %7127 = vmatprep.subr.mxu0 0.0
  %7128 = vmatpush1.msra.mxu0 0.0
  %7129 = vmatprep.subr.mxu0 0.0
  %7130 = vmatpush1.msra.mxu0 0.0
  %7131 = vmatprep.subr.mxu0 0.0
  %7132 = vmatpush1.msra.mxu0 0.0
  %7133 = vmatprep.subr.mxu0 0.0
  %7134 = vmatpush1.msra.mxu0 0.0
  %7135 = vmatprep.subr.mxu0 0.0
  %7136 = vmatpush1.msra.mxu0 0.0
  %7137 = vmatprep.subr.mxu0 0.0
  %7138 = vmatpush1.msra.mxu0 0.0
  %7139 = vmatprep.subr.mxu0 0.0
  %7140 = vmatpush1.msra.mxu0 0.0
  %7141 = vmatprep.subr.mxu0 0.0
  %7142 = vmatpush1.msra.mxu0 0.0
  %7143 = vmatprep.subr.mxu0 0.0
  %7144 = vmatpush1.msra.mxu0 0.0
  %7145 = vmatprep.subr.mxu0 0.0
  %7146 = vmatpush1.msra.mxu0 %v7108
  %7147 = vmatprep.subr.mxu0 0.0
  %7148 = vmatpush2.msra.mxu0 0.0
  %7149 = vmatprep.subr.mxu0 0.0
  %7150 = vmatpush2.msra.mxu0 0.0
  %7151 = vmatprep.subr.mxu0 0.0
  %7152 = vmatpush2.msra.mxu0 0.0
  %7153 = vmatprep.subr.mxu0 0.0
  %7154 = vmatpush2.msra.mxu0 0.0
  %7155 = vmatprep.subr.mxu0 0.0
  %7156 = vmatpush2.msra.mxu0 0.0
  %7157 = vmatprep.subr.mxu0 0.0
  %7158 = vmatpush2.msra.mxu0 0.0
  %7159 = vmatprep.subr.mxu0 0.0
  %7160 = vmatpush2.msra.mxu0 0.0
  %7161 = vmatprep.subr.mxu0 0.0
  %7162 = vmatpush2.msra.mxu0 0.0
  %7163 = vmatprep.subr.mxu0 0.0
  %7164 = vmatpush2.msra.mxu0 0.0
  %7165 = vmatprep.subr.mxu0 0.0
  %7166 = vmatpush2.msra.mxu0 0.0
  %7167 = vmatprep.subr.mxu0 0.0
  %7168 = vmatpush2.msra.mxu0 0.0
  %7169 = vmatprep.subr.mxu0 0.0
  %7170 = vmatpush2.msra.mxu0 0.0
  %7171 = vmatprep.subr.mxu0 0.0
  %7172 = vmatpush2.msra.mxu0 0.0
  %7173 = vmatprep.subr.mxu0 0.0
  %7174 = vmatpush2.msra.mxu0 0.0
  %7175 = vmatprep.subr.mxu0 0.0
  %7176 = vmatpush2.msra.mxu0 0.0
  %7177 = vmatprep.subr.mxu0 0.0
  %7178 = vmatpush2.msra.mxu0 0.0
  %7179 = vmatprep.mubr.f32.mxu0 0.0
  %7180 = vmatmul.mubr.f32.gmra.mxu0 %v7110
  %v7181 = vpop.f32.mrf.mxu0
  %v7182 = vadd.f32 0.0, %v7181
  %v7183 = vpop.f32.mrf.mxu0
  %7184 = vmatprep.mubr.f32.mxu0 0.0
  %7185 = vmatmul.mubr.f32.gmra.mxu0 %v7113
  %v7186 = vpop.f32.mrf.mxu0
  %v7187 = vadd.f32 0.0, %v7186
  %v7188 = vpop.f32.mrf.mxu0
  %7189 = vdwg.mxu0
  %7190 = vxpose.xlu0.b32.start [1/16] %v7182, 128
  %7191 = vxpose.xlu0.b32.cont [2/16] %v7187, 128
  %7192 = vxpose.xlu0.b32.cont [3/16] 0.0, 128
  %7193 = vxpose.xlu0.b32.cont [4/16] 0.0, 128
  %7194 = vxpose.xlu0.b32.cont [5/16] 0.0, 128
  %7195 = vxpose.xlu0.b32.cont [6/16] 0.0, 128
  %7196 = vxpose.xlu0.b32.cont [7/16] 0.0, 128
  %7197 = vxpose.xlu0.b32.cont [8/16] 0.0, 128
  %7198 = vxpose.xlu0.b32.cont [9/16] 0.0, 128
  %7199 = vxpose.xlu0.b32.cont [10/16] 0.0, 128
  %7200 = vxpose.xlu0.b32.cont [11/16] 0.0, 128
  %7201 = vxpose.xlu0.b32.cont [12/16] 0.0, 128
  %7202 = vxpose.xlu0.b32.cont [13/16] 0.0, 128
  %7203 = vxpose.xlu0.b32.cont [14/16] 0.0, 128
  %7204 = vxpose.xlu0.b32.cont [15/16] 0.0, 128
  %7205 = vxpose.xlu0.b32.end [16/16] 0.0, 128
  %v7206 = vpop.trf.xlu0
  %v7207 = vpop.trf.xlu0
  %v7208 = vpop.trf.xlu0
  %v7209 = vpop.trf.xlu0
  %v7210 = vpop.trf.xlu0
  %v7211 = vpop.trf.xlu0
  %v7212 = vpop.trf.xlu0
  %v7213 = vpop.trf.xlu0
  %v7214 = vpop.trf.xlu0
  %v7215 = vpop.trf.xlu0
  %v7216 = vpop.trf.xlu0
  %v7217 = vpop.trf.xlu0
  %v7218 = vpop.trf.xlu0
  %v7219 = vpop.trf.xlu0
  %v7220 = vpop.trf.xlu0
  %v7221 = vpop.trf.xlu0
  %7223 = vset.pattern.permute.xlu0 2
  %7224 = vperm.xlu0 %7223, %v7182
  %v7225 = vpop.permute.xlu0 %7224
  %7228 = vset.pattern.permute.xlu0 2
  %7229 = vperm.xlu0 %7228, %v7187
  %v7230 = vpop.permute.xlu0 %7229
  %v7232 = vlaneseq
  %v7233 = vshrl.u32 %v7232, 7
  %v7234 = vsub.s32 0, %v7233
  %v7235 = vrot.slane %v7206, %v7234
  %v7236 = vadd.f32 %v7225, %v7235
  %v7237 = vadd.f32 %v7230, %v7235
  %vm7238 = vcmp.gt.f32.partialorder %v7236, 0.0
  %vm7239 = vcmp.gt.f32.partialorder %v7237, 0.0
  %v7240 = vmul.f32 %v7236, 0.2
  %v7241 = vmul.f32 %v7237, 0.2
  %v7242 = vsel %vm7238, %v7236, %v7240
  %v7243 = vsel %vm7239, %v7237, %v7241
  %v7244 = vadd.f32 %v7242, %v49
  %v7245 = vadd.f32 %v7243, %v50
  %v7246 = vsel %vm53, %v7244, -inf
  %7247 = vmax.xlane.f32.xlu0 %v7246
  %v7248 = vpop.xlane.xlu0 %7247
  %v7249 = vsel %vm53, %v7245, -inf
  %7250 = vmax.xlane.f32.xlu0 %v7249
  %v7251 = vpop.xlane.xlu0 %7250
  %v7252 = vsub.f32 %v7244, %v7248
  %v7253 = vsub.f32 %v7245, %v7251
  %v7254 = vmul.f32 %v7252, 1.442695
  %v7255 = vpow.pop %v7254
  %v7256 = vmul.f32 %v7253, 1.442695
  %v7257 = vpow.pop %v7256
  %v7258 = vsel %vm53, %v7255, 0.0
  %7259 = vadd.xlane.f32.xlu0 %v7258
  %v7260 = vpop.xlane.xlu0 %7259
  %v7261 = vsel %vm53, %v7257, 0.0
  %7262 = vadd.xlane.f32.xlu0 %v7261
  %v7263 = vpop.xlane.xlu0 %7262
  %v7264 = vrcp.pop %v7260
  %v7265 = vmul.f32 %v7255, %v7264
  %v7266 = vrcp.pop %v7263
  %v7267 = vmul.f32 %v7257, %v7266
  %v7269 = vsel %vm53, %v7265, 0
  %v7272 = vsel %vm53, %v7267, 0
  %7274 = vmatprep.subr.mxu0 0.0
  %7275 = vmatpush1.msra.mxu0 0.0
  %7276 = vmatprep.subr.mxu0 0.0
  %7277 = vmatpush1.msra.mxu0 0.0
  %7278 = vmatprep.subr.mxu0 0.0
  %7279 = vmatpush1.msra.mxu0 0.0
  %7280 = vmatprep.subr.mxu0 0.0
  %7281 = vmatpush1.msra.mxu0 0.0
  %7282 = vmatprep.subr.mxu0 0.0
  %7283 = vmatpush1.msra.mxu0 0.0
  %7284 = vmatprep.subr.mxu0 0.0
  %7285 = vmatpush1.msra.mxu0 0.0
  %7286 = vmatprep.subr.mxu0 0.0
  %7287 = vmatpush1.msra.mxu0 0.0
  %7288 = vmatprep.subr.mxu0 0.0
  %7289 = vmatpush1.msra.mxu0 0.0
  %7290 = vmatprep.subr.mxu0 0.0
  %7291 = vmatpush1.msra.mxu0 0.0
  %7292 = vmatprep.subr.mxu0 0.0
  %7293 = vmatpush1.msra.mxu0 0.0
  %7294 = vmatprep.subr.mxu0 0.0
  %7295 = vmatpush1.msra.mxu0 0.0
  %7296 = vmatprep.subr.mxu0 0.0
  %7297 = vmatpush1.msra.mxu0 0.0
  %7298 = vmatprep.subr.mxu0 0.0
  %7299 = vmatpush1.msra.mxu0 0.0
  %7300 = vmatprep.subr.mxu0 0.0
  %7301 = vmatpush1.msra.mxu0 0.0
  %7302 = vmatprep.subr.mxu0 0.0
  %7303 = vmatpush1.msra.mxu0 %v7104
  %7304 = vmatprep.subr.mxu0 0.0
  %7305 = vmatpush1.msra.mxu0 %v7099
  %7306 = vmatprep.subr.mxu0 0.0
  %7307 = vmatpush2.msra.mxu0 0.0
  %7308 = vmatprep.subr.mxu0 0.0
  %7309 = vmatpush2.msra.mxu0 0.0
  %7310 = vmatprep.subr.mxu0 0.0
  %7311 = vmatpush2.msra.mxu0 0.0
  %7312 = vmatprep.subr.mxu0 0.0
  %7313 = vmatpush2.msra.mxu0 0.0
  %7314 = vmatprep.subr.mxu0 0.0
  %7315 = vmatpush2.msra.mxu0 0.0
  %7316 = vmatprep.subr.mxu0 0.0
  %7317 = vmatpush2.msra.mxu0 0.0
  %7318 = vmatprep.subr.mxu0 0.0
  %7319 = vmatpush2.msra.mxu0 0.0
  %7320 = vmatprep.subr.mxu0 0.0
  %7321 = vmatpush2.msra.mxu0 0.0
  %7322 = vmatprep.subr.mxu0 0.0
  %7323 = vmatpush2.msra.mxu0 0.0
  %7324 = vmatprep.subr.mxu0 0.0
  %7325 = vmatpush2.msra.mxu0 0.0
  %7326 = vmatprep.subr.mxu0 0.0
  %7327 = vmatpush2.msra.mxu0 0.0
  %7328 = vmatprep.subr.mxu0 0.0
  %7329 = vmatpush2.msra.mxu0 0.0
  %7330 = vmatprep.subr.mxu0 0.0
  %7331 = vmatpush2.msra.mxu0 0.0
  %7332 = vmatprep.subr.mxu0 0.0
  %7333 = vmatpush2.msra.mxu0 0.0
  %7334 = vmatprep.subr.mxu0 0.0
  %7335 = vmatpush2.msra.mxu0 0.0
  %7336 = vmatprep.subr.mxu0 0.0
  %7337 = vmatpush2.msra.mxu0 0.0
  %7338 = vmatprep.mubr.f32.mxu0 0.0
  %7339 = vmatmul.mubr.f32.gmra.mxu0 %v7269
  %v7340 = vpop.f32.mrf.mxu0
  %v7341 = vadd.f32 0.0, %v7340
  %v7342 = vpop.f32.mrf.mxu0
  %7343 = vmatprep.mubr.f32.mxu0 0.0
  %7344 = vmatmul.mubr.f32.gmra.mxu0 %v7272
  %v7345 = vpop.f32.mrf.mxu0
  %v7346 = vadd.f32 0.0, %v7345
  %v7347 = vpop.f32.mrf.mxu0
  %7348 = vdwg.mxu0
  %7349 = vset.pattern.permute.xlu0 3
  %7350 = vperm.xlu0 %7349, %v7182
  %v7351 = vpop.permute.xlu0 %7350
  %7353 = vset.pattern.permute.xlu0 3
  %7354 = vperm.xlu0 %7353, %v7187
  %v7355 = vpop.permute.xlu0 %7354
  %v7357 = vlaneseq
  %v7358 = vshrl.u32 %v7357, 7
  %v7359 = vsub.s32 1, %v7358
  %v7360 = vrot.slane %v7206, %v7359
  %v7361 = vadd.f32 %v7351, %v7360
  %v7362 = vadd.f32 %v7355, %v7360
  %vm7363 = vcmp.gt.f32.partialorder %v7361, 0.0
  %vm7364 = vcmp.gt.f32.partialorder %v7362, 0.0
  %v7365 = vmul.f32 %v7361, 0.2
  %v7366 = vmul.f32 %v7362, 0.2
  %v7367 = vsel %vm7363, %v7361, %v7365
  %v7368 = vsel %vm7364, %v7362, %v7366
  %v7369 = vadd.f32 %v7367, %v49
  %v7370 = vadd.f32 %v7368, %v50
  %v7371 = vsel %vm53, %v7369, -inf
  %7372 = vmax.xlane.f32.xlu0 %v7371
  %v7373 = vpop.xlane.xlu0 %7372
  %v7374 = vsel %vm53, %v7370, -inf
  %7375 = vmax.xlane.f32.xlu0 %v7374
  %v7376 = vpop.xlane.xlu0 %7375
  %v7377 = vsub.f32 %v7369, %v7373
  %v7378 = vsub.f32 %v7370, %v7376
  %v7379 = vmul.f32 %v7377, 1.442695
  %v7380 = vpow.pop %v7379
  %v7381 = vmul.f32 %v7378, 1.442695
  %v7382 = vpow.pop %v7381
  %v7383 = vsel %vm53, %v7380, 0.0
  %7384 = vadd.xlane.f32.xlu0 %v7383
  %v7385 = vpop.xlane.xlu0 %7384
  %v7386 = vsel %vm53, %v7382, 0.0
  %7387 = vadd.xlane.f32.xlu0 %v7386
  %v7388 = vpop.xlane.xlu0 %7387
  %v7389 = vrcp.pop %v7385
  %v7390 = vmul.f32 %v7380, %v7389
  %v7391 = vrcp.pop %v7388
  %v7392 = vmul.f32 %v7382, %v7391
  %7393 = vrot.lane.b32.xlu0 %v7099, 124
  %v7394 = vpop.permute.xlu0 %7393
  %7395 = vrot.lane.b32.xlu0 %v7104, 124
  %v7396 = vpop.permute.xlu0 %7395
  %v7400 = vsel %vm53, %v7390, 0
  %v7403 = vsel %vm53, %v7392, 0
  %7405 = vmatprep.subr.mxu0 0.0
  %7406 = vmatpush1.msra.mxu0 0.0
  %7407 = vmatprep.subr.mxu0 0.0
  %7408 = vmatpush1.msra.mxu0 0.0
  %7409 = vmatprep.subr.mxu0 0.0
  %7410 = vmatpush1.msra.mxu0 0.0
  %7411 = vmatprep.subr.mxu0 0.0
  %7412 = vmatpush1.msra.mxu0 0.0
  %7413 = vmatprep.subr.mxu0 0.0
  %7414 = vmatpush1.msra.mxu0 0.0
  %7415 = vmatprep.subr.mxu0 0.0
  %7416 = vmatpush1.msra.mxu0 0.0
  %7417 = vmatprep.subr.mxu0 0.0
  %7418 = vmatpush1.msra.mxu0 0.0
  %7419 = vmatprep.subr.mxu0 0.0
  %7420 = vmatpush1.msra.mxu0 0.0
  %7421 = vmatprep.subr.mxu0 0.0
  %7422 = vmatpush1.msra.mxu0 0.0
  %7423 = vmatprep.subr.mxu0 0.0
  %7424 = vmatpush1.msra.mxu0 0.0
  %7425 = vmatprep.subr.mxu0 0.0
  %7426 = vmatpush1.msra.mxu0 0.0
  %7427 = vmatprep.subr.mxu0 0.0
  %7428 = vmatpush1.msra.mxu0 0.0
  %7429 = vmatprep.subr.mxu0 0.0
  %7430 = vmatpush1.msra.mxu0 0.0
  %7431 = vmatprep.subr.mxu0 0.0
  %7432 = vmatpush1.msra.mxu0 0.0
  %7433 = vmatprep.subr.mxu0 0.0
  %7434 = vmatpush1.msra.mxu0 %v7396
  %7435 = vmatprep.subr.mxu0 0.0
  %7436 = vmatpush1.msra.mxu0 %v7394
  %7437 = vmatprep.subr.mxu0 0.0
  %7438 = vmatpush2.msra.mxu0 0.0
  %7439 = vmatprep.subr.mxu0 0.0
  %7440 = vmatpush2.msra.mxu0 0.0
  %7441 = vmatprep.subr.mxu0 0.0
  %7442 = vmatpush2.msra.mxu0 0.0
  %7443 = vmatprep.subr.mxu0 0.0
  %7444 = vmatpush2.msra.mxu0 0.0
  %7445 = vmatprep.subr.mxu0 0.0
  %7446 = vmatpush2.msra.mxu0 0.0
  %7447 = vmatprep.subr.mxu0 0.0
  %7448 = vmatpush2.msra.mxu0 0.0
  %7449 = vmatprep.subr.mxu0 0.0
  %7450 = vmatpush2.msra.mxu0 0.0
  %7451 = vmatprep.subr.mxu0 0.0
  %7452 = vmatpush2.msra.mxu0 0.0
  %7453 = vmatprep.subr.mxu0 0.0
  %7454 = vmatpush2.msra.mxu0 0.0
  %7455 = vmatprep.subr.mxu0 0.0
  %7456 = vmatpush2.msra.mxu0 0.0
  %7457 = vmatprep.subr.mxu0 0.0
  %7458 = vmatpush2.msra.mxu0 0.0
  %7459 = vmatprep.subr.mxu0 0.0
  %7460 = vmatpush2.msra.mxu0 0.0
  %7461 = vmatprep.subr.mxu0 0.0
  %7462 = vmatpush2.msra.mxu0 0.0
  %7463 = vmatprep.subr.mxu0 0.0
  %7464 = vmatpush2.msra.mxu0 0.0
  %7465 = vmatprep.subr.mxu0 0.0
  %7466 = vmatpush2.msra.mxu0 0.0
  %7467 = vmatprep.subr.mxu0 0.0
  %7468 = vmatpush2.msra.mxu0 0.0
  %7469 = vmatprep.mubr.f32.mxu0 0.0
  %7470 = vmatmul.mubr.f32.gmra.mxu0 %v7400
  %v7471 = vpop.f32.mrf.mxu0
  %v7472 = vadd.f32 0.0, %v7471
  %v7473 = vpop.f32.mrf.mxu0
  %7474 = vmatprep.mubr.f32.mxu0 0.0
  %7475 = vmatmul.mubr.f32.gmra.mxu0 %v7403
  %v7476 = vpop.f32.mrf.mxu0
  %v7477 = vadd.f32 0.0, %v7476
  %v7478 = vpop.f32.mrf.mxu0
  %7479 = vdwg.mxu0
  %7482 = vrot.lane.b32.xlu0 %v7472, 4
  %v7483 = vpop.permute.xlu0 %7482
  %7484 = vrot.lane.b32.xlu0 %v7477, 4
  %v7485 = vpop.permute.xlu0 %7484
  %v7488 = vsel %vm184, %v7341, %v7483
  %v7489 = vsel %vm184, %v7346, %v7485
  %v7490 = vld [vmem:[%s5 + $0xb] sm:$0x1]
  %v7491 = vlaneseq
  %v7492 = vshrl.u32 %v7491, 7
  %v7493 = vsub.s32 0, %v7492
  %v7494 = vrot.slane %v7490, %v7493
  %v7495 = vadd.f32 %v7488, %v7494
  %v7496 = vadd.f32 %v7489, %v7494
  %vm7497 = vcmp.gt.f32.partialorder %v7495, 0.0
  %vm7498 = vcmp.gt.f32.partialorder %v7496, 0.0
  %v7499 = vmin.f32 %v7495, 0.0
  %v7500 = vmin.f32 %v7496, 0.0
  %v7501 = vmul.f32 %v7499, 1.442695
  %v7502 = vpow.pop %v7501
  %v7503 = vmul.f32 %v7500, 1.442695
  %v7504 = vpow.pop %v7503
  %v7505 = vsub.f32 %v7502, 1.0
  %v7506 = vsub.f32 %v7504, 1.0
  %v7507 = vsel %vm7497, %v7495, %v7505
  %v7508 = vsel %vm7498, %v7496, %v7506
  %s7509 = scalar_lea.vmem %s6, 88
  %v7510 = vld [vmem:[%s7509] sm:$0xff]
  %v7511 = vld [vmem:[%s7 + $0xb] sm:$0x1]
  %v7512 = vlaneseq
  %v7513 = vshrl.u32 %v7512, 7
  %v7514 = vsub.s32 0, %v7513
  %v7515 = vrot.slane %v7511, %v7514
  %v7517 = vsel %vm271, %v7507, 0
  %v7520 = vsel %vm271, %v7508, 0
  %7522 = vmatprep.subr.mxu0 0.0
  %7523 = vmatpush1.msra.mxu0 0.0
  %7524 = vmatprep.subr.mxu0 0.0
  %7525 = vmatpush1.msra.mxu0 0.0
  %7526 = vmatprep.subr.mxu0 0.0
  %7527 = vmatpush1.msra.mxu0 0.0
  %7528 = vmatprep.subr.mxu0 0.0
  %7529 = vmatpush1.msra.mxu0 0.0
  %7530 = vmatprep.subr.mxu0 0.0
  %7531 = vmatpush1.msra.mxu0 0.0
  %7532 = vmatprep.subr.mxu0 0.0
  %7533 = vmatpush1.msra.mxu0 0.0
  %7534 = vmatprep.subr.mxu0 0.0
  %7535 = vmatpush1.msra.mxu0 0.0
  %7536 = vmatprep.subr.mxu0 0.0
  %7537 = vmatpush1.msra.mxu0 0.0
  %7538 = vmatprep.subr.mxu0 0.0
  %7539 = vmatpush1.msra.mxu0 0.0
  %7540 = vmatprep.subr.mxu0 0.0
  %7541 = vmatpush1.msra.mxu0 0.0
  %7542 = vmatprep.subr.mxu0 0.0
  %7543 = vmatpush1.msra.mxu0 0.0
  %7544 = vmatprep.subr.mxu0 0.0
  %7545 = vmatpush1.msra.mxu0 0.0
  %7546 = vmatprep.subr.mxu0 0.0
  %7547 = vmatpush1.msra.mxu0 0.0
  %7548 = vmatprep.subr.mxu0 0.0
  %7549 = vmatpush1.msra.mxu0 0.0
  %7550 = vmatprep.subr.mxu0 0.0
  %7551 = vmatpush1.msra.mxu0 0.0
  %7552 = vmatprep.subr.mxu0 0.0
  %7553 = vmatpush1.msra.mxu0 %v7510
  %7554 = vmatprep.subr.mxu0 0.0
  %7555 = vmatpush2.msra.mxu0 0.0
  %7556 = vmatprep.subr.mxu0 0.0
  %7557 = vmatpush2.msra.mxu0 0.0
  %7558 = vmatprep.subr.mxu0 0.0
  %7559 = vmatpush2.msra.mxu0 0.0
  %7560 = vmatprep.subr.mxu0 0.0
  %7561 = vmatpush2.msra.mxu0 0.0
  %7562 = vmatprep.subr.mxu0 0.0
  %7563 = vmatpush2.msra.mxu0 0.0
  %7564 = vmatprep.subr.mxu0 0.0
  %7565 = vmatpush2.msra.mxu0 0.0
  %7566 = vmatprep.subr.mxu0 0.0
  %7567 = vmatpush2.msra.mxu0 0.0
  %7568 = vmatprep.subr.mxu0 0.0
  %7569 = vmatpush2.msra.mxu0 0.0
  %7570 = vmatprep.subr.mxu0 0.0
  %7571 = vmatpush2.msra.mxu0 0.0
  %7572 = vmatprep.subr.mxu0 0.0
  %7573 = vmatpush2.msra.mxu0 0.0
  %7574 = vmatprep.subr.mxu0 0.0
  %7575 = vmatpush2.msra.mxu0 0.0
  %7576 = vmatprep.subr.mxu0 0.0
  %7577 = vmatpush2.msra.mxu0 0.0
  %7578 = vmatprep.subr.mxu0 0.0
  %7579 = vmatpush2.msra.mxu0 0.0
  %7580 = vmatprep.subr.mxu0 0.0
  %7581 = vmatpush2.msra.mxu0 0.0
  %7582 = vmatprep.subr.mxu0 0.0
  %7583 = vmatpush2.msra.mxu0 0.0
  %7584 = vmatprep.subr.mxu0 0.0
  %7585 = vmatpush2.msra.mxu0 0.0
  %7586 = vmatprep.mubr.f32.mxu0 0.0
  %7587 = vmatmul.mubr.f32.gmra.mxu0 %v7517
  %v7588 = vpop.f32.mrf.mxu0
  %v7589 = vadd.f32 %v7515, %v7588
  %v7590 = vpop.f32.mrf.mxu0
  %7591 = vmatprep.mubr.f32.mxu0 0.0
  %7592 = vmatmul.mubr.f32.gmra.mxu0 %v7520
  %v7593 = vpop.f32.mrf.mxu0
  %v7594 = vadd.f32 %v7515, %v7593
  %v7595 = vpop.f32.mrf.mxu0
  %7596 = vdwg.mxu0
  %s7597 = scalar_lea.vmem %s3, 48
  %v7598 = vld [vmem:[%s7597] sm:$0xf]
  %7599 = vrot.lane.b32.xlu0 %v6411, 120
  %v7600 = vpop.permute.xlu0 %7599
  %7601 = vrot.lane.b32.xlu0 %v6416, 120
  %v7602 = vpop.permute.xlu0 %7601
  %v7603 = vsel %vm184, %v7600, 0
  %v7605 = vsel %vm184, %v7602, 0
  %v7608 = vsel %vm191, %v7598, 0
  %7610 = vmatprep.subr.mxu0 0.0
  %7611 = vmatpush1.msra.mxu0 0.0
  %7612 = vmatprep.subr.mxu0 0.0
  %7613 = vmatpush1.msra.mxu0 0.0
  %7614 = vmatprep.subr.mxu0 0.0
  %7615 = vmatpush1.msra.mxu0 0.0
  %7616 = vmatprep.subr.mxu0 0.0
  %7617 = vmatpush1.msra.mxu0 0.0
  %7618 = vmatprep.subr.mxu0 0.0
  %7619 = vmatpush1.msra.mxu0 0.0
  %7620 = vmatprep.subr.mxu0 0.0
  %7621 = vmatpush1.msra.mxu0 0.0
  %7622 = vmatprep.subr.mxu0 0.0
  %7623 = vmatpush1.msra.mxu0 0.0
  %7624 = vmatprep.subr.mxu0 0.0
  %7625 = vmatpush1.msra.mxu0 0.0
  %7626 = vmatprep.subr.mxu0 0.0
  %7627 = vmatpush1.msra.mxu0 0.0
  %7628 = vmatprep.subr.mxu0 0.0
  %7629 = vmatpush1.msra.mxu0 0.0
  %7630 = vmatprep.subr.mxu0 0.0
  %7631 = vmatpush1.msra.mxu0 0.0
  %7632 = vmatprep.subr.mxu0 0.0
  %7633 = vmatpush1.msra.mxu0 0.0
  %7634 = vmatprep.subr.mxu0 0.0
  %7635 = vmatpush1.msra.mxu0 0.0
  %7636 = vmatprep.subr.mxu0 0.0
  %7637 = vmatpush1.msra.mxu0 0.0
  %7638 = vmatprep.subr.mxu0 0.0
  %7639 = vmatpush1.msra.mxu0 0.0
  %7640 = vmatprep.subr.mxu0 0.0
  %7641 = vmatpush1.msra.mxu0 %v7608
  %7642 = vmatprep.subr.mxu0 0.0
  %7643 = vmatpush2.msra.mxu0 0.0
  %7644 = vmatprep.subr.mxu0 0.0
  %7645 = vmatpush2.msra.mxu0 0.0
  %7646 = vmatprep.subr.mxu0 0.0
  %7647 = vmatpush2.msra.mxu0 0.0
  %7648 = vmatprep.subr.mxu0 0.0
  %7649 = vmatpush2.msra.mxu0 0.0
  %7650 = vmatprep.subr.mxu0 0.0
  %7651 = vmatpush2.msra.mxu0 0.0
  %7652 = vmatprep.subr.mxu0 0.0
  %7653 = vmatpush2.msra.mxu0 0.0
  %7654 = vmatprep.subr.mxu0 0.0
  %7655 = vmatpush2.msra.mxu0 0.0
  %7656 = vmatprep.subr.mxu0 0.0
  %7657 = vmatpush2.msra.mxu0 0.0
  %7658 = vmatprep.subr.mxu0 0.0
  %7659 = vmatpush2.msra.mxu0 0.0
  %7660 = vmatprep.subr.mxu0 0.0
  %7661 = vmatpush2.msra.mxu0 0.0
  %7662 = vmatprep.subr.mxu0 0.0
  %7663 = vmatpush2.msra.mxu0 0.0
  %7664 = vmatprep.subr.mxu0 0.0
  %7665 = vmatpush2.msra.mxu0 0.0
  %7666 = vmatprep.subr.mxu0 0.0
  %7667 = vmatpush2.msra.mxu0 0.0
  %7668 = vmatprep.subr.mxu0 0.0
  %7669 = vmatpush2.msra.mxu0 0.0
  %7670 = vmatprep.subr.mxu0 0.0
  %7671 = vmatpush2.msra.mxu0 0.0
  %7672 = vmatprep.subr.mxu0 0.0
  %7673 = vmatpush2.msra.mxu0 0.0
  %7674 = vmatprep.mubr.f32.mxu0 0.0
  %7675 = vmatmul.mubr.f32.gmra.mxu0 %v7603
  %v7676 = vpop.f32.mrf.mxu0
  %v7677 = vadd.f32 0.0, %v7676
  %v7678 = vpop.f32.mrf.mxu0
  %7679 = vmatprep.mubr.f32.mxu0 0.0
  %7680 = vmatmul.mubr.f32.gmra.mxu0 %v7605
  %v7681 = vpop.f32.mrf.mxu0
  %v7682 = vadd.f32 0.0, %v7681
  %v7683 = vpop.f32.mrf.mxu0
  %7684 = vdwg.mxu0
  %s7685 = scalar_lea.vmem %s4, 96
  %v7686 = vld [vmem:[%s7685] sm:$0xff]
  %v7688 = vsel %vm271, %v7677, 0
  %v7691 = vsel %vm271, %v7682, 0
  %7693 = vmatprep.subr.mxu0 0.0
  %7694 = vmatpush1.msra.mxu0 0.0
  %7695 = vmatprep.subr.mxu0 0.0
  %7696 = vmatpush1.msra.mxu0 0.0
  %7697 = vmatprep.subr.mxu0 0.0
  %7698 = vmatpush1.msra.mxu0 0.0
  %7699 = vmatprep.subr.mxu0 0.0
  %7700 = vmatpush1.msra.mxu0 0.0
  %7701 = vmatprep.subr.mxu0 0.0
  %7702 = vmatpush1.msra.mxu0 0.0
  %7703 = vmatprep.subr.mxu0 0.0
  %7704 = vmatpush1.msra.mxu0 0.0
  %7705 = vmatprep.subr.mxu0 0.0
  %7706 = vmatpush1.msra.mxu0 0.0
  %7707 = vmatprep.subr.mxu0 0.0
  %7708 = vmatpush1.msra.mxu0 0.0
  %7709 = vmatprep.subr.mxu0 0.0
  %7710 = vmatpush1.msra.mxu0 0.0
  %7711 = vmatprep.subr.mxu0 0.0
  %7712 = vmatpush1.msra.mxu0 0.0
  %7713 = vmatprep.subr.mxu0 0.0
  %7714 = vmatpush1.msra.mxu0 0.0
  %7715 = vmatprep.subr.mxu0 0.0
  %7716 = vmatpush1.msra.mxu0 0.0
  %7717 = vmatprep.subr.mxu0 0.0
  %7718 = vmatpush1.msra.mxu0 0.0
  %7719 = vmatprep.subr.mxu0 0.0
  %7720 = vmatpush1.msra.mxu0 0.0
  %7721 = vmatprep.subr.mxu0 0.0
  %7722 = vmatpush1.msra.mxu0 0.0
  %7723 = vmatprep.subr.mxu0 0.0
  %7724 = vmatpush1.msra.mxu0 %v7686
  %7725 = vmatprep.subr.mxu0 0.0
  %7726 = vmatpush2.msra.mxu0 0.0
  %7727 = vmatprep.subr.mxu0 0.0
  %7728 = vmatpush2.msra.mxu0 0.0
  %7729 = vmatprep.subr.mxu0 0.0
  %7730 = vmatpush2.msra.mxu0 0.0
  %7731 = vmatprep.subr.mxu0 0.0
  %7732 = vmatpush2.msra.mxu0 0.0
  %7733 = vmatprep.subr.mxu0 0.0
  %7734 = vmatpush2.msra.mxu0 0.0
  %7735 = vmatprep.subr.mxu0 0.0
  %7736 = vmatpush2.msra.mxu0 0.0
  %7737 = vmatprep.subr.mxu0 0.0
  %7738 = vmatpush2.msra.mxu0 0.0
  %7739 = vmatprep.subr.mxu0 0.0
  %7740 = vmatpush2.msra.mxu0 0.0
  %7741 = vmatprep.subr.mxu0 0.0
  %7742 = vmatpush2.msra.mxu0 0.0
  %7743 = vmatprep.subr.mxu0 0.0
  %7744 = vmatpush2.msra.mxu0 0.0
  %7745 = vmatprep.subr.mxu0 0.0
  %7746 = vmatpush2.msra.mxu0 0.0
  %7747 = vmatprep.subr.mxu0 0.0
  %7748 = vmatpush2.msra.mxu0 0.0
  %7749 = vmatprep.subr.mxu0 0.0
  %7750 = vmatpush2.msra.mxu0 0.0
  %7751 = vmatprep.subr.mxu0 0.0
  %7752 = vmatpush2.msra.mxu0 0.0
  %7753 = vmatprep.subr.mxu0 0.0
  %7754 = vmatpush2.msra.mxu0 0.0
  %7755 = vmatprep.subr.mxu0 0.0
  %7756 = vmatpush2.msra.mxu0 0.0
  %7757 = vmatprep.mubr.f32.mxu0 0.0
  %7758 = vmatmul.mubr.f32.gmra.mxu0 %v7688
  %v7759 = vpop.f32.mrf.mxu0
  %v7760 = vadd.f32 0.0, %v7759
  %v7761 = vpop.f32.mrf.mxu0
  %7762 = vmatprep.mubr.f32.mxu0 0.0
  %7763 = vmatmul.mubr.f32.gmra.mxu0 %v7691
  %v7764 = vpop.f32.mrf.mxu0
  %v7765 = vadd.f32 0.0, %v7764
  %v7766 = vpop.f32.mrf.mxu0
  %7767 = vdwg.mxu0
  %7768 = vxpose.xlu0.b32.start [1/16] %v7760, 128
  %7769 = vxpose.xlu0.b32.cont [2/16] %v7765, 128
  %7770 = vxpose.xlu0.b32.cont [3/16] 0.0, 128
  %7771 = vxpose.xlu0.b32.cont [4/16] 0.0, 128
  %7772 = vxpose.xlu0.b32.cont [5/16] 0.0, 128
  %7773 = vxpose.xlu0.b32.cont [6/16] 0.0, 128
  %7774 = vxpose.xlu0.b32.cont [7/16] 0.0, 128
  %7775 = vxpose.xlu0.b32.cont [8/16] 0.0, 128
  %7776 = vxpose.xlu0.b32.cont [9/16] 0.0, 128
  %7777 = vxpose.xlu0.b32.cont [10/16] 0.0, 128
  %7778 = vxpose.xlu0.b32.cont [11/16] 0.0, 128
  %7779 = vxpose.xlu0.b32.cont [12/16] 0.0, 128
  %7780 = vxpose.xlu0.b32.cont [13/16] 0.0, 128
  %7781 = vxpose.xlu0.b32.cont [14/16] 0.0, 128
  %7782 = vxpose.xlu0.b32.cont [15/16] 0.0, 128
  %7783 = vxpose.xlu0.b32.end [16/16] 0.0, 128
  %v7784 = vpop.trf.xlu0
  %v7785 = vpop.trf.xlu0
  %v7786 = vpop.trf.xlu0
  %v7787 = vpop.trf.xlu0
  %v7788 = vpop.trf.xlu0
  %v7789 = vpop.trf.xlu0
  %v7790 = vpop.trf.xlu0
  %v7791 = vpop.trf.xlu0
  %v7792 = vpop.trf.xlu0
  %v7793 = vpop.trf.xlu0
  %v7794 = vpop.trf.xlu0
  %v7795 = vpop.trf.xlu0
  %v7796 = vpop.trf.xlu0
  %v7797 = vpop.trf.xlu0
  %v7798 = vpop.trf.xlu0
  %v7799 = vpop.trf.xlu0
  %7801 = vset.pattern.permute.xlu0 2
  %7802 = vperm.xlu0 %7801, %v7760
  %v7803 = vpop.permute.xlu0 %7802
  %7806 = vset.pattern.permute.xlu0 2
  %7807 = vperm.xlu0 %7806, %v7765
  %v7808 = vpop.permute.xlu0 %7807
  %v7810 = vlaneseq
  %v7811 = vshrl.u32 %v7810, 7
  %v7812 = vsub.s32 0, %v7811
  %v7813 = vrot.slane %v7784, %v7812
  %v7814 = vadd.f32 %v7803, %v7813
  %v7815 = vadd.f32 %v7808, %v7813
  %vm7816 = vcmp.gt.f32.partialorder %v7814, 0.0
  %vm7817 = vcmp.gt.f32.partialorder %v7815, 0.0
  %v7818 = vmul.f32 %v7814, 0.2
  %v7819 = vmul.f32 %v7815, 0.2
  %v7820 = vsel %vm7816, %v7814, %v7818
  %v7821 = vsel %vm7817, %v7815, %v7819
  %v7822 = vadd.f32 %v7820, %v49
  %v7823 = vadd.f32 %v7821, %v50
  %v7824 = vsel %vm53, %v7822, -inf
  %7825 = vmax.xlane.f32.xlu0 %v7824
  %v7826 = vpop.xlane.xlu0 %7825
  %v7827 = vsel %vm53, %v7823, -inf
  %7828 = vmax.xlane.f32.xlu0 %v7827
  %v7829 = vpop.xlane.xlu0 %7828
  %v7830 = vsub.f32 %v7822, %v7826
  %v7831 = vsub.f32 %v7823, %v7829
  %v7832 = vmul.f32 %v7830, 1.442695
  %v7833 = vpow.pop %v7832
  %v7834 = vmul.f32 %v7831, 1.442695
  %v7835 = vpow.pop %v7834
  %v7836 = vsel %vm53, %v7833, 0.0
  %7837 = vadd.xlane.f32.xlu0 %v7836
  %v7838 = vpop.xlane.xlu0 %7837
  %v7839 = vsel %vm53, %v7835, 0.0
  %7840 = vadd.xlane.f32.xlu0 %v7839
  %v7841 = vpop.xlane.xlu0 %7840
  %v7842 = vrcp.pop %v7838
  %v7843 = vmul.f32 %v7833, %v7842
  %v7844 = vrcp.pop %v7841
  %v7845 = vmul.f32 %v7835, %v7844
  %v7847 = vsel %vm53, %v7843, 0
  %v7850 = vsel %vm53, %v7845, 0
  %7852 = vmatprep.subr.mxu0 0.0
  %7853 = vmatpush1.msra.mxu0 0.0
  %7854 = vmatprep.subr.mxu0 0.0
  %7855 = vmatpush1.msra.mxu0 0.0
  %7856 = vmatprep.subr.mxu0 0.0
  %7857 = vmatpush1.msra.mxu0 0.0
  %7858 = vmatprep.subr.mxu0 0.0
  %7859 = vmatpush1.msra.mxu0 0.0
  %7860 = vmatprep.subr.mxu0 0.0
  %7861 = vmatpush1.msra.mxu0 0.0
  %7862 = vmatprep.subr.mxu0 0.0
  %7863 = vmatpush1.msra.mxu0 0.0
  %7864 = vmatprep.subr.mxu0 0.0
  %7865 = vmatpush1.msra.mxu0 0.0
  %7866 = vmatprep.subr.mxu0 0.0
  %7867 = vmatpush1.msra.mxu0 0.0
  %7868 = vmatprep.subr.mxu0 0.0
  %7869 = vmatpush1.msra.mxu0 0.0
  %7870 = vmatprep.subr.mxu0 0.0
  %7871 = vmatpush1.msra.mxu0 0.0
  %7872 = vmatprep.subr.mxu0 0.0
  %7873 = vmatpush1.msra.mxu0 0.0
  %7874 = vmatprep.subr.mxu0 0.0
  %7875 = vmatpush1.msra.mxu0 0.0
  %7876 = vmatprep.subr.mxu0 0.0
  %7877 = vmatpush1.msra.mxu0 0.0
  %7878 = vmatprep.subr.mxu0 0.0
  %7879 = vmatpush1.msra.mxu0 0.0
  %7880 = vmatprep.subr.mxu0 0.0
  %7881 = vmatpush1.msra.mxu0 %v7682
  %7882 = vmatprep.subr.mxu0 0.0
  %7883 = vmatpush1.msra.mxu0 %v7677
  %7884 = vmatprep.subr.mxu0 0.0
  %7885 = vmatpush2.msra.mxu0 0.0
  %7886 = vmatprep.subr.mxu0 0.0
  %7887 = vmatpush2.msra.mxu0 0.0
  %7888 = vmatprep.subr.mxu0 0.0
  %7889 = vmatpush2.msra.mxu0 0.0
  %7890 = vmatprep.subr.mxu0 0.0
  %7891 = vmatpush2.msra.mxu0 0.0
  %7892 = vmatprep.subr.mxu0 0.0
  %7893 = vmatpush2.msra.mxu0 0.0
  %7894 = vmatprep.subr.mxu0 0.0
  %7895 = vmatpush2.msra.mxu0 0.0
  %7896 = vmatprep.subr.mxu0 0.0
  %7897 = vmatpush2.msra.mxu0 0.0
  %7898 = vmatprep.subr.mxu0 0.0
  %7899 = vmatpush2.msra.mxu0 0.0
  %7900 = vmatprep.subr.mxu0 0.0
  %7901 = vmatpush2.msra.mxu0 0.0
  %7902 = vmatprep.subr.mxu0 0.0
  %7903 = vmatpush2.msra.mxu0 0.0
  %7904 = vmatprep.subr.mxu0 0.0
  %7905 = vmatpush2.msra.mxu0 0.0
  %7906 = vmatprep.subr.mxu0 0.0
  %7907 = vmatpush2.msra.mxu0 0.0
  %7908 = vmatprep.subr.mxu0 0.0
  %7909 = vmatpush2.msra.mxu0 0.0
  %7910 = vmatprep.subr.mxu0 0.0
  %7911 = vmatpush2.msra.mxu0 0.0
  %7912 = vmatprep.subr.mxu0 0.0
  %7913 = vmatpush2.msra.mxu0 0.0
  %7914 = vmatprep.subr.mxu0 0.0
  %7915 = vmatpush2.msra.mxu0 0.0
  %7916 = vmatprep.mubr.f32.mxu0 0.0
  %7917 = vmatmul.mubr.f32.gmra.mxu0 %v7847
  %v7918 = vpop.f32.mrf.mxu0
  %v7919 = vadd.f32 0.0, %v7918
  %v7920 = vpop.f32.mrf.mxu0
  %7921 = vmatprep.mubr.f32.mxu0 0.0
  %7922 = vmatmul.mubr.f32.gmra.mxu0 %v7850
  %v7923 = vpop.f32.mrf.mxu0
  %v7924 = vadd.f32 0.0, %v7923
  %v7925 = vpop.f32.mrf.mxu0
  %7926 = vdwg.mxu0
  %7927 = vset.pattern.permute.xlu0 3
  %7928 = vperm.xlu0 %7927, %v7760
  %v7929 = vpop.permute.xlu0 %7928
  %7931 = vset.pattern.permute.xlu0 3
  %7932 = vperm.xlu0 %7931, %v7765
  %v7933 = vpop.permute.xlu0 %7932
  %v7935 = vlaneseq
  %v7936 = vshrl.u32 %v7935, 7
  %v7937 = vsub.s32 1, %v7936
  %v7938 = vrot.slane %v7784, %v7937
  %v7939 = vadd.f32 %v7929, %v7938
  %v7940 = vadd.f32 %v7933, %v7938
  %vm7941 = vcmp.gt.f32.partialorder %v7939, 0.0
  %vm7942 = vcmp.gt.f32.partialorder %v7940, 0.0
  %v7943 = vmul.f32 %v7939, 0.2
  %v7944 = vmul.f32 %v7940, 0.2
  %v7945 = vsel %vm7941, %v7939, %v7943
  %v7946 = vsel %vm7942, %v7940, %v7944
  %v7947 = vadd.f32 %v7945, %v49
  %v7948 = vadd.f32 %v7946, %v50
  %v7949 = vsel %vm53, %v7947, -inf
  %7950 = vmax.xlane.f32.xlu0 %v7949
  %v7951 = vpop.xlane.xlu0 %7950
  %v7952 = vsel %vm53, %v7948, -inf
  %7953 = vmax.xlane.f32.xlu0 %v7952
  %v7954 = vpop.xlane.xlu0 %7953
  %v7955 = vsub.f32 %v7947, %v7951
  %v7956 = vsub.f32 %v7948, %v7954
  %v7957 = vmul.f32 %v7955, 1.442695
  %v7958 = vpow.pop %v7957
  %v7959 = vmul.f32 %v7956, 1.442695
  %v7960 = vpow.pop %v7959
  %v7961 = vsel %vm53, %v7958, 0.0
  %7962 = vadd.xlane.f32.xlu0 %v7961
  %v7963 = vpop.xlane.xlu0 %7962
  %v7964 = vsel %vm53, %v7960, 0.0
  %7965 = vadd.xlane.f32.xlu0 %v7964
  %v7966 = vpop.xlane.xlu0 %7965
  %v7967 = vrcp.pop %v7963
  %v7968 = vmul.f32 %v7958, %v7967
  %v7969 = vrcp.pop %v7966
  %v7970 = vmul.f32 %v7960, %v7969
  %7971 = vrot.lane.b32.xlu0 %v7677, 124
  %v7972 = vpop.permute.xlu0 %7971
  %7973 = vrot.lane.b32.xlu0 %v7682, 124
  %v7974 = vpop.permute.xlu0 %7973
  %v7978 = vsel %vm53, %v7968, 0
  %v7981 = vsel %vm53, %v7970, 0
  %7983 = vmatprep.subr.mxu0 0.0
  %7984 = vmatpush1.msra.mxu0 0.0
  %7985 = vmatprep.subr.mxu0 0.0
  %7986 = vmatpush1.msra.mxu0 0.0
  %7987 = vmatprep.subr.mxu0 0.0
  %7988 = vmatpush1.msra.mxu0 0.0
  %7989 = vmatprep.subr.mxu0 0.0
  %7990 = vmatpush1.msra.mxu0 0.0
  %7991 = vmatprep.subr.mxu0 0.0
  %7992 = vmatpush1.msra.mxu0 0.0
  %7993 = vmatprep.subr.mxu0 0.0
  %7994 = vmatpush1.msra.mxu0 0.0
  %7995 = vmatprep.subr.mxu0 0.0
  %7996 = vmatpush1.msra.mxu0 0.0
  %7997 = vmatprep.subr.mxu0 0.0
  %7998 = vmatpush1.msra.mxu0 0.0
  %7999 = vmatprep.subr.mxu0 0.0
  %8000 = vmatpush1.msra.mxu0 0.0
  %8001 = vmatprep.subr.mxu0 0.0
  %8002 = vmatpush1.msra.mxu0 0.0
  %8003 = vmatprep.subr.mxu0 0.0
  %8004 = vmatpush1.msra.mxu0 0.0
  %8005 = vmatprep.subr.mxu0 0.0
  %8006 = vmatpush1.msra.mxu0 0.0
  %8007 = vmatprep.subr.mxu0 0.0
  %8008 = vmatpush1.msra.mxu0 0.0
  %8009 = vmatprep.subr.mxu0 0.0
  %8010 = vmatpush1.msra.mxu0 0.0
  %8011 = vmatprep.subr.mxu0 0.0
  %8012 = vmatpush1.msra.mxu0 %v7974
  %8013 = vmatprep.subr.mxu0 0.0
  %8014 = vmatpush1.msra.mxu0 %v7972
  %8015 = vmatprep.subr.mxu0 0.0
  %8016 = vmatpush2.msra.mxu0 0.0
  %8017 = vmatprep.subr.mxu0 0.0
  %8018 = vmatpush2.msra.mxu0 0.0
  %8019 = vmatprep.subr.mxu0 0.0
  %8020 = vmatpush2.msra.mxu0 0.0
  %8021 = vmatprep.subr.mxu0 0.0
  %8022 = vmatpush2.msra.mxu0 0.0
  %8023 = vmatprep.subr.mxu0 0.0
  %8024 = vmatpush2.msra.mxu0 0.0
  %8025 = vmatprep.subr.mxu0 0.0
  %8026 = vmatpush2.msra.mxu0 0.0
  %8027 = vmatprep.subr.mxu0 0.0
  %8028 = vmatpush2.msra.mxu0 0.0
  %8029 = vmatprep.subr.mxu0 0.0
  %8030 = vmatpush2.msra.mxu0 0.0
  %8031 = vmatprep.subr.mxu0 0.0
  %8032 = vmatpush2.msra.mxu0 0.0
  %8033 = vmatprep.subr.mxu0 0.0
  %8034 = vmatpush2.msra.mxu0 0.0
  %8035 = vmatprep.subr.mxu0 0.0
  %8036 = vmatpush2.msra.mxu0 0.0
  %8037 = vmatprep.subr.mxu0 0.0
  %8038 = vmatpush2.msra.mxu0 0.0
  %8039 = vmatprep.subr.mxu0 0.0
  %8040 = vmatpush2.msra.mxu0 0.0
  %8041 = vmatprep.subr.mxu0 0.0
  %8042 = vmatpush2.msra.mxu0 0.0
  %8043 = vmatprep.subr.mxu0 0.0
  %8044 = vmatpush2.msra.mxu0 0.0
  %8045 = vmatprep.subr.mxu0 0.0
  %8046 = vmatpush2.msra.mxu0 0.0
  %8047 = vmatprep.mubr.f32.mxu0 0.0
  %8048 = vmatmul.mubr.f32.gmra.mxu0 %v7978
  %v8049 = vpop.f32.mrf.mxu0
  %v8050 = vadd.f32 0.0, %v8049
  %v8051 = vpop.f32.mrf.mxu0
  %8052 = vmatprep.mubr.f32.mxu0 0.0
  %8053 = vmatmul.mubr.f32.gmra.mxu0 %v7981
  %v8054 = vpop.f32.mrf.mxu0
  %v8055 = vadd.f32 0.0, %v8054
  %v8056 = vpop.f32.mrf.mxu0
  %8057 = vdwg.mxu0
  %8060 = vrot.lane.b32.xlu0 %v8050, 4
  %v8061 = vpop.permute.xlu0 %8060
  %8062 = vrot.lane.b32.xlu0 %v8055, 4
  %v8063 = vpop.permute.xlu0 %8062
  %v8066 = vsel %vm184, %v7919, %v8061
  %v8067 = vsel %vm184, %v7924, %v8063
  %v8068 = vld [vmem:[%s5 + $0xc] sm:$0x1]
  %v8069 = vlaneseq
  %v8070 = vshrl.u32 %v8069, 7
  %v8071 = vsub.s32 0, %v8070
  %v8072 = vrot.slane %v8068, %v8071
  %v8073 = vadd.f32 %v8066, %v8072
  %v8074 = vadd.f32 %v8067, %v8072
  %vm8075 = vcmp.gt.f32.partialorder %v8073, 0.0
  %vm8076 = vcmp.gt.f32.partialorder %v8074, 0.0
  %v8077 = vmin.f32 %v8073, 0.0
  %v8078 = vmin.f32 %v8074, 0.0
  %v8079 = vmul.f32 %v8077, 1.442695
  %v8080 = vpow.pop %v8079
  %v8081 = vmul.f32 %v8078, 1.442695
  %v8082 = vpow.pop %v8081
  %v8083 = vsub.f32 %v8080, 1.0
  %v8084 = vsub.f32 %v8082, 1.0
  %v8085 = vsel %vm8075, %v8073, %v8083
  %v8086 = vsel %vm8076, %v8074, %v8084
  %s8087 = scalar_lea.vmem %s6, 96
  %v8088 = vld [vmem:[%s8087] sm:$0xff]
  %v8089 = vld [vmem:[%s7 + $0xc] sm:$0x1]
  %v8090 = vlaneseq
  %v8091 = vshrl.u32 %v8090, 7
  %v8092 = vsub.s32 0, %v8091
  %v8093 = vrot.slane %v8089, %v8092
  %v8095 = vsel %vm271, %v8085, 0
  %v8098 = vsel %vm271, %v8086, 0
  %8100 = vmatprep.subr.mxu0 0.0
  %8101 = vmatpush1.msra.mxu0 0.0
  %8102 = vmatprep.subr.mxu0 0.0
  %8103 = vmatpush1.msra.mxu0 0.0
  %8104 = vmatprep.subr.mxu0 0.0
  %8105 = vmatpush1.msra.mxu0 0.0
  %8106 = vmatprep.subr.mxu0 0.0
  %8107 = vmatpush1.msra.mxu0 0.0
  %8108 = vmatprep.subr.mxu0 0.0
  %8109 = vmatpush1.msra.mxu0 0.0
  %8110 = vmatprep.subr.mxu0 0.0
  %8111 = vmatpush1.msra.mxu0 0.0
  %8112 = vmatprep.subr.mxu0 0.0
  %8113 = vmatpush1.msra.mxu0 0.0
  %8114 = vmatprep.subr.mxu0 0.0
  %8115 = vmatpush1.msra.mxu0 0.0
  %8116 = vmatprep.subr.mxu0 0.0
  %8117 = vmatpush1.msra.mxu0 0.0
  %8118 = vmatprep.subr.mxu0 0.0
  %8119 = vmatpush1.msra.mxu0 0.0
  %8120 = vmatprep.subr.mxu0 0.0
  %8121 = vmatpush1.msra.mxu0 0.0
  %8122 = vmatprep.subr.mxu0 0.0
  %8123 = vmatpush1.msra.mxu0 0.0
  %8124 = vmatprep.subr.mxu0 0.0
  %8125 = vmatpush1.msra.mxu0 0.0
  %8126 = vmatprep.subr.mxu0 0.0
  %8127 = vmatpush1.msra.mxu0 0.0
  %8128 = vmatprep.subr.mxu0 0.0
  %8129 = vmatpush1.msra.mxu0 0.0
  %8130 = vmatprep.subr.mxu0 0.0
  %8131 = vmatpush1.msra.mxu0 %v8088
  %8132 = vmatprep.subr.mxu0 0.0
  %8133 = vmatpush2.msra.mxu0 0.0
  %8134 = vmatprep.subr.mxu0 0.0
  %8135 = vmatpush2.msra.mxu0 0.0
  %8136 = vmatprep.subr.mxu0 0.0
  %8137 = vmatpush2.msra.mxu0 0.0
  %8138 = vmatprep.subr.mxu0 0.0
  %8139 = vmatpush2.msra.mxu0 0.0
  %8140 = vmatprep.subr.mxu0 0.0
  %8141 = vmatpush2.msra.mxu0 0.0
  %8142 = vmatprep.subr.mxu0 0.0
  %8143 = vmatpush2.msra.mxu0 0.0
  %8144 = vmatprep.subr.mxu0 0.0
  %8145 = vmatpush2.msra.mxu0 0.0
  %8146 = vmatprep.subr.mxu0 0.0
  %8147 = vmatpush2.msra.mxu0 0.0
  %8148 = vmatprep.subr.mxu0 0.0
  %8149 = vmatpush2.msra.mxu0 0.0
  %8150 = vmatprep.subr.mxu0 0.0
  %8151 = vmatpush2.msra.mxu0 0.0
  %8152 = vmatprep.subr.mxu0 0.0
  %8153 = vmatpush2.msra.mxu0 0.0
  %8154 = vmatprep.subr.mxu0 0.0
  %8155 = vmatpush2.msra.mxu0 0.0
  %8156 = vmatprep.subr.mxu0 0.0
  %8157 = vmatpush2.msra.mxu0 0.0
  %8158 = vmatprep.subr.mxu0 0.0
  %8159 = vmatpush2.msra.mxu0 0.0
  %8160 = vmatprep.subr.mxu0 0.0
  %8161 = vmatpush2.msra.mxu0 0.0
  %8162 = vmatprep.subr.mxu0 0.0
  %8163 = vmatpush2.msra.mxu0 0.0
  %8164 = vmatprep.mubr.f32.mxu0 0.0
  %8165 = vmatmul.mubr.f32.gmra.mxu0 %v8095
  %v8166 = vpop.f32.mrf.mxu0
  %v8167 = vadd.f32 %v8093, %v8166
  %v8168 = vpop.f32.mrf.mxu0
  %8169 = vmatprep.mubr.f32.mxu0 0.0
  %8170 = vmatmul.mubr.f32.gmra.mxu0 %v8098
  %v8171 = vpop.f32.mrf.mxu0
  %v8172 = vadd.f32 %v8093, %v8171
  %v8173 = vpop.f32.mrf.mxu0
  %8174 = vdwg.mxu0
  %8177 = vrot.lane.b32.xlu0 %v1458, 8
  %v8178 = vpop.permute.xlu0 %8177
  %8179 = vrot.lane.b32.xlu0 %v1463, 8
  %v8180 = vpop.permute.xlu0 %8179
  %8185 = vrot.lane.b32.xlu0 %v2036, 16
  %v8186 = vpop.permute.xlu0 %8185
  %8187 = vrot.lane.b32.xlu0 %v2041, 16
  %v8188 = vpop.permute.xlu0 %8187
  %8193 = vrot.lane.b32.xlu0 %v2614, 24
  %v8194 = vpop.permute.xlu0 %8193
  %8195 = vrot.lane.b32.xlu0 %v2619, 24
  %v8196 = vpop.permute.xlu0 %8195
  %8201 = vrot.lane.b32.xlu0 %v3315, 32
  %v8202 = vpop.permute.xlu0 %8201
  %8203 = vrot.lane.b32.xlu0 %v3320, 32
  %v8204 = vpop.permute.xlu0 %8203
  %8209 = vrot.lane.b32.xlu0 %v3893, 40
  %v8210 = vpop.permute.xlu0 %8209
  %8211 = vrot.lane.b32.xlu0 %v3898, 40
  %v8212 = vpop.permute.xlu0 %8211
  %8217 = vrot.lane.b32.xlu0 %v4471, 48
  %v8218 = vpop.permute.xlu0 %8217
  %8219 = vrot.lane.b32.xlu0 %v4476, 48
  %v8220 = vpop.permute.xlu0 %8219
  %8225 = vrot.lane.b32.xlu0 %v5164, 56
  %v8226 = vpop.permute.xlu0 %8225
  %8227 = vrot.lane.b32.xlu0 %v5169, 56
  %v8228 = vpop.permute.xlu0 %8227
  %8233 = vrot.lane.b32.xlu0 %v5742, 64
  %v8234 = vpop.permute.xlu0 %8233
  %8235 = vrot.lane.b32.xlu0 %v5747, 64
  %v8236 = vpop.permute.xlu0 %8235
  %8241 = vrot.lane.b32.xlu0 %v6320, 72
  %v8242 = vpop.permute.xlu0 %8241
  %8243 = vrot.lane.b32.xlu0 %v6325, 72
  %v8244 = vpop.permute.xlu0 %8243
  %8249 = vrot.lane.b32.xlu0 %v7011, 80
  %v8250 = vpop.permute.xlu0 %8249
  %8251 = vrot.lane.b32.xlu0 %v7016, 80
  %v8252 = vpop.permute.xlu0 %8251
  %8257 = vrot.lane.b32.xlu0 %v7589, 88
  %v8258 = vpop.permute.xlu0 %8257
  %8259 = vrot.lane.b32.xlu0 %v7594, 88
  %v8260 = vpop.permute.xlu0 %8259
  %8265 = vrot.lane.b32.xlu0 %v8167, 96
  %v8266 = vpop.permute.xlu0 %8265
  %8267 = vrot.lane.b32.xlu0 %v8172, 96
  %v8268 = vpop.permute.xlu0 %8267
  %v8271 = vsel %vm271, %v751, %v8178
  %v8272 = vsel %vm271, %v756, %v8180
  %v8273 = vsel %vm53, %v8271, %v8186
  %v8274 = vsel %vm53, %v8272, %v8188
  %vm8275 = vcmask 195584
  %v8276 = vsel %vm8275, %v8273, %v8194
  %v8277 = vsel %vm8275, %v8274, %v8196
  %vm8278 = vcmask 261120
  %v8279 = vsel %vm8278, %v8276, %v8202
  %v8280 = vsel %vm8278, %v8277, %v8204
  %vm8281 = vcmask 326656
  %v8282 = vsel %vm8281, %v8279, %v8210
  %v8283 = vsel %vm8281, %v8280, %v8212
  %vm8284 = vcmask 392192
  %v8285 = vsel %vm8284, %v8282, %v8218
  %v8286 = vsel %vm8284, %v8283, %v8220
  %vm8287 = vcmask 457728
  %v8288 = vsel %vm8287, %v8285, %v8226
  %v8289 = vsel %vm8287, %v8286, %v8228
  %vm8290 = vcmask 523264
  %v8291 = vsel %vm8290, %v8288, %v8234
  %v8292 = vsel %vm8290, %v8289, %v8236
  %vm8293 = vcmask 588800
  %v8294 = vsel %vm8293, %v8291, %v8242
  %v8295 = vsel %vm8293, %v8292, %v8244
  %vm8296 = vcmask 654336
  %v8297 = vsel %vm8296, %v8294, %v8250
  %v8298 = vsel %vm8296, %v8295, %v8252
  %vm8299 = vcmask 719872
  %v8300 = vsel %vm8299, %v8297, %v8258
  %v8301 = vsel %vm8299, %v8298, %v8260
  %vm8302 = vcmask 785408
  %v8303 = vsel %vm8302, %v8300, %v8266
  %v8304 = vsel %vm8302, %v8301, %v8268
  %vm8305 = vcmp.gt.f32.partialorder %v8303, 0.0
  %vm8306 = vcmp.gt.f32.partialorder %v8304, 0.0
  %v8307 = vmin.f32 %v8303, 0.0
  %v8308 = vmin.f32 %v8304, 0.0
  %v8309 = vmul.f32 %v8307, 1.442695
  %v8310 = vpow.pop %v8309
  %v8311 = vmul.f32 %v8308, 1.442695
  %v8312 = vpow.pop %v8311
  %v8313 = vsub.f32 %v8310, 1.0
  %v8314 = vsub.f32 %v8312, 1.0
  %v8315 = vsel %vm8305, %v8303, %v8313
  %v8316 = vsel %vm8306, %v8304, %v8314
  %v8317 = vld [vmem:[%s8] sm:$0xff]
  %v8318 = vld [vmem:[%s8 + $0x8] sm:$0xff]
  %v8319 = vld [vmem:[%s8 + $0x10] sm:$0xff]
  %v8320 = vld [vmem:[%s8 + $0x18] sm:$0xff]
  %v8321 = vld [vmem:[%s8 + $0x20] sm:$0xff]
  %v8322 = vld [vmem:[%s8 + $0x28] sm:$0xff]
  %v8323 = vld [vmem:[%s8 + $0x30] sm:$0xff]
  %v8324 = vld [vmem:[%s8 + $0x38] sm:$0xff]
  %v8325 = vld [vmem:[%s8 + $0x40] sm:$0xff]
  %v8326 = vld [vmem:[%s8 + $0x48] sm:$0xff]
  %v8327 = vld [vmem:[%s8 + $0x50] sm:$0xff]
  %v8328 = vld [vmem:[%s8 + $0x58] sm:$0xff]
  %v8329 = vld [vmem:[%s8 + $0x60] sm:$0xff]
  %v8330 = vld [vmem:[%s9] sm:$0x1]
  %v8332 = vlaneseq
  %v8333 = vshrl.u32 %v8332, 7
  %v8334 = vsub.s32 0, %v8333
  %v8335 = vrot.slane %v8330, %v8334
  %vm8337 = vcmask 850944
  %v8339 = vsel %vm8337, %v8315, 0
  %v8342 = vsel %vm8337, %v8316, 0
  %8344 = vmatprep.subr.mxu0 0.0
  %8345 = vmatpush1.msra.mxu0 0.0
  %8346 = vmatprep.subr.mxu0 0.0
  %8347 = vmatpush1.msra.mxu0 0.0
  %8348 = vmatprep.subr.mxu0 0.0
  %8349 = vmatpush1.msra.mxu0 0.0
  %8350 = vmatprep.subr.mxu0 0.0
  %8351 = vmatpush1.msra.mxu0 %v8329
  %8352 = vmatprep.subr.mxu0 0.0
  %8353 = vmatpush1.msra.mxu0 %v8328
  %8354 = vmatprep.subr.mxu0 0.0
  %8355 = vmatpush1.msra.mxu0 %v8327
  %8356 = vmatprep.subr.mxu0 0.0
  %8357 = vmatpush1.msra.mxu0 %v8326
  %8358 = vmatprep.subr.mxu0 0.0
  %8359 = vmatpush1.msra.mxu0 %v8325
  %8360 = vmatprep.subr.mxu0 0.0
  %8361 = vmatpush1.msra.mxu0 %v8324
  %8362 = vmatprep.subr.mxu0 0.0
  %8363 = vmatpush1.msra.mxu0 %v8323
  %8364 = vmatprep.subr.mxu0 0.0
  %8365 = vmatpush1.msra.mxu0 %v8322
  %8366 = vmatprep.subr.mxu0 0.0
  %8367 = vmatpush1.msra.mxu0 %v8321
  %8368 = vmatprep.subr.mxu0 0.0
  %8369 = vmatpush1.msra.mxu0 %v8320
  %8370 = vmatprep.subr.mxu0 0.0
  %8371 = vmatpush1.msra.mxu0 %v8319
  %8372 = vmatprep.subr.mxu0 0.0
  %8373 = vmatpush1.msra.mxu0 %v8318
  %8374 = vmatprep.subr.mxu0 0.0
  %8375 = vmatpush1.msra.mxu0 %v8317
  %8376 = vmatprep.subr.mxu0 0.0
  %8377 = vmatpush2.msra.mxu0 0.0
  %8378 = vmatprep.subr.mxu0 0.0
  %8379 = vmatpush2.msra.mxu0 0.0
  %8380 = vmatprep.subr.mxu0 0.0
  %8381 = vmatpush2.msra.mxu0 0.0
  %8382 = vmatprep.subr.mxu0 0.0
  %8383 = vmatpush2.msra.mxu0 0.0
  %8384 = vmatprep.subr.mxu0 0.0
  %8385 = vmatpush2.msra.mxu0 0.0
  %8386 = vmatprep.subr.mxu0 0.0
  %8387 = vmatpush2.msra.mxu0 0.0
  %8388 = vmatprep.subr.mxu0 0.0
  %8389 = vmatpush2.msra.mxu0 0.0
  %8390 = vmatprep.subr.mxu0 0.0
  %8391 = vmatpush2.msra.mxu0 0.0
  %8392 = vmatprep.subr.mxu0 0.0
  %8393 = vmatpush2.msra.mxu0 0.0
  %8394 = vmatprep.subr.mxu0 0.0
  %8395 = vmatpush2.msra.mxu0 0.0
  %8396 = vmatprep.subr.mxu0 0.0
  %8397 = vmatpush2.msra.mxu0 0.0
  %8398 = vmatprep.subr.mxu0 0.0
  %8399 = vmatpush2.msra.mxu0 0.0
  %8400 = vmatprep.subr.mxu0 0.0
  %8401 = vmatpush2.msra.mxu0 0.0
  %8402 = vmatprep.subr.mxu0 0.0
  %8403 = vmatpush2.msra.mxu0 0.0
  %8404 = vmatprep.subr.mxu0 0.0
  %8405 = vmatpush2.msra.mxu0 0.0
  %8406 = vmatprep.subr.mxu0 0.0
  %8407 = vmatpush2.msra.mxu0 0.0
  %8408 = vmatprep.mubr.f32.mxu0 0.0
  %8409 = vmatmul.mubr.f32.gmra.mxu0 %v8339
  %v8410 = vpop.f32.mrf.mxu0
  %v8411 = vadd.f32 %v8335, %v8410
  %v8412 = vpop.f32.mrf.mxu0
  %8413 = vmatprep.mubr.f32.mxu0 0.0
  %8414 = vmatmul.mubr.f32.gmra.mxu0 %v8342
  %v8415 = vpop.f32.mrf.mxu0
  %v8416 = vadd.f32 %v8335, %v8415
  %v8417 = vpop.f32.mrf.mxu0
  %8418 = vdwg.mxu0
  %v8419 = vsel %vm184, %v8411, -inf
  %8420 = vmax.xlane.f32.xlu0 %v8419
  %v8421 = vpop.xlane.xlu0 %8420
  %v8422 = vsel %vm184, %v8416, -inf
  %8423 = vmax.xlane.f32.xlu0 %v8422
  %v8424 = vpop.xlane.xlu0 %8423
  %v8425 = vsub.f32 %v8411, %v8421
  %v8426 = vsub.f32 %v8416, %v8424
  %v8427 = vmul.f32 %v8425, 1.442695
  %v8428 = vpow.pop %v8427
  %v8429 = vmul.f32 %v8426, 1.442695
  %v8430 = vpow.pop %v8429
  %v8431 = vsel %vm184, %v8428, 0.0
  %8432 = vadd.xlane.f32.xlu0 %v8431
  %v8433 = vpop.xlane.xlu0 %8432
  %v8434 = vsel %vm184, %v8430, 0.0
  %8435 = vadd.xlane.f32.xlu0 %v8434
  %v8436 = vpop.xlane.xlu0 %8435
  %v8437 = vlog2.pop %v8433
  %v8438 = vmul.f32 %v8437, 0.6931472
  %v8439 = vlog2.pop %v8436
  %v8440 = vmul.f32 %v8439, 0.6931472
  %v8441 = vsub.f32 %v8425, %v8438
  %v8442 = vsub.f32 %v8426, %v8440
  %8443 = vst.msk [vmem:[%s10] sm:$0xff] %vm184, %v8441
  %8444 = vst.msk [vmem:[%s10 + $0x8] sm:$0xff] %vm184, %v8442
  // Predicated region
  $region42: #{tpu_custom_call.1} parent=0 // pred_check
    _
  $region43: #{tpu_custom_call.1} parent=0 // pred_check_branch
    %8446 = sbr.rel (0) target = $region45
  $region44: #{tpu_custom_call.1} parent=0 // pred_region
    _
  $region45: #{tpu_custom_call.1} parent=0 // pred_fallthru
    _
  // Predicated region
  $region46: #{tpu_custom_call.1} parent=0 // pred_check
    _
  $region47: #{tpu_custom_call.1} parent=0 // pred_check_branch
    %8448 = sbr.rel (0) target = $region49
  $region48: #{tpu_custom_call.1} parent=0 // pred_region
    _
  $region49: #{tpu_custom_call.1} parent=0 // pred_fallthru
    _

</llo_original>
